<compile_context>
chip_gen: v6e
topology: v6e:2x2x1
jax: 0.10.0
libtpu: 0.0.40
codegen_flags: <defaults>
</compile_context>

<pallas_src>
import functools

import jax
import jax.numpy as jnp
from jax.experimental import pallas as pl
from jax.experimental.pallas import tpu as pltpu

EPS = 1e-5
LANE = 128


def _round_up(x, m):
    return (x + m - 1) // m * m


def _tpu_vmem_capacity_bytes():
    """Physical per-core VMEM bytes; falls back to 128 MiB (v5e/v6e)."""
    try:
        return int(pltpu.get_tpu_info().vmem_capacity_bytes)
    except Exception:
        return 128 * 1024 * 1024


def _pick_batch_tile(n, m_spatial, target_rows=256):
    """Images per grid step: fill the MXU M dim (~>=256 rows) while keeping
    >= 2 grid steps when possible so both v7x TensorCores get work."""
    btile = n
    for d in range(1, n + 1):
        if n % d == 0 and d * m_spatial >= target_rows:
            btile = d
            break
    if btile == n and n > 1:
        btile = max(d for d in range(1, n) if n % d == 0)
    return btile


def _nbytes(shape, dtype):
    size = 1
    for d in shape:
        size *= int(d)
    return size * jnp.dtype(dtype).itemsize


def _cost(flops, bytes_accessed):
    return pl.CostEstimate(flops=int(flops), transcendentals=0,
                           bytes_accessed=int(bytes_accessed))


# ---------------------------------------------------------------------------
# in-kernel helpers
# ---------------------------------------------------------------------------
def _make_tap(x_ref, ho, wo, stride, phase_split):
    """tap(k) for k = 3*dy + dx -> conv window; all reads are unit-stride."""
    if not phase_split:
        # x_ref: (bt, H+2, W+2, cp), 1-pixel spatially padded, stride 1.
        def tap(k):
            dy, dx = divmod(k, 3)
            return x_ref[:, pl.ds(dy, ho), pl.ds(dx, wo), :]
        return tap

    # x_ref: (bt, s*s, Hq, Wq, cp) phase-de-interleaved planes (stride s):
    # padded pixel (s*i + dy, s*j + dx) lives in plane (dy%s)*s + dx%s at
    # unit-stride plane offset (dy//s, dx//s).
    s = stride

    def tap(k):
        dy, dx = divmod(k, 3)
        q = (dy % s) * s + (dx % s)
        return x_ref[:, pl.ds(q, 1), pl.ds(dy // s, ho), pl.ds(dx // s, wo), :]
    return tap


def _conv3x3_acc(tap, w_ref, m, cp, group):
    """3x3 conv as accumulating matmuls over `group`-sized tap groups.

    Avoids the full (m, 9*cp) im2col buffer.  Weight rows are tap-major
    ((3*dy + dx)*cp + c), so each group maps to a static row slice of w_ref.
    """
    acc = None
    for g0 in range(0, 9, group):
        taps = [tap(k).reshape(m, cp) for k in range(g0, min(g0 + group, 9))]
        a = taps[0] if len(taps) == 1 else jnp.concatenate(taps, axis=-1)
        part = jnp.dot(a, w_ref[pl.ds(g0 * cp, len(taps) * cp), :],
                       preferred_element_type=jnp.float32)
        acc = part if acc is None else acc + part
    return acc                                           # (m, pp) f32


def _stats_rows(ys, pp):
    """Per-channel (sum, sum-of-squares) rows for each array in `ys`,
    zero-padded to 8 sublane rows so the stats store is unmasked."""
    # TODO(synk): E[x^2]-E[x]^2 in f32 can lose precision at very large
    # N*H*W; a two-pass / Welford variant would need an extra HBM pass.
    rows = []
    for y in ys:
        rows.append(jnp.sum(y, axis=0, keepdims=True))
        rows.append(jnp.sum(y * y, axis=0, keepdims=True))
    rows.append(jnp.zeros((8 - 2 * len(ys), pp), jnp.float32))
    return jnp.concatenate(rows, axis=0)                 # (8, pp) f32


# ---------------------------------------------------------------------------
# pass 1: conv1 (+ optional 1x1 projection conv) + per-tile BN moments
# ---------------------------------------------------------------------------
def _conv1_kernel(x_ref, w1_ref, y1_ref, st_ref, *, stride, phase_split, group):
    bt, ho, wo, pp = y1_ref.shape
    cp = x_ref.shape[-1]
    m = bt * ho * wo
    tap = _make_tap(x_ref, ho, wo, stride, phase_split)
    y1 = _conv3x3_acc(tap, w1_ref, m, cp, group)
    y1_ref[...] = y1.reshape(bt, ho, wo, pp).astype(y1_ref.dtype)
    st_ref[...] = _stats_rows([y1], pp).reshape(1, 8, pp)


def _conv1_proj_kernel(x_ref, w1_ref, wsc_ref, y1_ref, ysc_ref, st_ref, *,
                       stride, phase_split, group):
    bt, ho, wo, pp = y1_ref.shape
    cp = x_ref.shape[-1]
    m = bt * ho * wo
    tap = _make_tap(x_ref, ho, wo, stride, phase_split)
    y1 = _conv3x3_acc(tap, w1_ref, m, cp, group)
    y1_ref[...] = y1.reshape(bt, ho, wo, pp).astype(y1_ref.dtype)
    # 1x1 projection shortcut: the (strided) center tap, one matmul.
    xc = tap(4).reshape(m, cp)
    ysc = jnp.dot(xc, wsc_ref[...], preferred_element_type=jnp.float32)
    ysc_ref[...] = ysc.reshape(bt, ho, wo, pp).astype(ysc_ref.dtype)
    st_ref[...] = _stats_rows([y1, ysc], pp).reshape(1, 8, pp)


# ---------------------------------------------------------------------------
# pass 2: bn1 (folded scale/bias) + ReLU fused into conv2 + BN moments of conv2
# ---------------------------------------------------------------------------
def _conv2_kernel(y1_ref, s1_ref, b1_ref, w2_ref, y2_ref, st_ref, pad_ref, *,
                  group):
    bt, ho, wo, pp = y2_ref.shape
    m = bt * ho * wo
    # bn1 folded to per-channel scale+bias, ReLU; BN math in f32.
    h = jnp.maximum(
        y1_ref[...].astype(jnp.float32) * s1_ref[...] + b1_ref[...], 0.0)

    # conv2 halo scratch: 8-wide left/right W halos so the interior store is
    # sublane-aligned (offset 8).  Per-step zeroing is required for
    # correctness under "parallel" megacore sharding (per-core scratch).
    pdt = pad_ref.dtype
    zrow = jnp.zeros((bt, 1, wo + 16, pp), pdt)
    zcol = jnp.zeros((bt, ho + 2, 8, pp), pdt)
    pad_ref[:, pl.ds(0, 1), :, :] = zrow
    pad_ref[:, pl.ds(ho + 1, 1), :, :] = zrow
    pad_ref[:, :, pl.ds(0, 8), :] = zcol
    pad_ref[:, :, pl.ds(wo + 8, 8), :] = zcol
    pad_ref[:, pl.ds(1, ho), pl.ds(8, wo), :] = h.astype(pdt)

    def tap(k):
        dy, dx = divmod(k, 3)
        return pad_ref[:, pl.ds(dy, ho), pl.ds(7 + dx, wo), :]

    y2 = _conv3x3_acc(tap, w2_ref, m, pp, group)
    y2_ref[...] = y2.reshape(bt, ho, wo, pp).astype(y2_ref.dtype)
    st_ref[...] = _stats_rows([y2], pp).reshape(1, 8, pp)


# ---------------------------------------------------------------------------
# pass 3: bn2 apply + shortcut (+ its BN) + final ReLU
# ---------------------------------------------------------------------------
def _epilogue_id_kernel(y2_ref, s2_ref, b2_ref, x_ref, out_ref):
    out = (y2_ref[...].astype(jnp.float32) * s2_ref[...] + b2_ref[...]
           + x_ref[...])
    out_ref[...] = jnp.maximum(out, 0.0).astype(out_ref.dtype)


def _epilogue_proj_kernel(y2_ref, s2_ref, b2_ref, ysc_ref, ssc_ref, bsc_ref,
                          out_ref):
    sc = ysc_ref[...].astype(jnp.float32) * ssc_ref[...] + bsc_ref[...]
    out = y2_ref[...].astype(jnp.float32) * s2_ref[...] + b2_ref[...] + sc
    out_ref[...] = jnp.maximum(out, 0.0).astype(out_ref.dtype)


# ---------------------------------------------------------------------------
# wrapper
# ---------------------------------------------------------------------------
def _fold_bn(psum, psumsq, count, gamma, beta, pp):
    """Training-mode BN folded to per-channel (scale, bias), lane-padded."""
    p = gamma.shape[0]
    mean = psum[:p] / count
    # Biased variance (PyTorch training-mode normalization); clamp guards the
    # E[x^2]-E[x]^2 form against tiny negative round-off.
    var = jnp.maximum(psumsq[:p] / count - mean * mean, 0.0)
    scale = gamma * jax.lax.rsqrt(var + EPS)
    bias = beta - mean * scale
    pad = pp - p
    return (jnp.pad(scale, (0, pad)).reshape(1, pp).astype(jnp.float32),
            jnp.pad(bias, (0, pad)).reshape(1, pp).astype(jnp.float32))


def basic_block_forward(x_nchw, params, stride=1, use_bf16=True):
    """BasicBlock forward.  x_nchw: (N, Cin, H, W) f32 -> (N, planes, Ho, Wo).

    use_bf16=True (default): bf16 MXU operands + bf16 inter-pass activations,
    f32 accumulation and BN math.  use_bf16=False: fully f32 (reference-exact).
    """
    x = jnp.transpose(x_nchw, (0, 2, 3, 1)).astype(jnp.float32)   # NHWC
    n, h, w, cin = x.shape
    p = params["w1"].shape[-1]
    ho = (h - 1) // stride + 1
    wo = (w - 1) // stride + 1
    cp = _round_up(cin, LANE)
    pp = _round_up(p, LANE)
    has_projection = (stride != 1) or (cin != p)
    cdt = jnp.bfloat16 if use_bf16 else jnp.float32

    # Generation-aware knobs (VMEM capacity as a proxy: v7x = 64 MiB per TC).
    vmem_cap = _tpu_vmem_capacity_bytes()
    vmem_limit = min(100 * 2**20, max(32 * 2**20, vmem_cap - 16 * 2**20))
    group = 1 if vmem_cap <= 64 * 2**20 else 3   # v7x: per-tap (MRB); else 3-row groups

    btile = _pick_batch_tile(n, ho * wo)
    g = n // btile
    grid = (g,)
    count = n * ho * wo

    # Lane-dense channel padding (XLA, once).  xc stays f32 (identity shortcut).
    xc = jnp.pad(x, ((0, 0), (0, 0), (0, 0), (0, cp - cin)))

    if stride == 1:
        phase_split = False
        x_in = jnp.pad(xc, ((0, 0), (1, 1), (1, 1), (0, 0))).astype(cdt)
        x_spec = pl.BlockSpec((btile, h + 2, w + 2, cp), lambda i: (i, 0, 0, 0))
    else:
        # Phase de-interleave so stride-s tap reads are unit-stride in-kernel.
        phase_split = True
        s = stride
        hp = _round_up(h + 2, s)
        wp = _round_up(w + 2, s)
        xq = jnp.pad(xc, ((0, 0), (1, hp - h - 1), (1, wp - w - 1), (0, 0)))
        xq = xq.reshape(n, hp // s, s, wp // s, s, cp)
        xq = jnp.transpose(xq, (0, 2, 4, 1, 3, 5))
        x_in = xq.reshape(n, s * s, hp // s, wp // s, cp).astype(cdt)
        x_spec = pl.BlockSpec((btile, s * s, hp // s, wp // s, cp),
                              lambda i: (i, 0, 0, 0, 0))

    # Weights: pre-padded, tap-major flattened, pre-cast to the MXU dtype.
    w1 = jnp.pad(params["w1"], ((0, 0), (0, 0), (0, cp - cin), (0, pp - p))
                 ).reshape(9 * cp, pp).astype(cdt)
    w2 = jnp.pad(params["w2"], ((0, 0), (0, 0), (0, pp - p), (0, pp - p))
                 ).reshape(9 * pp, pp).astype(cdt)

    cparams = pltpu.CompilerParams(
        dimension_semantics=("parallel",),     # shard batch-tile grid across TCs
        vmem_limit_bytes=vmem_limit,
    )

    vspec_y = pl.BlockSpec((btile, ho, wo, pp), lambda i: (i, 0, 0, 0))
    svec = pl.BlockSpec((1, pp), lambda i: (0, 0))
    st_spec = pl.BlockSpec((1, 8, pp), lambda i: (i, 0, 0))
    st_shape = jax.ShapeDtypeStruct((g, 8, pp), jnp.float32)
    y_shape = jax.ShapeDtypeStruct((n, ho, wo, pp), cdt)
    w1_spec = pl.BlockSpec((9 * cp, pp), lambda i: (0, 0))
    w2_spec = pl.BlockSpec((9 * pp, pp), lambda i: (0, 0))

    y_bytes = _nbytes((n, ho, wo, pp), cdt)
    st_bytes = _nbytes((g, 8, pp), jnp.float32)

    # -------- pass 1: conv1 (+ projection conv) + partial BN moments --------
    if has_projection:
        wsc = jnp.pad(params["wsc"], ((0, 0), (0, 0), (0, cp - cin), (0, pp - p))
                      ).reshape(cp, pp).astype(cdt)
        flops1 = 2 * count * pp * (9 * cp + cp)
        bytes1 = (_nbytes(x_in.shape, cdt) + _nbytes(w1.shape, cdt)
                  + _nbytes(wsc.shape, cdt) + 2 * y_bytes + st_bytes)
        y1, ysc, st1 = pl.pallas_call(
            functools.partial(_conv1_proj_kernel, stride=stride,
                              phase_split=phase_split, group=group),
            grid=grid,
            in_specs=[x_spec, w1_spec, pl.BlockSpec((cp, pp), lambda i: (0, 0))],
            out_specs=(vspec_y, vspec_y, st_spec),
            out_shape=(y_shape, y_shape, st_shape),
            compiler_params=cparams,
            cost_estimate=_cost(flops1, bytes1),
        )(x_in, w1, wsc)
    else:
        flops1 = 2 * count * pp * 9 * cp
        bytes1 = (_nbytes(x_in.shape, cdt) + _nbytes(w1.shape, cdt)
                  + y_bytes + st_bytes)
        y1, st1 = pl.pallas_call(
            functools.partial(_conv1_kernel, stride=stride,
                              phase_split=phase_split, group=group),
            grid=grid,
            in_specs=[x_spec, w1_spec],
            out_specs=(vspec_y, st_spec),
            out_shape=(y_shape, st_shape),
            compiler_params=cparams,
            cost_estimate=_cost(flops1, bytes1),
        )(x_in, w1)
        ysc = None

    st1 = jnp.sum(st1, axis=0)                        # cross-tile BN reduction
    scale1, bias1 = _fold_bn(st1[0], st1[1], count,
                             params["g1"], params["b1"], pp)
    if has_projection:
        scale_sc, bias_sc = _fold_bn(st1[2], st1[3], count,
                                     params["gsc"], params["bsc"], pp)

    # -------- pass 2: bn1+ReLU fused into conv2 + partial BN moments --------
    flops2 = 2 * count * pp * 9 * pp
    bytes2 = 2 * y_bytes + _nbytes(w2.shape, cdt) + st_bytes
    y2, st2 = pl.pallas_call(
        functools.partial(_conv2_kernel, group=group),
        grid=grid,
        in_specs=[vspec_y, svec, svec, w2_spec],
        out_specs=(vspec_y, st_spec),
        out_shape=(y_shape, st_shape),
        scratch_shapes=[pltpu.VMEM((btile, ho + 2, wo + 16, pp), cdt)],
        compiler_params=cparams,
        cost_estimate=_cost(flops2, bytes2),
    )(y1, scale1, bias1, w2)

    st2 = jnp.sum(st2, axis=0)
    scale2, bias2 = _fold_bn(st2[0], st2[1], count,
                             params["g2"], params["b2"], pp)

    # -------- pass 3: bn2 apply + shortcut + ReLU (bandwidth-bound) --------
    out_shape = jax.ShapeDtypeStruct((n, ho, wo, pp), jnp.float32)
    out_bytes = _nbytes((n, ho, wo, pp), jnp.float32)
    if has_projection:
        out = pl.pallas_call(
            _epilogue_proj_kernel,
            grid=grid,
            in_specs=[vspec_y, svec, svec, vspec_y, svec, svec],
            out_specs=vspec_y,
            out_shape=out_shape,
            compiler_params=cparams,
            cost_estimate=_cost(6 * count * pp, 2 * y_bytes + out_bytes),
        )(y2, scale2, bias2, ysc, scale_sc, bias_sc)
    else:
        xid_spec = pl.BlockSpec((btile, ho, wo, cp), lambda i: (i, 0, 0, 0))
        out = pl.pallas_call(
            _epilogue_id_kernel,
            grid=grid,
            in_specs=[vspec_y, svec, svec, xid_spec],
            out_specs=vspec_y,
            out_shape=out_shape,
            compiler_params=cparams,
            cost_estimate=_cost(4 * count * pp,
                                y_bytes + _nbytes(xc.shape, jnp.float32)
                                + out_bytes),
        )(y2, scale2, bias2, xc)

    out = out[..., :p]                                # drop lane padding
    return jnp.transpose(out, (0, 3, 1, 2))           # back to NCHW


# ---------------------------------------------------------------------------
# pure-JAX reference (XLA convs) for correctness checking
# ---------------------------------------------------------------------------
def _ref_forward(x_nchw, params, stride=1):
    def conv(x, w_hwio, s, pad):
        return jax.lax.conv_general_dilated(
            x, w_hwio, (s, s), pad,
            dimension_numbers=("NCHW", "HWIO", "NCHW"))

    def bn(y, g, b):
        mean = jnp.mean(y, axis=(0, 2, 3), keepdims=True)
        var = jnp.mean((y - mean) ** 2, axis=(0, 2, 3), keepdims=True)
        return ((y - mean) * jax.lax.rsqrt(var + EPS)
                * g.reshape(1, -1, 1, 1) + b.reshape(1, -1, 1, 1))

    cin = x_nchw.shape[1]
    p = params["w1"].shape[-1]
    out = jax.nn.relu(bn(conv(x_nchw, params["w1"], stride, [(1, 1), (1, 1)]),
                         params["g1"], params["b1"]))
    out = bn(conv(out, params["w2"], 1, [(1, 1), (1, 1)]),
             params["g2"], params["b2"])
    if stride != 1 or cin != p:
        sc = bn(conv(x_nchw, params["wsc"], stride, [(0, 0), (0, 0)]),
                params["gsc"], params["bsc"])
    else:
        sc = x_nchw
    return jax.nn.relu(out + sc)


if __name__ == "__main__":
    def make_params(key, cin, p):
        ks = jax.random.split(key, 9)
        return {
            "w1": 0.1 * jax.random.normal(ks[0], (3, 3, cin, p), jnp.float32),
            "g1": 1.0 + 0.1 * jax.random.normal(ks[1], (p,), jnp.float32),
            "b1": 0.1 * jax.random.normal(ks[2], (p,), jnp.float32),
            "w2": 0.1 * jax.random.normal(ks[3], (3, 3, p, p), jnp.float32),
            "g2": 1.0 + 0.1 * jax.random.normal(ks[4], (p,), jnp.float32),
            "b2": 0.1 * jax.random.normal(ks[5], (p,), jnp.float32),
            "wsc": 0.1 * jax.random.normal(ks[6], (1, 1, cin, p), jnp.float32),
            "gsc": 1.0 + 0.1 * jax.random.normal(ks[7], (p,), jnp.float32),
            "bsc": 0.1 * jax.random.normal(ks[8], (p,), jnp.float32),
        }

    key = jax.random.PRNGKey(0)
    n, h, w = 2, 16, 16

    # (name, cin, planes, stride, use_bf16, max-abs tol, rel-L2 tol)
    # f32 mode is checked tightly (exercises every kernel path); the bf16
    # default is checked against the f32 reference with a bf16-appropriate
    # tolerance (operand + inter-pass rounding).
    cases = [
        ("proj shortcut, stride=1, f32", 4, 8, 1, False, 1e-3, 1e-3),
        ("identity shortcut, stride=1, f32", 8, 8, 1, False, 1e-3, 1e-3),
        ("proj shortcut, stride=2, f32", 4, 8, 2, False, 1e-3, 1e-3),
        ("proj shortcut, stride=2, bf16", 4, 8, 2, True, 1.5e-1, 3e-2),
    ]

    for name, cin, p, stride, use_bf16, atol, ftol in cases:
        kp, kx, key = jax.random.split(key, 3)
        params = make_params(kp, cin, p)
        x = jax.random.normal(kx, (n, cin, h, w), jnp.float32)

        fwd = jax.jit(functools.partial(basic_block_forward, stride=stride,
                                        use_bf16=use_bf16))
        y = fwd(x, params)
        jax.block_until_ready(y)

        y_ref = _ref_forward(x, params, stride=stride)
        ho = (h - 1) // stride + 1
        wo = (w - 1) // stride + 1
        assert y.shape == (n, p, ho, wo), (name, y.shape)
        diff = y.astype(jnp.float32) - y_ref
        err = float(jnp.max(jnp.abs(diff)))
        rel = float(jnp.sqrt(jnp.sum(diff * diff))
                    / (jnp.sqrt(jnp.sum(y_ref * y_ref)) + 1e-12))
        assert err < atol and rel < ftol, (name, err, rel)

    print("KERNEL_OK")
</pallas_src>

<mosaic_0001>
module attributes {stable_mosaic.version = 11 : i64} {
  func.func @_conv1_proj_kernel(%arg0: i32, %arg1: memref<1x18x18x128xf32, #tpu.memory_space<vmem>>, %arg2: memref<1152x128xf32, #tpu.memory_space<vmem>>, %arg3: memref<128x128xf32, #tpu.memory_space<vmem>>, %arg4: memref<1x16x16x128xf32, #tpu.memory_space<vmem>>, %arg5: memref<1x16x16x128xf32, #tpu.memory_space<vmem>>, %arg6: memref<1x8x128xf32, #tpu.memory_space<vmem>>) attributes {dimension_semantics = [#tpu.dimension_semantics<parallel>], iteration_bounds = array<i64: 2>, scalar_prefetch = 0 : i64, scratch_operands = 0 : i64, tpu.core_type = #tpu.core_type<tc>, window_params = [{transform_indices = @transform_0, window_bounds = array<i64: 1, 18, 18, 128>}, {pipeline_mode = #tpu.pipeline_mode<synchronous>, transform_indices = @transform_1, window_bounds = array<i64: 1152, 128>}, {pipeline_mode = #tpu.pipeline_mode<synchronous>, transform_indices = @transform_2, window_bounds = array<i64: 128, 128>}, {transform_indices = @transform_3, window_bounds = array<i64: 1, 16, 16, 128>}, {transform_indices = @transform_4, window_bounds = array<i64: 1, 16, 16, 128>}, {transform_indices = @transform_5, window_bounds = array<i64: 1, 8, 128>}]} {
    %c0 = arith.constant 0 : index
    %c0_0 = arith.constant 0 : index
    %c0_1 = arith.constant 0 : index
    %c0_2 = arith.constant 0 : index
    %0 = vector.load %arg1[%c0, %c0_0, %c0_1, %c0_2] : memref<1x18x18x128xf32, #tpu.memory_space<vmem>>, vector<1x16x16x128xf32>
    %1 = vector.shape_cast %0 : vector<1x16x16x128xf32> to vector<256x128xf32>
    %c0_3 = arith.constant 0 : index
    %c0_4 = arith.constant 0 : index
    %c1 = arith.constant 1 : index
    %c0_5 = arith.constant 0 : index
    %2 = vector.load %arg1[%c0_3, %c0_4, %c1, %c0_5] : memref<1x18x18x128xf32, #tpu.memory_space<vmem>>, vector<1x16x16x128xf32>
    %3 = vector.shape_cast %2 : vector<1x16x16x128xf32> to vector<256x128xf32>
    %c0_6 = arith.constant 0 : index
    %c0_7 = arith.constant 0 : index
    %c2 = arith.constant 2 : index
    %c0_8 = arith.constant 0 : index
    %4 = vector.load %arg1[%c0_6, %c0_7, %c2, %c0_8] : memref<1x18x18x128xf32, #tpu.memory_space<vmem>>, vector<1x16x16x128xf32>
    %5 = vector.shape_cast %4 : vector<1x16x16x128xf32> to vector<256x128xf32>
    %6 = tpu.concatenate %1, %3, %5 in 1 : vector<256x128xf32>, vector<256x128xf32>, vector<256x128xf32> -> vector<256x384xf32>
    %c0_9 = arith.constant 0 : index
    %c0_10 = arith.constant 0 : index
    %7 = vector.load %arg2[%c0_9, %c0_10] : memref<1152x128xf32, #tpu.memory_space<vmem>>, vector<384x128xf32>
    %cst = arith.constant dense<0.000000e+00> : vector<256x128xf32>
    %8 = tpu.matmul %6, %7, %cst {dimension_numbers = #tpu.dot_dimension_numbers<[1], [0], [0], [1], [0, 0, 1, 1], [], []>} : vector<256x384xf32>, vector<384x128xf32>, vector<256x128xf32> -> vector<256x128xf32>
    %c0_11 = arith.constant 0 : index
    %c1_12 = arith.constant 1 : index
    %c0_13 = arith.constant 0 : index
    %c0_14 = arith.constant 0 : index
    %9 = vector.load %arg1[%c0_11, %c1_12, %c0_13, %c0_14] : memref<1x18x18x128xf32, #tpu.memory_space<vmem>>, vector<1x16x16x128xf32>
    %10 = vector.shape_cast %9 : vector<1x16x16x128xf32> to vector<256x128xf32>
    %c0_15 = arith.constant 0 : index
    %c1_16 = arith.constant 1 : index
    %c1_17 = arith.constant 1 : index
    %c0_18 = arith.constant 0 : index
    %11 = vector.load %arg1[%c0_15, %c1_16, %c1_17, %c0_18] : memref<1x18x18x128xf32, #tpu.memory_space<vmem>>, vector<1x16x16x128xf32>
    %12 = vector.shape_cast %11 : vector<1x16x16x128xf32> to vector<256x128xf32>
    %c0_19 = arith.constant 0 : index
    %c1_20 = arith.constant 1 : index
    %c2_21 = arith.constant 2 : index
    %c0_22 = arith.constant 0 : index
    %13 = vector.load %arg1[%c0_19, %c1_20, %c2_21, %c0_22] : memref<1x18x18x128xf32, #tpu.memory_space<vmem>>, vector<1x16x16x128xf32>
    %14 = vector.shape_cast %13 : vector<1x16x16x128xf32> to vector<256x128xf32>
    %15 = tpu.concatenate %10, %12, %14 in 1 : vector<256x128xf32>, vector<256x128xf32>, vector<256x128xf32> -> vector<256x384xf32>
    %c384 = arith.constant 384 : index
    %c0_23 = arith.constant 0 : index
    %16 = vector.load %arg2[%c384, %c0_23] : memref<1152x128xf32, #tpu.memory_space<vmem>>, vector<384x128xf32>
    %cst_24 = arith.constant dense<0.000000e+00> : vector<256x128xf32>
    %17 = tpu.matmul %15, %16, %cst_24 {dimension_numbers = #tpu.dot_dimension_numbers<[1], [0], [0], [1], [0, 0, 1, 1], [], []>} : vector<256x384xf32>, vector<384x128xf32>, vector<256x128xf32> -> vector<256x128xf32>
    %18 = arith.addf %8, %17 : vector<256x128xf32>
    %c0_25 = arith.constant 0 : index
    %c2_26 = arith.constant 2 : index
    %c0_27 = arith.constant 0 : index
    %c0_28 = arith.constant 0 : index
    %19 = vector.load %arg1[%c0_25, %c2_26, %c0_27, %c0_28] : memref<1x18x18x128xf32, #tpu.memory_space<vmem>>, vector<1x16x16x128xf32>
    %20 = vector.shape_cast %19 : vector<1x16x16x128xf32> to vector<256x128xf32>
    %c0_29 = arith.constant 0 : index
    %c2_30 = arith.constant 2 : index
    %c1_31 = arith.constant 1 : index
    %c0_32 = arith.constant 0 : index
    %21 = vector.load %arg1[%c0_29, %c2_30, %c1_31, %c0_32] : memref<1x18x18x128xf32, #tpu.memory_space<vmem>>, vector<1x16x16x128xf32>
    %22 = vector.shape_cast %21 : vector<1x16x16x128xf32> to vector<256x128xf32>
    %c0_33 = arith.constant 0 : index
    %c2_34 = arith.constant 2 : index
    %c2_35 = arith.constant 2 : index
    %c0_36 = arith.constant 0 : index
    %23 = vector.load %arg1[%c0_33, %c2_34, %c2_35, %c0_36] : memref<1x18x18x128xf32, #tpu.memory_space<vmem>>, vector<1x16x16x128xf32>
    %24 = vector.shape_cast %23 : vector<1x16x16x128xf32> to vector<256x128xf32>
    %25 = tpu.concatenate %20, %22, %24 in 1 : vector<256x128xf32>, vector<256x128xf32>, vector<256x128xf32> -> vector<256x384xf32>
    %c768 = arith.constant 768 : index
    %c0_37 = arith.constant 0 : index
    %26 = vector.load %arg2[%c768, %c0_37] : memref<1152x128xf32, #tpu.memory_space<vmem>>, vector<384x128xf32>
    %cst_38 = arith.constant dense<0.000000e+00> : vector<256x128xf32>
    %27 = tpu.matmul %25, %26, %cst_38 {dimension_numbers = #tpu.dot_dimension_numbers<[1], [0], [0], [1], [0, 0, 1, 1], [], []>} : vector<256x384xf32>, vector<384x128xf32>, vector<256x128xf32> -> vector<256x128xf32>
    %28 = arith.addf %18, %27 : vector<256x128xf32>
    %29 = vector.shape_cast %28 : vector<256x128xf32> to vector<1x16x16x128xf32>
    %c0_39 = arith.constant 0 : index
    %c0_40 = arith.constant 0 : index
    %c0_41 = arith.constant 0 : index
    %c0_42 = arith.constant 0 : index
    %30 = vector.load %arg4[%c0_39, %c0_40, %c0_41, %c0_42] : memref<1x16x16x128xf32, #tpu.memory_space<vmem>>, vector<1x16x16x128xf32>
    tpu.vector_store %arg4[%c0_39, %c0_40, %c0_41, %c0_42], %29 {strides = array<i32>} : memref<1x16x16x128xf32, #tpu.memory_space<vmem>>, vector<1x16x16x128xf32>,
    %c0_43 = arith.constant 0 : index
    %c1_44 = arith.constant 1 : index
    %c1_45 = arith.constant 1 : index
    %c0_46 = arith.constant 0 : index
    %31 = vector.load %arg1[%c0_43, %c1_44, %c1_45, %c0_46] : memref<1x18x18x128xf32, #tpu.memory_space<vmem>>, vector<1x16x16x128xf32>
    %32 = vector.shape_cast %31 : vector<1x16x16x128xf32> to vector<256x128xf32>
    %c0_47 = arith.constant 0 : index
    %c0_48 = arith.constant 0 : index
    %33 = vector.load %arg3[%c0_47, %c0_48] : memref<128x128xf32, #tpu.memory_space<vmem>>, vector<128x128xf32>
    %cst_49 = arith.constant dense<0.000000e+00> : vector<256x128xf32>
    %34 = tpu.matmul %32, %33, %cst_49 {dimension_numbers = #tpu.dot_dimension_numbers<[1], [0], [0], [1], [0, 0, 1, 1], [], []>} : vector<256x128xf32>, vector<128x128xf32>, vector<256x128xf32> -> vector<256x128xf32>
    %35 = vector.shape_cast %34 : vector<256x128xf32> to vector<1x16x16x128xf32>
    %c0_50 = arith.constant 0 : index
    %c0_51 = arith.constant 0 : index
    %c0_52 = arith.constant 0 : index
    %c0_53 = arith.constant 0 : index
    %36 = vector.load %arg5[%c0_50, %c0_51, %c0_52, %c0_53] : memref<1x16x16x128xf32, #tpu.memory_space<vmem>>, vector<1x16x16x128xf32>
    tpu.vector_store %arg5[%c0_50, %c0_51, %c0_52, %c0_53], %35 {strides = array<i32>} : memref<1x16x16x128xf32, #tpu.memory_space<vmem>>, vector<1x16x16x128xf32>,
    %cst_54 = arith.constant dense<0.000000e+00> : vector<128xf32>
    %37 = vector.multi_reduction <add>, %28, %cst_54 [0] : vector<256x128xf32> to vector<128xf32>
    %38 = vector.shape_cast %37 : vector<128xf32> to vector<1x128xf32>
    %39 = arith.mulf %28, %28 : vector<256x128xf32>
    %cst_55 = arith.constant dense<0.000000e+00> : vector<128xf32>
    %40 = vector.multi_reduction <add>, %39, %cst_55 [0] : vector<256x128xf32> to vector<128xf32>
    %41 = vector.shape_cast %40 : vector<128xf32> to vector<1x128xf32>
    %cst_56 = arith.constant dense<0.000000e+00> : vector<128xf32>
    %42 = vector.multi_reduction <add>, %34, %cst_56 [0] : vector<256x128xf32> to vector<128xf32>
    %43 = vector.shape_cast %42 : vector<128xf32> to vector<1x128xf32>
    %44 = arith.mulf %34, %34 : vector<256x128xf32>
    %cst_57 = arith.constant dense<0.000000e+00> : vector<128xf32>
    %45 = vector.multi_reduction <add>, %44, %cst_57 [0] : vector<256x128xf32> to vector<128xf32>
    %46 = vector.shape_cast %45 : vector<128xf32> to vector<1x128xf32>
    %cst_58 = arith.constant 0.000000e+00 : f32
    %47 = vector.broadcast %cst_58 : f32 to vector<4x128xf32>
    %48 = tpu.concatenate %38, %41, %43, %46, %47 in 0 : vector<1x128xf32>, vector<1x128xf32>, vector<1x128xf32>, vector<1x128xf32>, vector<4x128xf32> -> vector<8x128xf32>
    %49 = vector.shape_cast %48 : vector<8x128xf32> to vector<1x8x128xf32>
    %c0_59 = arith.constant 0 : index
    %c0_60 = arith.constant 0 : index
    %c0_61 = arith.constant 0 : index
    %50 = vector.load %arg6[%c0_59, %c0_60, %c0_61] : memref<1x8x128xf32, #tpu.memory_space<vmem>>, vector<1x8x128xf32>
    tpu.vector_store %arg6[%c0_59, %c0_60, %c0_61], %49 {strides = array<i32>} : memref<1x8x128xf32, #tpu.memory_space<vmem>>, vector<1x8x128xf32>,
    return
  }
  func.func @transform_0(%arg0: i32) -> (i32, i32, i32, i32) {
    %c0_i32 = arith.constant 0 : i32
    %c0_i32_0 = arith.constant 0 : i32
    %c0_i32_1 = arith.constant 0 : i32
    %c0_i32_2 = arith.constant 0 : i32
    return %arg0, %c0_i32, %c0_i32_0, %c0_i32_1 : i32, i32, i32, i32
  }
  func.func @transform_1(%arg0: i32) -> (i32, i32) {
    %c0_i32 = arith.constant 0 : i32
    %c0_i32_0 = arith.constant 0 : i32
    %c0_i32_1 = arith.constant 0 : i32
    return %c0_i32, %c0_i32_0 : i32, i32
  }
  func.func @transform_2(%arg0: i32) -> (i32, i32) {
    %c0_i32 = arith.constant 0 : i32
    %c0_i32_0 = arith.constant 0 : i32
    %c0_i32_1 = arith.constant 0 : i32
    return %c0_i32, %c0_i32_0 : i32, i32
  }
  func.func @transform_3(%arg0: i32) -> (i32, i32, i32, i32) {
    %c0_i32 = arith.constant 0 : i32
    %c0_i32_0 = arith.constant 0 : i32
    %c0_i32_1 = arith.constant 0 : i32
    %c0_i32_2 = arith.constant 0 : i32
    return %arg0, %c0_i32, %c0_i32_0, %c0_i32_1 : i32, i32, i32, i32
  }
  func.func @transform_4(%arg0: i32) -> (i32, i32, i32, i32) {
    %c0_i32 = arith.constant 0 : i32
    %c0_i32_0 = arith.constant 0 : i32
    %c0_i32_1 = arith.constant 0 : i32
    %c0_i32_2 = arith.constant 0 : i32
    return %arg0, %c0_i32, %c0_i32_0, %c0_i32_1 : i32, i32, i32, i32
  }
  func.func @transform_5(%arg0: i32) -> (i32, i32, i32) {
    %c0_i32 = arith.constant 0 : i32
    %c0_i32_0 = arith.constant 0 : i32
    %c0_i32_1 = arith.constant 0 : i32
    return %arg0, %c0_i32, %c0_i32_0 : i32, i32, i32
  }
}

module attributes {stable_mosaic.version = 11 : i64} {
  func.func @_conv2_kernel(%arg0: i32, %arg1: memref<1x16x16x128xf32, #tpu.memory_space<vmem>>, %arg2: memref<1x128xf32, #tpu.memory_space<vmem>>, %arg3: memref<1x128xf32, #tpu.memory_space<vmem>>, %arg4: memref<1152x128xf32, #tpu.memory_space<vmem>>, %arg5: memref<1x16x16x128xf32, #tpu.memory_space<vmem>>, %arg6: memref<1x8x128xf32, #tpu.memory_space<vmem>>, %arg7: memref<1x18x32x128xf32, #tpu.memory_space<vmem>>) attributes {dimension_semantics = [#tpu.dimension_semantics<parallel>], iteration_bounds = array<i64: 2>, scalar_prefetch = 0 : i64, scratch_operands = 1 : i64, tpu.core_type = #tpu.core_type<tc>, window_params = [{transform_indices = @transform_0, window_bounds = array<i64: 1, 16, 16, 128>}, {pipeline_mode = #tpu.pipeline_mode<synchronous>, transform_indices = @transform_1, window_bounds = array<i64: 1, 128>}, {pipeline_mode = #tpu.pipeline_mode<synchronous>, transform_indices = @transform_2, window_bounds = array<i64: 1, 128>}, {pipeline_mode = #tpu.pipeline_mode<synchronous>, transform_indices = @transform_3, window_bounds = array<i64: 1152, 128>}, {transform_indices = @transform_4, window_bounds = array<i64: 1, 16, 16, 128>}, {transform_indices = @transform_5, window_bounds = array<i64: 1, 8, 128>}]} {
    %c0 = arith.constant 0 : index
    %c0_0 = arith.constant 0 : index
    %c0_1 = arith.constant 0 : index
    %c0_2 = arith.constant 0 : index
    %0 = vector.load %arg1[%c0, %c0_0, %c0_1, %c0_2] : memref<1x16x16x128xf32, #tpu.memory_space<vmem>>, vector<1x16x16x128xf32>
    %c0_3 = arith.constant 0 : index
    %c0_4 = arith.constant 0 : index
    %1 = vector.load %arg2[%c0_3, %c0_4] : memref<1x128xf32, #tpu.memory_space<vmem>>, vector<1x128xf32>
    %2 = vector.shape_cast %1 : vector<1x128xf32> to vector<1x1x1x128xf32>
    %3 = vector.broadcast %2 : vector<1x1x1x128xf32> to vector<1x16x16x128xf32>
    %4 = arith.mulf %0, %3 : vector<1x16x16x128xf32>
    %c0_5 = arith.constant 0 : index
    %c0_6 = arith.constant 0 : index
    %5 = vector.load %arg3[%c0_5, %c0_6] : memref<1x128xf32, #tpu.memory_space<vmem>>, vector<1x128xf32>
    %6 = vector.shape_cast %5 : vector<1x128xf32> to vector<1x1x1x128xf32>
    %7 = vector.broadcast %6 : vector<1x1x1x128xf32> to vector<1x16x16x128xf32>
    %8 = arith.addf %4, %7 : vector<1x16x16x128xf32>
    %cst = arith.constant 0.000000e+00 : f32
    %9 = vector.broadcast %cst : f32 to vector<1x16x16x128xf32>
    %10 = arith.maximumf %8, %9 : vector<1x16x16x128xf32>
    %cst_7 = arith.constant 0.000000e+00 : f32
    %11 = vector.broadcast %cst_7 : f32 to vector<1x1x32x128xf32>
    %cst_8 = arith.constant 0.000000e+00 : f32
    %12 = vector.broadcast %cst_8 : f32 to vector<1x18x8x128xf32>
    %c0_9 = arith.constant 0 : index
    %c0_10 = arith.constant 0 : index
    %c0_11 = arith.constant 0 : index
    %c0_12 = arith.constant 0 : index
    %13 = vector.load %arg7[%c0_9, %c0_10, %c0_11, %c0_12] : memref<1x18x32x128xf32, #tpu.memory_space<vmem>>, vector<1x1x32x128xf32>
    tpu.vector_store %arg7[%c0_9, %c0_10, %c0_11, %c0_12], %11 {strides = array<i32>} : memref<1x18x32x128xf32, #tpu.memory_space<vmem>>, vector<1x1x32x128xf32>,
    %c0_13 = arith.constant 0 : index
    %c17 = arith.constant 17 : index
    %c0_14 = arith.constant 0 : index
    %c0_15 = arith.constant 0 : index
    %14 = vector.load %arg7[%c0_13, %c17, %c0_14, %c0_15] : memref<1x18x32x128xf32, #tpu.memory_space<vmem>>, vector<1x1x32x128xf32>
    tpu.vector_store %arg7[%c0_13, %c17, %c0_14, %c0_15], %11 {strides = array<i32>} : memref<1x18x32x128xf32, #tpu.memory_space<vmem>>, vector<1x1x32x128xf32>,
    %c0_16 = arith.constant 0 : index
    %c0_17 = arith.constant 0 : index
    %c0_18 = arith.constant 0 : index
    %c0_19 = arith.constant 0 : index
    %15 = vector.load %arg7[%c0_16, %c0_17, %c0_18, %c0_19] : memref<1x18x32x128xf32, #tpu.memory_space<vmem>>, vector<1x18x8x128xf32>
    tpu.vector_store %arg7[%c0_16, %c0_17, %c0_18, %c0_19], %12 {strides = array<i32>} : memref<1x18x32x128xf32, #tpu.memory_space<vmem>>, vector<1x18x8x128xf32>,
    %c0_20 = arith.constant 0 : index
    %c0_21 = arith.constant 0 : index
    %c24 = arith.constant 24 : index
    %c0_22 = arith.constant 0 : index
    %16 = vector.load %arg7[%c0_20, %c0_21, %c24, %c0_22] : memref<1x18x32x128xf32, #tpu.memory_space<vmem>>, vector<1x18x8x128xf32>
    tpu.vector_store %arg7[%c0_20, %c0_21, %c24, %c0_22], %12 {strides = array<i32>} : memref<1x18x32x128xf32, #tpu.memory_space<vmem>>, vector<1x18x8x128xf32>,
    %c0_23 = arith.constant 0 : index
    %c1 = arith.constant 1 : index
    %c8 = arith.constant 8 : index
    %c0_24 = arith.constant 0 : index
    %17 = vector.load %arg7[%c0_23, %c1, %c8, %c0_24] : memref<1x18x32x128xf32, #tpu.memory_space<vmem>>, vector<1x16x16x128xf32>
    tpu.vector_store %arg7[%c0_23, %c1, %c8, %c0_24], %10 {strides = array<i32>} : memref<1x18x32x128xf32, #tpu.memory_space<vmem>>, vector<1x16x16x128xf32>,
    %c0_25 = arith.constant 0 : index
    %c0_26 = arith.constant 0 : index
    %c7 = arith.constant 7 : index
    %c0_27 = arith.constant 0 : index
    %18 = vector.load %arg7[%c0_25, %c0_26, %c7, %c0_27] : memref<1x18x32x128xf32, #tpu.memory_space<vmem>>, vector<1x16x16x128xf32>
    %19 = vector.shape_cast %18 : vector<1x16x16x128xf32> to vector<256x128xf32>
    %c0_28 = arith.constant 0 : index
    %c0_29 = arith.constant 0 : index
    %c8_30 = arith.constant 8 : index
    %c0_31 = arith.constant 0 : index
    %20 = vector.load %arg7[%c0_28, %c0_29, %c8_30, %c0_31] : memref<1x18x32x128xf32, #tpu.memory_space<vmem>>, vector<1x16x16x128xf32>
    %21 = vector.shape_cast %20 : vector<1x16x16x128xf32> to vector<256x128xf32>
    %c0_32 = arith.constant 0 : index
    %c0_33 = arith.constant 0 : index
    %c9 = arith.constant 9 : index
    %c0_34 = arith.constant 0 : index
    %22 = vector.load %arg7[%c0_32, %c0_33, %c9, %c0_34] : memref<1x18x32x128xf32, #tpu.memory_space<vmem>>, vector<1x16x16x128xf32>
    %23 = vector.shape_cast %22 : vector<1x16x16x128xf32> to vector<256x128xf32>
    %24 = tpu.concatenate %19, %21, %23 in 1 : vector<256x128xf32>, vector<256x128xf32>, vector<256x128xf32> -> vector<256x384xf32>
    %c0_35 = arith.constant 0 : index
    %c0_36 = arith.constant 0 : index
    %25 = vector.load %arg4[%c0_35, %c0_36] : memref<1152x128xf32, #tpu.memory_space<vmem>>, vector<384x128xf32>
    %cst_37 = arith.constant dense<0.000000e+00> : vector<256x128xf32>
    %26 = tpu.matmul %24, %25, %cst_37 {dimension_numbers = #tpu.dot_dimension_numbers<[1], [0], [0], [1], [0, 0, 1, 1], [], []>} : vector<256x384xf32>, vector<384x128xf32>, vector<256x128xf32> -> vector<256x128xf32>
    %c0_38 = arith.constant 0 : index
    %c1_39 = arith.constant 1 : index
    %c7_40 = arith.constant 7 : index
    %c0_41 = arith.constant 0 : index
    %27 = vector.load %arg7[%c0_38, %c1_39, %c7_40, %c0_41] : memref<1x18x32x128xf32, #tpu.memory_space<vmem>>, vector<1x16x16x128xf32>
    %28 = vector.shape_cast %27 : vector<1x16x16x128xf32> to vector<256x128xf32>
    %c0_42 = arith.constant 0 : index
    %c1_43 = arith.constant 1 : index
    %c8_44 = arith.constant 8 : index
    %c0_45 = arith.constant 0 : index
    %29 = vector.load %arg7[%c0_42, %c1_43, %c8_44, %c0_45] : memref<1x18x32x128xf32, #tpu.memory_space<vmem>>, vector<1x16x16x128xf32>
    %30 = vector.shape_cast %29 : vector<1x16x16x128xf32> to vector<256x128xf32>
    %c0_46 = arith.constant 0 : index
    %c1_47 = arith.constant 1 : index
    %c9_48 = arith.constant 9 : index
    %c0_49 = arith.constant 0 : index
    %31 = vector.load %arg7[%c0_46, %c1_47, %c9_48, %c0_49] : memref<1x18x32x128xf32, #tpu.memory_space<vmem>>, vector<1x16x16x128xf32>
    %32 = vector.shape_cast %31 : vector<1x16x16x128xf32> to vector<256x128xf32>
    %33 = tpu.concatenate %28, %30, %32 in 1 : vector<256x128xf32>, vector<256x128xf32>, vector<256x128xf32> -> vector<256x384xf32>
    %c384 = arith.constant 384 : index
    %c0_50 = arith.constant 0 : index
    %34 = vector.load %arg4[%c384, %c0_50] : memref<1152x128xf32, #tpu.memory_space<vmem>>, vector<384x128xf32>
    %cst_51 = arith.constant dense<0.000000e+00> : vector<256x128xf32>
    %35 = tpu.matmul %33, %34, %cst_51 {dimension_numbers = #tpu.dot_dimension_numbers<[1], [0], [0], [1], [0, 0, 1, 1], [], []>} : vector<256x384xf32>, vector<384x128xf32>, vector<256x128xf32> -> vector<256x128xf32>
    %36 = arith.addf %26, %35 : vector<256x128xf32>
    %c0_52 = arith.constant 0 : index
    %c2 = arith.constant 2 : index
    %c7_53 = arith.constant 7 : index
    %c0_54 = arith.constant 0 : index
    %37 = vector.load %arg7[%c0_52, %c2, %c7_53, %c0_54] : memref<1x18x32x128xf32, #tpu.memory_space<vmem>>, vector<1x16x16x128xf32>
    %38 = vector.shape_cast %37 : vector<1x16x16x128xf32> to vector<256x128xf32>
    %c0_55 = arith.constant 0 : index
    %c2_56 = arith.constant 2 : index
    %c8_57 = arith.constant 8 : index
    %c0_58 = arith.constant 0 : index
    %39 = vector.load %arg7[%c0_55, %c2_56, %c8_57, %c0_58] : memref<1x18x32x128xf32, #tpu.memory_space<vmem>>, vector<1x16x16x128xf32>
    %40 = vector.shape_cast %39 : vector<1x16x16x128xf32> to vector<256x128xf32>
    %c0_59 = arith.constant 0 : index
    %c2_60 = arith.constant 2 : index
    %c9_61 = arith.constant 9 : index
    %c0_62 = arith.constant 0 : index
    %41 = vector.load %arg7[%c0_59, %c2_60, %c9_61, %c0_62] : memref<1x18x32x128xf32, #tpu.memory_space<vmem>>, vector<1x16x16x128xf32>
    %42 = vector.shape_cast %41 : vector<1x16x16x128xf32> to vector<256x128xf32>
    %43 = tpu.concatenate %38, %40, %42 in 1 : vector<256x128xf32>, vector<256x128xf32>, vector<256x128xf32> -> vector<256x384xf32>
    %c768 = arith.constant 768 : index
    %c0_63 = arith.constant 0 : index
    %44 = vector.load %arg4[%c768, %c0_63] : memref<1152x128xf32, #tpu.memory_space<vmem>>, vector<384x128xf32>
    %cst_64 = arith.constant dense<0.000000e+00> : vector<256x128xf32>
    %45 = tpu.matmul %43, %44, %cst_64 {dimension_numbers = #tpu.dot_dimension_numbers<[1], [0], [0], [1], [0, 0, 1, 1], [], []>} : vector<256x384xf32>, vector<384x128xf32>, vector<256x128xf32> -> vector<256x128xf32>
    %46 = arith.addf %36, %45 : vector<256x128xf32>
    %47 = vector.shape_cast %46 : vector<256x128xf32> to vector<1x16x16x128xf32>
    %c0_65 = arith.constant 0 : index
    %c0_66 = arith.constant 0 : index
    %c0_67 = arith.constant 0 : index
    %c0_68 = arith.constant 0 : index
    %48 = vector.load %arg5[%c0_65, %c0_66, %c0_67, %c0_68] : memref<1x16x16x128xf32, #tpu.memory_space<vmem>>, vector<1x16x16x128xf32>
    tpu.vector_store %arg5[%c0_65, %c0_66, %c0_67, %c0_68], %47 {strides = array<i32>} : memref<1x16x16x128xf32, #tpu.memory_space<vmem>>, vector<1x16x16x128xf32>,
    %cst_69 = arith.constant dense<0.000000e+00> : vector<128xf32>
    %49 = vector.multi_reduction <add>, %46, %cst_69 [0] : vector<256x128xf32> to vector<128xf32>
    %50 = vector.shape_cast %49 : vector<128xf32> to vector<1x128xf32>
    %51 = arith.mulf %46, %46 : vector<256x128xf32>
    %cst_70 = arith.constant dense<0.000000e+00> : vector<128xf32>
    %52 = vector.multi_reduction <add>, %51, %cst_70 [0] : vector<256x128xf32> to vector<128xf32>
    %53 = vector.shape_cast %52 : vector<128xf32> to vector<1x128xf32>
    %cst_71 = arith.constant 0.000000e+00 : f32
    %54 = vector.broadcast %cst_71 : f32 to vector<6x128xf32>
    %55 = tpu.concatenate %50, %53, %54 in 0 : vector<1x128xf32>, vector<1x128xf32>, vector<6x128xf32> -> vector<8x128xf32>
    %56 = vector.shape_cast %55 : vector<8x128xf32> to vector<1x8x128xf32>
    %c0_72 = arith.constant 0 : index
    %c0_73 = arith.constant 0 : index
    %c0_74 = arith.constant 0 : index
    %57 = vector.load %arg6[%c0_72, %c0_73, %c0_74] : memref<1x8x128xf32, #tpu.memory_space<vmem>>, vector<1x8x128xf32>
    tpu.vector_store %arg6[%c0_72, %c0_73, %c0_74], %56 {strides = array<i32>} : memref<1x8x128xf32, #tpu.memory_space<vmem>>, vector<1x8x128xf32>,
    return
  }
  func.func @transform_0(%arg0: i32) -> (i32, i32, i32, i32) {
    %c0_i32 = arith.constant 0 : i32
    %c0_i32_0 = arith.constant 0 : i32
    %c0_i32_1 = arith.constant 0 : i32
    %c0_i32_2 = arith.constant 0 : i32
    return %arg0, %c0_i32, %c0_i32_0, %c0_i32_1 : i32, i32, i32, i32
  }
  func.func @transform_1(%arg0: i32) -> (i32, i32) {
    %c0_i32 = arith.constant 0 : i32
    %c0_i32_0 = arith.constant 0 : i32
    %c0_i32_1 = arith.constant 0 : i32
    return %c0_i32, %c0_i32_0 : i32, i32
  }
  func.func @transform_2(%arg0: i32) -> (i32, i32) {
    %c0_i32 = arith.constant 0 : i32
    %c0_i32_0 = arith.constant 0 : i32
    %c0_i32_1 = arith.constant 0 : i32
    return %c0_i32, %c0_i32_0 : i32, i32
  }
  func.func @transform_3(%arg0: i32) -> (i32, i32) {
    %c0_i32 = arith.constant 0 : i32
    %c0_i32_0 = arith.constant 0 : i32
    %c0_i32_1 = arith.constant 0 : i32
    return %c0_i32, %c0_i32_0 : i32, i32
  }
  func.func @transform_4(%arg0: i32) -> (i32, i32, i32, i32) {
    %c0_i32 = arith.constant 0 : i32
    %c0_i32_0 = arith.constant 0 : i32
    %c0_i32_1 = arith.constant 0 : i32
    %c0_i32_2 = arith.constant 0 : i32
    return %arg0, %c0_i32, %c0_i32_0, %c0_i32_1 : i32, i32, i32, i32
  }
  func.func @transform_5(%arg0: i32) -> (i32, i32, i32) {
    %c0_i32 = arith.constant 0 : i32
    %c0_i32_0 = arith.constant 0 : i32
    %c0_i32_1 = arith.constant 0 : i32
    return %arg0, %c0_i32, %c0_i32_0 : i32, i32, i32
  }
}

module attributes {stable_mosaic.version = 11 : i64} {
  func.func @_epilogue_proj_kernel(%arg0: i32, %arg1: memref<1x16x16x128xf32, #tpu.memory_space<vmem>>, %arg2: memref<1x128xf32, #tpu.memory_space<vmem>>, %arg3: memref<1x128xf32, #tpu.memory_space<vmem>>, %arg4: memref<1x16x16x128xf32, #tpu.memory_space<vmem>>, %arg5: memref<1x128xf32, #tpu.memory_space<vmem>>, %arg6: memref<1x128xf32, #tpu.memory_space<vmem>>, %arg7: memref<1x16x16x128xf32, #tpu.memory_space<vmem>>) attributes {dimension_semantics = [#tpu.dimension_semantics<parallel>], iteration_bounds = array<i64: 2>, scalar_prefetch = 0 : i64, scratch_operands = 0 : i64, tpu.core_type = #tpu.core_type<tc>, window_params = [{transform_indices = @transform_0, window_bounds = array<i64: 1, 16, 16, 128>}, {pipeline_mode = #tpu.pipeline_mode<synchronous>, transform_indices = @transform_1, window_bounds = array<i64: 1, 128>}, {pipeline_mode = #tpu.pipeline_mode<synchronous>, transform_indices = @transform_2, window_bounds = array<i64: 1, 128>}, {transform_indices = @transform_3, window_bounds = array<i64: 1, 16, 16, 128>}, {pipeline_mode = #tpu.pipeline_mode<synchronous>, transform_indices = @transform_4, window_bounds = array<i64: 1, 128>}, {pipeline_mode = #tpu.pipeline_mode<synchronous>, transform_indices = @transform_5, window_bounds = array<i64: 1, 128>}, {transform_indices = @transform_6, window_bounds = array<i64: 1, 16, 16, 128>}]} {
    %c0 = arith.constant 0 : index
    %c0_0 = arith.constant 0 : index
    %c0_1 = arith.constant 0 : index
    %c0_2 = arith.constant 0 : index
    %0 = vector.load %arg4[%c0, %c0_0, %c0_1, %c0_2] : memref<1x16x16x128xf32, #tpu.memory_space<vmem>>, vector<1x16x16x128xf32>
    %c0_3 = arith.constant 0 : index
    %c0_4 = arith.constant 0 : index
    %1 = vector.load %arg5[%c0_3, %c0_4] : memref<1x128xf32, #tpu.memory_space<vmem>>, vector<1x128xf32>
    %2 = vector.shape_cast %1 : vector<1x128xf32> to vector<1x1x1x128xf32>
    %3 = vector.broadcast %2 : vector<1x1x1x128xf32> to vector<1x16x16x128xf32>
    %4 = arith.mulf %0, %3 : vector<1x16x16x128xf32>
    %c0_5 = arith.constant 0 : index
    %c0_6 = arith.constant 0 : index
    %5 = vector.load %arg6[%c0_5, %c0_6] : memref<1x128xf32, #tpu.memory_space<vmem>>, vector<1x128xf32>
    %6 = vector.shape_cast %5 : vector<1x128xf32> to vector<1x1x1x128xf32>
    %7 = vector.broadcast %6 : vector<1x1x1x128xf32> to vector<1x16x16x128xf32>
    %8 = arith.addf %4, %7 : vector<1x16x16x128xf32>
    %c0_7 = arith.constant 0 : index
    %c0_8 = arith.constant 0 : index
    %c0_9 = arith.constant 0 : index
    %c0_10 = arith.constant 0 : index
    %9 = vector.load %arg1[%c0_7, %c0_8, %c0_9, %c0_10] : memref<1x16x16x128xf32, #tpu.memory_space<vmem>>, vector<1x16x16x128xf32>
    %c0_11 = arith.constant 0 : index
    %c0_12 = arith.constant 0 : index
    %10 = vector.load %arg2[%c0_11, %c0_12] : memref<1x128xf32, #tpu.memory_space<vmem>>, vector<1x128xf32>
    %11 = vector.shape_cast %10 : vector<1x128xf32> to vector<1x1x1x128xf32>
    %12 = vector.broadcast %11 : vector<1x1x1x128xf32> to vector<1x16x16x128xf32>
    %13 = arith.mulf %9, %12 : vector<1x16x16x128xf32>
    %c0_13 = arith.constant 0 : index
    %c0_14 = arith.constant 0 : index
    %14 = vector.load %arg3[%c0_13, %c0_14] : memref<1x128xf32, #tpu.memory_space<vmem>>, vector<1x128xf32>
    %15 = vector.shape_cast %14 : vector<1x128xf32> to vector<1x1x1x128xf32>
    %16 = vector.broadcast %15 : vector<1x1x1x128xf32> to vector<1x16x16x128xf32>
    %17 = arith.addf %13, %16 : vector<1x16x16x128xf32>
    %18 = arith.addf %17, %8 : vector<1x16x16x128xf32>
    %cst = arith.constant 0.000000e+00 : f32
    %19 = vector.broadcast %cst : f32 to vector<1x16x16x128xf32>
    %20 = arith.maximumf %18, %19 : vector<1x16x16x128xf32>
    %c0_15 = arith.constant 0 : index
    %c0_16 = arith.constant 0 : index
    %c0_17 = arith.constant 0 : index
    %c0_18 = arith.constant 0 : index
    %21 = vector.load %arg7[%c0_15, %c0_16, %c0_17, %c0_18] : memref<1x16x16x128xf32, #tpu.memory_space<vmem>>, vector<1x16x16x128xf32>
    tpu.vector_store %arg7[%c0_15, %c0_16, %c0_17, %c0_18], %20 {strides = array<i32>} : memref<1x16x16x128xf32, #tpu.memory_space<vmem>>, vector<1x16x16x128xf32>,
    return
  }
  func.func @transform_0(%arg0: i32) -> (i32, i32, i32, i32) {
    %c0_i32 = arith.constant 0 : i32
    %c0_i32_0 = arith.constant 0 : i32
    %c0_i32_1 = arith.constant 0 : i32
    %c0_i32_2 = arith.constant 0 : i32
    return %arg0, %c0_i32, %c0_i32_0, %c0_i32_1 : i32, i32, i32, i32
  }
  func.func @transform_1(%arg0: i32) -> (i32, i32) {
    %c0_i32 = arith.constant 0 : i32
    %c0_i32_0 = arith.constant 0 : i32
    %c0_i32_1 = arith.constant 0 : i32
    return %c0_i32, %c0_i32_0 : i32, i32
  }
  func.func @transform_2(%arg0: i32) -> (i32, i32) {
    %c0_i32 = arith.constant 0 : i32
    %c0_i32_0 = arith.constant 0 : i32
    %c0_i32_1 = arith.constant 0 : i32
    return %c0_i32, %c0_i32_0 : i32, i32
  }
  func.func @transform_3(%arg0: i32) -> (i32, i32, i32, i32) {
    %c0_i32 = arith.constant 0 : i32
    %c0_i32_0 = arith.constant 0 : i32
    %c0_i32_1 = arith.constant 0 : i32
    %c0_i32_2 = arith.constant 0 : i32
    return %arg0, %c0_i32, %c0_i32_0, %c0_i32_1 : i32, i32, i32, i32
  }
  func.func @transform_4(%arg0: i32) -> (i32, i32) {
    %c0_i32 = arith.constant 0 : i32
    %c0_i32_0 = arith.constant 0 : i32
    %c0_i32_1 = arith.constant 0 : i32
    return %c0_i32, %c0_i32_0 : i32, i32
  }
  func.func @transform_5(%arg0: i32) -> (i32, i32) {
    %c0_i32 = arith.constant 0 : i32
    %c0_i32_0 = arith.constant 0 : i32
    %c0_i32_1 = arith.constant 0 : i32
    return %c0_i32, %c0_i32_0 : i32, i32
  }
  func.func @transform_6(%arg0: i32) -> (i32, i32, i32, i32) {
    %c0_i32 = arith.constant 0 : i32
    %c0_i32_0 = arith.constant 0 : i32
    %c0_i32_1 = arith.constant 0 : i32
    %c0_i32_2 = arith.constant 0 : i32
    return %arg0, %c0_i32, %c0_i32_0, %c0_i32_1 : i32, i32, i32, i32
  }
}

</mosaic_0001>

<llo_original>
// kernel: basic_block_forward.5
$region0: #{basic_block_forward.5}
  #allocation0 [shape = 'u32[]', space=smem, size = 0x4, offset = 0x4, fixed_abs, tag = 'smem constant byte address 0x4 - core index']
  #allocation1 [shape = 'u32[144,128]{1,0:T(1,128)}', space=vmem, size = 0x12000, scoped, tag = 'internal scratch']
  %s0 = inlined_call_operand.vmem [shape: f32[2,16,16,128], index: 0, kind: input, shape index: {}]
  %s1 = inlined_call_operand.vmem [shape: f32[1,128], index: 1, kind: input, shape index: {}]
  %s2 = inlined_call_operand.vmem [shape: f32[1,128], index: 2, kind: input, shape index: {}]
  %s3 = inlined_call_operand.vmem [shape: f32[2,16,16,128], index: 3, kind: input, shape index: {}]
  %s4 = inlined_call_operand.vmem [shape: f32[1,128], index: 4, kind: input, shape index: {}]
  %s5 = inlined_call_operand.vmem [shape: f32[1,128], index: 5, kind: input, shape index: {}]
  %s6 = inlined_call_operand.vmem [shape: f32[2,16,16,128], index: 6, kind: output, shape index: {}]
  %s7 = sld [smem:[#allocation0]]
  $region57: #{basic_block_forward.5} parent=0
    _
  %s9 = ssub.s32 1, %s7
  %s10 = scalar_select 0, %s9, %s7
  loop: start=0, step=1, limit=4
  $region2: #{basic_block_forward.5} parent=0 // loop_pre_header
    _
  $region3: #{basic_block_forward.5} parent=0 // loop_header
    %s12 = sphi 0, %s16
    %p13 = scmp.ge.s32.totalorder %s12, 4
    %s22 = sphi 0, %s24
    %s25 = sphi 0, %s22
    %s26 = sphi 0, %s25
    %s42 = sphi 0, %s26
    %s46 = sphi 0, %s46
    %s48 = sphi 0, %s46
    %s49 = sphi 0, %s48
    %s63 = sphi 0, %s49
    %s67 = sphi 0, %s67
    %s69 = sphi 0, %s67
    %s70 = sphi 0, %s69
    %s84 = sphi 0, %s70
    %s90 = sphi 0, %s92
    %s93 = sphi 0, %s90
    %s94 = sphi 0, %s93
    %s110 = sphi 0, %s94
    %s114 = sphi 0, %s114
    %s116 = sphi 0, %s114
    %s117 = sphi 0, %s116
    %s131 = sphi 0, %s117
    %s135 = sphi 0, %s135
    %s137 = sphi 0, %s135
    %s138 = sphi 0, %s137
    %s152 = sphi 0, %s138
    %s158 = sphi 0, %s160
    %s161 = sphi 0, %s158
    %s162 = sphi 0, %s161
    %s178 = sphi 0, %s162
  $region4: #{basic_block_forward.5} parent=0 // loop_header_branch
    %15 = sbr.rel (%p13) target = $region8
  $region5: #{basic_block_forward.5} parent=0 // loop_body
    %s17 = ssub.s32 %s12, 1
    %s18 = ssub.s32 %s12, 2
    %s19 = sadd.s32 %s12, 1
    %s20 = ssub.s32 %s12, %s19
    %p21 = scmp.eq.s32.totalorder %s20, 0
    %s23 = sadd.s32 %s22, 1
    %s24 = scalar_select %p21, %s22, %s23
    %p27 = pneg %p21
    %p28 = scmp.eq.s32.totalorder %s12, 1
    %p29 = por %p27, %p28
    %p30 = scmp.ne.s32.totalorder %s22, %s25
    %p31 = scmp.eq.s32.totalorder %s12, 0
    %p32 = por %p30, %p31
    %p33 = scmp.ne.s32.totalorder %s22, %s25
    %p34 = scmp.eq.s32.totalorder %s17, 1
    %p35 = por %p33, %p34
    %p36 = scmp.ne.s32.totalorder %s25, %s26
    %p37 = scmp.eq.s32.totalorder %s17, 0
    %p38 = por %p36, %p37
    %p39 = scmp.ne.s32.totalorder %s25, %s26
    %p40 = scmp.eq.s32.totalorder %s18, 1
    %p41 = por %p39, %p40
    %p43 = scmp.ne.s32.totalorder %s26, %s42
    %p44 = scmp.eq.s32.totalorder %s18, 0
    %p45 = por %p43, %p44
    %s47 = sadd.s32 %s46, 1
    %p50 = scmp.eq.s32.totalorder %s12, 1
    %p51 = scmp.ne.s32.totalorder %s46, %s48
    %p52 = scmp.eq.s32.totalorder %s12, 0
    %p53 = por %p51, %p52
    %p54 = scmp.ne.s32.totalorder %s46, %s48
    %p55 = scmp.eq.s32.totalorder %s17, 1
    %p56 = por %p54, %p55
    %p57 = scmp.ne.s32.totalorder %s48, %s49
    %p58 = scmp.eq.s32.totalorder %s17, 0
    %p59 = por %p57, %p58
    %p60 = scmp.ne.s32.totalorder %s48, %s49
    %p61 = scmp.eq.s32.totalorder %s18, 1
    %p62 = por %p60, %p61
    %p64 = scmp.ne.s32.totalorder %s49, %s63
    %p65 = scmp.eq.s32.totalorder %s18, 0
    %p66 = por %p64, %p65
    %s68 = sadd.s32 %s67, 1
    %p71 = scmp.eq.s32.totalorder %s12, 1
    %p72 = scmp.ne.s32.totalorder %s67, %s69
    %p73 = scmp.eq.s32.totalorder %s12, 0
    %p74 = por %p72, %p73
    %p75 = scmp.ne.s32.totalorder %s67, %s69
    %p76 = scmp.eq.s32.totalorder %s17, 1
    %p77 = por %p75, %p76
    %p78 = scmp.ne.s32.totalorder %s69, %s70
    %p79 = scmp.eq.s32.totalorder %s17, 0
    %p80 = por %p78, %p79
    %p81 = scmp.ne.s32.totalorder %s69, %s70
    %p82 = scmp.eq.s32.totalorder %s18, 1
    %p83 = por %p81, %p82
    %p85 = scmp.ne.s32.totalorder %s70, %s84
    %p86 = scmp.eq.s32.totalorder %s18, 0
    %p87 = por %p85, %p86
    %s88 = ssub.s32 %s12, %s19
    %p89 = scmp.eq.s32.totalorder %s88, 0
    %s91 = sadd.s32 %s90, 1
    %s92 = scalar_select %p89, %s90, %s91
    %p95 = pneg %p89
    %p96 = scmp.eq.s32.totalorder %s12, 1
    %p97 = por %p95, %p96
    %p98 = scmp.ne.s32.totalorder %s90, %s93
    %p99 = scmp.eq.s32.totalorder %s12, 0
    %p100 = por %p98, %p99
    %p101 = scmp.ne.s32.totalorder %s90, %s93
    %p102 = scmp.eq.s32.totalorder %s17, 1
    %p103 = por %p101, %p102
    %p104 = scmp.ne.s32.totalorder %s93, %s94
    %p105 = scmp.eq.s32.totalorder %s17, 0
    %p106 = por %p104, %p105
    %p107 = scmp.ne.s32.totalorder %s93, %s94
    %p108 = scmp.eq.s32.totalorder %s18, 1
    %p109 = por %p107, %p108
    %p111 = scmp.ne.s32.totalorder %s94, %s110
    %p112 = scmp.eq.s32.totalorder %s18, 0
    %p113 = por %p111, %p112
    %s115 = sadd.s32 %s114, 1
    %p118 = scmp.eq.s32.totalorder %s12, 1
    %p119 = scmp.ne.s32.totalorder %s114, %s116
    %p120 = scmp.eq.s32.totalorder %s12, 0
    %p121 = por %p119, %p120
    %p122 = scmp.ne.s32.totalorder %s114, %s116
    %p123 = scmp.eq.s32.totalorder %s17, 1
    %p124 = por %p122, %p123
    %p125 = scmp.ne.s32.totalorder %s116, %s117
    %p126 = scmp.eq.s32.totalorder %s17, 0
    %p127 = por %p125, %p126
    %p128 = scmp.ne.s32.totalorder %s116, %s117
    %p129 = scmp.eq.s32.totalorder %s18, 1
    %p130 = por %p128, %p129
    %p132 = scmp.ne.s32.totalorder %s117, %s131
    %p133 = scmp.eq.s32.totalorder %s18, 0
    %p134 = por %p132, %p133
    %s136 = sadd.s32 %s135, 1
    %p139 = scmp.eq.s32.totalorder %s12, 1
    %p140 = scmp.ne.s32.totalorder %s135, %s137
    %p141 = scmp.eq.s32.totalorder %s12, 0
    %p142 = por %p140, %p141
    %p143 = scmp.ne.s32.totalorder %s135, %s137
    %p144 = scmp.eq.s32.totalorder %s17, 1
    %p145 = por %p143, %p144
    %p146 = scmp.ne.s32.totalorder %s137, %s138
    %p147 = scmp.eq.s32.totalorder %s17, 0
    %p148 = por %p146, %p147
    %p149 = scmp.ne.s32.totalorder %s137, %s138
    %p150 = scmp.eq.s32.totalorder %s18, 1
    %p151 = por %p149, %p150
    %p153 = scmp.ne.s32.totalorder %s138, %s152
    %p154 = scmp.eq.s32.totalorder %s18, 0
    %p155 = por %p153, %p154
    %s156 = ssub.s32 %s12, %s19
    %p157 = scmp.eq.s32.totalorder %s156, 0
    %s159 = sadd.s32 %s158, 1
    %s160 = scalar_select %p157, %s158, %s159
    %p163 = pneg %p157
    %p164 = scmp.eq.s32.totalorder %s12, 1
    %p165 = por %p163, %p164
    %p166 = scmp.ne.s32.totalorder %s158, %s161
    %p167 = scmp.eq.s32.totalorder %s12, 0
    %p168 = por %p166, %p167
    %p169 = scmp.ne.s32.totalorder %s158, %s161
    %p170 = scmp.eq.s32.totalorder %s17, 1
    %p171 = por %p169, %p170
    %p172 = scmp.ne.s32.totalorder %s161, %s162
    %p173 = scmp.eq.s32.totalorder %s17, 0
    %p174 = por %p172, %p173
    %p175 = scmp.ne.s32.totalorder %s161, %s162
    %p176 = scmp.eq.s32.totalorder %s18, 1
    %p177 = por %p175, %p176
    %p179 = scmp.ne.s32.totalorder %s162, %s178
    %p180 = scmp.eq.s32.totalorder %s18, 0
    %p181 = por %p179, %p180
    %p182 = scmp.le.s32.totalorder 1, %s12
    %p183 = scmp.lt.s32.totalorder %s12, 3
    %p184 = pnand %p182, %p183
    %p185 = pneg %p184
    // Predicated region
    $region9: #{basic_block_forward.5} parent=5 // pred_check
      _
    $region10: #{basic_block_forward.5} parent=5 // pred_check_branch
      %187 = sbr.rel (%p184) target = $region12
    $region11: #{basic_block_forward.5} parent=5 // pred_region
      %s188 = ssub.s32 %s12, 1
      // Predicated region
      $region13: #{basic_block_forward.5} parent=11 // pred_check
        %p189 = pneg %p59
      $region14: #{basic_block_forward.5} parent=11 // pred_check_branch
        %191 = sbr.rel (%p189) target = $region16
      $region15: #{basic_block_forward.5} parent=11 // pred_region
        _
      $region16: #{basic_block_forward.5} parent=11 // pred_fallthru
        _
      // Predicated region
      $region17: #{basic_block_forward.5} parent=11 // pred_check
        %p192 = pneg %p80
      $region18: #{basic_block_forward.5} parent=11 // pred_check_branch
        %194 = sbr.rel (%p192) target = $region20
      $region19: #{basic_block_forward.5} parent=11 // pred_region
        _
      $region20: #{basic_block_forward.5} parent=11 // pred_fallthru
        _
      // Predicated region
      $region21: #{basic_block_forward.5} parent=11 // pred_check
        %p195 = pneg %p127
      $region22: #{basic_block_forward.5} parent=11 // pred_check_branch
        %197 = sbr.rel (%p195) target = $region24
      $region23: #{basic_block_forward.5} parent=11 // pred_region
        _
      $region24: #{basic_block_forward.5} parent=11 // pred_fallthru
        _
      // Predicated region
      $region25: #{basic_block_forward.5} parent=11 // pred_check
        %p198 = pneg %p148
      $region26: #{basic_block_forward.5} parent=11 // pred_check_branch
        %200 = sbr.rel (%p198) target = $region28
      $region27: #{basic_block_forward.5} parent=11 // pred_region
        _
      $region28: #{basic_block_forward.5} parent=11 // pred_fallthru
        _
    $region12: #{basic_block_forward.5} parent=5 // pred_fallthru
      _
    %p201 = scmp.lt.s32.totalorder %s12, 2
    // Predicated region
    $region29: #{basic_block_forward.5} parent=5 // pred_check
      %p202 = pneg %p201
    $region30: #{basic_block_forward.5} parent=5 // pred_check_branch
      %204 = sbr.rel (%p202) target = $region32
    $region31: #{basic_block_forward.5} parent=5 // pred_region
      // Predicated region
      $region33: #{basic_block_forward.5} parent=31 // pred_check
        %p205 = pneg %p32
      $region34: #{basic_block_forward.5} parent=31 // pred_check_branch
        %207 = sbr.rel (%p205) target = $region36
      $region35: #{basic_block_forward.5} parent=31 // pred_region
        %p208 = scmp.lt.s32.totalorder %s12, 1
        %s209 = scalar_select %p208, %s12, 1
        %s210 = smul.addr %s209, 32
        %s211 = smul.addr %s210, 8
        %s212 = scalar_lea.vmem %s0, %s211
      $region36: #{basic_block_forward.5} parent=31 // pred_fallthru
        _
      // Predicated region
      $region37: #{basic_block_forward.5} parent=31 // pred_check
        %p213 = pneg %p100
      $region38: #{basic_block_forward.5} parent=31 // pred_check_branch
        %215 = sbr.rel (%p213) target = $region40
      $region39: #{basic_block_forward.5} parent=31 // pred_region
        %p216 = scmp.lt.s32.totalorder %s12, 1
        %s217 = scalar_select %p216, %s12, 1
        %s218 = smul.addr %s217, 32
        %s219 = smul.addr %s218, 8
        %s220 = scalar_lea.vmem %s3, %s219
      $region40: #{basic_block_forward.5} parent=31 // pred_fallthru
        _
    $region32: #{basic_block_forward.5} parent=5 // pred_fallthru
      _
    %p221 = scmp.le.s32.totalorder 1, %s12
    %p222 = scmp.lt.s32.totalorder %s12, 3
    %p223 = pnand %p221, %p222
    %p224 = pneg %p223
    // Predicated region
    $region41: #{basic_block_forward.5} parent=5 // pred_check
      _
    $region42: #{basic_block_forward.5} parent=5 // pred_check_branch
      %226 = sbr.rel (%p223) target = $region44
    $region43: #{basic_block_forward.5} parent=5 // pred_region
      %s227 = ssub.s32 %s12, 1
      %p228 = scmp.lt.s32.totalorder %s17, 1
      %s229 = scalar_select %p228, %s17, 1
      %s230 = smul.addr %s229, 32
      %s231 = smul.addr %s230, 8
      %s232 = scalar_lea.vmem %s0, %s231
      %p233 = pneg %p38
      %p234 = pneg %p35
      %p235 = pneg %p59
      %p236 = pneg %p56
      %p237 = pneg %p80
      %p238 = pneg %p77
      %p239 = scmp.lt.s32.totalorder %s17, 1
      %s240 = scalar_select %p239, %s17, 1
      %s241 = smul.addr %s240, 32
      %s242 = smul.addr %s241, 8
      %s243 = scalar_lea.vmem %s3, %s242
      %p244 = pneg %p106
      %p245 = pneg %p103
      %p246 = pneg %p127
      %p247 = pneg %p124
      %p248 = pneg %p148
      %p249 = pneg %p145
      %p250 = pneg %p174
      %p251 = pneg %p171
      %p252 = scmp.lt.s32.totalorder %s17, 1
      %s253 = scalar_select %p252, %s17, 1
      %s254 = smul.addr %s253, 32
      %s255 = smul.addr %s254, 8
      %s256 = scalar_lea.vmem %s6, %s255
      %p257 = scmp.lt.s32.totalorder %s17, 1
      %s258 = scalar_select %p257, %s17, 1
      %s259 = smul.addr %s258, 32
      %s260 = smul.addr %s259, 8
      %s261 = scalar_lea.vmem %s0, %s260
      %p262 = scmp.lt.s32.totalorder %s17, 1
      %s263 = scalar_select %p262, %s17, 1
      %s264 = smul.addr %s263, 32
      %s265 = smul.addr %s264, 8
      %s266 = scalar_lea.vmem %s3, %s265
      %p267 = scmp.lt.s32.totalorder %s17, 1
      %s268 = scalar_select %p267, %s17, 1
      %s269 = smul.addr %s268, 32
      %s270 = smul.addr %s269, 8
      %s271 = scalar_lea.vmem %s6, %s270
      %v272 = vld [vmem:[%s266] sm:$0xff]
      %v273 = vld [vmem:[%s266 + $0x8] sm:$0xff]
      %v274 = vld [vmem:[%s266 + $0x10] sm:$0xff]
      %v275 = vld [vmem:[%s266 + $0x18] sm:$0xff]
      %v276 = vld [vmem:[%s266 + $0x20] sm:$0xff]
      %v277 = vld [vmem:[%s266 + $0x28] sm:$0xff]
      %v278 = vld [vmem:[%s266 + $0x30] sm:$0xff]
      %v279 = vld [vmem:[%s266 + $0x38] sm:$0xff]
      %v280 = vld [vmem:[%s266 + $0x40] sm:$0xff]
      %v281 = vld [vmem:[%s266 + $0x48] sm:$0xff]
      %v282 = vld [vmem:[%s266 + $0x50] sm:$0xff]
      %v283 = vld [vmem:[%s266 + $0x58] sm:$0xff]
      %v284 = vld [vmem:[%s266 + $0x60] sm:$0xff]
      %v285 = vld [vmem:[%s266 + $0x68] sm:$0xff]
      %v286 = vld [vmem:[%s266 + $0x70] sm:$0xff]
      %v287 = vld [vmem:[%s266 + $0x78] sm:$0xff]
      %v288 = vld [vmem:[%s266 + $0x80] sm:$0xff]
      %v289 = vld [vmem:[%s266 + $0x88] sm:$0xff]
      %v290 = vld [vmem:[%s266 + $0x90] sm:$0xff]
      %v291 = vld [vmem:[%s266 + $0x98] sm:$0xff]
      %v292 = vld [vmem:[%s266 + $0xa0] sm:$0xff]
      %v293 = vld [vmem:[%s266 + $0xa8] sm:$0xff]
      %v294 = vld [vmem:[%s266 + $0xb0] sm:$0xff]
      %v295 = vld [vmem:[%s266 + $0xb8] sm:$0xff]
      %v296 = vld [vmem:[%s266 + $0xc0] sm:$0xff]
      %v297 = vld [vmem:[%s266 + $0xc8] sm:$0xff]
      %v298 = vld [vmem:[%s266 + $0xd0] sm:$0xff]
      %v299 = vld [vmem:[%s266 + $0xd8] sm:$0xff]
      %v300 = vld [vmem:[%s266 + $0xe0] sm:$0xff]
      %v301 = vld [vmem:[%s266 + $0xe8] sm:$0xff]
      %v302 = vld [vmem:[%s266 + $0xf0] sm:$0xff]
      %v303 = vld [vmem:[%s266 + $0xf8] sm:$0xff]
      %v304 = vld [vmem:[%s4] sm:$0x1]
      %v306 = vlaneseq
      %v307 = vshrl.u32 %v306, 7
      %v308 = vsub.s32 0, %v307
      %v309 = vrot.slane %v304, %v308
      %v311 = vmul.f32 %v272, %v309
      %v312 = vmul.f32 %v273, %v309
      %v313 = vmul.f32 %v274, %v309
      %v314 = vmul.f32 %v275, %v309
      %v315 = vmul.f32 %v276, %v309
      %v316 = vmul.f32 %v277, %v309
      %v317 = vmul.f32 %v278, %v309
      %v318 = vmul.f32 %v279, %v309
      %v319 = vmul.f32 %v280, %v309
      %v320 = vmul.f32 %v281, %v309
      %v321 = vmul.f32 %v282, %v309
      %v322 = vmul.f32 %v283, %v309
      %v323 = vmul.f32 %v284, %v309
      %v324 = vmul.f32 %v285, %v309
      %v325 = vmul.f32 %v286, %v309
      %v326 = vmul.f32 %v287, %v309
      %v327 = vmul.f32 %v288, %v309
      %v328 = vmul.f32 %v289, %v309
      %v329 = vmul.f32 %v290, %v309
      %v330 = vmul.f32 %v291, %v309
      %v331 = vmul.f32 %v292, %v309
      %v332 = vmul.f32 %v293, %v309
      %v333 = vmul.f32 %v294, %v309
      %v334 = vmul.f32 %v295, %v309
      %v335 = vmul.f32 %v296, %v309
      %v336 = vmul.f32 %v297, %v309
      %v337 = vmul.f32 %v298, %v309
      %v338 = vmul.f32 %v299, %v309
      %v339 = vmul.f32 %v300, %v309
      %v340 = vmul.f32 %v301, %v309
      %v341 = vmul.f32 %v302, %v309
      %v342 = vmul.f32 %v303, %v309
      %v343 = vld [vmem:[%s5] sm:$0x1]
      %v345 = vlaneseq
      %v346 = vshrl.u32 %v345, 7
      %v347 = vsub.s32 0, %v346
      %v348 = vrot.slane %v343, %v347
      %v350 = vadd.f32 %v311, %v348
      %v351 = vadd.f32 %v312, %v348
      %v352 = vadd.f32 %v313, %v348
      %v353 = vadd.f32 %v314, %v348
      %v354 = vadd.f32 %v315, %v348
      %v355 = vadd.f32 %v316, %v348
      %v356 = vadd.f32 %v317, %v348
      %v357 = vadd.f32 %v318, %v348
      %v358 = vadd.f32 %v319, %v348
      %v359 = vadd.f32 %v320, %v348
      %v360 = vadd.f32 %v321, %v348
      %v361 = vadd.f32 %v322, %v348
      %v362 = vadd.f32 %v323, %v348
      %v363 = vadd.f32 %v324, %v348
      %v364 = vadd.f32 %v325, %v348
      %v365 = vadd.f32 %v326, %v348
      %v366 = vadd.f32 %v327, %v348
      %v367 = vadd.f32 %v328, %v348
      %v368 = vadd.f32 %v329, %v348
      %v369 = vadd.f32 %v330, %v348
      %v370 = vadd.f32 %v331, %v348
      %v371 = vadd.f32 %v332, %v348
      %v372 = vadd.f32 %v333, %v348
      %v373 = vadd.f32 %v334, %v348
      %v374 = vadd.f32 %v335, %v348
      %v375 = vadd.f32 %v336, %v348
      %v376 = vadd.f32 %v337, %v348
      %v377 = vadd.f32 %v338, %v348
      %v378 = vadd.f32 %v339, %v348
      %v379 = vadd.f32 %v340, %v348
      %v380 = vadd.f32 %v341, %v348
      %v381 = vadd.f32 %v342, %v348
      %v382 = vld [vmem:[%s261] sm:$0xff]
      %v383 = vld [vmem:[%s261 + $0x8] sm:$0xff]
      %v384 = vld [vmem:[%s261 + $0x10] sm:$0xff]
      %v385 = vld [vmem:[%s261 + $0x18] sm:$0xff]
      %v386 = vld [vmem:[%s261 + $0x20] sm:$0xff]
      %v387 = vld [vmem:[%s261 + $0x28] sm:$0xff]
      %v388 = vld [vmem:[%s261 + $0x30] sm:$0xff]
      %v389 = vld [vmem:[%s261 + $0x38] sm:$0xff]
      %v390 = vld [vmem:[%s261 + $0x40] sm:$0xff]
      %v391 = vld [vmem:[%s261 + $0x48] sm:$0xff]
      %v392 = vld [vmem:[%s261 + $0x50] sm:$0xff]
      %v393 = vld [vmem:[%s261 + $0x58] sm:$0xff]
      %v394 = vld [vmem:[%s261 + $0x60] sm:$0xff]
      %v395 = vld [vmem:[%s261 + $0x68] sm:$0xff]
      %v396 = vld [vmem:[%s261 + $0x70] sm:$0xff]
      %v397 = vld [vmem:[%s261 + $0x78] sm:$0xff]
      %v398 = vld [vmem:[%s261 + $0x80] sm:$0xff]
      %v399 = vld [vmem:[%s261 + $0x88] sm:$0xff]
      %v400 = vld [vmem:[%s261 + $0x90] sm:$0xff]
      %v401 = vld [vmem:[%s261 + $0x98] sm:$0xff]
      %v402 = vld [vmem:[%s261 + $0xa0] sm:$0xff]
      %v403 = vld [vmem:[%s261 + $0xa8] sm:$0xff]
      %v404 = vld [vmem:[%s261 + $0xb0] sm:$0xff]
      %v405 = vld [vmem:[%s261 + $0xb8] sm:$0xff]
      %v406 = vld [vmem:[%s261 + $0xc0] sm:$0xff]
      %v407 = vld [vmem:[%s261 + $0xc8] sm:$0xff]
      %v408 = vld [vmem:[%s261 + $0xd0] sm:$0xff]
      %v409 = vld [vmem:[%s261 + $0xd8] sm:$0xff]
      %v410 = vld [vmem:[%s261 + $0xe0] sm:$0xff]
      %v411 = vld [vmem:[%s261 + $0xe8] sm:$0xff]
      %v412 = vld [vmem:[%s261 + $0xf0] sm:$0xff]
      %v413 = vld [vmem:[%s261 + $0xf8] sm:$0xff]
      %v414 = vld [vmem:[%s1] sm:$0x1]
      %v416 = vlaneseq
      %v417 = vshrl.u32 %v416, 7
      %v418 = vsub.s32 0, %v417
      %v419 = vrot.slane %v414, %v418
      %v421 = vmul.f32 %v382, %v419
      %v422 = vmul.f32 %v383, %v419
      %v423 = vmul.f32 %v384, %v419
      %v424 = vmul.f32 %v385, %v419
      %v425 = vmul.f32 %v386, %v419
      %v426 = vmul.f32 %v387, %v419
      %v427 = vmul.f32 %v388, %v419
      %v428 = vmul.f32 %v389, %v419
      %v429 = vmul.f32 %v390, %v419
      %v430 = vmul.f32 %v391, %v419
      %v431 = vmul.f32 %v392, %v419
      %v432 = vmul.f32 %v393, %v419
      %v433 = vmul.f32 %v394, %v419
      %v434 = vmul.f32 %v395, %v419
      %v435 = vmul.f32 %v396, %v419
      %v436 = vmul.f32 %v397, %v419
      %v437 = vmul.f32 %v398, %v419
      %v438 = vmul.f32 %v399, %v419
      %v439 = vmul.f32 %v400, %v419
      %v440 = vmul.f32 %v401, %v419
      %v441 = vmul.f32 %v402, %v419
      %v442 = vmul.f32 %v403, %v419
      %v443 = vmul.f32 %v404, %v419
      %v444 = vmul.f32 %v405, %v419
      %v445 = vmul.f32 %v406, %v419
      %v446 = vmul.f32 %v407, %v419
      %v447 = vmul.f32 %v408, %v419
      %v448 = vmul.f32 %v409, %v419
      %v449 = vmul.f32 %v410, %v419
      %v450 = vmul.f32 %v411, %v419
      %v451 = vmul.f32 %v412, %v419
      %v452 = vmul.f32 %v413, %v419
      %v453 = vld [vmem:[%s2] sm:$0x1]
      %v455 = vlaneseq
      %v456 = vshrl.u32 %v455, 7
      %v457 = vsub.s32 0, %v456
      %v458 = vrot.slane %v453, %v457
      %v460 = vadd.f32 %v421, %v458
      %v461 = vadd.f32 %v422, %v458
      %v462 = vadd.f32 %v423, %v458
      %v463 = vadd.f32 %v424, %v458
      %v464 = vadd.f32 %v425, %v458
      %v465 = vadd.f32 %v426, %v458
      %v466 = vadd.f32 %v427, %v458
      %v467 = vadd.f32 %v428, %v458
      %v468 = vadd.f32 %v429, %v458
      %v469 = vadd.f32 %v430, %v458
      %v470 = vadd.f32 %v431, %v458
      %v471 = vadd.f32 %v432, %v458
      %v472 = vadd.f32 %v433, %v458
      %v473 = vadd.f32 %v434, %v458
      %v474 = vadd.f32 %v435, %v458
      %v475 = vadd.f32 %v436, %v458
      %v476 = vadd.f32 %v437, %v458
      %v477 = vadd.f32 %v438, %v458
      %v478 = vadd.f32 %v439, %v458
      %v479 = vadd.f32 %v440, %v458
      %v480 = vadd.f32 %v441, %v458
      %v481 = vadd.f32 %v442, %v458
      %v482 = vadd.f32 %v443, %v458
      %v483 = vadd.f32 %v444, %v458
      %v484 = vadd.f32 %v445, %v458
      %v485 = vadd.f32 %v446, %v458
      %v486 = vadd.f32 %v447, %v458
      %v487 = vadd.f32 %v448, %v458
      %v488 = vadd.f32 %v449, %v458
      %v489 = vadd.f32 %v450, %v458
      %v490 = vadd.f32 %v451, %v458
      %v491 = vadd.f32 %v452, %v458
      %v492 = vadd.f32 %v460, %v350
      %v493 = vadd.f32 %v461, %v351
      %v494 = vadd.f32 %v462, %v352
      %v495 = vadd.f32 %v463, %v353
      %v496 = vadd.f32 %v464, %v354
      %v497 = vadd.f32 %v465, %v355
      %v498 = vadd.f32 %v466, %v356
      %v499 = vadd.f32 %v467, %v357
      %v500 = vadd.f32 %v468, %v358
      %v501 = vadd.f32 %v469, %v359
      %v502 = vadd.f32 %v470, %v360
      %v503 = vadd.f32 %v471, %v361
      %v504 = vadd.f32 %v472, %v362
      %v505 = vadd.f32 %v473, %v363
      %v506 = vadd.f32 %v474, %v364
      %v507 = vadd.f32 %v475, %v365
      %v508 = vadd.f32 %v476, %v366
      %v509 = vadd.f32 %v477, %v367
      %v510 = vadd.f32 %v478, %v368
      %v511 = vadd.f32 %v479, %v369
      %v512 = vadd.f32 %v480, %v370
      %v513 = vadd.f32 %v481, %v371
      %v514 = vadd.f32 %v482, %v372
      %v515 = vadd.f32 %v483, %v373
      %v516 = vadd.f32 %v484, %v374
      %v517 = vadd.f32 %v485, %v375
      %v518 = vadd.f32 %v486, %v376
      %v519 = vadd.f32 %v487, %v377
      %v520 = vadd.f32 %v488, %v378
      %v521 = vadd.f32 %v489, %v379
      %v522 = vadd.f32 %v490, %v380
      %v523 = vadd.f32 %v491, %v381
      %v524 = vmax.f32 %v492, 0.0
      %v525 = vmax.f32 %v493, 0.0
      %v526 = vmax.f32 %v494, 0.0
      %v527 = vmax.f32 %v495, 0.0
      %v528 = vmax.f32 %v496, 0.0
      %v529 = vmax.f32 %v497, 0.0
      %v530 = vmax.f32 %v498, 0.0
      %v531 = vmax.f32 %v499, 0.0
      %v532 = vmax.f32 %v500, 0.0
      %v533 = vmax.f32 %v501, 0.0
      %v534 = vmax.f32 %v502, 0.0
      %v535 = vmax.f32 %v503, 0.0
      %v536 = vmax.f32 %v504, 0.0
      %v537 = vmax.f32 %v505, 0.0
      %v538 = vmax.f32 %v506, 0.0
      %v539 = vmax.f32 %v507, 0.0
      %v540 = vmax.f32 %v508, 0.0
      %v541 = vmax.f32 %v509, 0.0
      %v542 = vmax.f32 %v510, 0.0
      %v543 = vmax.f32 %v511, 0.0
      %v544 = vmax.f32 %v512, 0.0
      %v545 = vmax.f32 %v513, 0.0
      %v546 = vmax.f32 %v514, 0.0
      %v547 = vmax.f32 %v515, 0.0
      %v548 = vmax.f32 %v516, 0.0
      %v549 = vmax.f32 %v517, 0.0
      %v550 = vmax.f32 %v518, 0.0
      %v551 = vmax.f32 %v519, 0.0
      %v552 = vmax.f32 %v520, 0.0
      %v553 = vmax.f32 %v521, 0.0
      %v554 = vmax.f32 %v522, 0.0
      %v555 = vmax.f32 %v523, 0.0
      %556 = vst [vmem:[%s271] sm:$0xff] %v524
      %557 = vst [vmem:[%s271 + $0x8] sm:$0xff] %v525
      %558 = vst [vmem:[%s271 + $0x10] sm:$0xff] %v526
      %559 = vst [vmem:[%s271 + $0x18] sm:$0xff] %v527
      %560 = vst [vmem:[%s271 + $0x20] sm:$0xff] %v528
      %561 = vst [vmem:[%s271 + $0x28] sm:$0xff] %v529
      %562 = vst [vmem:[%s271 + $0x30] sm:$0xff] %v530
      %563 = vst [vmem:[%s271 + $0x38] sm:$0xff] %v531
      %564 = vst [vmem:[%s271 + $0x40] sm:$0xff] %v532
      %565 = vst [vmem:[%s271 + $0x48] sm:$0xff] %v533
      %566 = vst [vmem:[%s271 + $0x50] sm:$0xff] %v534
      %567 = vst [vmem:[%s271 + $0x58] sm:$0xff] %v535
      %568 = vst [vmem:[%s271 + $0x60] sm:$0xff] %v536
      %569 = vst [vmem:[%s271 + $0x68] sm:$0xff] %v537
      %570 = vst [vmem:[%s271 + $0x70] sm:$0xff] %v538
      %571 = vst [vmem:[%s271 + $0x78] sm:$0xff] %v539
      %572 = vst [vmem:[%s271 + $0x80] sm:$0xff] %v540
      %573 = vst [vmem:[%s271 + $0x88] sm:$0xff] %v541
      %574 = vst [vmem:[%s271 + $0x90] sm:$0xff] %v542
      %575 = vst [vmem:[%s271 + $0x98] sm:$0xff] %v543
      %576 = vst [vmem:[%s271 + $0xa0] sm:$0xff] %v544
      %577 = vst [vmem:[%s271 + $0xa8] sm:$0xff] %v545
      %578 = vst [vmem:[%s271 + $0xb0] sm:$0xff] %v546
      %579 = vst [vmem:[%s271 + $0xb8] sm:$0xff] %v547
      %580 = vst [vmem:[%s271 + $0xc0] sm:$0xff] %v548
      %581 = vst [vmem:[%s271 + $0xc8] sm:$0xff] %v549
      %582 = vst [vmem:[%s271 + $0xd0] sm:$0xff] %v550
      %583 = vst [vmem:[%s271 + $0xd8] sm:$0xff] %v551
      %584 = vst [vmem:[%s271 + $0xe0] sm:$0xff] %v552
      %585 = vst [vmem:[%s271 + $0xe8] sm:$0xff] %v553
      %586 = vst [vmem:[%s271 + $0xf0] sm:$0xff] %v554
      %587 = vst [vmem:[%s271 + $0xf8] sm:$0xff] %v555
      %p588 = scmp.lt.s32.totalorder %s17, 1
      %s589 = scalar_select %p588, %s17, 1
      %s590 = smul.addr %s589, 32
      %s591 = smul.addr %s590, 8
      %s592 = scalar_lea.vmem %s6, %s591
      // Predicated region
      $region45: #{basic_block_forward.5} parent=43 // pred_check
        %p593 = pneg %p171
      $region46: #{basic_block_forward.5} parent=43 // pred_check_branch
        %595 = sbr.rel (%p593) target = $region48
      $region47: #{basic_block_forward.5} parent=43 // pred_region
        _
      $region48: #{basic_block_forward.5} parent=43 // pred_fallthru
        _
    $region44: #{basic_block_forward.5} parent=5 // pred_fallthru
      _
    %p596 = scmp.le.s32.totalorder 2, %s12
    // Predicated region
    $region49: #{basic_block_forward.5} parent=5 // pred_check
      %p597 = pneg %p596
    $region50: #{basic_block_forward.5} parent=5 // pred_check_branch
      %599 = sbr.rel (%p597) target = $region52
    $region51: #{basic_block_forward.5} parent=5 // pred_region
      %s600 = ssub.s32 %s12, 2
      // Predicated region
      $region53: #{basic_block_forward.5} parent=51 // pred_check
        %p601 = pneg %p177
      $region54: #{basic_block_forward.5} parent=51 // pred_check_branch
        %603 = sbr.rel (%p601) target = $region56
      $region55: #{basic_block_forward.5} parent=51 // pred_region
        %p604 = scmp.lt.s32.totalorder %s18, 1
        %s605 = scalar_select %p604, %s18, 1
        %s606 = smul.addr %s605, 32
        %s607 = smul.addr %s606, 8
        %s608 = scalar_lea.vmem %s6, %s607
      $region56: #{basic_block_forward.5} parent=51 // pred_fallthru
        _
    $region52: #{basic_block_forward.5} parent=5 // pred_fallthru
      _
  $region6: #{basic_block_forward.5} parent=0 // loop_footer
    %s16 = sadd.s32 1, %s12
  $region7: #{basic_block_forward.5} parent=0 // loop_footer_branch
    %11 = sbr.rel target = $region3
  $region8: #{basic_block_forward.5} parent=0 // loop_exit
    _

// kernel: basic_block_forward.3
$region0: #{basic_block_forward.3}
  #allocation0 [shape = 'u32[]', space=smem, size = 0x4, offset = 0x4, fixed_abs, tag = 'smem constant byte address 0x4 - core index']
  #allocation1 [shape = 'u32[144,128]{1,0:T(1,128)}', space=vmem, size = 0x12000, scoped, tag = 'internal scratch']
  %s0 = inlined_call_operand.vmem [shape: f32[2,18,18,128], index: 0, kind: input, shape index: {}]
  %s1 = inlined_call_operand.vmem [shape: f32[1152,128], index: 1, kind: input, shape index: {}]
  %s2 = inlined_call_operand.vmem [shape: f32[128,128], index: 2, kind: input, shape index: {}]
  %s3 = inlined_call_operand.vmem [shape: f32[2,16,16,128], index: 3, kind: output, shape index: {0}]
  %s4 = inlined_call_operand.vmem [shape: f32[2,16,16,128], index: 4, kind: output, shape index: {1}]
  %s5 = inlined_call_operand.vmem [shape: f32[2,8,128], index: 5, kind: output, shape index: {2}]
  %6 = xla_tuple %s3, %s4, %s5
  %s7 = sld [smem:[#allocation0]]
  $region61: #{basic_block_forward.3} parent=0
    _
  %s9 = ssub.s32 1, %s7
  %s10 = scalar_select 0, %s9, %s7
  loop: start=0, step=1, limit=4
  $region2: #{basic_block_forward.3} parent=0 // loop_pre_header
    _
  $region3: #{basic_block_forward.3} parent=0 // loop_header
    %s12 = sphi 0, %s16
    %p13 = scmp.ge.s32.totalorder %s12, 4
    %s22 = sphi 0, %s24
    %s25 = sphi 0, %s22
    %s26 = sphi 0, %s25
    %s42 = sphi 0, %s26
    %s46 = sphi 0, %s46
    %s48 = sphi 0, %s46
    %s49 = sphi 0, %s48
    %s63 = sphi 0, %s49
    %s67 = sphi 0, %s67
    %s69 = sphi 0, %s67
    %s70 = sphi 0, %s69
    %s84 = sphi 0, %s70
    %s90 = sphi 0, %s92
    %s93 = sphi 0, %s90
    %s94 = sphi 0, %s93
    %s110 = sphi 0, %s94
    %s116 = sphi 0, %s118
    %s119 = sphi 0, %s116
    %s120 = sphi 0, %s119
    %s136 = sphi 0, %s120
    %s142 = sphi 0, %s144
    %s145 = sphi 0, %s142
    %s146 = sphi 0, %s145
    %s162 = sphi 0, %s146
  $region4: #{basic_block_forward.3} parent=0 // loop_header_branch
    %15 = sbr.rel (%p13) target = $region8
  $region5: #{basic_block_forward.3} parent=0 // loop_body
    %s17 = ssub.s32 %s12, 1
    %s18 = ssub.s32 %s12, 2
    %s19 = sadd.s32 %s12, 1
    %s20 = ssub.s32 %s12, %s19
    %p21 = scmp.eq.s32.totalorder %s20, 0
    %s23 = sadd.s32 %s22, 1
    %s24 = scalar_select %p21, %s22, %s23
    %p27 = pneg %p21
    %p28 = scmp.eq.s32.totalorder %s12, 1
    %p29 = por %p27, %p28
    %p30 = scmp.ne.s32.totalorder %s22, %s25
    %p31 = scmp.eq.s32.totalorder %s12, 0
    %p32 = por %p30, %p31
    %p33 = scmp.ne.s32.totalorder %s22, %s25
    %p34 = scmp.eq.s32.totalorder %s17, 1
    %p35 = por %p33, %p34
    %p36 = scmp.ne.s32.totalorder %s25, %s26
    %p37 = scmp.eq.s32.totalorder %s17, 0
    %p38 = por %p36, %p37
    %p39 = scmp.ne.s32.totalorder %s25, %s26
    %p40 = scmp.eq.s32.totalorder %s18, 1
    %p41 = por %p39, %p40
    %p43 = scmp.ne.s32.totalorder %s26, %s42
    %p44 = scmp.eq.s32.totalorder %s18, 0
    %p45 = por %p43, %p44
    %s47 = sadd.s32 %s46, 1
    %p50 = scmp.eq.s32.totalorder %s12, 1
    %p51 = scmp.ne.s32.totalorder %s46, %s48
    %p52 = scmp.eq.s32.totalorder %s12, 0
    %p53 = por %p51, %p52
    %p54 = scmp.ne.s32.totalorder %s46, %s48
    %p55 = scmp.eq.s32.totalorder %s17, 1
    %p56 = por %p54, %p55
    %p57 = scmp.ne.s32.totalorder %s48, %s49
    %p58 = scmp.eq.s32.totalorder %s17, 0
    %p59 = por %p57, %p58
    %p60 = scmp.ne.s32.totalorder %s48, %s49
    %p61 = scmp.eq.s32.totalorder %s18, 1
    %p62 = por %p60, %p61
    %p64 = scmp.ne.s32.totalorder %s49, %s63
    %p65 = scmp.eq.s32.totalorder %s18, 0
    %p66 = por %p64, %p65
    %s68 = sadd.s32 %s67, 1
    %p71 = scmp.eq.s32.totalorder %s12, 1
    %p72 = scmp.ne.s32.totalorder %s67, %s69
    %p73 = scmp.eq.s32.totalorder %s12, 0
    %p74 = por %p72, %p73
    %p75 = scmp.ne.s32.totalorder %s67, %s69
    %p76 = scmp.eq.s32.totalorder %s17, 1
    %p77 = por %p75, %p76
    %p78 = scmp.ne.s32.totalorder %s69, %s70
    %p79 = scmp.eq.s32.totalorder %s17, 0
    %p80 = por %p78, %p79
    %p81 = scmp.ne.s32.totalorder %s69, %s70
    %p82 = scmp.eq.s32.totalorder %s18, 1
    %p83 = por %p81, %p82
    %p85 = scmp.ne.s32.totalorder %s70, %s84
    %p86 = scmp.eq.s32.totalorder %s18, 0
    %p87 = por %p85, %p86
    %s88 = ssub.s32 %s12, %s19
    %p89 = scmp.eq.s32.totalorder %s88, 0
    %s91 = sadd.s32 %s90, 1
    %s92 = scalar_select %p89, %s90, %s91
    %p95 = pneg %p89
    %p96 = scmp.eq.s32.totalorder %s12, 1
    %p97 = por %p95, %p96
    %p98 = scmp.ne.s32.totalorder %s90, %s93
    %p99 = scmp.eq.s32.totalorder %s12, 0
    %p100 = por %p98, %p99
    %p101 = scmp.ne.s32.totalorder %s90, %s93
    %p102 = scmp.eq.s32.totalorder %s17, 1
    %p103 = por %p101, %p102
    %p104 = scmp.ne.s32.totalorder %s93, %s94
    %p105 = scmp.eq.s32.totalorder %s17, 0
    %p106 = por %p104, %p105
    %p107 = scmp.ne.s32.totalorder %s93, %s94
    %p108 = scmp.eq.s32.totalorder %s18, 1
    %p109 = por %p107, %p108
    %p111 = scmp.ne.s32.totalorder %s94, %s110
    %p112 = scmp.eq.s32.totalorder %s18, 0
    %p113 = por %p111, %p112
    %s114 = ssub.s32 %s12, %s19
    %p115 = scmp.eq.s32.totalorder %s114, 0
    %s117 = sadd.s32 %s116, 1
    %s118 = scalar_select %p115, %s116, %s117
    %p121 = pneg %p115
    %p122 = scmp.eq.s32.totalorder %s12, 1
    %p123 = por %p121, %p122
    %p124 = scmp.ne.s32.totalorder %s116, %s119
    %p125 = scmp.eq.s32.totalorder %s12, 0
    %p126 = por %p124, %p125
    %p127 = scmp.ne.s32.totalorder %s116, %s119
    %p128 = scmp.eq.s32.totalorder %s17, 1
    %p129 = por %p127, %p128
    %p130 = scmp.ne.s32.totalorder %s119, %s120
    %p131 = scmp.eq.s32.totalorder %s17, 0
    %p132 = por %p130, %p131
    %p133 = scmp.ne.s32.totalorder %s119, %s120
    %p134 = scmp.eq.s32.totalorder %s18, 1
    %p135 = por %p133, %p134
    %p137 = scmp.ne.s32.totalorder %s120, %s136
    %p138 = scmp.eq.s32.totalorder %s18, 0
    %p139 = por %p137, %p138
    %s140 = ssub.s32 %s12, %s19
    %p141 = scmp.eq.s32.totalorder %s140, 0
    %s143 = sadd.s32 %s142, 1
    %s144 = scalar_select %p141, %s142, %s143
    %p147 = pneg %p141
    %p148 = scmp.eq.s32.totalorder %s12, 1
    %p149 = por %p147, %p148
    %p150 = scmp.ne.s32.totalorder %s142, %s145
    %p151 = scmp.eq.s32.totalorder %s12, 0
    %p152 = por %p150, %p151
    %p153 = scmp.ne.s32.totalorder %s142, %s145
    %p154 = scmp.eq.s32.totalorder %s17, 1
    %p155 = por %p153, %p154
    %p156 = scmp.ne.s32.totalorder %s145, %s146
    %p157 = scmp.eq.s32.totalorder %s17, 0
    %p158 = por %p156, %p157
    %p159 = scmp.ne.s32.totalorder %s145, %s146
    %p160 = scmp.eq.s32.totalorder %s18, 1
    %p161 = por %p159, %p160
    %p163 = scmp.ne.s32.totalorder %s146, %s162
    %p164 = scmp.eq.s32.totalorder %s18, 0
    %p165 = por %p163, %p164
    %p166 = scmp.le.s32.totalorder 1, %s12
    %p167 = scmp.lt.s32.totalorder %s12, 3
    %p168 = pnand %p166, %p167
    %p169 = pneg %p168
    // Predicated region
    $region9: #{basic_block_forward.3} parent=5 // pred_check
      _
    $region10: #{basic_block_forward.3} parent=5 // pred_check_branch
      %171 = sbr.rel (%p168) target = $region12
    $region11: #{basic_block_forward.3} parent=5 // pred_region
      %s172 = ssub.s32 %s12, 1
      // Predicated region
      $region13: #{basic_block_forward.3} parent=11 // pred_check
        %p173 = pneg %p59
      $region14: #{basic_block_forward.3} parent=11 // pred_check_branch
        %175 = sbr.rel (%p173) target = $region16
      $region15: #{basic_block_forward.3} parent=11 // pred_region
        _
      $region16: #{basic_block_forward.3} parent=11 // pred_fallthru
        _
      // Predicated region
      $region17: #{basic_block_forward.3} parent=11 // pred_check
        %p176 = pneg %p80
      $region18: #{basic_block_forward.3} parent=11 // pred_check_branch
        %178 = sbr.rel (%p176) target = $region20
      $region19: #{basic_block_forward.3} parent=11 // pred_region
        _
      $region20: #{basic_block_forward.3} parent=11 // pred_fallthru
        _
    $region12: #{basic_block_forward.3} parent=5 // pred_fallthru
      _
    %p179 = scmp.lt.s32.totalorder %s12, 2
    // Predicated region
    $region21: #{basic_block_forward.3} parent=5 // pred_check
      %p180 = pneg %p179
    $region22: #{basic_block_forward.3} parent=5 // pred_check_branch
      %182 = sbr.rel (%p180) target = $region24
    $region23: #{basic_block_forward.3} parent=5 // pred_region
      // Predicated region
      $region25: #{basic_block_forward.3} parent=23 // pred_check
        %p183 = pneg %p32
      $region26: #{basic_block_forward.3} parent=23 // pred_check_branch
        %185 = sbr.rel (%p183) target = $region28
      $region27: #{basic_block_forward.3} parent=23 // pred_region
        %p186 = scmp.lt.s32.totalorder %s12, 1
        %s187 = scalar_select %p186, %s12, 1
        %s188 = smul.addr %s187, 54
        %s189 = smul.addr %s188, 8
        %s190 = scalar_lea.vmem %s0, %s189
      $region28: #{basic_block_forward.3} parent=23 // pred_fallthru
        _
    $region24: #{basic_block_forward.3} parent=5 // pred_fallthru
      _
    %p191 = scmp.le.s32.totalorder 1, %s12
    %p192 = scmp.lt.s32.totalorder %s12, 3
    %p193 = pnand %p191, %p192
    %p194 = pneg %p193
    // Predicated region
    $region29: #{basic_block_forward.3} parent=5 // pred_check
      _
    $region30: #{basic_block_forward.3} parent=5 // pred_check_branch
      %196 = sbr.rel (%p193) target = $region32
    $region31: #{basic_block_forward.3} parent=5 // pred_region
      %s197 = ssub.s32 %s12, 1
      %p198 = scmp.lt.s32.totalorder %s17, 1
      %s199 = scalar_select %p198, %s17, 1
      %s200 = smul.addr %s199, 54
      %s201 = smul.addr %s200, 8
      %s202 = scalar_lea.vmem %s0, %s201
      %p203 = pneg %p38
      %p204 = pneg %p35
      %p205 = pneg %p59
      %p206 = pneg %p56
      %p207 = pneg %p80
      %p208 = pneg %p77
      %p209 = pneg %p106
      %p210 = pneg %p103
      %p211 = scmp.lt.s32.totalorder %s17, 1
      %s212 = scalar_select %p211, %s17, 1
      %s213 = smul.addr %s212, 32
      %s214 = smul.addr %s213, 8
      %s215 = scalar_lea.vmem %s3, %s214
      %p216 = pneg %p132
      %p217 = pneg %p129
      %p218 = scmp.lt.s32.totalorder %s17, 1
      %s219 = scalar_select %p218, %s17, 1
      %s220 = smul.addr %s219, 32
      %s221 = smul.addr %s220, 8
      %s222 = scalar_lea.vmem %s4, %s221
      %p223 = pneg %p158
      %p224 = pneg %p155
      %p225 = scmp.lt.s32.totalorder %s17, 1
      %s226 = scalar_select %p225, %s17, 1
      %s227 = smul.addr %s226, 8
      %s228 = scalar_lea.vmem %s5, %s227
      %p229 = scmp.lt.s32.totalorder %s17, 1
      %s230 = scalar_select %p229, %s17, 1
      %s231 = smul.addr %s230, 54
      %s232 = smul.addr %s231, 8
      %s233 = scalar_lea.vmem %s0, %s232
      %p234 = scmp.lt.s32.totalorder %s17, 1
      %s235 = scalar_select %p234, %s17, 1
      %s236 = smul.addr %s235, 32
      %s237 = smul.addr %s236, 8
      %s238 = scalar_lea.vmem %s3, %s237
      %p239 = scmp.lt.s32.totalorder %s17, 1
      %s240 = scalar_select %p239, %s17, 1
      %s241 = smul.addr %s240, 32
      %s242 = smul.addr %s241, 8
      %s243 = scalar_lea.vmem %s4, %s242
      %p244 = scmp.lt.s32.totalorder %s17, 1
      %s245 = scalar_select %p244, %s17, 1
      %s246 = smul.addr %s245, 8
      %s247 = scalar_lea.vmem %s5, %s246
      %v248 = vld [vmem:[%s233] sm:$0xff]
      %v249 = vld [vmem:[%s233 + $0x8] sm:$0xff]
      %v250 = vld [vmem:[%s233 + $0x18] sm:$0xff]
      %v251 = vld [vmem:[%s233 + $0x20] sm:$0xff]
      %v252 = vld [vmem:[%s233 + $0x30] sm:$0xff]
      %v253 = vld [vmem:[%s233 + $0x38] sm:$0xff]
      %v254 = vld [vmem:[%s233 + $0x48] sm:$0xff]
      %v255 = vld [vmem:[%s233 + $0x50] sm:$0xff]
      %v256 = vld [vmem:[%s233 + $0x60] sm:$0xff]
      %v257 = vld [vmem:[%s233 + $0x68] sm:$0xff]
      %v258 = vld [vmem:[%s233 + $0x78] sm:$0xff]
      %v259 = vld [vmem:[%s233 + $0x80] sm:$0xff]
      %v260 = vld [vmem:[%s233 + $0x90] sm:$0xff]
      %v261 = vld [vmem:[%s233 + $0x98] sm:$0xff]
      %v262 = vld [vmem:[%s233 + $0xa8] sm:$0xff]
      %v263 = vld [vmem:[%s233 + $0xb0] sm:$0xff]
      %v264 = vld [vmem:[%s233 + $0xc0] sm:$0xff]
      %v265 = vld [vmem:[%s233 + $0xc8] sm:$0xff]
      %v266 = vld [vmem:[%s233 + $0xd8] sm:$0xff]
      %v267 = vld [vmem:[%s233 + $0xe0] sm:$0xff]
      %v268 = vld [vmem:[%s233 + $0xf0] sm:$0xff]
      %v269 = vld [vmem:[%s233 + $0xf8] sm:$0xff]
      %v270 = vld [vmem:[%s233 + $0x108] sm:$0xff]
      %v271 = vld [vmem:[%s233 + $0x110] sm:$0xff]
      %v272 = vld [vmem:[%s233 + $0x120] sm:$0xff]
      %v273 = vld [vmem:[%s233 + $0x128] sm:$0xff]
      %v274 = vld [vmem:[%s233 + $0x138] sm:$0xff]
      %v275 = vld [vmem:[%s233 + $0x140] sm:$0xff]
      %v276 = vld [vmem:[%s233 + $0x150] sm:$0xff]
      %v277 = vld [vmem:[%s233 + $0x158] sm:$0xff]
      %v278 = vld [vmem:[%s233 + $0x168] sm:$0xff]
      %v279 = vld [vmem:[%s233 + $0x170] sm:$0xff]
      %v280 = vld [vmem:[%s233 + $0x1] sm:$0xff]
      %v281 = vld [vmem:[%s233 + $0x9] sm:$0xff]
      %v282 = vld [vmem:[%s233 + $0x19] sm:$0xff]
      %v283 = vld [vmem:[%s233 + $0x21] sm:$0xff]
      %v284 = vld [vmem:[%s233 + $0x31] sm:$0xff]
      %v285 = vld [vmem:[%s233 + $0x39] sm:$0xff]
      %v286 = vld [vmem:[%s233 + $0x49] sm:$0xff]
      %v287 = vld [vmem:[%s233 + $0x51] sm:$0xff]
      %v288 = vld [vmem:[%s233 + $0x61] sm:$0xff]
      %v289 = vld [vmem:[%s233 + $0x69] sm:$0xff]
      %v290 = vld [vmem:[%s233 + $0x79] sm:$0xff]
      %v291 = vld [vmem:[%s233 + $0x81] sm:$0xff]
      %v292 = vld [vmem:[%s233 + $0x91] sm:$0xff]
      %v293 = vld [vmem:[%s233 + $0x99] sm:$0xff]
      %v294 = vld [vmem:[%s233 + $0xa9] sm:$0xff]
      %v295 = vld [vmem:[%s233 + $0xb1] sm:$0xff]
      %v296 = vld [vmem:[%s233 + $0xc1] sm:$0xff]
      %v297 = vld [vmem:[%s233 + $0xc9] sm:$0xff]
      %v298 = vld [vmem:[%s233 + $0xd9] sm:$0xff]
      %v299 = vld [vmem:[%s233 + $0xe1] sm:$0xff]
      %v300 = vld [vmem:[%s233 + $0xf1] sm:$0xff]
      %v301 = vld [vmem:[%s233 + $0xf9] sm:$0xff]
      %v302 = vld [vmem:[%s233 + $0x109] sm:$0xff]
      %v303 = vld [vmem:[%s233 + $0x111] sm:$0xff]
      %v304 = vld [vmem:[%s233 + $0x121] sm:$0xff]
      %v305 = vld [vmem:[%s233 + $0x129] sm:$0xff]
      %v306 = vld [vmem:[%s233 + $0x139] sm:$0xff]
      %v307 = vld [vmem:[%s233 + $0x141] sm:$0xff]
      %v308 = vld [vmem:[%s233 + $0x151] sm:$0xff]
      %v309 = vld [vmem:[%s233 + $0x159] sm:$0xff]
      %v310 = vld [vmem:[%s233 + $0x169] sm:$0xff]
      %v311 = vld [vmem:[%s233 + $0x171] sm:$0xff]
      %v312 = vld [vmem:[%s233 + $0x2] sm:$0xff]
      %v313 = vld [vmem:[%s233 + $0xa] sm:$0xff]
      %v314 = vld [vmem:[%s233 + $0x1a] sm:$0xff]
      %v315 = vld [vmem:[%s233 + $0x22] sm:$0xff]
      %v316 = vld [vmem:[%s233 + $0x32] sm:$0xff]
      %v317 = vld [vmem:[%s233 + $0x3a] sm:$0xff]
      %v318 = vld [vmem:[%s233 + $0x4a] sm:$0xff]
      %v319 = vld [vmem:[%s233 + $0x52] sm:$0xff]
      %v320 = vld [vmem:[%s233 + $0x62] sm:$0xff]
      %v321 = vld [vmem:[%s233 + $0x6a] sm:$0xff]
      %v322 = vld [vmem:[%s233 + $0x7a] sm:$0xff]
      %v323 = vld [vmem:[%s233 + $0x82] sm:$0xff]
      %v324 = vld [vmem:[%s233 + $0x92] sm:$0xff]
      %v325 = vld [vmem:[%s233 + $0x9a] sm:$0xff]
      %v326 = vld [vmem:[%s233 + $0xaa] sm:$0xff]
      %v327 = vld [vmem:[%s233 + $0xb2] sm:$0xff]
      %v328 = vld [vmem:[%s233 + $0xc2] sm:$0xff]
      %v329 = vld [vmem:[%s233 + $0xca] sm:$0xff]
      %v330 = vld [vmem:[%s233 + $0xda] sm:$0xff]
      %v331 = vld [vmem:[%s233 + $0xe2] sm:$0xff]
      %v332 = vld [vmem:[%s233 + $0xf2] sm:$0xff]
      %v333 = vld [vmem:[%s233 + $0xfa] sm:$0xff]
      %v334 = vld [vmem:[%s233 + $0x10a] sm:$0xff]
      %v335 = vld [vmem:[%s233 + $0x112] sm:$0xff]
      %v336 = vld [vmem:[%s233 + $0x122] sm:$0xff]
      %v337 = vld [vmem:[%s233 + $0x12a] sm:$0xff]
      %v338 = vld [vmem:[%s233 + $0x13a] sm:$0xff]
      %v339 = vld [vmem:[%s233 + $0x142] sm:$0xff]
      %v340 = vld [vmem:[%s233 + $0x152] sm:$0xff]
      %v341 = vld [vmem:[%s233 + $0x15a] sm:$0xff]
      %v342 = vld [vmem:[%s233 + $0x16a] sm:$0xff]
      %v343 = vld [vmem:[%s233 + $0x172] sm:$0xff]
      %v344 = vld [vmem:[%s1] sm:$0xff]
      %v345 = vld [vmem:[%s1 + $0x8] sm:$0xff]
      %v346 = vld [vmem:[%s1 + $0x10] sm:$0xff]
      %v347 = vld [vmem:[%s1 + $0x18] sm:$0xff]
      %v348 = vld [vmem:[%s1 + $0x20] sm:$0xff]
      %v349 = vld [vmem:[%s1 + $0x28] sm:$0xff]
      %v350 = vld [vmem:[%s1 + $0x30] sm:$0xff]
      %v351 = vld [vmem:[%s1 + $0x38] sm:$0xff]
      %v352 = vld [vmem:[%s1 + $0x40] sm:$0xff]
      %v353 = vld [vmem:[%s1 + $0x48] sm:$0xff]
      %v354 = vld [vmem:[%s1 + $0x50] sm:$0xff]
      %v355 = vld [vmem:[%s1 + $0x58] sm:$0xff]
      %v356 = vld [vmem:[%s1 + $0x60] sm:$0xff]
      %v357 = vld [vmem:[%s1 + $0x68] sm:$0xff]
      %v358 = vld [vmem:[%s1 + $0x70] sm:$0xff]
      %v359 = vld [vmem:[%s1 + $0x78] sm:$0xff]
      %v360 = vld [vmem:[%s1 + $0x80] sm:$0xff]
      %v361 = vld [vmem:[%s1 + $0x88] sm:$0xff]
      %v362 = vld [vmem:[%s1 + $0x90] sm:$0xff]
      %v363 = vld [vmem:[%s1 + $0x98] sm:$0xff]
      %v364 = vld [vmem:[%s1 + $0xa0] sm:$0xff]
      %v365 = vld [vmem:[%s1 + $0xa8] sm:$0xff]
      %v366 = vld [vmem:[%s1 + $0xb0] sm:$0xff]
      %v367 = vld [vmem:[%s1 + $0xb8] sm:$0xff]
      %v368 = vld [vmem:[%s1 + $0xc0] sm:$0xff]
      %v369 = vld [vmem:[%s1 + $0xc8] sm:$0xff]
      %v370 = vld [vmem:[%s1 + $0xd0] sm:$0xff]
      %v371 = vld [vmem:[%s1 + $0xd8] sm:$0xff]
      %v372 = vld [vmem:[%s1 + $0xe0] sm:$0xff]
      %v373 = vld [vmem:[%s1 + $0xe8] sm:$0xff]
      %v374 = vld [vmem:[%s1 + $0xf0] sm:$0xff]
      %v375 = vld [vmem:[%s1 + $0xf8] sm:$0xff]
      %v376 = vld [vmem:[%s1 + $0x100] sm:$0xff]
      %v377 = vld [vmem:[%s1 + $0x108] sm:$0xff]
      %v378 = vld [vmem:[%s1 + $0x110] sm:$0xff]
      %v379 = vld [vmem:[%s1 + $0x118] sm:$0xff]
      %v380 = vld [vmem:[%s1 + $0x120] sm:$0xff]
      %v381 = vld [vmem:[%s1 + $0x128] sm:$0xff]
      %v382 = vld [vmem:[%s1 + $0x130] sm:$0xff]
      %v383 = vld [vmem:[%s1 + $0x138] sm:$0xff]
      %v384 = vld [vmem:[%s1 + $0x140] sm:$0xff]
      %v385 = vld [vmem:[%s1 + $0x148] sm:$0xff]
      %v386 = vld [vmem:[%s1 + $0x150] sm:$0xff]
      %v387 = vld [vmem:[%s1 + $0x158] sm:$0xff]
      %v388 = vld [vmem:[%s1 + $0x160] sm:$0xff]
      %v389 = vld [vmem:[%s1 + $0x168] sm:$0xff]
      %v390 = vld [vmem:[%s1 + $0x170] sm:$0xff]
      %v391 = vld [vmem:[%s1 + $0x178] sm:$0xff]
      %s392 = scalar_lea.vmem %s233, 24
      %v393 = vld [vmem:[%s392] sm:$0xff]
      %v394 = vld [vmem:[%s392 + $0x8] sm:$0xff]
      %v395 = vld [vmem:[%s392 + $0x18] sm:$0xff]
      %v396 = vld [vmem:[%s392 + $0x20] sm:$0xff]
      %v397 = vld [vmem:[%s392 + $0x30] sm:$0xff]
      %v398 = vld [vmem:[%s392 + $0x38] sm:$0xff]
      %v399 = vld [vmem:[%s392 + $0x48] sm:$0xff]
      %v400 = vld [vmem:[%s392 + $0x50] sm:$0xff]
      %v401 = vld [vmem:[%s392 + $0x60] sm:$0xff]
      %v402 = vld [vmem:[%s392 + $0x68] sm:$0xff]
      %v403 = vld [vmem:[%s392 + $0x78] sm:$0xff]
      %v404 = vld [vmem:[%s392 + $0x80] sm:$0xff]
      %v405 = vld [vmem:[%s392 + $0x90] sm:$0xff]
      %v406 = vld [vmem:[%s392 + $0x98] sm:$0xff]
      %v407 = vld [vmem:[%s392 + $0xa8] sm:$0xff]
      %v408 = vld [vmem:[%s392 + $0xb0] sm:$0xff]
      %v409 = vld [vmem:[%s392 + $0xc0] sm:$0xff]
      %v410 = vld [vmem:[%s392 + $0xc8] sm:$0xff]
      %v411 = vld [vmem:[%s392 + $0xd8] sm:$0xff]
      %v412 = vld [vmem:[%s392 + $0xe0] sm:$0xff]
      %v413 = vld [vmem:[%s392 + $0xf0] sm:$0xff]
      %v414 = vld [vmem:[%s392 + $0xf8] sm:$0xff]
      %v415 = vld [vmem:[%s392 + $0x108] sm:$0xff]
      %v416 = vld [vmem:[%s392 + $0x110] sm:$0xff]
      %v417 = vld [vmem:[%s392 + $0x120] sm:$0xff]
      %v418 = vld [vmem:[%s392 + $0x128] sm:$0xff]
      %v419 = vld [vmem:[%s392 + $0x138] sm:$0xff]
      %v420 = vld [vmem:[%s392 + $0x140] sm:$0xff]
      %v421 = vld [vmem:[%s392 + $0x150] sm:$0xff]
      %v422 = vld [vmem:[%s392 + $0x158] sm:$0xff]
      %v423 = vld [vmem:[%s392 + $0x168] sm:$0xff]
      %v424 = vld [vmem:[%s392 + $0x170] sm:$0xff]
      %v425 = vld [vmem:[%s392 + $0x1] sm:$0xff]
      %v426 = vld [vmem:[%s392 + $0x9] sm:$0xff]
      %v427 = vld [vmem:[%s392 + $0x19] sm:$0xff]
      %v428 = vld [vmem:[%s392 + $0x21] sm:$0xff]
      %v429 = vld [vmem:[%s392 + $0x31] sm:$0xff]
      %v430 = vld [vmem:[%s392 + $0x39] sm:$0xff]
      %v431 = vld [vmem:[%s392 + $0x49] sm:$0xff]
      %v432 = vld [vmem:[%s392 + $0x51] sm:$0xff]
      %v433 = vld [vmem:[%s392 + $0x61] sm:$0xff]
      %v434 = vld [vmem:[%s392 + $0x69] sm:$0xff]
      %v435 = vld [vmem:[%s392 + $0x79] sm:$0xff]
      %v436 = vld [vmem:[%s392 + $0x81] sm:$0xff]
      %v437 = vld [vmem:[%s392 + $0x91] sm:$0xff]
      %v438 = vld [vmem:[%s392 + $0x99] sm:$0xff]
      %v439 = vld [vmem:[%s392 + $0xa9] sm:$0xff]
      %v440 = vld [vmem:[%s392 + $0xb1] sm:$0xff]
      %v441 = vld [vmem:[%s392 + $0xc1] sm:$0xff]
      %v442 = vld [vmem:[%s392 + $0xc9] sm:$0xff]
      %v443 = vld [vmem:[%s392 + $0xd9] sm:$0xff]
      %v444 = vld [vmem:[%s392 + $0xe1] sm:$0xff]
      %v445 = vld [vmem:[%s392 + $0xf1] sm:$0xff]
      %v446 = vld [vmem:[%s392 + $0xf9] sm:$0xff]
      %v447 = vld [vmem:[%s392 + $0x109] sm:$0xff]
      %v448 = vld [vmem:[%s392 + $0x111] sm:$0xff]
      %v449 = vld [vmem:[%s392 + $0x121] sm:$0xff]
      %v450 = vld [vmem:[%s392 + $0x129] sm:$0xff]
      %v451 = vld [vmem:[%s392 + $0x139] sm:$0xff]
      %v452 = vld [vmem:[%s392 + $0x141] sm:$0xff]
      %v453 = vld [vmem:[%s392 + $0x151] sm:$0xff]
      %v454 = vld [vmem:[%s392 + $0x159] sm:$0xff]
      %v455 = vld [vmem:[%s392 + $0x169] sm:$0xff]
      %v456 = vld [vmem:[%s392 + $0x171] sm:$0xff]
      %v457 = vld [vmem:[%s392 + $0x2] sm:$0xff]
      %v458 = vld [vmem:[%s392 + $0xa] sm:$0xff]
      %v459 = vld [vmem:[%s392 + $0x1a] sm:$0xff]
      %v460 = vld [vmem:[%s392 + $0x22] sm:$0xff]
      %v461 = vld [vmem:[%s392 + $0x32] sm:$0xff]
      %v462 = vld [vmem:[%s392 + $0x3a] sm:$0xff]
      %v463 = vld [vmem:[%s392 + $0x4a] sm:$0xff]
      %v464 = vld [vmem:[%s392 + $0x52] sm:$0xff]
      %v465 = vld [vmem:[%s392 + $0x62] sm:$0xff]
      %v466 = vld [vmem:[%s392 + $0x6a] sm:$0xff]
      %v467 = vld [vmem:[%s392 + $0x7a] sm:$0xff]
      %v468 = vld [vmem:[%s392 + $0x82] sm:$0xff]
      %v469 = vld [vmem:[%s392 + $0x92] sm:$0xff]
      %v470 = vld [vmem:[%s392 + $0x9a] sm:$0xff]
      %v471 = vld [vmem:[%s392 + $0xaa] sm:$0xff]
      %v472 = vld [vmem:[%s392 + $0xb2] sm:$0xff]
      %v473 = vld [vmem:[%s392 + $0xc2] sm:$0xff]
      %v474 = vld [vmem:[%s392 + $0xca] sm:$0xff]
      %v475 = vld [vmem:[%s392 + $0xda] sm:$0xff]
      %v476 = vld [vmem:[%s392 + $0xe2] sm:$0xff]
      %v477 = vld [vmem:[%s392 + $0xf2] sm:$0xff]
      %v478 = vld [vmem:[%s392 + $0xfa] sm:$0xff]
      %v479 = vld [vmem:[%s392 + $0x10a] sm:$0xff]
      %v480 = vld [vmem:[%s392 + $0x112] sm:$0xff]
      %v481 = vld [vmem:[%s392 + $0x122] sm:$0xff]
      %v482 = vld [vmem:[%s392 + $0x12a] sm:$0xff]
      %v483 = vld [vmem:[%s392 + $0x13a] sm:$0xff]
      %v484 = vld [vmem:[%s392 + $0x142] sm:$0xff]
      %v485 = vld [vmem:[%s392 + $0x152] sm:$0xff]
      %v486 = vld [vmem:[%s392 + $0x15a] sm:$0xff]
      %v487 = vld [vmem:[%s392 + $0x16a] sm:$0xff]
      %v488 = vld [vmem:[%s392 + $0x172] sm:$0xff]
      %v489 = vld [vmem:[%s1 + $0x180] sm:$0xff]
      %v490 = vld [vmem:[%s1 + $0x188] sm:$0xff]
      %v491 = vld [vmem:[%s1 + $0x190] sm:$0xff]
      %v492 = vld [vmem:[%s1 + $0x198] sm:$0xff]
      %v493 = vld [vmem:[%s1 + $0x1a0] sm:$0xff]
      %v494 = vld [vmem:[%s1 + $0x1a8] sm:$0xff]
      %v495 = vld [vmem:[%s1 + $0x1b0] sm:$0xff]
      %v496 = vld [vmem:[%s1 + $0x1b8] sm:$0xff]
      %v497 = vld [vmem:[%s1 + $0x1c0] sm:$0xff]
      %v498 = vld [vmem:[%s1 + $0x1c8] sm:$0xff]
      %v499 = vld [vmem:[%s1 + $0x1d0] sm:$0xff]
      %v500 = vld [vmem:[%s1 + $0x1d8] sm:$0xff]
      %v501 = vld [vmem:[%s1 + $0x1e0] sm:$0xff]
      %v502 = vld [vmem:[%s1 + $0x1e8] sm:$0xff]
      %v503 = vld [vmem:[%s1 + $0x1f0] sm:$0xff]
      %v504 = vld [vmem:[%s1 + $0x1f8] sm:$0xff]
      %v505 = vld [vmem:[%s1 + $0x200] sm:$0xff]
      %v506 = vld [vmem:[%s1 + $0x208] sm:$0xff]
      %v507 = vld [vmem:[%s1 + $0x210] sm:$0xff]
      %v508 = vld [vmem:[%s1 + $0x218] sm:$0xff]
      %v509 = vld [vmem:[%s1 + $0x220] sm:$0xff]
      %v510 = vld [vmem:[%s1 + $0x228] sm:$0xff]
      %v511 = vld [vmem:[%s1 + $0x230] sm:$0xff]
      %v512 = vld [vmem:[%s1 + $0x238] sm:$0xff]
      %v513 = vld [vmem:[%s1 + $0x240] sm:$0xff]
      %v514 = vld [vmem:[%s1 + $0x248] sm:$0xff]
      %v515 = vld [vmem:[%s1 + $0x250] sm:$0xff]
      %v516 = vld [vmem:[%s1 + $0x258] sm:$0xff]
      %v517 = vld [vmem:[%s1 + $0x260] sm:$0xff]
      %v518 = vld [vmem:[%s1 + $0x268] sm:$0xff]
      %v519 = vld [vmem:[%s1 + $0x270] sm:$0xff]
      %v520 = vld [vmem:[%s1 + $0x278] sm:$0xff]
      %v521 = vld [vmem:[%s1 + $0x280] sm:$0xff]
      %v522 = vld [vmem:[%s1 + $0x288] sm:$0xff]
      %v523 = vld [vmem:[%s1 + $0x290] sm:$0xff]
      %v524 = vld [vmem:[%s1 + $0x298] sm:$0xff]
      %v525 = vld [vmem:[%s1 + $0x2a0] sm:$0xff]
      %v526 = vld [vmem:[%s1 + $0x2a8] sm:$0xff]
      %v527 = vld [vmem:[%s1 + $0x2b0] sm:$0xff]
      %v528 = vld [vmem:[%s1 + $0x2b8] sm:$0xff]
      %v529 = vld [vmem:[%s1 + $0x2c0] sm:$0xff]
      %v530 = vld [vmem:[%s1 + $0x2c8] sm:$0xff]
      %v531 = vld [vmem:[%s1 + $0x2d0] sm:$0xff]
      %v532 = vld [vmem:[%s1 + $0x2d8] sm:$0xff]
      %v533 = vld [vmem:[%s1 + $0x2e0] sm:$0xff]
      %v534 = vld [vmem:[%s1 + $0x2e8] sm:$0xff]
      %v535 = vld [vmem:[%s1 + $0x2f0] sm:$0xff]
      %v536 = vld [vmem:[%s1 + $0x2f8] sm:$0xff]
      %537 = vmatprep.subr.mxu0 0.0
      %538 = vmatpush1.msra.mxu0 %v504
      %539 = vmatprep.subr.mxu0 0.0
      %540 = vmatpush1.msra.mxu0 %v503
      %541 = vmatprep.subr.mxu0 0.0
      %542 = vmatpush1.msra.mxu0 %v502
      %543 = vmatprep.subr.mxu0 0.0
      %544 = vmatpush1.msra.mxu0 %v501
      %545 = vmatprep.subr.mxu0 0.0
      %546 = vmatpush1.msra.mxu0 %v500
      %547 = vmatprep.subr.mxu0 0.0
      %548 = vmatpush1.msra.mxu0 %v499
      %549 = vmatprep.subr.mxu0 0.0
      %550 = vmatpush1.msra.mxu0 %v498
      %551 = vmatprep.subr.mxu0 0.0
      %552 = vmatpush1.msra.mxu0 %v497
      %553 = vmatprep.subr.mxu0 0.0
      %554 = vmatpush1.msra.mxu0 %v496
      %555 = vmatprep.subr.mxu0 0.0
      %556 = vmatpush1.msra.mxu0 %v495
      %557 = vmatprep.subr.mxu0 0.0
      %558 = vmatpush1.msra.mxu0 %v494
      %559 = vmatprep.subr.mxu0 0.0
      %560 = vmatpush1.msra.mxu0 %v493
      %561 = vmatprep.subr.mxu0 0.0
      %562 = vmatpush1.msra.mxu0 %v492
      %563 = vmatprep.subr.mxu0 0.0
      %564 = vmatpush1.msra.mxu0 %v491
      %565 = vmatprep.subr.mxu0 0.0
      %566 = vmatpush1.msra.mxu0 %v490
      %567 = vmatprep.subr.mxu0 0.0
      %568 = vmatpush1.msra.mxu0 %v489
      %569 = vmatprep.subr.mxu0 0.0
      %570 = vmatpush2.msra.mxu0 %v520
      %571 = vmatprep.subr.mxu0 0.0
      %572 = vmatpush2.msra.mxu0 %v519
      %573 = vmatprep.subr.mxu0 0.0
      %574 = vmatpush2.msra.mxu0 %v518
      %575 = vmatprep.subr.mxu0 0.0
      %576 = vmatpush2.msra.mxu0 %v517
      %577 = vmatprep.subr.mxu0 0.0
      %578 = vmatpush2.msra.mxu0 %v516
      %579 = vmatprep.subr.mxu0 0.0
      %580 = vmatpush2.msra.mxu0 %v515
      %581 = vmatprep.subr.mxu0 0.0
      %582 = vmatpush2.msra.mxu0 %v514
      %583 = vmatprep.subr.mxu0 0.0
      %584 = vmatpush2.msra.mxu0 %v513
      %585 = vmatprep.subr.mxu0 0.0
      %586 = vmatpush2.msra.mxu0 %v512
      %587 = vmatprep.subr.mxu0 0.0
      %588 = vmatpush2.msra.mxu0 %v511
      %589 = vmatprep.subr.mxu0 0.0
      %590 = vmatpush2.msra.mxu0 %v510
      %591 = vmatprep.subr.mxu0 0.0
      %592 = vmatpush2.msra.mxu0 %v509
      %593 = vmatprep.subr.mxu0 0.0
      %594 = vmatpush2.msra.mxu0 %v508
      %595 = vmatprep.subr.mxu0 0.0
      %596 = vmatpush2.msra.mxu0 %v507
      %597 = vmatprep.subr.mxu0 0.0
      %598 = vmatpush2.msra.mxu0 %v506
      %599 = vmatprep.subr.mxu0 0.0
      %600 = vmatpush2.msra.mxu0 %v505
      %601 = vmatprep.mubr.f32.mxu0 %v425
      %602 = vmatmul.mubr.f32.gmra.mxu0 %v393
      %v603 = vpop.f32.mrf.mxu0
      %v604 = vadd.f32 0.0, %v603
      %v605 = vpop.f32.mrf.mxu0
      %606 = vmatprep.mubr.f32.mxu0 %v426
      %607 = vmatmul.mubr.f32.gmra.mxu0 %v394
      %v608 = vpop.f32.mrf.mxu0
      %v609 = vadd.f32 0.0, %v608
      %v610 = vpop.f32.mrf.mxu0
      %611 = vmatprep.mubr.f32.mxu0 %v427
      %612 = vmatmul.mubr.f32.gmra.mxu0 %v395
      %v613 = vpop.f32.mrf.mxu0
      %v614 = vadd.f32 0.0, %v613
      %v615 = vpop.f32.mrf.mxu0
      %616 = vmatprep.mubr.f32.mxu0 %v428
      %617 = vmatmul.mubr.f32.gmra.mxu0 %v396
      %v618 = vpop.f32.mrf.mxu0
      %v619 = vadd.f32 0.0, %v618
      %v620 = vpop.f32.mrf.mxu0
      %621 = vmatprep.mubr.f32.mxu0 %v429
      %622 = vmatmul.mubr.f32.gmra.mxu0 %v397
      %v623 = vpop.f32.mrf.mxu0
      %v624 = vadd.f32 0.0, %v623
      %v625 = vpop.f32.mrf.mxu0
      %626 = vmatprep.mubr.f32.mxu0 %v430
      %627 = vmatmul.mubr.f32.gmra.mxu0 %v398
      %v628 = vpop.f32.mrf.mxu0
      %v629 = vadd.f32 0.0, %v628
      %v630 = vpop.f32.mrf.mxu0
      %631 = vmatprep.mubr.f32.mxu0 %v431
      %632 = vmatmul.mubr.f32.gmra.mxu0 %v399
      %v633 = vpop.f32.mrf.mxu0
      %v634 = vadd.f32 0.0, %v633
      %v635 = vpop.f32.mrf.mxu0
      %636 = vmatprep.mubr.f32.mxu0 %v432
      %637 = vmatmul.mubr.f32.gmra.mxu0 %v400
      %v638 = vpop.f32.mrf.mxu0
      %v639 = vadd.f32 0.0, %v638
      %v640 = vpop.f32.mrf.mxu0
      %641 = vmatprep.mubr.f32.mxu0 %v433
      %642 = vmatmul.mubr.f32.gmra.mxu0 %v401
      %v643 = vpop.f32.mrf.mxu0
      %v644 = vadd.f32 0.0, %v643
      %v645 = vpop.f32.mrf.mxu0
      %646 = vmatprep.mubr.f32.mxu0 %v434
      %647 = vmatmul.mubr.f32.gmra.mxu0 %v402
      %v648 = vpop.f32.mrf.mxu0
      %v649 = vadd.f32 0.0, %v648
      %v650 = vpop.f32.mrf.mxu0
      %651 = vmatprep.mubr.f32.mxu0 %v435
      %652 = vmatmul.mubr.f32.gmra.mxu0 %v403
      %v653 = vpop.f32.mrf.mxu0
      %v654 = vadd.f32 0.0, %v653
      %v655 = vpop.f32.mrf.mxu0
      %656 = vmatprep.mubr.f32.mxu0 %v436
      %657 = vmatmul.mubr.f32.gmra.mxu0 %v404
      %v658 = vpop.f32.mrf.mxu0
      %v659 = vadd.f32 0.0, %v658
      %v660 = vpop.f32.mrf.mxu0
      %661 = vmatprep.mubr.f32.mxu0 %v437
      %662 = vmatmul.mubr.f32.gmra.mxu0 %v405
      %v663 = vpop.f32.mrf.mxu0
      %v664 = vadd.f32 0.0, %v663
      %v665 = vpop.f32.mrf.mxu0
      %666 = vmatprep.mubr.f32.mxu0 %v438
      %667 = vmatmul.mubr.f32.gmra.mxu0 %v406
      %v668 = vpop.f32.mrf.mxu0
      %v669 = vadd.f32 0.0, %v668
      %v670 = vpop.f32.mrf.mxu0
      %671 = vmatprep.mubr.f32.mxu0 %v439
      %672 = vmatmul.mubr.f32.gmra.mxu0 %v407
      %v673 = vpop.f32.mrf.mxu0
      %v674 = vadd.f32 0.0, %v673
      %v675 = vpop.f32.mrf.mxu0
      %676 = vmatprep.mubr.f32.mxu0 %v440
      %677 = vmatmul.mubr.f32.gmra.mxu0 %v408
      %v678 = vpop.f32.mrf.mxu0
      %v679 = vadd.f32 0.0, %v678
      %v680 = vpop.f32.mrf.mxu0
      %681 = vmatprep.mubr.f32.mxu0 %v441
      %682 = vmatmul.mubr.f32.gmra.mxu0 %v409
      %v683 = vpop.f32.mrf.mxu0
      %v684 = vadd.f32 0.0, %v683
      %v685 = vpop.f32.mrf.mxu0
      %686 = vmatprep.mubr.f32.mxu0 %v442
      %687 = vmatmul.mubr.f32.gmra.mxu0 %v410
      %v688 = vpop.f32.mrf.mxu0
      %v689 = vadd.f32 0.0, %v688
      %v690 = vpop.f32.mrf.mxu0
      %691 = vmatprep.mubr.f32.mxu0 %v443
      %692 = vmatmul.mubr.f32.gmra.mxu0 %v411
      %v693 = vpop.f32.mrf.mxu0
      %v694 = vadd.f32 0.0, %v693
      %v695 = vpop.f32.mrf.mxu0
      %696 = vmatprep.mubr.f32.mxu0 %v444
      %697 = vmatmul.mubr.f32.gmra.mxu0 %v412
      %v698 = vpop.f32.mrf.mxu0
      %v699 = vadd.f32 0.0, %v698
      %v700 = vpop.f32.mrf.mxu0
      %701 = vmatprep.mubr.f32.mxu0 %v445
      %702 = vmatmul.mubr.f32.gmra.mxu0 %v413
      %v703 = vpop.f32.mrf.mxu0
      %v704 = vadd.f32 0.0, %v703
      %v705 = vpop.f32.mrf.mxu0
      %706 = vmatprep.mubr.f32.mxu0 %v446
      %707 = vmatmul.mubr.f32.gmra.mxu0 %v414
      %v708 = vpop.f32.mrf.mxu0
      %v709 = vadd.f32 0.0, %v708
      %v710 = vpop.f32.mrf.mxu0
      %711 = vmatprep.mubr.f32.mxu0 %v447
      %712 = vmatmul.mubr.f32.gmra.mxu0 %v415
      %v713 = vpop.f32.mrf.mxu0
      %v714 = vadd.f32 0.0, %v713
      %v715 = vpop.f32.mrf.mxu0
      %716 = vmatprep.mubr.f32.mxu0 %v448
      %717 = vmatmul.mubr.f32.gmra.mxu0 %v416
      %v718 = vpop.f32.mrf.mxu0
      %v719 = vadd.f32 0.0, %v718
      %v720 = vpop.f32.mrf.mxu0
      %721 = vmatprep.mubr.f32.mxu0 %v449
      %722 = vmatmul.mubr.f32.gmra.mxu0 %v417
      %v723 = vpop.f32.mrf.mxu0
      %v724 = vadd.f32 0.0, %v723
      %v725 = vpop.f32.mrf.mxu0
      %726 = vmatprep.mubr.f32.mxu0 %v450
      %727 = vmatmul.mubr.f32.gmra.mxu0 %v418
      %v728 = vpop.f32.mrf.mxu0
      %v729 = vadd.f32 0.0, %v728
      %v730 = vpop.f32.mrf.mxu0
      %731 = vmatprep.mubr.f32.mxu0 %v451
      %732 = vmatmul.mubr.f32.gmra.mxu0 %v419
      %v733 = vpop.f32.mrf.mxu0
      %v734 = vadd.f32 0.0, %v733
      %v735 = vpop.f32.mrf.mxu0
      %736 = vmatprep.mubr.f32.mxu0 %v452
      %737 = vmatmul.mubr.f32.gmra.mxu0 %v420
      %v738 = vpop.f32.mrf.mxu0
      %v739 = vadd.f32 0.0, %v738
      %v740 = vpop.f32.mrf.mxu0
      %741 = vmatprep.mubr.f32.mxu0 %v453
      %742 = vmatmul.mubr.f32.gmra.mxu0 %v421
      %v743 = vpop.f32.mrf.mxu0
      %v744 = vadd.f32 0.0, %v743
      %v745 = vpop.f32.mrf.mxu0
      %746 = vmatprep.mubr.f32.mxu0 %v454
      %747 = vmatmul.mubr.f32.gmra.mxu0 %v422
      %v748 = vpop.f32.mrf.mxu0
      %v749 = vadd.f32 0.0, %v748
      %v750 = vpop.f32.mrf.mxu0
      %751 = vmatprep.mubr.f32.mxu0 %v455
      %752 = vmatmul.mubr.f32.gmra.mxu0 %v423
      %v753 = vpop.f32.mrf.mxu0
      %v754 = vadd.f32 0.0, %v753
      %v755 = vpop.f32.mrf.mxu0
      %756 = vmatprep.mubr.f32.mxu0 %v456
      %757 = vmatmul.mubr.f32.gmra.mxu0 %v424
      %v758 = vpop.f32.mrf.mxu0
      %v759 = vadd.f32 0.0, %v758
      %v760 = vpop.f32.mrf.mxu0
      %761 = vdwg.mxu0
      %762 = vmatprep.subr.mxu0 0.0
      %763 = vmatpush1.msra.mxu0 %v536
      %764 = vmatprep.subr.mxu0 0.0
      %765 = vmatpush1.msra.mxu0 %v535
      %766 = vmatprep.subr.mxu0 0.0
      %767 = vmatpush1.msra.mxu0 %v534
      %768 = vmatprep.subr.mxu0 0.0
      %769 = vmatpush1.msra.mxu0 %v533
      %770 = vmatprep.subr.mxu0 0.0
      %771 = vmatpush1.msra.mxu0 %v532
      %772 = vmatprep.subr.mxu0 0.0
      %773 = vmatpush1.msra.mxu0 %v531
      %774 = vmatprep.subr.mxu0 0.0
      %775 = vmatpush1.msra.mxu0 %v530
      %776 = vmatprep.subr.mxu0 0.0
      %777 = vmatpush1.msra.mxu0 %v529
      %778 = vmatprep.subr.mxu0 0.0
      %779 = vmatpush1.msra.mxu0 %v528
      %780 = vmatprep.subr.mxu0 0.0
      %781 = vmatpush1.msra.mxu0 %v527
      %782 = vmatprep.subr.mxu0 0.0
      %783 = vmatpush1.msra.mxu0 %v526
      %784 = vmatprep.subr.mxu0 0.0
      %785 = vmatpush1.msra.mxu0 %v525
      %786 = vmatprep.subr.mxu0 0.0
      %787 = vmatpush1.msra.mxu0 %v524
      %788 = vmatprep.subr.mxu0 0.0
      %789 = vmatpush1.msra.mxu0 %v523
      %790 = vmatprep.subr.mxu0 0.0
      %791 = vmatpush1.msra.mxu0 %v522
      %792 = vmatprep.subr.mxu0 0.0
      %793 = vmatpush1.msra.mxu0 %v521
      %794 = vmatprep.subr.mxu0 0.0
      %795 = vmatpush2.msra.mxu0 0.0
      %796 = vmatprep.subr.mxu0 0.0
      %797 = vmatpush2.msra.mxu0 0.0
      %798 = vmatprep.subr.mxu0 0.0
      %799 = vmatpush2.msra.mxu0 0.0
      %800 = vmatprep.subr.mxu0 0.0
      %801 = vmatpush2.msra.mxu0 0.0
      %802 = vmatprep.subr.mxu0 0.0
      %803 = vmatpush2.msra.mxu0 0.0
      %804 = vmatprep.subr.mxu0 0.0
      %805 = vmatpush2.msra.mxu0 0.0
      %806 = vmatprep.subr.mxu0 0.0
      %807 = vmatpush2.msra.mxu0 0.0
      %808 = vmatprep.subr.mxu0 0.0
      %809 = vmatpush2.msra.mxu0 0.0
      %810 = vmatprep.subr.mxu0 0.0
      %811 = vmatpush2.msra.mxu0 0.0
      %812 = vmatprep.subr.mxu0 0.0
      %813 = vmatpush2.msra.mxu0 0.0
      %814 = vmatprep.subr.mxu0 0.0
      %815 = vmatpush2.msra.mxu0 0.0
      %816 = vmatprep.subr.mxu0 0.0
      %817 = vmatpush2.msra.mxu0 0.0
      %818 = vmatprep.subr.mxu0 0.0
      %819 = vmatpush2.msra.mxu0 0.0
      %820 = vmatprep.subr.mxu0 0.0
      %821 = vmatpush2.msra.mxu0 0.0
      %822 = vmatprep.subr.mxu0 0.0
      %823 = vmatpush2.msra.mxu0 0.0
      %824 = vmatprep.subr.mxu0 0.0
      %825 = vmatpush2.msra.mxu0 0.0
      %826 = vmatprep.mubr.f32.mxu0 0.0
      %827 = vmatmul.mubr.f32.gmra.mxu0 %v457
      %v828 = vpop.f32.mrf.mxu0
      %v829 = vadd.f32 %v604, %v828
      %v830 = vpop.f32.mrf.mxu0
      %831 = vmatprep.mubr.f32.mxu0 0.0
      %832 = vmatmul.mubr.f32.gmra.mxu0 %v458
      %v833 = vpop.f32.mrf.mxu0
      %v834 = vadd.f32 %v609, %v833
      %v835 = vpop.f32.mrf.mxu0
      %836 = vmatprep.mubr.f32.mxu0 0.0
      %837 = vmatmul.mubr.f32.gmra.mxu0 %v459
      %v838 = vpop.f32.mrf.mxu0
      %v839 = vadd.f32 %v614, %v838
      %v840 = vpop.f32.mrf.mxu0
      %841 = vmatprep.mubr.f32.mxu0 0.0
      %842 = vmatmul.mubr.f32.gmra.mxu0 %v460
      %v843 = vpop.f32.mrf.mxu0
      %v844 = vadd.f32 %v619, %v843
      %v845 = vpop.f32.mrf.mxu0
      %846 = vmatprep.mubr.f32.mxu0 0.0
      %847 = vmatmul.mubr.f32.gmra.mxu0 %v461
      %v848 = vpop.f32.mrf.mxu0
      %v849 = vadd.f32 %v624, %v848
      %v850 = vpop.f32.mrf.mxu0
      %851 = vmatprep.mubr.f32.mxu0 0.0
      %852 = vmatmul.mubr.f32.gmra.mxu0 %v462
      %v853 = vpop.f32.mrf.mxu0
      %v854 = vadd.f32 %v629, %v853
      %v855 = vpop.f32.mrf.mxu0
      %856 = vmatprep.mubr.f32.mxu0 0.0
      %857 = vmatmul.mubr.f32.gmra.mxu0 %v463
      %v858 = vpop.f32.mrf.mxu0
      %v859 = vadd.f32 %v634, %v858
      %v860 = vpop.f32.mrf.mxu0
      %861 = vmatprep.mubr.f32.mxu0 0.0
      %862 = vmatmul.mubr.f32.gmra.mxu0 %v464
      %v863 = vpop.f32.mrf.mxu0
      %v864 = vadd.f32 %v639, %v863
      %v865 = vpop.f32.mrf.mxu0
      %866 = vmatprep.mubr.f32.mxu0 0.0
      %867 = vmatmul.mubr.f32.gmra.mxu0 %v465
      %v868 = vpop.f32.mrf.mxu0
      %v869 = vadd.f32 %v644, %v868
      %v870 = vpop.f32.mrf.mxu0
      %871 = vmatprep.mubr.f32.mxu0 0.0
      %872 = vmatmul.mubr.f32.gmra.mxu0 %v466
      %v873 = vpop.f32.mrf.mxu0
      %v874 = vadd.f32 %v649, %v873
      %v875 = vpop.f32.mrf.mxu0
      %876 = vmatprep.mubr.f32.mxu0 0.0
      %877 = vmatmul.mubr.f32.gmra.mxu0 %v467
      %v878 = vpop.f32.mrf.mxu0
      %v879 = vadd.f32 %v654, %v878
      %v880 = vpop.f32.mrf.mxu0
      %881 = vmatprep.mubr.f32.mxu0 0.0
      %882 = vmatmul.mubr.f32.gmra.mxu0 %v468
      %v883 = vpop.f32.mrf.mxu0
      %v884 = vadd.f32 %v659, %v883
      %v885 = vpop.f32.mrf.mxu0
      %886 = vmatprep.mubr.f32.mxu0 0.0
      %887 = vmatmul.mubr.f32.gmra.mxu0 %v469
      %v888 = vpop.f32.mrf.mxu0
      %v889 = vadd.f32 %v664, %v888
      %v890 = vpop.f32.mrf.mxu0
      %891 = vmatprep.mubr.f32.mxu0 0.0
      %892 = vmatmul.mubr.f32.gmra.mxu0 %v470
      %v893 = vpop.f32.mrf.mxu0
      %v894 = vadd.f32 %v669, %v893
      %v895 = vpop.f32.mrf.mxu0
      %896 = vmatprep.mubr.f32.mxu0 0.0
      %897 = vmatmul.mubr.f32.gmra.mxu0 %v471
      %v898 = vpop.f32.mrf.mxu0
      %v899 = vadd.f32 %v674, %v898
      %v900 = vpop.f32.mrf.mxu0
      %901 = vmatprep.mubr.f32.mxu0 0.0
      %902 = vmatmul.mubr.f32.gmra.mxu0 %v472
      %v903 = vpop.f32.mrf.mxu0
      %v904 = vadd.f32 %v679, %v903
      %v905 = vpop.f32.mrf.mxu0
      %906 = vmatprep.mubr.f32.mxu0 0.0
      %907 = vmatmul.mubr.f32.gmra.mxu0 %v473
      %v908 = vpop.f32.mrf.mxu0
      %v909 = vadd.f32 %v684, %v908
      %v910 = vpop.f32.mrf.mxu0
      %911 = vmatprep.mubr.f32.mxu0 0.0
      %912 = vmatmul.mubr.f32.gmra.mxu0 %v474
      %v913 = vpop.f32.mrf.mxu0
      %v914 = vadd.f32 %v689, %v913
      %v915 = vpop.f32.mrf.mxu0
      %916 = vmatprep.mubr.f32.mxu0 0.0
      %917 = vmatmul.mubr.f32.gmra.mxu0 %v475
      %v918 = vpop.f32.mrf.mxu0
      %v919 = vadd.f32 %v694, %v918
      %v920 = vpop.f32.mrf.mxu0
      %921 = vmatprep.mubr.f32.mxu0 0.0
      %922 = vmatmul.mubr.f32.gmra.mxu0 %v476
      %v923 = vpop.f32.mrf.mxu0
      %v924 = vadd.f32 %v699, %v923
      %v925 = vpop.f32.mrf.mxu0
      %926 = vmatprep.mubr.f32.mxu0 0.0
      %927 = vmatmul.mubr.f32.gmra.mxu0 %v477
      %v928 = vpop.f32.mrf.mxu0
      %v929 = vadd.f32 %v704, %v928
      %v930 = vpop.f32.mrf.mxu0
      %931 = vmatprep.mubr.f32.mxu0 0.0
      %932 = vmatmul.mubr.f32.gmra.mxu0 %v478
      %v933 = vpop.f32.mrf.mxu0
      %v934 = vadd.f32 %v709, %v933
      %v935 = vpop.f32.mrf.mxu0
      %936 = vmatprep.mubr.f32.mxu0 0.0
      %937 = vmatmul.mubr.f32.gmra.mxu0 %v479
      %v938 = vpop.f32.mrf.mxu0
      %v939 = vadd.f32 %v714, %v938
      %v940 = vpop.f32.mrf.mxu0
      %941 = vmatprep.mubr.f32.mxu0 0.0
      %942 = vmatmul.mubr.f32.gmra.mxu0 %v480
      %v943 = vpop.f32.mrf.mxu0
      %v944 = vadd.f32 %v719, %v943
      %v945 = vpop.f32.mrf.mxu0
      %946 = vmatprep.mubr.f32.mxu0 0.0
      %947 = vmatmul.mubr.f32.gmra.mxu0 %v481
      %v948 = vpop.f32.mrf.mxu0
      %v949 = vadd.f32 %v724, %v948
      %v950 = vpop.f32.mrf.mxu0
      %951 = vmatprep.mubr.f32.mxu0 0.0
      %952 = vmatmul.mubr.f32.gmra.mxu0 %v482
      %v953 = vpop.f32.mrf.mxu0
      %v954 = vadd.f32 %v729, %v953
      %v955 = vpop.f32.mrf.mxu0
      %956 = vmatprep.mubr.f32.mxu0 0.0
      %957 = vmatmul.mubr.f32.gmra.mxu0 %v483
      %v958 = vpop.f32.mrf.mxu0
      %v959 = vadd.f32 %v734, %v958
      %v960 = vpop.f32.mrf.mxu0
      %961 = vmatprep.mubr.f32.mxu0 0.0
      %962 = vmatmul.mubr.f32.gmra.mxu0 %v484
      %v963 = vpop.f32.mrf.mxu0
      %v964 = vadd.f32 %v739, %v963
      %v965 = vpop.f32.mrf.mxu0
      %966 = vmatprep.mubr.f32.mxu0 0.0
      %967 = vmatmul.mubr.f32.gmra.mxu0 %v485
      %v968 = vpop.f32.mrf.mxu0
      %v969 = vadd.f32 %v744, %v968
      %v970 = vpop.f32.mrf.mxu0
      %971 = vmatprep.mubr.f32.mxu0 0.0
      %972 = vmatmul.mubr.f32.gmra.mxu0 %v486
      %v973 = vpop.f32.mrf.mxu0
      %v974 = vadd.f32 %v749, %v973
      %v975 = vpop.f32.mrf.mxu0
      %976 = vmatprep.mubr.f32.mxu0 0.0
      %977 = vmatmul.mubr.f32.gmra.mxu0 %v487
      %v978 = vpop.f32.mrf.mxu0
      %v979 = vadd.f32 %v754, %v978
      %v980 = vpop.f32.mrf.mxu0
      %981 = vmatprep.mubr.f32.mxu0 0.0
      %982 = vmatmul.mubr.f32.gmra.mxu0 %v488
      %v983 = vpop.f32.mrf.mxu0
      %v984 = vadd.f32 %v759, %v983
      %v985 = vpop.f32.mrf.mxu0
      %986 = vdwg.mxu0
      %987 = vmatprep.subr.mxu0 0.0
      %988 = vmatpush1.msra.mxu0 %v359
      %989 = vmatprep.subr.mxu0 0.0
      %990 = vmatpush1.msra.mxu0 %v358
      %991 = vmatprep.subr.mxu0 0.0
      %992 = vmatpush1.msra.mxu0 %v357
      %993 = vmatprep.subr.mxu0 0.0
      %994 = vmatpush1.msra.mxu0 %v356
      %995 = vmatprep.subr.mxu0 0.0
      %996 = vmatpush1.msra.mxu0 %v355
      %997 = vmatprep.subr.mxu0 0.0
      %998 = vmatpush1.msra.mxu0 %v354
      %999 = vmatprep.subr.mxu0 0.0
      %1000 = vmatpush1.msra.mxu0 %v353
      %1001 = vmatprep.subr.mxu0 0.0
      %1002 = vmatpush1.msra.mxu0 %v352
      %1003 = vmatprep.subr.mxu0 0.0
      %1004 = vmatpush1.msra.mxu0 %v351
      %1005 = vmatprep.subr.mxu0 0.0
      %1006 = vmatpush1.msra.mxu0 %v350
      %1007 = vmatprep.subr.mxu0 0.0
      %1008 = vmatpush1.msra.mxu0 %v349
      %1009 = vmatprep.subr.mxu0 0.0
      %1010 = vmatpush1.msra.mxu0 %v348
      %1011 = vmatprep.subr.mxu0 0.0
      %1012 = vmatpush1.msra.mxu0 %v347
      %1013 = vmatprep.subr.mxu0 0.0
      %1014 = vmatpush1.msra.mxu0 %v346
      %1015 = vmatprep.subr.mxu0 0.0
      %1016 = vmatpush1.msra.mxu0 %v345
      %1017 = vmatprep.subr.mxu0 0.0
      %1018 = vmatpush1.msra.mxu0 %v344
      %1019 = vmatprep.subr.mxu0 0.0
      %1020 = vmatpush2.msra.mxu0 %v375
      %1021 = vmatprep.subr.mxu0 0.0
      %1022 = vmatpush2.msra.mxu0 %v374
      %1023 = vmatprep.subr.mxu0 0.0
      %1024 = vmatpush2.msra.mxu0 %v373
      %1025 = vmatprep.subr.mxu0 0.0
      %1026 = vmatpush2.msra.mxu0 %v372
      %1027 = vmatprep.subr.mxu0 0.0
      %1028 = vmatpush2.msra.mxu0 %v371
      %1029 = vmatprep.subr.mxu0 0.0
      %1030 = vmatpush2.msra.mxu0 %v370
      %1031 = vmatprep.subr.mxu0 0.0
      %1032 = vmatpush2.msra.mxu0 %v369
      %1033 = vmatprep.subr.mxu0 0.0
      %1034 = vmatpush2.msra.mxu0 %v368
      %1035 = vmatprep.subr.mxu0 0.0
      %1036 = vmatpush2.msra.mxu0 %v367
      %1037 = vmatprep.subr.mxu0 0.0
      %1038 = vmatpush2.msra.mxu0 %v366
      %1039 = vmatprep.subr.mxu0 0.0
      %1040 = vmatpush2.msra.mxu0 %v365
      %1041 = vmatprep.subr.mxu0 0.0
      %1042 = vmatpush2.msra.mxu0 %v364
      %1043 = vmatprep.subr.mxu0 0.0
      %1044 = vmatpush2.msra.mxu0 %v363
      %1045 = vmatprep.subr.mxu0 0.0
      %1046 = vmatpush2.msra.mxu0 %v362
      %1047 = vmatprep.subr.mxu0 0.0
      %1048 = vmatpush2.msra.mxu0 %v361
      %1049 = vmatprep.subr.mxu0 0.0
      %1050 = vmatpush2.msra.mxu0 %v360
      %1051 = vmatprep.mubr.f32.mxu0 %v280
      %1052 = vmatmul.mubr.f32.gmra.mxu0 %v248
      %v1053 = vpop.f32.mrf.mxu0
      %v1054 = vadd.f32 %v829, %v1053
      %v1055 = vpop.f32.mrf.mxu0
      %1056 = vmatprep.mubr.f32.mxu0 %v281
      %1057 = vmatmul.mubr.f32.gmra.mxu0 %v249
      %v1058 = vpop.f32.mrf.mxu0
      %v1059 = vadd.f32 %v834, %v1058
      %v1060 = vpop.f32.mrf.mxu0
      %1061 = vmatprep.mubr.f32.mxu0 %v282
      %1062 = vmatmul.mubr.f32.gmra.mxu0 %v250
      %v1063 = vpop.f32.mrf.mxu0
      %v1064 = vadd.f32 %v839, %v1063
      %v1065 = vpop.f32.mrf.mxu0
      %1066 = vmatprep.mubr.f32.mxu0 %v283
      %1067 = vmatmul.mubr.f32.gmra.mxu0 %v251
      %v1068 = vpop.f32.mrf.mxu0
      %v1069 = vadd.f32 %v844, %v1068
      %v1070 = vpop.f32.mrf.mxu0
      %1071 = vmatprep.mubr.f32.mxu0 %v284
      %1072 = vmatmul.mubr.f32.gmra.mxu0 %v252
      %v1073 = vpop.f32.mrf.mxu0
      %v1074 = vadd.f32 %v849, %v1073
      %v1075 = vpop.f32.mrf.mxu0
      %1076 = vmatprep.mubr.f32.mxu0 %v285
      %1077 = vmatmul.mubr.f32.gmra.mxu0 %v253
      %v1078 = vpop.f32.mrf.mxu0
      %v1079 = vadd.f32 %v854, %v1078
      %v1080 = vpop.f32.mrf.mxu0
      %1081 = vmatprep.mubr.f32.mxu0 %v286
      %1082 = vmatmul.mubr.f32.gmra.mxu0 %v254
      %v1083 = vpop.f32.mrf.mxu0
      %v1084 = vadd.f32 %v859, %v1083
      %v1085 = vpop.f32.mrf.mxu0
      %1086 = vmatprep.mubr.f32.mxu0 %v287
      %1087 = vmatmul.mubr.f32.gmra.mxu0 %v255
      %v1088 = vpop.f32.mrf.mxu0
      %v1089 = vadd.f32 %v864, %v1088
      %v1090 = vpop.f32.mrf.mxu0
      %1091 = vmatprep.mubr.f32.mxu0 %v288
      %1092 = vmatmul.mubr.f32.gmra.mxu0 %v256
      %v1093 = vpop.f32.mrf.mxu0
      %v1094 = vadd.f32 %v869, %v1093
      %v1095 = vpop.f32.mrf.mxu0
      %1096 = vmatprep.mubr.f32.mxu0 %v289
      %1097 = vmatmul.mubr.f32.gmra.mxu0 %v257
      %v1098 = vpop.f32.mrf.mxu0
      %v1099 = vadd.f32 %v874, %v1098
      %v1100 = vpop.f32.mrf.mxu0
      %1101 = vmatprep.mubr.f32.mxu0 %v290
      %1102 = vmatmul.mubr.f32.gmra.mxu0 %v258
      %v1103 = vpop.f32.mrf.mxu0
      %v1104 = vadd.f32 %v879, %v1103
      %v1105 = vpop.f32.mrf.mxu0
      %1106 = vmatprep.mubr.f32.mxu0 %v291
      %1107 = vmatmul.mubr.f32.gmra.mxu0 %v259
      %v1108 = vpop.f32.mrf.mxu0
      %v1109 = vadd.f32 %v884, %v1108
      %v1110 = vpop.f32.mrf.mxu0
      %1111 = vmatprep.mubr.f32.mxu0 %v292
      %1112 = vmatmul.mubr.f32.gmra.mxu0 %v260
      %v1113 = vpop.f32.mrf.mxu0
      %v1114 = vadd.f32 %v889, %v1113
      %v1115 = vpop.f32.mrf.mxu0
      %1116 = vmatprep.mubr.f32.mxu0 %v293
      %1117 = vmatmul.mubr.f32.gmra.mxu0 %v261
      %v1118 = vpop.f32.mrf.mxu0
      %v1119 = vadd.f32 %v894, %v1118
      %v1120 = vpop.f32.mrf.mxu0
      %1121 = vmatprep.mubr.f32.mxu0 %v294
      %1122 = vmatmul.mubr.f32.gmra.mxu0 %v262
      %v1123 = vpop.f32.mrf.mxu0
      %v1124 = vadd.f32 %v899, %v1123
      %v1125 = vpop.f32.mrf.mxu0
      %1126 = vmatprep.mubr.f32.mxu0 %v295
      %1127 = vmatmul.mubr.f32.gmra.mxu0 %v263
      %v1128 = vpop.f32.mrf.mxu0
      %v1129 = vadd.f32 %v904, %v1128
      %v1130 = vpop.f32.mrf.mxu0
      %1131 = vmatprep.mubr.f32.mxu0 %v296
      %1132 = vmatmul.mubr.f32.gmra.mxu0 %v264
      %v1133 = vpop.f32.mrf.mxu0
      %v1134 = vadd.f32 %v909, %v1133
      %v1135 = vpop.f32.mrf.mxu0
      %1136 = vmatprep.mubr.f32.mxu0 %v297
      %1137 = vmatmul.mubr.f32.gmra.mxu0 %v265
      %v1138 = vpop.f32.mrf.mxu0
      %v1139 = vadd.f32 %v914, %v1138
      %v1140 = vpop.f32.mrf.mxu0
      %1141 = vmatprep.mubr.f32.mxu0 %v298
      %1142 = vmatmul.mubr.f32.gmra.mxu0 %v266
      %v1143 = vpop.f32.mrf.mxu0
      %v1144 = vadd.f32 %v919, %v1143
      %v1145 = vpop.f32.mrf.mxu0
      %1146 = vmatprep.mubr.f32.mxu0 %v299
      %1147 = vmatmul.mubr.f32.gmra.mxu0 %v267
      %v1148 = vpop.f32.mrf.mxu0
      %v1149 = vadd.f32 %v924, %v1148
      %v1150 = vpop.f32.mrf.mxu0
      %1151 = vmatprep.mubr.f32.mxu0 %v300
      %1152 = vmatmul.mubr.f32.gmra.mxu0 %v268
      %v1153 = vpop.f32.mrf.mxu0
      %v1154 = vadd.f32 %v929, %v1153
      %v1155 = vpop.f32.mrf.mxu0
      %1156 = vmatprep.mubr.f32.mxu0 %v301
      %1157 = vmatmul.mubr.f32.gmra.mxu0 %v269
      %v1158 = vpop.f32.mrf.mxu0
      %v1159 = vadd.f32 %v934, %v1158
      %v1160 = vpop.f32.mrf.mxu0
      %1161 = vmatprep.mubr.f32.mxu0 %v302
      %1162 = vmatmul.mubr.f32.gmra.mxu0 %v270
      %v1163 = vpop.f32.mrf.mxu0
      %v1164 = vadd.f32 %v939, %v1163
      %v1165 = vpop.f32.mrf.mxu0
      %1166 = vmatprep.mubr.f32.mxu0 %v303
      %1167 = vmatmul.mubr.f32.gmra.mxu0 %v271
      %v1168 = vpop.f32.mrf.mxu0
      %v1169 = vadd.f32 %v944, %v1168
      %v1170 = vpop.f32.mrf.mxu0
      %1171 = vmatprep.mubr.f32.mxu0 %v304
      %1172 = vmatmul.mubr.f32.gmra.mxu0 %v272
      %v1173 = vpop.f32.mrf.mxu0
      %v1174 = vadd.f32 %v949, %v1173
      %v1175 = vpop.f32.mrf.mxu0
      %1176 = vmatprep.mubr.f32.mxu0 %v305
      %1177 = vmatmul.mubr.f32.gmra.mxu0 %v273
      %v1178 = vpop.f32.mrf.mxu0
      %v1179 = vadd.f32 %v954, %v1178
      %v1180 = vpop.f32.mrf.mxu0
      %1181 = vmatprep.mubr.f32.mxu0 %v306
      %1182 = vmatmul.mubr.f32.gmra.mxu0 %v274
      %v1183 = vpop.f32.mrf.mxu0
      %v1184 = vadd.f32 %v959, %v1183
      %v1185 = vpop.f32.mrf.mxu0
      %1186 = vmatprep.mubr.f32.mxu0 %v307
      %1187 = vmatmul.mubr.f32.gmra.mxu0 %v275
      %v1188 = vpop.f32.mrf.mxu0
      %v1189 = vadd.f32 %v964, %v1188
      %v1190 = vpop.f32.mrf.mxu0
      %1191 = vmatprep.mubr.f32.mxu0 %v308
      %1192 = vmatmul.mubr.f32.gmra.mxu0 %v276
      %v1193 = vpop.f32.mrf.mxu0
      %v1194 = vadd.f32 %v969, %v1193
      %v1195 = vpop.f32.mrf.mxu0
      %1196 = vmatprep.mubr.f32.mxu0 %v309
      %1197 = vmatmul.mubr.f32.gmra.mxu0 %v277
      %v1198 = vpop.f32.mrf.mxu0
      %v1199 = vadd.f32 %v974, %v1198
      %v1200 = vpop.f32.mrf.mxu0
      %1201 = vmatprep.mubr.f32.mxu0 %v310
      %1202 = vmatmul.mubr.f32.gmra.mxu0 %v278
      %v1203 = vpop.f32.mrf.mxu0
      %v1204 = vadd.f32 %v979, %v1203
      %v1205 = vpop.f32.mrf.mxu0
      %1206 = vmatprep.mubr.f32.mxu0 %v311
      %1207 = vmatmul.mubr.f32.gmra.mxu0 %v279
      %v1208 = vpop.f32.mrf.mxu0
      %v1209 = vadd.f32 %v984, %v1208
      %v1210 = vpop.f32.mrf.mxu0
      %1211 = vdwg.mxu0
      %1212 = vmatprep.subr.mxu0 0.0
      %1213 = vmatpush1.msra.mxu0 %v391
      %1214 = vmatprep.subr.mxu0 0.0
      %1215 = vmatpush1.msra.mxu0 %v390
      %1216 = vmatprep.subr.mxu0 0.0
      %1217 = vmatpush1.msra.mxu0 %v389
      %1218 = vmatprep.subr.mxu0 0.0
      %1219 = vmatpush1.msra.mxu0 %v388
      %1220 = vmatprep.subr.mxu0 0.0
      %1221 = vmatpush1.msra.mxu0 %v387
      %1222 = vmatprep.subr.mxu0 0.0
      %1223 = vmatpush1.msra.mxu0 %v386
      %1224 = vmatprep.subr.mxu0 0.0
      %1225 = vmatpush1.msra.mxu0 %v385
      %1226 = vmatprep.subr.mxu0 0.0
      %1227 = vmatpush1.msra.mxu0 %v384
      %1228 = vmatprep.subr.mxu0 0.0
      %1229 = vmatpush1.msra.mxu0 %v383
      %1230 = vmatprep.subr.mxu0 0.0
      %1231 = vmatpush1.msra.mxu0 %v382
      %1232 = vmatprep.subr.mxu0 0.0
      %1233 = vmatpush1.msra.mxu0 %v381
      %1234 = vmatprep.subr.mxu0 0.0
      %1235 = vmatpush1.msra.mxu0 %v380
      %1236 = vmatprep.subr.mxu0 0.0
      %1237 = vmatpush1.msra.mxu0 %v379
      %1238 = vmatprep.subr.mxu0 0.0
      %1239 = vmatpush1.msra.mxu0 %v378
      %1240 = vmatprep.subr.mxu0 0.0
      %1241 = vmatpush1.msra.mxu0 %v377
      %1242 = vmatprep.subr.mxu0 0.0
      %1243 = vmatpush1.msra.mxu0 %v376
      %1244 = vmatprep.subr.mxu0 0.0
      %1245 = vmatpush2.msra.mxu0 0.0
      %1246 = vmatprep.subr.mxu0 0.0
      %1247 = vmatpush2.msra.mxu0 0.0
      %1248 = vmatprep.subr.mxu0 0.0
      %1249 = vmatpush2.msra.mxu0 0.0
      %1250 = vmatprep.subr.mxu0 0.0
      %1251 = vmatpush2.msra.mxu0 0.0
      %1252 = vmatprep.subr.mxu0 0.0
      %1253 = vmatpush2.msra.mxu0 0.0
      %1254 = vmatprep.subr.mxu0 0.0
      %1255 = vmatpush2.msra.mxu0 0.0
      %1256 = vmatprep.subr.mxu0 0.0
      %1257 = vmatpush2.msra.mxu0 0.0
      %1258 = vmatprep.subr.mxu0 0.0
      %1259 = vmatpush2.msra.mxu0 0.0
      %1260 = vmatprep.subr.mxu0 0.0
      %1261 = vmatpush2.msra.mxu0 0.0
      %1262 = vmatprep.subr.mxu0 0.0
      %1263 = vmatpush2.msra.mxu0 0.0
      %1264 = vmatprep.subr.mxu0 0.0
      %1265 = vmatpush2.msra.mxu0 0.0
      %1266 = vmatprep.subr.mxu0 0.0
      %1267 = vmatpush2.msra.mxu0 0.0
      %1268 = vmatprep.subr.mxu0 0.0
      %1269 = vmatpush2.msra.mxu0 0.0
      %1270 = vmatprep.subr.mxu0 0.0
      %1271 = vmatpush2.msra.mxu0 0.0
      %1272 = vmatprep.subr.mxu0 0.0
      %1273 = vmatpush2.msra.mxu0 0.0
      %1274 = vmatprep.subr.mxu0 0.0
      %1275 = vmatpush2.msra.mxu0 0.0
      %1276 = vmatprep.mubr.f32.mxu0 0.0
      %1277 = vmatmul.mubr.f32.gmra.mxu0 %v312
      %v1278 = vpop.f32.mrf.mxu0
      %v1279 = vadd.f32 %v1054, %v1278
      %v1280 = vpop.f32.mrf.mxu0
      %1281 = vmatprep.mubr.f32.mxu0 0.0
      %1282 = vmatmul.mubr.f32.gmra.mxu0 %v313
      %v1283 = vpop.f32.mrf.mxu0
      %v1284 = vadd.f32 %v1059, %v1283
      %v1285 = vpop.f32.mrf.mxu0
      %1286 = vmatprep.mubr.f32.mxu0 0.0
      %1287 = vmatmul.mubr.f32.gmra.mxu0 %v314
      %v1288 = vpop.f32.mrf.mxu0
      %v1289 = vadd.f32 %v1064, %v1288
      %v1290 = vpop.f32.mrf.mxu0
      %1291 = vmatprep.mubr.f32.mxu0 0.0
      %1292 = vmatmul.mubr.f32.gmra.mxu0 %v315
      %v1293 = vpop.f32.mrf.mxu0
      %v1294 = vadd.f32 %v1069, %v1293
      %v1295 = vpop.f32.mrf.mxu0
      %1296 = vmatprep.mubr.f32.mxu0 0.0
      %1297 = vmatmul.mubr.f32.gmra.mxu0 %v316
      %v1298 = vpop.f32.mrf.mxu0
      %v1299 = vadd.f32 %v1074, %v1298
      %v1300 = vpop.f32.mrf.mxu0
      %1301 = vmatprep.mubr.f32.mxu0 0.0
      %1302 = vmatmul.mubr.f32.gmra.mxu0 %v317
      %v1303 = vpop.f32.mrf.mxu0
      %v1304 = vadd.f32 %v1079, %v1303
      %v1305 = vpop.f32.mrf.mxu0
      %1306 = vmatprep.mubr.f32.mxu0 0.0
      %1307 = vmatmul.mubr.f32.gmra.mxu0 %v318
      %v1308 = vpop.f32.mrf.mxu0
      %v1309 = vadd.f32 %v1084, %v1308
      %v1310 = vpop.f32.mrf.mxu0
      %1311 = vmatprep.mubr.f32.mxu0 0.0
      %1312 = vmatmul.mubr.f32.gmra.mxu0 %v319
      %v1313 = vpop.f32.mrf.mxu0
      %v1314 = vadd.f32 %v1089, %v1313
      %v1315 = vpop.f32.mrf.mxu0
      %1316 = vmatprep.mubr.f32.mxu0 0.0
      %1317 = vmatmul.mubr.f32.gmra.mxu0 %v320
      %v1318 = vpop.f32.mrf.mxu0
      %v1319 = vadd.f32 %v1094, %v1318
      %v1320 = vpop.f32.mrf.mxu0
      %1321 = vmatprep.mubr.f32.mxu0 0.0
      %1322 = vmatmul.mubr.f32.gmra.mxu0 %v321
      %v1323 = vpop.f32.mrf.mxu0
      %v1324 = vadd.f32 %v1099, %v1323
      %v1325 = vpop.f32.mrf.mxu0
      %1326 = vmatprep.mubr.f32.mxu0 0.0
      %1327 = vmatmul.mubr.f32.gmra.mxu0 %v322
      %v1328 = vpop.f32.mrf.mxu0
      %v1329 = vadd.f32 %v1104, %v1328
      %v1330 = vpop.f32.mrf.mxu0
      %1331 = vmatprep.mubr.f32.mxu0 0.0
      %1332 = vmatmul.mubr.f32.gmra.mxu0 %v323
      %v1333 = vpop.f32.mrf.mxu0
      %v1334 = vadd.f32 %v1109, %v1333
      %v1335 = vpop.f32.mrf.mxu0
      %1336 = vmatprep.mubr.f32.mxu0 0.0
      %1337 = vmatmul.mubr.f32.gmra.mxu0 %v324
      %v1338 = vpop.f32.mrf.mxu0
      %v1339 = vadd.f32 %v1114, %v1338
      %v1340 = vpop.f32.mrf.mxu0
      %1341 = vmatprep.mubr.f32.mxu0 0.0
      %1342 = vmatmul.mubr.f32.gmra.mxu0 %v325
      %v1343 = vpop.f32.mrf.mxu0
      %v1344 = vadd.f32 %v1119, %v1343
      %v1345 = vpop.f32.mrf.mxu0
      %1346 = vmatprep.mubr.f32.mxu0 0.0
      %1347 = vmatmul.mubr.f32.gmra.mxu0 %v326
      %v1348 = vpop.f32.mrf.mxu0
      %v1349 = vadd.f32 %v1124, %v1348
      %v1350 = vpop.f32.mrf.mxu0
      %1351 = vmatprep.mubr.f32.mxu0 0.0
      %1352 = vmatmul.mubr.f32.gmra.mxu0 %v327
      %v1353 = vpop.f32.mrf.mxu0
      %v1354 = vadd.f32 %v1129, %v1353
      %v1355 = vpop.f32.mrf.mxu0
      %1356 = vmatprep.mubr.f32.mxu0 0.0
      %1357 = vmatmul.mubr.f32.gmra.mxu0 %v328
      %v1358 = vpop.f32.mrf.mxu0
      %v1359 = vadd.f32 %v1134, %v1358
      %v1360 = vpop.f32.mrf.mxu0
      %1361 = vmatprep.mubr.f32.mxu0 0.0
      %1362 = vmatmul.mubr.f32.gmra.mxu0 %v329
      %v1363 = vpop.f32.mrf.mxu0
      %v1364 = vadd.f32 %v1139, %v1363
      %v1365 = vpop.f32.mrf.mxu0
      %1366 = vmatprep.mubr.f32.mxu0 0.0
      %1367 = vmatmul.mubr.f32.gmra.mxu0 %v330
      %v1368 = vpop.f32.mrf.mxu0
      %v1369 = vadd.f32 %v1144, %v1368
      %v1370 = vpop.f32.mrf.mxu0
      %1371 = vmatprep.mubr.f32.mxu0 0.0
      %1372 = vmatmul.mubr.f32.gmra.mxu0 %v331
      %v1373 = vpop.f32.mrf.mxu0
      %v1374 = vadd.f32 %v1149, %v1373
      %v1375 = vpop.f32.mrf.mxu0
      %1376 = vmatprep.mubr.f32.mxu0 0.0
      %1377 = vmatmul.mubr.f32.gmra.mxu0 %v332
      %v1378 = vpop.f32.mrf.mxu0
      %v1379 = vadd.f32 %v1154, %v1378
      %v1380 = vpop.f32.mrf.mxu0
      %1381 = vmatprep.mubr.f32.mxu0 0.0
      %1382 = vmatmul.mubr.f32.gmra.mxu0 %v333
      %v1383 = vpop.f32.mrf.mxu0
      %v1384 = vadd.f32 %v1159, %v1383
      %v1385 = vpop.f32.mrf.mxu0
      %1386 = vmatprep.mubr.f32.mxu0 0.0
      %1387 = vmatmul.mubr.f32.gmra.mxu0 %v334
      %v1388 = vpop.f32.mrf.mxu0
      %v1389 = vadd.f32 %v1164, %v1388
      %v1390 = vpop.f32.mrf.mxu0
      %1391 = vmatprep.mubr.f32.mxu0 0.0
      %1392 = vmatmul.mubr.f32.gmra.mxu0 %v335
      %v1393 = vpop.f32.mrf.mxu0
      %v1394 = vadd.f32 %v1169, %v1393
      %v1395 = vpop.f32.mrf.mxu0
      %1396 = vmatprep.mubr.f32.mxu0 0.0
      %1397 = vmatmul.mubr.f32.gmra.mxu0 %v336
      %v1398 = vpop.f32.mrf.mxu0
      %v1399 = vadd.f32 %v1174, %v1398
      %v1400 = vpop.f32.mrf.mxu0
      %1401 = vmatprep.mubr.f32.mxu0 0.0
      %1402 = vmatmul.mubr.f32.gmra.mxu0 %v337
      %v1403 = vpop.f32.mrf.mxu0
      %v1404 = vadd.f32 %v1179, %v1403
      %v1405 = vpop.f32.mrf.mxu0
      %1406 = vmatprep.mubr.f32.mxu0 0.0
      %1407 = vmatmul.mubr.f32.gmra.mxu0 %v338
      %v1408 = vpop.f32.mrf.mxu0
      %v1409 = vadd.f32 %v1184, %v1408
      %v1410 = vpop.f32.mrf.mxu0
      %1411 = vmatprep.mubr.f32.mxu0 0.0
      %1412 = vmatmul.mubr.f32.gmra.mxu0 %v339
      %v1413 = vpop.f32.mrf.mxu0
      %v1414 = vadd.f32 %v1189, %v1413
      %v1415 = vpop.f32.mrf.mxu0
      %1416 = vmatprep.mubr.f32.mxu0 0.0
      %1417 = vmatmul.mubr.f32.gmra.mxu0 %v340
      %v1418 = vpop.f32.mrf.mxu0
      %v1419 = vadd.f32 %v1194, %v1418
      %v1420 = vpop.f32.mrf.mxu0
      %1421 = vmatprep.mubr.f32.mxu0 0.0
      %1422 = vmatmul.mubr.f32.gmra.mxu0 %v341
      %v1423 = vpop.f32.mrf.mxu0
      %v1424 = vadd.f32 %v1199, %v1423
      %v1425 = vpop.f32.mrf.mxu0
      %1426 = vmatprep.mubr.f32.mxu0 0.0
      %1427 = vmatmul.mubr.f32.gmra.mxu0 %v342
      %v1428 = vpop.f32.mrf.mxu0
      %v1429 = vadd.f32 %v1204, %v1428
      %v1430 = vpop.f32.mrf.mxu0
      %1431 = vmatprep.mubr.f32.mxu0 0.0
      %1432 = vmatmul.mubr.f32.gmra.mxu0 %v343
      %v1433 = vpop.f32.mrf.mxu0
      %v1434 = vadd.f32 %v1209, %v1433
      %v1435 = vpop.f32.mrf.mxu0
      %1436 = vdwg.mxu0
      %s1437 = scalar_lea.vmem %s233, 48
      %v1438 = vld [vmem:[%s1437] sm:$0xff]
      %v1439 = vld [vmem:[%s1437 + $0x8] sm:$0xff]
      %v1440 = vld [vmem:[%s1437 + $0x18] sm:$0xff]
      %v1441 = vld [vmem:[%s1437 + $0x20] sm:$0xff]
      %v1442 = vld [vmem:[%s1437 + $0x30] sm:$0xff]
      %v1443 = vld [vmem:[%s1437 + $0x38] sm:$0xff]
      %v1444 = vld [vmem:[%s1437 + $0x48] sm:$0xff]
      %v1445 = vld [vmem:[%s1437 + $0x50] sm:$0xff]
      %v1446 = vld [vmem:[%s1437 + $0x60] sm:$0xff]
      %v1447 = vld [vmem:[%s1437 + $0x68] sm:$0xff]
      %v1448 = vld [vmem:[%s1437 + $0x78] sm:$0xff]
      %v1449 = vld [vmem:[%s1437 + $0x80] sm:$0xff]
      %v1450 = vld [vmem:[%s1437 + $0x90] sm:$0xff]
      %v1451 = vld [vmem:[%s1437 + $0x98] sm:$0xff]
      %v1452 = vld [vmem:[%s1437 + $0xa8] sm:$0xff]
      %v1453 = vld [vmem:[%s1437 + $0xb0] sm:$0xff]
      %v1454 = vld [vmem:[%s1437 + $0xc0] sm:$0xff]
      %v1455 = vld [vmem:[%s1437 + $0xc8] sm:$0xff]
      %v1456 = vld [vmem:[%s1437 + $0xd8] sm:$0xff]
      %v1457 = vld [vmem:[%s1437 + $0xe0] sm:$0xff]
      %v1458 = vld [vmem:[%s1437 + $0xf0] sm:$0xff]
      %v1459 = vld [vmem:[%s1437 + $0xf8] sm:$0xff]
      %v1460 = vld [vmem:[%s1437 + $0x108] sm:$0xff]
      %v1461 = vld [vmem:[%s1437 + $0x110] sm:$0xff]
      %v1462 = vld [vmem:[%s1437 + $0x120] sm:$0xff]
      %v1463 = vld [vmem:[%s1437 + $0x128] sm:$0xff]
      %v1464 = vld [vmem:[%s1437 + $0x138] sm:$0xff]
      %v1465 = vld [vmem:[%s1437 + $0x140] sm:$0xff]
      %v1466 = vld [vmem:[%s1437 + $0x150] sm:$0xff]
      %v1467 = vld [vmem:[%s1437 + $0x158] sm:$0xff]
      %v1468 = vld [vmem:[%s1437 + $0x168] sm:$0xff]
      %v1469 = vld [vmem:[%s1437 + $0x170] sm:$0xff]
      %v1470 = vld [vmem:[%s1437 + $0x1] sm:$0xff]
      %v1471 = vld [vmem:[%s1437 + $0x9] sm:$0xff]
      %v1472 = vld [vmem:[%s1437 + $0x19] sm:$0xff]
      %v1473 = vld [vmem:[%s1437 + $0x21] sm:$0xff]
      %v1474 = vld [vmem:[%s1437 + $0x31] sm:$0xff]
      %v1475 = vld [vmem:[%s1437 + $0x39] sm:$0xff]
      %v1476 = vld [vmem:[%s1437 + $0x49] sm:$0xff]
      %v1477 = vld [vmem:[%s1437 + $0x51] sm:$0xff]
      %v1478 = vld [vmem:[%s1437 + $0x61] sm:$0xff]
      %v1479 = vld [vmem:[%s1437 + $0x69] sm:$0xff]
      %v1480 = vld [vmem:[%s1437 + $0x79] sm:$0xff]
      %v1481 = vld [vmem:[%s1437 + $0x81] sm:$0xff]
      %v1482 = vld [vmem:[%s1437 + $0x91] sm:$0xff]
      %v1483 = vld [vmem:[%s1437 + $0x99] sm:$0xff]
      %v1484 = vld [vmem:[%s1437 + $0xa9] sm:$0xff]
      %v1485 = vld [vmem:[%s1437 + $0xb1] sm:$0xff]
      %v1486 = vld [vmem:[%s1437 + $0xc1] sm:$0xff]
      %v1487 = vld [vmem:[%s1437 + $0xc9] sm:$0xff]
      %v1488 = vld [vmem:[%s1437 + $0xd9] sm:$0xff]
      %v1489 = vld [vmem:[%s1437 + $0xe1] sm:$0xff]
      %v1490 = vld [vmem:[%s1437 + $0xf1] sm:$0xff]
      %v1491 = vld [vmem:[%s1437 + $0xf9] sm:$0xff]
      %v1492 = vld [vmem:[%s1437 + $0x109] sm:$0xff]
      %v1493 = vld [vmem:[%s1437 + $0x111] sm:$0xff]
      %v1494 = vld [vmem:[%s1437 + $0x121] sm:$0xff]
      %v1495 = vld [vmem:[%s1437 + $0x129] sm:$0xff]
      %v1496 = vld [vmem:[%s1437 + $0x139] sm:$0xff]
      %v1497 = vld [vmem:[%s1437 + $0x141] sm:$0xff]
      %v1498 = vld [vmem:[%s1437 + $0x151] sm:$0xff]
      %v1499 = vld [vmem:[%s1437 + $0x159] sm:$0xff]
      %v1500 = vld [vmem:[%s1437 + $0x169] sm:$0xff]
      %v1501 = vld [vmem:[%s1437 + $0x171] sm:$0xff]
      %v1502 = vld [vmem:[%s1437 + $0x2] sm:$0xff]
      %v1503 = vld [vmem:[%s1437 + $0xa] sm:$0xff]
      %v1504 = vld [vmem:[%s1437 + $0x1a] sm:$0xff]
      %v1505 = vld [vmem:[%s1437 + $0x22] sm:$0xff]
      %v1506 = vld [vmem:[%s1437 + $0x32] sm:$0xff]
      %v1507 = vld [vmem:[%s1437 + $0x3a] sm:$0xff]
      %v1508 = vld [vmem:[%s1437 + $0x4a] sm:$0xff]
      %v1509 = vld [vmem:[%s1437 + $0x52] sm:$0xff]
      %v1510 = vld [vmem:[%s1437 + $0x62] sm:$0xff]
      %v1511 = vld [vmem:[%s1437 + $0x6a] sm:$0xff]
      %v1512 = vld [vmem:[%s1437 + $0x7a] sm:$0xff]
      %v1513 = vld [vmem:[%s1437 + $0x82] sm:$0xff]
      %v1514 = vld [vmem:[%s1437 + $0x92] sm:$0xff]
      %v1515 = vld [vmem:[%s1437 + $0x9a] sm:$0xff]
      %v1516 = vld [vmem:[%s1437 + $0xaa] sm:$0xff]
      %v1517 = vld [vmem:[%s1437 + $0xb2] sm:$0xff]
      %v1518 = vld [vmem:[%s1437 + $0xc2] sm:$0xff]
      %v1519 = vld [vmem:[%s1437 + $0xca] sm:$0xff]
      %v1520 = vld [vmem:[%s1437 + $0xda] sm:$0xff]
      %v1521 = vld [vmem:[%s1437 + $0xe2] sm:$0xff]
      %v1522 = vld [vmem:[%s1437 + $0xf2] sm:$0xff]
      %v1523 = vld [vmem:[%s1437 + $0xfa] sm:$0xff]
      %v1524 = vld [vmem:[%s1437 + $0x10a] sm:$0xff]
      %v1525 = vld [vmem:[%s1437 + $0x112] sm:$0xff]
      %v1526 = vld [vmem:[%s1437 + $0x122] sm:$0xff]
      %v1527 = vld [vmem:[%s1437 + $0x12a] sm:$0xff]
      %v1528 = vld [vmem:[%s1437 + $0x13a] sm:$0xff]
      %v1529 = vld [vmem:[%s1437 + $0x142] sm:$0xff]
      %v1530 = vld [vmem:[%s1437 + $0x152] sm:$0xff]
      %v1531 = vld [vmem:[%s1437 + $0x15a] sm:$0xff]
      %v1532 = vld [vmem:[%s1437 + $0x16a] sm:$0xff]
      %v1533 = vld [vmem:[%s1437 + $0x172] sm:$0xff]
      %v1534 = vld [vmem:[%s1 + $0x300] sm:$0xff]
      %v1535 = vld [vmem:[%s1 + $0x308] sm:$0xff]
      %v1536 = vld [vmem:[%s1 + $0x310] sm:$0xff]
      %v1537 = vld [vmem:[%s1 + $0x318] sm:$0xff]
      %v1538 = vld [vmem:[%s1 + $0x320] sm:$0xff]
      %v1539 = vld [vmem:[%s1 + $0x328] sm:$0xff]
      %v1540 = vld [vmem:[%s1 + $0x330] sm:$0xff]
      %v1541 = vld [vmem:[%s1 + $0x338] sm:$0xff]
      %v1542 = vld [vmem:[%s1 + $0x340] sm:$0xff]
      %v1543 = vld [vmem:[%s1 + $0x348] sm:$0xff]
      %v1544 = vld [vmem:[%s1 + $0x350] sm:$0xff]
      %v1545 = vld [vmem:[%s1 + $0x358] sm:$0xff]
      %v1546 = vld [vmem:[%s1 + $0x360] sm:$0xff]
      %v1547 = vld [vmem:[%s1 + $0x368] sm:$0xff]
      %v1548 = vld [vmem:[%s1 + $0x370] sm:$0xff]
      %v1549 = vld [vmem:[%s1 + $0x378] sm:$0xff]
      %v1550 = vld [vmem:[%s1 + $0x380] sm:$0xff]
      %v1551 = vld [vmem:[%s1 + $0x388] sm:$0xff]
      %v1552 = vld [vmem:[%s1 + $0x390] sm:$0xff]
      %v1553 = vld [vmem:[%s1 + $0x398] sm:$0xff]
      %v1554 = vld [vmem:[%s1 + $0x3a0] sm:$0xff]
      %v1555 = vld [vmem:[%s1 + $0x3a8] sm:$0xff]
      %v1556 = vld [vmem:[%s1 + $0x3b0] sm:$0xff]
      %v1557 = vld [vmem:[%s1 + $0x3b8] sm:$0xff]
      %v1558 = vld [vmem:[%s1 + $0x3c0] sm:$0xff]
      %v1559 = vld [vmem:[%s1 + $0x3c8] sm:$0xff]
      %v1560 = vld [vmem:[%s1 + $0x3d0] sm:$0xff]
      %v1561 = vld [vmem:[%s1 + $0x3d8] sm:$0xff]
      %v1562 = vld [vmem:[%s1 + $0x3e0] sm:$0xff]
      %v1563 = vld [vmem:[%s1 + $0x3e8] sm:$0xff]
      %v1564 = vld [vmem:[%s1 + $0x3f0] sm:$0xff]
      %v1565 = vld [vmem:[%s1 + $0x3f8] sm:$0xff]
      %v1566 = vld [vmem:[%s1 + $0x400] sm:$0xff]
      %v1567 = vld [vmem:[%s1 + $0x408] sm:$0xff]
      %v1568 = vld [vmem:[%s1 + $0x410] sm:$0xff]
      %v1569 = vld [vmem:[%s1 + $0x418] sm:$0xff]
      %v1570 = vld [vmem:[%s1 + $0x420] sm:$0xff]
      %v1571 = vld [vmem:[%s1 + $0x428] sm:$0xff]
      %v1572 = vld [vmem:[%s1 + $0x430] sm:$0xff]
      %v1573 = vld [vmem:[%s1 + $0x438] sm:$0xff]
      %v1574 = vld [vmem:[%s1 + $0x440] sm:$0xff]
      %v1575 = vld [vmem:[%s1 + $0x448] sm:$0xff]
      %v1576 = vld [vmem:[%s1 + $0x450] sm:$0xff]
      %v1577 = vld [vmem:[%s1 + $0x458] sm:$0xff]
      %v1578 = vld [vmem:[%s1 + $0x460] sm:$0xff]
      %v1579 = vld [vmem:[%s1 + $0x468] sm:$0xff]
      %v1580 = vld [vmem:[%s1 + $0x470] sm:$0xff]
      %v1581 = vld [vmem:[%s1 + $0x478] sm:$0xff]
      %1582 = vmatprep.subr.mxu0 0.0
      %1583 = vmatpush1.msra.mxu0 %v1549
      %1584 = vmatprep.subr.mxu0 0.0
      %1585 = vmatpush1.msra.mxu0 %v1548
      %1586 = vmatprep.subr.mxu0 0.0
      %1587 = vmatpush1.msra.mxu0 %v1547
      %1588 = vmatprep.subr.mxu0 0.0
      %1589 = vmatpush1.msra.mxu0 %v1546
      %1590 = vmatprep.subr.mxu0 0.0
      %1591 = vmatpush1.msra.mxu0 %v1545
      %1592 = vmatprep.subr.mxu0 0.0
      %1593 = vmatpush1.msra.mxu0 %v1544
      %1594 = vmatprep.subr.mxu0 0.0
      %1595 = vmatpush1.msra.mxu0 %v1543
      %1596 = vmatprep.subr.mxu0 0.0
      %1597 = vmatpush1.msra.mxu0 %v1542
      %1598 = vmatprep.subr.mxu0 0.0
      %1599 = vmatpush1.msra.mxu0 %v1541
      %1600 = vmatprep.subr.mxu0 0.0
      %1601 = vmatpush1.msra.mxu0 %v1540
      %1602 = vmatprep.subr.mxu0 0.0
      %1603 = vmatpush1.msra.mxu0 %v1539
      %1604 = vmatprep.subr.mxu0 0.0
      %1605 = vmatpush1.msra.mxu0 %v1538
      %1606 = vmatprep.subr.mxu0 0.0
      %1607 = vmatpush1.msra.mxu0 %v1537
      %1608 = vmatprep.subr.mxu0 0.0
      %1609 = vmatpush1.msra.mxu0 %v1536
      %1610 = vmatprep.subr.mxu0 0.0
      %1611 = vmatpush1.msra.mxu0 %v1535
      %1612 = vmatprep.subr.mxu0 0.0
      %1613 = vmatpush1.msra.mxu0 %v1534
      %1614 = vmatprep.subr.mxu0 0.0
      %1615 = vmatpush2.msra.mxu0 %v1565
      %1616 = vmatprep.subr.mxu0 0.0
      %1617 = vmatpush2.msra.mxu0 %v1564
      %1618 = vmatprep.subr.mxu0 0.0
      %1619 = vmatpush2.msra.mxu0 %v1563
      %1620 = vmatprep.subr.mxu0 0.0
      %1621 = vmatpush2.msra.mxu0 %v1562
      %1622 = vmatprep.subr.mxu0 0.0
      %1623 = vmatpush2.msra.mxu0 %v1561
      %1624 = vmatprep.subr.mxu0 0.0
      %1625 = vmatpush2.msra.mxu0 %v1560
      %1626 = vmatprep.subr.mxu0 0.0
      %1627 = vmatpush2.msra.mxu0 %v1559
      %1628 = vmatprep.subr.mxu0 0.0
      %1629 = vmatpush2.msra.mxu0 %v1558
      %1630 = vmatprep.subr.mxu0 0.0
      %1631 = vmatpush2.msra.mxu0 %v1557
      %1632 = vmatprep.subr.mxu0 0.0
      %1633 = vmatpush2.msra.mxu0 %v1556
      %1634 = vmatprep.subr.mxu0 0.0
      %1635 = vmatpush2.msra.mxu0 %v1555
      %1636 = vmatprep.subr.mxu0 0.0
      %1637 = vmatpush2.msra.mxu0 %v1554
      %1638 = vmatprep.subr.mxu0 0.0
      %1639 = vmatpush2.msra.mxu0 %v1553
      %1640 = vmatprep.subr.mxu0 0.0
      %1641 = vmatpush2.msra.mxu0 %v1552
      %1642 = vmatprep.subr.mxu0 0.0
      %1643 = vmatpush2.msra.mxu0 %v1551
      %1644 = vmatprep.subr.mxu0 0.0
      %1645 = vmatpush2.msra.mxu0 %v1550
      %1646 = vmatprep.mubr.f32.mxu0 %v1470
      %1647 = vmatmul.mubr.f32.gmra.mxu0 %v1438
      %v1648 = vpop.f32.mrf.mxu0
      %v1649 = vadd.f32 0.0, %v1648
      %v1650 = vpop.f32.mrf.mxu0
      %1651 = vmatprep.mubr.f32.mxu0 %v1471
      %1652 = vmatmul.mubr.f32.gmra.mxu0 %v1439
      %v1653 = vpop.f32.mrf.mxu0
      %v1654 = vadd.f32 0.0, %v1653
      %v1655 = vpop.f32.mrf.mxu0
      %1656 = vmatprep.mubr.f32.mxu0 %v1472
      %1657 = vmatmul.mubr.f32.gmra.mxu0 %v1440
      %v1658 = vpop.f32.mrf.mxu0
      %v1659 = vadd.f32 0.0, %v1658
      %v1660 = vpop.f32.mrf.mxu0
      %1661 = vmatprep.mubr.f32.mxu0 %v1473
      %1662 = vmatmul.mubr.f32.gmra.mxu0 %v1441
      %v1663 = vpop.f32.mrf.mxu0
      %v1664 = vadd.f32 0.0, %v1663
      %v1665 = vpop.f32.mrf.mxu0
      %1666 = vmatprep.mubr.f32.mxu0 %v1474
      %1667 = vmatmul.mubr.f32.gmra.mxu0 %v1442
      %v1668 = vpop.f32.mrf.mxu0
      %v1669 = vadd.f32 0.0, %v1668
      %v1670 = vpop.f32.mrf.mxu0
      %1671 = vmatprep.mubr.f32.mxu0 %v1475
      %1672 = vmatmul.mubr.f32.gmra.mxu0 %v1443
      %v1673 = vpop.f32.mrf.mxu0
      %v1674 = vadd.f32 0.0, %v1673
      %v1675 = vpop.f32.mrf.mxu0
      %1676 = vmatprep.mubr.f32.mxu0 %v1476
      %1677 = vmatmul.mubr.f32.gmra.mxu0 %v1444
      %v1678 = vpop.f32.mrf.mxu0
      %v1679 = vadd.f32 0.0, %v1678
      %v1680 = vpop.f32.mrf.mxu0
      %1681 = vmatprep.mubr.f32.mxu0 %v1477
      %1682 = vmatmul.mubr.f32.gmra.mxu0 %v1445
      %v1683 = vpop.f32.mrf.mxu0
      %v1684 = vadd.f32 0.0, %v1683
      %v1685 = vpop.f32.mrf.mxu0
      %1686 = vmatprep.mubr.f32.mxu0 %v1478
      %1687 = vmatmul.mubr.f32.gmra.mxu0 %v1446
      %v1688 = vpop.f32.mrf.mxu0
      %v1689 = vadd.f32 0.0, %v1688
      %v1690 = vpop.f32.mrf.mxu0
      %1691 = vmatprep.mubr.f32.mxu0 %v1479
      %1692 = vmatmul.mubr.f32.gmra.mxu0 %v1447
      %v1693 = vpop.f32.mrf.mxu0
      %v1694 = vadd.f32 0.0, %v1693
      %v1695 = vpop.f32.mrf.mxu0
      %1696 = vmatprep.mubr.f32.mxu0 %v1480
      %1697 = vmatmul.mubr.f32.gmra.mxu0 %v1448
      %v1698 = vpop.f32.mrf.mxu0
      %v1699 = vadd.f32 0.0, %v1698
      %v1700 = vpop.f32.mrf.mxu0
      %1701 = vmatprep.mubr.f32.mxu0 %v1481
      %1702 = vmatmul.mubr.f32.gmra.mxu0 %v1449
      %v1703 = vpop.f32.mrf.mxu0
      %v1704 = vadd.f32 0.0, %v1703
      %v1705 = vpop.f32.mrf.mxu0
      %1706 = vmatprep.mubr.f32.mxu0 %v1482
      %1707 = vmatmul.mubr.f32.gmra.mxu0 %v1450
      %v1708 = vpop.f32.mrf.mxu0
      %v1709 = vadd.f32 0.0, %v1708
      %v1710 = vpop.f32.mrf.mxu0
      %1711 = vmatprep.mubr.f32.mxu0 %v1483
      %1712 = vmatmul.mubr.f32.gmra.mxu0 %v1451
      %v1713 = vpop.f32.mrf.mxu0
      %v1714 = vadd.f32 0.0, %v1713
      %v1715 = vpop.f32.mrf.mxu0
      %1716 = vmatprep.mubr.f32.mxu0 %v1484
      %1717 = vmatmul.mubr.f32.gmra.mxu0 %v1452
      %v1718 = vpop.f32.mrf.mxu0
      %v1719 = vadd.f32 0.0, %v1718
      %v1720 = vpop.f32.mrf.mxu0
      %1721 = vmatprep.mubr.f32.mxu0 %v1485
      %1722 = vmatmul.mubr.f32.gmra.mxu0 %v1453
      %v1723 = vpop.f32.mrf.mxu0
      %v1724 = vadd.f32 0.0, %v1723
      %v1725 = vpop.f32.mrf.mxu0
      %1726 = vmatprep.mubr.f32.mxu0 %v1486
      %1727 = vmatmul.mubr.f32.gmra.mxu0 %v1454
      %v1728 = vpop.f32.mrf.mxu0
      %v1729 = vadd.f32 0.0, %v1728
      %v1730 = vpop.f32.mrf.mxu0
      %1731 = vmatprep.mubr.f32.mxu0 %v1487
      %1732 = vmatmul.mubr.f32.gmra.mxu0 %v1455
      %v1733 = vpop.f32.mrf.mxu0
      %v1734 = vadd.f32 0.0, %v1733
      %v1735 = vpop.f32.mrf.mxu0
      %1736 = vmatprep.mubr.f32.mxu0 %v1488
      %1737 = vmatmul.mubr.f32.gmra.mxu0 %v1456
      %v1738 = vpop.f32.mrf.mxu0
      %v1739 = vadd.f32 0.0, %v1738
      %v1740 = vpop.f32.mrf.mxu0
      %1741 = vmatprep.mubr.f32.mxu0 %v1489
      %1742 = vmatmul.mubr.f32.gmra.mxu0 %v1457
      %v1743 = vpop.f32.mrf.mxu0
      %v1744 = vadd.f32 0.0, %v1743
      %v1745 = vpop.f32.mrf.mxu0
      %1746 = vmatprep.mubr.f32.mxu0 %v1490
      %1747 = vmatmul.mubr.f32.gmra.mxu0 %v1458
      %v1748 = vpop.f32.mrf.mxu0
      %v1749 = vadd.f32 0.0, %v1748
      %v1750 = vpop.f32.mrf.mxu0
      %1751 = vmatprep.mubr.f32.mxu0 %v1491
      %1752 = vmatmul.mubr.f32.gmra.mxu0 %v1459
      %v1753 = vpop.f32.mrf.mxu0
      %v1754 = vadd.f32 0.0, %v1753
      %v1755 = vpop.f32.mrf.mxu0
      %1756 = vmatprep.mubr.f32.mxu0 %v1492
      %1757 = vmatmul.mubr.f32.gmra.mxu0 %v1460
      %v1758 = vpop.f32.mrf.mxu0
      %v1759 = vadd.f32 0.0, %v1758
      %v1760 = vpop.f32.mrf.mxu0
      %1761 = vmatprep.mubr.f32.mxu0 %v1493
      %1762 = vmatmul.mubr.f32.gmra.mxu0 %v1461
      %v1763 = vpop.f32.mrf.mxu0
      %v1764 = vadd.f32 0.0, %v1763
      %v1765 = vpop.f32.mrf.mxu0
      %1766 = vmatprep.mubr.f32.mxu0 %v1494
      %1767 = vmatmul.mubr.f32.gmra.mxu0 %v1462
      %v1768 = vpop.f32.mrf.mxu0
      %v1769 = vadd.f32 0.0, %v1768
      %v1770 = vpop.f32.mrf.mxu0
      %1771 = vmatprep.mubr.f32.mxu0 %v1495
      %1772 = vmatmul.mubr.f32.gmra.mxu0 %v1463
      %v1773 = vpop.f32.mrf.mxu0
      %v1774 = vadd.f32 0.0, %v1773
      %v1775 = vpop.f32.mrf.mxu0
      %1776 = vmatprep.mubr.f32.mxu0 %v1496
      %1777 = vmatmul.mubr.f32.gmra.mxu0 %v1464
      %v1778 = vpop.f32.mrf.mxu0
      %v1779 = vadd.f32 0.0, %v1778
      %v1780 = vpop.f32.mrf.mxu0
      %1781 = vmatprep.mubr.f32.mxu0 %v1497
      %1782 = vmatmul.mubr.f32.gmra.mxu0 %v1465
      %v1783 = vpop.f32.mrf.mxu0
      %v1784 = vadd.f32 0.0, %v1783
      %v1785 = vpop.f32.mrf.mxu0
      %1786 = vmatprep.mubr.f32.mxu0 %v1498
      %1787 = vmatmul.mubr.f32.gmra.mxu0 %v1466
      %v1788 = vpop.f32.mrf.mxu0
      %v1789 = vadd.f32 0.0, %v1788
      %v1790 = vpop.f32.mrf.mxu0
      %1791 = vmatprep.mubr.f32.mxu0 %v1499
      %1792 = vmatmul.mubr.f32.gmra.mxu0 %v1467
      %v1793 = vpop.f32.mrf.mxu0
      %v1794 = vadd.f32 0.0, %v1793
      %v1795 = vpop.f32.mrf.mxu0
      %1796 = vmatprep.mubr.f32.mxu0 %v1500
      %1797 = vmatmul.mubr.f32.gmra.mxu0 %v1468
      %v1798 = vpop.f32.mrf.mxu0
      %v1799 = vadd.f32 0.0, %v1798
      %v1800 = vpop.f32.mrf.mxu0
      %1801 = vmatprep.mubr.f32.mxu0 %v1501
      %1802 = vmatmul.mubr.f32.gmra.mxu0 %v1469
      %v1803 = vpop.f32.mrf.mxu0
      %v1804 = vadd.f32 0.0, %v1803
      %v1805 = vpop.f32.mrf.mxu0
      %1806 = vdwg.mxu0
      %1807 = vmatprep.subr.mxu0 0.0
      %1808 = vmatpush1.msra.mxu0 %v1581
      %1809 = vmatprep.subr.mxu0 0.0
      %1810 = vmatpush1.msra.mxu0 %v1580
      %1811 = vmatprep.subr.mxu0 0.0
      %1812 = vmatpush1.msra.mxu0 %v1579
      %1813 = vmatprep.subr.mxu0 0.0
      %1814 = vmatpush1.msra.mxu0 %v1578
      %1815 = vmatprep.subr.mxu0 0.0
      %1816 = vmatpush1.msra.mxu0 %v1577
      %1817 = vmatprep.subr.mxu0 0.0
      %1818 = vmatpush1.msra.mxu0 %v1576
      %1819 = vmatprep.subr.mxu0 0.0
      %1820 = vmatpush1.msra.mxu0 %v1575
      %1821 = vmatprep.subr.mxu0 0.0
      %1822 = vmatpush1.msra.mxu0 %v1574
      %1823 = vmatprep.subr.mxu0 0.0
      %1824 = vmatpush1.msra.mxu0 %v1573
      %1825 = vmatprep.subr.mxu0 0.0
      %1826 = vmatpush1.msra.mxu0 %v1572
      %1827 = vmatprep.subr.mxu0 0.0
      %1828 = vmatpush1.msra.mxu0 %v1571
      %1829 = vmatprep.subr.mxu0 0.0
      %1830 = vmatpush1.msra.mxu0 %v1570
      %1831 = vmatprep.subr.mxu0 0.0
      %1832 = vmatpush1.msra.mxu0 %v1569
      %1833 = vmatprep.subr.mxu0 0.0
      %1834 = vmatpush1.msra.mxu0 %v1568
      %1835 = vmatprep.subr.mxu0 0.0
      %1836 = vmatpush1.msra.mxu0 %v1567
      %1837 = vmatprep.subr.mxu0 0.0
      %1838 = vmatpush1.msra.mxu0 %v1566
      %1839 = vmatprep.subr.mxu0 0.0
      %1840 = vmatpush2.msra.mxu0 0.0
      %1841 = vmatprep.subr.mxu0 0.0
      %1842 = vmatpush2.msra.mxu0 0.0
      %1843 = vmatprep.subr.mxu0 0.0
      %1844 = vmatpush2.msra.mxu0 0.0
      %1845 = vmatprep.subr.mxu0 0.0
      %1846 = vmatpush2.msra.mxu0 0.0
      %1847 = vmatprep.subr.mxu0 0.0
      %1848 = vmatpush2.msra.mxu0 0.0
      %1849 = vmatprep.subr.mxu0 0.0
      %1850 = vmatpush2.msra.mxu0 0.0
      %1851 = vmatprep.subr.mxu0 0.0
      %1852 = vmatpush2.msra.mxu0 0.0
      %1853 = vmatprep.subr.mxu0 0.0
      %1854 = vmatpush2.msra.mxu0 0.0
      %1855 = vmatprep.subr.mxu0 0.0
      %1856 = vmatpush2.msra.mxu0 0.0
      %1857 = vmatprep.subr.mxu0 0.0
      %1858 = vmatpush2.msra.mxu0 0.0
      %1859 = vmatprep.subr.mxu0 0.0
      %1860 = vmatpush2.msra.mxu0 0.0
      %1861 = vmatprep.subr.mxu0 0.0
      %1862 = vmatpush2.msra.mxu0 0.0
      %1863 = vmatprep.subr.mxu0 0.0
      %1864 = vmatpush2.msra.mxu0 0.0
      %1865 = vmatprep.subr.mxu0 0.0
      %1866 = vmatpush2.msra.mxu0 0.0
      %1867 = vmatprep.subr.mxu0 0.0
      %1868 = vmatpush2.msra.mxu0 0.0
      %1869 = vmatprep.subr.mxu0 0.0
      %1870 = vmatpush2.msra.mxu0 0.0
      %1871 = vmatprep.mubr.f32.mxu0 0.0
      %1872 = vmatmul.mubr.f32.gmra.mxu0 %v1502
      %v1873 = vpop.f32.mrf.mxu0
      %v1874 = vadd.f32 %v1649, %v1873
      %v1875 = vpop.f32.mrf.mxu0
      %1876 = vmatprep.mubr.f32.mxu0 0.0
      %1877 = vmatmul.mubr.f32.gmra.mxu0 %v1503
      %v1878 = vpop.f32.mrf.mxu0
      %v1879 = vadd.f32 %v1654, %v1878
      %v1880 = vpop.f32.mrf.mxu0
      %1881 = vmatprep.mubr.f32.mxu0 0.0
      %1882 = vmatmul.mubr.f32.gmra.mxu0 %v1504
      %v1883 = vpop.f32.mrf.mxu0
      %v1884 = vadd.f32 %v1659, %v1883
      %v1885 = vpop.f32.mrf.mxu0
      %1886 = vmatprep.mubr.f32.mxu0 0.0
      %1887 = vmatmul.mubr.f32.gmra.mxu0 %v1505
      %v1888 = vpop.f32.mrf.mxu0
      %v1889 = vadd.f32 %v1664, %v1888
      %v1890 = vpop.f32.mrf.mxu0
      %1891 = vmatprep.mubr.f32.mxu0 0.0
      %1892 = vmatmul.mubr.f32.gmra.mxu0 %v1506
      %v1893 = vpop.f32.mrf.mxu0
      %v1894 = vadd.f32 %v1669, %v1893
      %v1895 = vpop.f32.mrf.mxu0
      %1896 = vmatprep.mubr.f32.mxu0 0.0
      %1897 = vmatmul.mubr.f32.gmra.mxu0 %v1507
      %v1898 = vpop.f32.mrf.mxu0
      %v1899 = vadd.f32 %v1674, %v1898
      %v1900 = vpop.f32.mrf.mxu0
      %1901 = vmatprep.mubr.f32.mxu0 0.0
      %1902 = vmatmul.mubr.f32.gmra.mxu0 %v1508
      %v1903 = vpop.f32.mrf.mxu0
      %v1904 = vadd.f32 %v1679, %v1903
      %v1905 = vpop.f32.mrf.mxu0
      %1906 = vmatprep.mubr.f32.mxu0 0.0
      %1907 = vmatmul.mubr.f32.gmra.mxu0 %v1509
      %v1908 = vpop.f32.mrf.mxu0
      %v1909 = vadd.f32 %v1684, %v1908
      %v1910 = vpop.f32.mrf.mxu0
      %1911 = vmatprep.mubr.f32.mxu0 0.0
      %1912 = vmatmul.mubr.f32.gmra.mxu0 %v1510
      %v1913 = vpop.f32.mrf.mxu0
      %v1914 = vadd.f32 %v1689, %v1913
      %v1915 = vpop.f32.mrf.mxu0
      %1916 = vmatprep.mubr.f32.mxu0 0.0
      %1917 = vmatmul.mubr.f32.gmra.mxu0 %v1511
      %v1918 = vpop.f32.mrf.mxu0
      %v1919 = vadd.f32 %v1694, %v1918
      %v1920 = vpop.f32.mrf.mxu0
      %1921 = vmatprep.mubr.f32.mxu0 0.0
      %1922 = vmatmul.mubr.f32.gmra.mxu0 %v1512
      %v1923 = vpop.f32.mrf.mxu0
      %v1924 = vadd.f32 %v1699, %v1923
      %v1925 = vpop.f32.mrf.mxu0
      %1926 = vmatprep.mubr.f32.mxu0 0.0
      %1927 = vmatmul.mubr.f32.gmra.mxu0 %v1513
      %v1928 = vpop.f32.mrf.mxu0
      %v1929 = vadd.f32 %v1704, %v1928
      %v1930 = vpop.f32.mrf.mxu0
      %1931 = vmatprep.mubr.f32.mxu0 0.0
      %1932 = vmatmul.mubr.f32.gmra.mxu0 %v1514
      %v1933 = vpop.f32.mrf.mxu0
      %v1934 = vadd.f32 %v1709, %v1933
      %v1935 = vpop.f32.mrf.mxu0
      %1936 = vmatprep.mubr.f32.mxu0 0.0
      %1937 = vmatmul.mubr.f32.gmra.mxu0 %v1515
      %v1938 = vpop.f32.mrf.mxu0
      %v1939 = vadd.f32 %v1714, %v1938
      %v1940 = vpop.f32.mrf.mxu0
      %1941 = vmatprep.mubr.f32.mxu0 0.0
      %1942 = vmatmul.mubr.f32.gmra.mxu0 %v1516
      %v1943 = vpop.f32.mrf.mxu0
      %v1944 = vadd.f32 %v1719, %v1943
      %v1945 = vpop.f32.mrf.mxu0
      %1946 = vmatprep.mubr.f32.mxu0 0.0
      %1947 = vmatmul.mubr.f32.gmra.mxu0 %v1517
      %v1948 = vpop.f32.mrf.mxu0
      %v1949 = vadd.f32 %v1724, %v1948
      %v1950 = vpop.f32.mrf.mxu0
      %1951 = vmatprep.mubr.f32.mxu0 0.0
      %1952 = vmatmul.mubr.f32.gmra.mxu0 %v1518
      %v1953 = vpop.f32.mrf.mxu0
      %v1954 = vadd.f32 %v1729, %v1953
      %v1955 = vpop.f32.mrf.mxu0
      %1956 = vmatprep.mubr.f32.mxu0 0.0
      %1957 = vmatmul.mubr.f32.gmra.mxu0 %v1519
      %v1958 = vpop.f32.mrf.mxu0
      %v1959 = vadd.f32 %v1734, %v1958
      %v1960 = vpop.f32.mrf.mxu0
      %1961 = vmatprep.mubr.f32.mxu0 0.0
      %1962 = vmatmul.mubr.f32.gmra.mxu0 %v1520
      %v1963 = vpop.f32.mrf.mxu0
      %v1964 = vadd.f32 %v1739, %v1963
      %v1965 = vpop.f32.mrf.mxu0
      %1966 = vmatprep.mubr.f32.mxu0 0.0
      %1967 = vmatmul.mubr.f32.gmra.mxu0 %v1521
      %v1968 = vpop.f32.mrf.mxu0
      %v1969 = vadd.f32 %v1744, %v1968
      %v1970 = vpop.f32.mrf.mxu0
      %1971 = vmatprep.mubr.f32.mxu0 0.0
      %1972 = vmatmul.mubr.f32.gmra.mxu0 %v1522
      %v1973 = vpop.f32.mrf.mxu0
      %v1974 = vadd.f32 %v1749, %v1973
      %v1975 = vpop.f32.mrf.mxu0
      %1976 = vmatprep.mubr.f32.mxu0 0.0
      %1977 = vmatmul.mubr.f32.gmra.mxu0 %v1523
      %v1978 = vpop.f32.mrf.mxu0
      %v1979 = vadd.f32 %v1754, %v1978
      %v1980 = vpop.f32.mrf.mxu0
      %1981 = vmatprep.mubr.f32.mxu0 0.0
      %1982 = vmatmul.mubr.f32.gmra.mxu0 %v1524
      %v1983 = vpop.f32.mrf.mxu0
      %v1984 = vadd.f32 %v1759, %v1983
      %v1985 = vpop.f32.mrf.mxu0
      %1986 = vmatprep.mubr.f32.mxu0 0.0
      %1987 = vmatmul.mubr.f32.gmra.mxu0 %v1525
      %v1988 = vpop.f32.mrf.mxu0
      %v1989 = vadd.f32 %v1764, %v1988
      %v1990 = vpop.f32.mrf.mxu0
      %1991 = vmatprep.mubr.f32.mxu0 0.0
      %1992 = vmatmul.mubr.f32.gmra.mxu0 %v1526
      %v1993 = vpop.f32.mrf.mxu0
      %v1994 = vadd.f32 %v1769, %v1993
      %v1995 = vpop.f32.mrf.mxu0
      %1996 = vmatprep.mubr.f32.mxu0 0.0
      %1997 = vmatmul.mubr.f32.gmra.mxu0 %v1527
      %v1998 = vpop.f32.mrf.mxu0
      %v1999 = vadd.f32 %v1774, %v1998
      %v2000 = vpop.f32.mrf.mxu0
      %2001 = vmatprep.mubr.f32.mxu0 0.0
      %2002 = vmatmul.mubr.f32.gmra.mxu0 %v1528
      %v2003 = vpop.f32.mrf.mxu0
      %v2004 = vadd.f32 %v1779, %v2003
      %v2005 = vpop.f32.mrf.mxu0
      %2006 = vmatprep.mubr.f32.mxu0 0.0
      %2007 = vmatmul.mubr.f32.gmra.mxu0 %v1529
      %v2008 = vpop.f32.mrf.mxu0
      %v2009 = vadd.f32 %v1784, %v2008
      %v2010 = vpop.f32.mrf.mxu0
      %2011 = vmatprep.mubr.f32.mxu0 0.0
      %2012 = vmatmul.mubr.f32.gmra.mxu0 %v1530
      %v2013 = vpop.f32.mrf.mxu0
      %v2014 = vadd.f32 %v1789, %v2013
      %v2015 = vpop.f32.mrf.mxu0
      %2016 = vmatprep.mubr.f32.mxu0 0.0
      %2017 = vmatmul.mubr.f32.gmra.mxu0 %v1531
      %v2018 = vpop.f32.mrf.mxu0
      %v2019 = vadd.f32 %v1794, %v2018
      %v2020 = vpop.f32.mrf.mxu0
      %2021 = vmatprep.mubr.f32.mxu0 0.0
      %2022 = vmatmul.mubr.f32.gmra.mxu0 %v1532
      %v2023 = vpop.f32.mrf.mxu0
      %v2024 = vadd.f32 %v1799, %v2023
      %v2025 = vpop.f32.mrf.mxu0
      %2026 = vmatprep.mubr.f32.mxu0 0.0
      %2027 = vmatmul.mubr.f32.gmra.mxu0 %v1533
      %v2028 = vpop.f32.mrf.mxu0
      %v2029 = vadd.f32 %v1804, %v2028
      %v2030 = vpop.f32.mrf.mxu0
      %2031 = vdwg.mxu0
      %v2032 = vadd.f32 %v1279, %v1874
      %v2033 = vadd.f32 %v1284, %v1879
      %v2034 = vadd.f32 %v1289, %v1884
      %v2035 = vadd.f32 %v1294, %v1889
      %v2036 = vadd.f32 %v1299, %v1894
      %v2037 = vadd.f32 %v1304, %v1899
      %v2038 = vadd.f32 %v1309, %v1904
      %v2039 = vadd.f32 %v1314, %v1909
      %v2040 = vadd.f32 %v1319, %v1914
      %v2041 = vadd.f32 %v1324, %v1919
      %v2042 = vadd.f32 %v1329, %v1924
      %v2043 = vadd.f32 %v1334, %v1929
      %v2044 = vadd.f32 %v1339, %v1934
      %v2045 = vadd.f32 %v1344, %v1939
      %v2046 = vadd.f32 %v1349, %v1944
      %v2047 = vadd.f32 %v1354, %v1949
      %v2048 = vadd.f32 %v1359, %v1954
      %v2049 = vadd.f32 %v1364, %v1959
      %v2050 = vadd.f32 %v1369, %v1964
      %v2051 = vadd.f32 %v1374, %v1969
      %v2052 = vadd.f32 %v1379, %v1974
      %v2053 = vadd.f32 %v1384, %v1979
      %v2054 = vadd.f32 %v1389, %v1984
      %v2055 = vadd.f32 %v1394, %v1989
      %v2056 = vadd.f32 %v1399, %v1994
      %v2057 = vadd.f32 %v1404, %v1999
      %v2058 = vadd.f32 %v1409, %v2004
      %v2059 = vadd.f32 %v1414, %v2009
      %v2060 = vadd.f32 %v1419, %v2014
      %v2061 = vadd.f32 %v1424, %v2019
      %v2062 = vadd.f32 %v1429, %v2024
      %v2063 = vadd.f32 %v1434, %v2029
      %2064 = vst [vmem:[%s238] sm:$0xff] %v2032
      %2065 = vst [vmem:[%s238 + $0x8] sm:$0xff] %v2033
      %2066 = vst [vmem:[%s238 + $0x10] sm:$0xff] %v2034
      %2067 = vst [vmem:[%s238 + $0x18] sm:$0xff] %v2035
      %2068 = vst [vmem:[%s238 + $0x20] sm:$0xff] %v2036
      %2069 = vst [vmem:[%s238 + $0x28] sm:$0xff] %v2037
      %2070 = vst [vmem:[%s238 + $0x30] sm:$0xff] %v2038
      %2071 = vst [vmem:[%s238 + $0x38] sm:$0xff] %v2039
      %2072 = vst [vmem:[%s238 + $0x40] sm:$0xff] %v2040
      %2073 = vst [vmem:[%s238 + $0x48] sm:$0xff] %v2041
      %2074 = vst [vmem:[%s238 + $0x50] sm:$0xff] %v2042
      %2075 = vst [vmem:[%s238 + $0x58] sm:$0xff] %v2043
      %2076 = vst [vmem:[%s238 + $0x60] sm:$0xff] %v2044
      %2077 = vst [vmem:[%s238 + $0x68] sm:$0xff] %v2045
      %2078 = vst [vmem:[%s238 + $0x70] sm:$0xff] %v2046
      %2079 = vst [vmem:[%s238 + $0x78] sm:$0xff] %v2047
      %2080 = vst [vmem:[%s238 + $0x80] sm:$0xff] %v2048
      %2081 = vst [vmem:[%s238 + $0x88] sm:$0xff] %v2049
      %2082 = vst [vmem:[%s238 + $0x90] sm:$0xff] %v2050
      %2083 = vst [vmem:[%s238 + $0x98] sm:$0xff] %v2051
      %2084 = vst [vmem:[%s238 + $0xa0] sm:$0xff] %v2052
      %2085 = vst [vmem:[%s238 + $0xa8] sm:$0xff] %v2053
      %2086 = vst [vmem:[%s238 + $0xb0] sm:$0xff] %v2054
      %2087 = vst [vmem:[%s238 + $0xb8] sm:$0xff] %v2055
      %2088 = vst [vmem:[%s238 + $0xc0] sm:$0xff] %v2056
      %2089 = vst [vmem:[%s238 + $0xc8] sm:$0xff] %v2057
      %2090 = vst [vmem:[%s238 + $0xd0] sm:$0xff] %v2058
      %2091 = vst [vmem:[%s238 + $0xd8] sm:$0xff] %v2059
      %2092 = vst [vmem:[%s238 + $0xe0] sm:$0xff] %v2060
      %2093 = vst [vmem:[%s238 + $0xe8] sm:$0xff] %v2061
      %2094 = vst [vmem:[%s238 + $0xf0] sm:$0xff] %v2062
      %2095 = vst [vmem:[%s238 + $0xf8] sm:$0xff] %v2063
      %v2096 = vld [vmem:[%s392 + $0x1] sm:$0xff]
      %v2097 = vld [vmem:[%s392 + $0x9] sm:$0xff]
      %v2098 = vld [vmem:[%s392 + $0x19] sm:$0xff]
      %v2099 = vld [vmem:[%s392 + $0x21] sm:$0xff]
      %v2100 = vld [vmem:[%s392 + $0x31] sm:$0xff]
      %v2101 = vld [vmem:[%s392 + $0x39] sm:$0xff]
      %v2102 = vld [vmem:[%s392 + $0x49] sm:$0xff]
      %v2103 = vld [vmem:[%s392 + $0x51] sm:$0xff]
      %v2104 = vld [vmem:[%s392 + $0x61] sm:$0xff]
      %v2105 = vld [vmem:[%s392 + $0x69] sm:$0xff]
      %v2106 = vld [vmem:[%s392 + $0x79] sm:$0xff]
      %v2107 = vld [vmem:[%s392 + $0x81] sm:$0xff]
      %v2108 = vld [vmem:[%s392 + $0x91] sm:$0xff]
      %v2109 = vld [vmem:[%s392 + $0x99] sm:$0xff]
      %v2110 = vld [vmem:[%s392 + $0xa9] sm:$0xff]
      %v2111 = vld [vmem:[%s392 + $0xb1] sm:$0xff]
      %v2112 = vld [vmem:[%s392 + $0xc1] sm:$0xff]
      %v2113 = vld [vmem:[%s392 + $0xc9] sm:$0xff]
      %v2114 = vld [vmem:[%s392 + $0xd9] sm:$0xff]
      %v2115 = vld [vmem:[%s392 + $0xe1] sm:$0xff]
      %v2116 = vld [vmem:[%s392 + $0xf1] sm:$0xff]
      %v2117 = vld [vmem:[%s392 + $0xf9] sm:$0xff]
      %v2118 = vld [vmem:[%s392 + $0x109] sm:$0xff]
      %v2119 = vld [vmem:[%s392 + $0x111] sm:$0xff]
      %v2120 = vld [vmem:[%s392 + $0x121] sm:$0xff]
      %v2121 = vld [vmem:[%s392 + $0x129] sm:$0xff]
      %v2122 = vld [vmem:[%s392 + $0x139] sm:$0xff]
      %v2123 = vld [vmem:[%s392 + $0x141] sm:$0xff]
      %v2124 = vld [vmem:[%s392 + $0x151] sm:$0xff]
      %v2125 = vld [vmem:[%s392 + $0x159] sm:$0xff]
      %v2126 = vld [vmem:[%s392 + $0x169] sm:$0xff]
      %v2127 = vld [vmem:[%s392 + $0x171] sm:$0xff]
      %v2128 = vld [vmem:[%s2] sm:$0xff]
      %v2129 = vld [vmem:[%s2 + $0x8] sm:$0xff]
      %v2130 = vld [vmem:[%s2 + $0x10] sm:$0xff]
      %v2131 = vld [vmem:[%s2 + $0x18] sm:$0xff]
      %v2132 = vld [vmem:[%s2 + $0x20] sm:$0xff]
      %v2133 = vld [vmem:[%s2 + $0x28] sm:$0xff]
      %v2134 = vld [vmem:[%s2 + $0x30] sm:$0xff]
      %v2135 = vld [vmem:[%s2 + $0x38] sm:$0xff]
      %v2136 = vld [vmem:[%s2 + $0x40] sm:$0xff]
      %v2137 = vld [vmem:[%s2 + $0x48] sm:$0xff]
      %v2138 = vld [vmem:[%s2 + $0x50] sm:$0xff]
      %v2139 = vld [vmem:[%s2 + $0x58] sm:$0xff]
      %v2140 = vld [vmem:[%s2 + $0x60] sm:$0xff]
      %v2141 = vld [vmem:[%s2 + $0x68] sm:$0xff]
      %v2142 = vld [vmem:[%s2 + $0x70] sm:$0xff]
      %v2143 = vld [vmem:[%s2 + $0x78] sm:$0xff]
      %2144 = vmatprep.subr.mxu0 0.0
      %2145 = vmatpush1.msra.mxu0 %v2143
      %2146 = vmatprep.subr.mxu0 0.0
      %2147 = vmatpush1.msra.mxu0 %v2142
      %2148 = vmatprep.subr.mxu0 0.0
      %2149 = vmatpush1.msra.mxu0 %v2141
      %2150 = vmatprep.subr.mxu0 0.0
      %2151 = vmatpush1.msra.mxu0 %v2140
      %2152 = vmatprep.subr.mxu0 0.0
      %2153 = vmatpush1.msra.mxu0 %v2139
      %2154 = vmatprep.subr.mxu0 0.0
      %2155 = vmatpush1.msra.mxu0 %v2138
      %2156 = vmatprep.subr.mxu0 0.0
      %2157 = vmatpush1.msra.mxu0 %v2137
      %2158 = vmatprep.subr.mxu0 0.0
      %2159 = vmatpush1.msra.mxu0 %v2136
      %2160 = vmatprep.subr.mxu0 0.0
      %2161 = vmatpush1.msra.mxu0 %v2135
      %2162 = vmatprep.subr.mxu0 0.0
      %2163 = vmatpush1.msra.mxu0 %v2134
      %2164 = vmatprep.subr.mxu0 0.0
      %2165 = vmatpush1.msra.mxu0 %v2133
      %2166 = vmatprep.subr.mxu0 0.0
      %2167 = vmatpush1.msra.mxu0 %v2132
      %2168 = vmatprep.subr.mxu0 0.0
      %2169 = vmatpush1.msra.mxu0 %v2131
      %2170 = vmatprep.subr.mxu0 0.0
      %2171 = vmatpush1.msra.mxu0 %v2130
      %2172 = vmatprep.subr.mxu0 0.0
      %2173 = vmatpush1.msra.mxu0 %v2129
      %2174 = vmatprep.subr.mxu0 0.0
      %2175 = vmatpush1.msra.mxu0 %v2128
      %2176 = vmatprep.subr.mxu0 0.0
      %2177 = vmatpush2.msra.mxu0 0.0
      %2178 = vmatprep.subr.mxu0 0.0
      %2179 = vmatpush2.msra.mxu0 0.0
      %2180 = vmatprep.subr.mxu0 0.0
      %2181 = vmatpush2.msra.mxu0 0.0
      %2182 = vmatprep.subr.mxu0 0.0
      %2183 = vmatpush2.msra.mxu0 0.0
      %2184 = vmatprep.subr.mxu0 0.0
      %2185 = vmatpush2.msra.mxu0 0.0
      %2186 = vmatprep.subr.mxu0 0.0
      %2187 = vmatpush2.msra.mxu0 0.0
      %2188 = vmatprep.subr.mxu0 0.0
      %2189 = vmatpush2.msra.mxu0 0.0
      %2190 = vmatprep.subr.mxu0 0.0
      %2191 = vmatpush2.msra.mxu0 0.0
      %2192 = vmatprep.subr.mxu0 0.0
      %2193 = vmatpush2.msra.mxu0 0.0
      %2194 = vmatprep.subr.mxu0 0.0
      %2195 = vmatpush2.msra.mxu0 0.0
      %2196 = vmatprep.subr.mxu0 0.0
      %2197 = vmatpush2.msra.mxu0 0.0
      %2198 = vmatprep.subr.mxu0 0.0
      %2199 = vmatpush2.msra.mxu0 0.0
      %2200 = vmatprep.subr.mxu0 0.0
      %2201 = vmatpush2.msra.mxu0 0.0
      %2202 = vmatprep.subr.mxu0 0.0
      %2203 = vmatpush2.msra.mxu0 0.0
      %2204 = vmatprep.subr.mxu0 0.0
      %2205 = vmatpush2.msra.mxu0 0.0
      %2206 = vmatprep.subr.mxu0 0.0
      %2207 = vmatpush2.msra.mxu0 0.0
      %2208 = vmatprep.mubr.f32.mxu0 0.0
      %2209 = vmatmul.mubr.f32.gmra.mxu0 %v2096
      %v2210 = vpop.f32.mrf.mxu0
      %v2211 = vadd.f32 0.0, %v2210
      %v2212 = vpop.f32.mrf.mxu0
      %2213 = vmatprep.mubr.f32.mxu0 0.0
      %2214 = vmatmul.mubr.f32.gmra.mxu0 %v2097
      %v2215 = vpop.f32.mrf.mxu0
      %v2216 = vadd.f32 0.0, %v2215
      %v2217 = vpop.f32.mrf.mxu0
      %2218 = vmatprep.mubr.f32.mxu0 0.0
      %2219 = vmatmul.mubr.f32.gmra.mxu0 %v2098
      %v2220 = vpop.f32.mrf.mxu0
      %v2221 = vadd.f32 0.0, %v2220
      %v2222 = vpop.f32.mrf.mxu0
      %2223 = vmatprep.mubr.f32.mxu0 0.0
      %2224 = vmatmul.mubr.f32.gmra.mxu0 %v2099
      %v2225 = vpop.f32.mrf.mxu0
      %v2226 = vadd.f32 0.0, %v2225
      %v2227 = vpop.f32.mrf.mxu0
      %2228 = vmatprep.mubr.f32.mxu0 0.0
      %2229 = vmatmul.mubr.f32.gmra.mxu0 %v2100
      %v2230 = vpop.f32.mrf.mxu0
      %v2231 = vadd.f32 0.0, %v2230
      %v2232 = vpop.f32.mrf.mxu0
      %2233 = vmatprep.mubr.f32.mxu0 0.0
      %2234 = vmatmul.mubr.f32.gmra.mxu0 %v2101
      %v2235 = vpop.f32.mrf.mxu0
      %v2236 = vadd.f32 0.0, %v2235
      %v2237 = vpop.f32.mrf.mxu0
      %2238 = vmatprep.mubr.f32.mxu0 0.0
      %2239 = vmatmul.mubr.f32.gmra.mxu0 %v2102
      %v2240 = vpop.f32.mrf.mxu0
      %v2241 = vadd.f32 0.0, %v2240
      %v2242 = vpop.f32.mrf.mxu0
      %2243 = vmatprep.mubr.f32.mxu0 0.0
      %2244 = vmatmul.mubr.f32.gmra.mxu0 %v2103
      %v2245 = vpop.f32.mrf.mxu0
      %v2246 = vadd.f32 0.0, %v2245
      %v2247 = vpop.f32.mrf.mxu0
      %2248 = vmatprep.mubr.f32.mxu0 0.0
      %2249 = vmatmul.mubr.f32.gmra.mxu0 %v2104
      %v2250 = vpop.f32.mrf.mxu0
      %v2251 = vadd.f32 0.0, %v2250
      %v2252 = vpop.f32.mrf.mxu0
      %2253 = vmatprep.mubr.f32.mxu0 0.0
      %2254 = vmatmul.mubr.f32.gmra.mxu0 %v2105
      %v2255 = vpop.f32.mrf.mxu0
      %v2256 = vadd.f32 0.0, %v2255
      %v2257 = vpop.f32.mrf.mxu0
      %2258 = vmatprep.mubr.f32.mxu0 0.0
      %2259 = vmatmul.mubr.f32.gmra.mxu0 %v2106
      %v2260 = vpop.f32.mrf.mxu0
      %v2261 = vadd.f32 0.0, %v2260
      %v2262 = vpop.f32.mrf.mxu0
      %2263 = vmatprep.mubr.f32.mxu0 0.0
      %2264 = vmatmul.mubr.f32.gmra.mxu0 %v2107
      %v2265 = vpop.f32.mrf.mxu0
      %v2266 = vadd.f32 0.0, %v2265
      %v2267 = vpop.f32.mrf.mxu0
      %2268 = vmatprep.mubr.f32.mxu0 0.0
      %2269 = vmatmul.mubr.f32.gmra.mxu0 %v2108
      %v2270 = vpop.f32.mrf.mxu0
      %v2271 = vadd.f32 0.0, %v2270
      %v2272 = vpop.f32.mrf.mxu0
      %2273 = vmatprep.mubr.f32.mxu0 0.0
      %2274 = vmatmul.mubr.f32.gmra.mxu0 %v2109
      %v2275 = vpop.f32.mrf.mxu0
      %v2276 = vadd.f32 0.0, %v2275
      %v2277 = vpop.f32.mrf.mxu0
      %2278 = vmatprep.mubr.f32.mxu0 0.0
      %2279 = vmatmul.mubr.f32.gmra.mxu0 %v2110
      %v2280 = vpop.f32.mrf.mxu0
      %v2281 = vadd.f32 0.0, %v2280
      %v2282 = vpop.f32.mrf.mxu0
      %2283 = vmatprep.mubr.f32.mxu0 0.0
      %2284 = vmatmul.mubr.f32.gmra.mxu0 %v2111
      %v2285 = vpop.f32.mrf.mxu0
      %v2286 = vadd.f32 0.0, %v2285
      %v2287 = vpop.f32.mrf.mxu0
      %2288 = vmatprep.mubr.f32.mxu0 0.0
      %2289 = vmatmul.mubr.f32.gmra.mxu0 %v2112
      %v2290 = vpop.f32.mrf.mxu0
      %v2291 = vadd.f32 0.0, %v2290
      %v2292 = vpop.f32.mrf.mxu0
      %2293 = vmatprep.mubr.f32.mxu0 0.0
      %2294 = vmatmul.mubr.f32.gmra.mxu0 %v2113
      %v2295 = vpop.f32.mrf.mxu0
      %v2296 = vadd.f32 0.0, %v2295
      %v2297 = vpop.f32.mrf.mxu0
      %2298 = vmatprep.mubr.f32.mxu0 0.0
      %2299 = vmatmul.mubr.f32.gmra.mxu0 %v2114
      %v2300 = vpop.f32.mrf.mxu0
      %v2301 = vadd.f32 0.0, %v2300
      %v2302 = vpop.f32.mrf.mxu0
      %2303 = vmatprep.mubr.f32.mxu0 0.0
      %2304 = vmatmul.mubr.f32.gmra.mxu0 %v2115
      %v2305 = vpop.f32.mrf.mxu0
      %v2306 = vadd.f32 0.0, %v2305
      %v2307 = vpop.f32.mrf.mxu0
      %2308 = vmatprep.mubr.f32.mxu0 0.0
      %2309 = vmatmul.mubr.f32.gmra.mxu0 %v2116
      %v2310 = vpop.f32.mrf.mxu0
      %v2311 = vadd.f32 0.0, %v2310
      %v2312 = vpop.f32.mrf.mxu0
      %2313 = vmatprep.mubr.f32.mxu0 0.0
      %2314 = vmatmul.mubr.f32.gmra.mxu0 %v2117
      %v2315 = vpop.f32.mrf.mxu0
      %v2316 = vadd.f32 0.0, %v2315
      %v2317 = vpop.f32.mrf.mxu0
      %2318 = vmatprep.mubr.f32.mxu0 0.0
      %2319 = vmatmul.mubr.f32.gmra.mxu0 %v2118
      %v2320 = vpop.f32.mrf.mxu0
      %v2321 = vadd.f32 0.0, %v2320
      %v2322 = vpop.f32.mrf.mxu0
      %2323 = vmatprep.mubr.f32.mxu0 0.0
      %2324 = vmatmul.mubr.f32.gmra.mxu0 %v2119
      %v2325 = vpop.f32.mrf.mxu0
      %v2326 = vadd.f32 0.0, %v2325
      %v2327 = vpop.f32.mrf.mxu0
      %2328 = vmatprep.mubr.f32.mxu0 0.0
      %2329 = vmatmul.mubr.f32.gmra.mxu0 %v2120
      %v2330 = vpop.f32.mrf.mxu0
      %v2331 = vadd.f32 0.0, %v2330
      %v2332 = vpop.f32.mrf.mxu0
      %2333 = vmatprep.mubr.f32.mxu0 0.0
      %2334 = vmatmul.mubr.f32.gmra.mxu0 %v2121
      %v2335 = vpop.f32.mrf.mxu0
      %v2336 = vadd.f32 0.0, %v2335
      %v2337 = vpop.f32.mrf.mxu0
      %2338 = vmatprep.mubr.f32.mxu0 0.0
      %2339 = vmatmul.mubr.f32.gmra.mxu0 %v2122
      %v2340 = vpop.f32.mrf.mxu0
      %v2341 = vadd.f32 0.0, %v2340
      %v2342 = vpop.f32.mrf.mxu0
      %2343 = vmatprep.mubr.f32.mxu0 0.0
      %2344 = vmatmul.mubr.f32.gmra.mxu0 %v2123
      %v2345 = vpop.f32.mrf.mxu0
      %v2346 = vadd.f32 0.0, %v2345
      %v2347 = vpop.f32.mrf.mxu0
      %2348 = vmatprep.mubr.f32.mxu0 0.0
      %2349 = vmatmul.mubr.f32.gmra.mxu0 %v2124
      %v2350 = vpop.f32.mrf.mxu0
      %v2351 = vadd.f32 0.0, %v2350
      %v2352 = vpop.f32.mrf.mxu0
      %2353 = vmatprep.mubr.f32.mxu0 0.0
      %2354 = vmatmul.mubr.f32.gmra.mxu0 %v2125
      %v2355 = vpop.f32.mrf.mxu0
      %v2356 = vadd.f32 0.0, %v2355
      %v2357 = vpop.f32.mrf.mxu0
      %2358 = vmatprep.mubr.f32.mxu0 0.0
      %2359 = vmatmul.mubr.f32.gmra.mxu0 %v2126
      %v2360 = vpop.f32.mrf.mxu0
      %v2361 = vadd.f32 0.0, %v2360
      %v2362 = vpop.f32.mrf.mxu0
      %2363 = vmatprep.mubr.f32.mxu0 0.0
      %2364 = vmatmul.mubr.f32.gmra.mxu0 %v2127
      %v2365 = vpop.f32.mrf.mxu0
      %v2366 = vadd.f32 0.0, %v2365
      %v2367 = vpop.f32.mrf.mxu0
      %2368 = vdwg.mxu0
      %2369 = vst [vmem:[%s243] sm:$0xff] %v2211
      %2370 = vst [vmem:[%s243 + $0x8] sm:$0xff] %v2216
      %2371 = vst [vmem:[%s243 + $0x10] sm:$0xff] %v2221
      %2372 = vst [vmem:[%s243 + $0x18] sm:$0xff] %v2226
      %2373 = vst [vmem:[%s243 + $0x20] sm:$0xff] %v2231
      %2374 = vst [vmem:[%s243 + $0x28] sm:$0xff] %v2236
      %2375 = vst [vmem:[%s243 + $0x30] sm:$0xff] %v2241
      %2376 = vst [vmem:[%s243 + $0x38] sm:$0xff] %v2246
      %2377 = vst [vmem:[%s243 + $0x40] sm:$0xff] %v2251
      %2378 = vst [vmem:[%s243 + $0x48] sm:$0xff] %v2256
      %2379 = vst [vmem:[%s243 + $0x50] sm:$0xff] %v2261
      %2380 = vst [vmem:[%s243 + $0x58] sm:$0xff] %v2266
      %2381 = vst [vmem:[%s243 + $0x60] sm:$0xff] %v2271
      %2382 = vst [vmem:[%s243 + $0x68] sm:$0xff] %v2276
      %2383 = vst [vmem:[%s243 + $0x70] sm:$0xff] %v2281
      %2384 = vst [vmem:[%s243 + $0x78] sm:$0xff] %v2286
      %2385 = vst [vmem:[%s243 + $0x80] sm:$0xff] %v2291
      %2386 = vst [vmem:[%s243 + $0x88] sm:$0xff] %v2296
      %2387 = vst [vmem:[%s243 + $0x90] sm:$0xff] %v2301
      %2388 = vst [vmem:[%s243 + $0x98] sm:$0xff] %v2306
      %2389 = vst [vmem:[%s243 + $0xa0] sm:$0xff] %v2311
      %2390 = vst [vmem:[%s243 + $0xa8] sm:$0xff] %v2316
      %2391 = vst [vmem:[%s243 + $0xb0] sm:$0xff] %v2321
      %2392 = vst [vmem:[%s243 + $0xb8] sm:$0xff] %v2326
      %2393 = vst [vmem:[%s243 + $0xc0] sm:$0xff] %v2331
      %2394 = vst [vmem:[%s243 + $0xc8] sm:$0xff] %v2336
      %2395 = vst [vmem:[%s243 + $0xd0] sm:$0xff] %v2341
      %2396 = vst [vmem:[%s243 + $0xd8] sm:$0xff] %v2346
      %2397 = vst [vmem:[%s243 + $0xe0] sm:$0xff] %v2351
      %2398 = vst [vmem:[%s243 + $0xe8] sm:$0xff] %v2356
      %2399 = vst [vmem:[%s243 + $0xf0] sm:$0xff] %v2361
      %2400 = vst [vmem:[%s243 + $0xf8] sm:$0xff] %v2366
      %v2401 = vadd.f32 %v2032, %v2033
      %v2402 = vadd.f32 %v2401, %v2034
      %v2403 = vadd.f32 %v2402, %v2035
      %v2404 = vadd.f32 %v2403, %v2036
      %v2405 = vadd.f32 %v2404, %v2037
      %v2406 = vadd.f32 %v2405, %v2038
      %v2407 = vadd.f32 %v2406, %v2039
      %v2408 = vadd.f32 %v2407, %v2040
      %v2409 = vadd.f32 %v2408, %v2041
      %v2410 = vadd.f32 %v2409, %v2042
      %v2411 = vadd.f32 %v2410, %v2043
      %v2412 = vadd.f32 %v2411, %v2044
      %v2413 = vadd.f32 %v2412, %v2045
      %v2414 = vadd.f32 %v2413, %v2046
      %v2415 = vadd.f32 %v2414, %v2047
      %v2416 = vadd.f32 %v2415, %v2048
      %v2417 = vadd.f32 %v2416, %v2049
      %v2418 = vadd.f32 %v2417, %v2050
      %v2419 = vadd.f32 %v2418, %v2051
      %v2420 = vadd.f32 %v2419, %v2052
      %v2421 = vadd.f32 %v2420, %v2053
      %v2422 = vadd.f32 %v2421, %v2054
      %v2423 = vadd.f32 %v2422, %v2055
      %v2424 = vadd.f32 %v2423, %v2056
      %v2425 = vadd.f32 %v2424, %v2057
      %v2426 = vadd.f32 %v2425, %v2058
      %v2427 = vadd.f32 %v2426, %v2059
      %v2428 = vadd.f32 %v2427, %v2060
      %v2429 = vadd.f32 %v2428, %v2061
      %v2430 = vadd.f32 %v2429, %v2062
      %v2431 = vadd.f32 %v2430, %v2063
      %v2432 = vrot.slane %v2431, 4
      %v2433 = vadd.f32 %v2431, %v2432
      %v2434 = vrot.slane %v2433, 2
      %v2435 = vadd.f32 %v2433, %v2434
      %v2436 = vrot.slane %v2435, 1
      %v2437 = vadd.f32 %v2435, %v2436
      %v2438 = vmul.f32 %v2032, %v2032
      %v2439 = vmul.f32 %v2033, %v2033
      %v2440 = vmul.f32 %v2034, %v2034
      %v2441 = vmul.f32 %v2035, %v2035
      %v2442 = vmul.f32 %v2036, %v2036
      %v2443 = vmul.f32 %v2037, %v2037
      %v2444 = vmul.f32 %v2038, %v2038
      %v2445 = vmul.f32 %v2039, %v2039
      %v2446 = vmul.f32 %v2040, %v2040
      %v2447 = vmul.f32 %v2041, %v2041
      %v2448 = vmul.f32 %v2042, %v2042
      %v2449 = vmul.f32 %v2043, %v2043
      %v2450 = vmul.f32 %v2044, %v2044
      %v2451 = vmul.f32 %v2045, %v2045
      %v2452 = vmul.f32 %v2046, %v2046
      %v2453 = vmul.f32 %v2047, %v2047
      %v2454 = vmul.f32 %v2048, %v2048
      %v2455 = vmul.f32 %v2049, %v2049
      %v2456 = vmul.f32 %v2050, %v2050
      %v2457 = vmul.f32 %v2051, %v2051
      %v2458 = vmul.f32 %v2052, %v2052
      %v2459 = vmul.f32 %v2053, %v2053
      %v2460 = vmul.f32 %v2054, %v2054
      %v2461 = vmul.f32 %v2055, %v2055
      %v2462 = vmul.f32 %v2056, %v2056
      %v2463 = vmul.f32 %v2057, %v2057
      %v2464 = vmul.f32 %v2058, %v2058
      %v2465 = vmul.f32 %v2059, %v2059
      %v2466 = vmul.f32 %v2060, %v2060
      %v2467 = vmul.f32 %v2061, %v2061
      %v2468 = vmul.f32 %v2062, %v2062
      %v2469 = vmul.f32 %v2063, %v2063
      %v2470 = vadd.f32 %v2438, %v2439
      %v2471 = vadd.f32 %v2470, %v2440
      %v2472 = vadd.f32 %v2471, %v2441
      %v2473 = vadd.f32 %v2472, %v2442
      %v2474 = vadd.f32 %v2473, %v2443
      %v2475 = vadd.f32 %v2474, %v2444
      %v2476 = vadd.f32 %v2475, %v2445
      %v2477 = vadd.f32 %v2476, %v2446
      %v2478 = vadd.f32 %v2477, %v2447
      %v2479 = vadd.f32 %v2478, %v2448
      %v2480 = vadd.f32 %v2479, %v2449
      %v2481 = vadd.f32 %v2480, %v2450
      %v2482 = vadd.f32 %v2481, %v2451
      %v2483 = vadd.f32 %v2482, %v2452
      %v2484 = vadd.f32 %v2483, %v2453
      %v2485 = vadd.f32 %v2484, %v2454
      %v2486 = vadd.f32 %v2485, %v2455
      %v2487 = vadd.f32 %v2486, %v2456
      %v2488 = vadd.f32 %v2487, %v2457
      %v2489 = vadd.f32 %v2488, %v2458
      %v2490 = vadd.f32 %v2489, %v2459
      %v2491 = vadd.f32 %v2490, %v2460
      %v2492 = vadd.f32 %v2491, %v2461
      %v2493 = vadd.f32 %v2492, %v2462
      %v2494 = vadd.f32 %v2493, %v2463
      %v2495 = vadd.f32 %v2494, %v2464
      %v2496 = vadd.f32 %v2495, %v2465
      %v2497 = vadd.f32 %v2496, %v2466
      %v2498 = vadd.f32 %v2497, %v2467
      %v2499 = vadd.f32 %v2498, %v2468
      %v2500 = vadd.f32 %v2499, %v2469
      %v2501 = vrot.slane %v2500, 4
      %v2502 = vadd.f32 %v2500, %v2501
      %v2503 = vrot.slane %v2502, 2
      %v2504 = vadd.f32 %v2502, %v2503
      %v2505 = vrot.slane %v2504, 1
      %v2506 = vadd.f32 %v2504, %v2505
      %v2507 = vadd.f32 %v2211, %v2216
      %v2508 = vadd.f32 %v2507, %v2221
      %v2509 = vadd.f32 %v2508, %v2226
      %v2510 = vadd.f32 %v2509, %v2231
      %v2511 = vadd.f32 %v2510, %v2236
      %v2512 = vadd.f32 %v2511, %v2241
      %v2513 = vadd.f32 %v2512, %v2246
      %v2514 = vadd.f32 %v2513, %v2251
      %v2515 = vadd.f32 %v2514, %v2256
      %v2516 = vadd.f32 %v2515, %v2261
      %v2517 = vadd.f32 %v2516, %v2266
      %v2518 = vadd.f32 %v2517, %v2271
      %v2519 = vadd.f32 %v2518, %v2276
      %v2520 = vadd.f32 %v2519, %v2281
      %v2521 = vadd.f32 %v2520, %v2286
      %v2522 = vadd.f32 %v2521, %v2291
      %v2523 = vadd.f32 %v2522, %v2296
      %v2524 = vadd.f32 %v2523, %v2301
      %v2525 = vadd.f32 %v2524, %v2306
      %v2526 = vadd.f32 %v2525, %v2311
      %v2527 = vadd.f32 %v2526, %v2316
      %v2528 = vadd.f32 %v2527, %v2321
      %v2529 = vadd.f32 %v2528, %v2326
      %v2530 = vadd.f32 %v2529, %v2331
      %v2531 = vadd.f32 %v2530, %v2336
      %v2532 = vadd.f32 %v2531, %v2341
      %v2533 = vadd.f32 %v2532, %v2346
      %v2534 = vadd.f32 %v2533, %v2351
      %v2535 = vadd.f32 %v2534, %v2356
      %v2536 = vadd.f32 %v2535, %v2361
      %v2537 = vadd.f32 %v2536, %v2366
      %v2538 = vrot.slane %v2537, 4
      %v2539 = vadd.f32 %v2537, %v2538
      %v2540 = vrot.slane %v2539, 2
      %v2541 = vadd.f32 %v2539, %v2540
      %v2542 = vrot.slane %v2541, 1
      %v2543 = vadd.f32 %v2541, %v2542
      %v2544 = vmul.f32 %v2211, %v2211
      %v2545 = vmul.f32 %v2216, %v2216
      %v2546 = vmul.f32 %v2221, %v2221
      %v2547 = vmul.f32 %v2226, %v2226
      %v2548 = vmul.f32 %v2231, %v2231
      %v2549 = vmul.f32 %v2236, %v2236
      %v2550 = vmul.f32 %v2241, %v2241
      %v2551 = vmul.f32 %v2246, %v2246
      %v2552 = vmul.f32 %v2251, %v2251
      %v2553 = vmul.f32 %v2256, %v2256
      %v2554 = vmul.f32 %v2261, %v2261
      %v2555 = vmul.f32 %v2266, %v2266
      %v2556 = vmul.f32 %v2271, %v2271
      %v2557 = vmul.f32 %v2276, %v2276
      %v2558 = vmul.f32 %v2281, %v2281
      %v2559 = vmul.f32 %v2286, %v2286
      %v2560 = vmul.f32 %v2291, %v2291
      %v2561 = vmul.f32 %v2296, %v2296
      %v2562 = vmul.f32 %v2301, %v2301
      %v2563 = vmul.f32 %v2306, %v2306
      %v2564 = vmul.f32 %v2311, %v2311
      %v2565 = vmul.f32 %v2316, %v2316
      %v2566 = vmul.f32 %v2321, %v2321
      %v2567 = vmul.f32 %v2326, %v2326
      %v2568 = vmul.f32 %v2331, %v2331
      %v2569 = vmul.f32 %v2336, %v2336
      %v2570 = vmul.f32 %v2341, %v2341
      %v2571 = vmul.f32 %v2346, %v2346
      %v2572 = vmul.f32 %v2351, %v2351
      %v2573 = vmul.f32 %v2356, %v2356
      %v2574 = vmul.f32 %v2361, %v2361
      %v2575 = vmul.f32 %v2366, %v2366
      %v2576 = vadd.f32 %v2544, %v2545
      %v2577 = vadd.f32 %v2576, %v2546
      %v2578 = vadd.f32 %v2577, %v2547
      %v2579 = vadd.f32 %v2578, %v2548
      %v2580 = vadd.f32 %v2579, %v2549
      %v2581 = vadd.f32 %v2580, %v2550
      %v2582 = vadd.f32 %v2581, %v2551
      %v2583 = vadd.f32 %v2582, %v2552
      %v2584 = vadd.f32 %v2583, %v2553
      %v2585 = vadd.f32 %v2584, %v2554
      %v2586 = vadd.f32 %v2585, %v2555
      %v2587 = vadd.f32 %v2586, %v2556
      %v2588 = vadd.f32 %v2587, %v2557
      %v2589 = vadd.f32 %v2588, %v2558
      %v2590 = vadd.f32 %v2589, %v2559
      %v2591 = vadd.f32 %v2590, %v2560
      %v2592 = vadd.f32 %v2591, %v2561
      %v2593 = vadd.f32 %v2592, %v2562
      %v2594 = vadd.f32 %v2593, %v2563
      %v2595 = vadd.f32 %v2594, %v2564
      %v2596 = vadd.f32 %v2595, %v2565
      %v2597 = vadd.f32 %v2596, %v2566
      %v2598 = vadd.f32 %v2597, %v2567
      %v2599 = vadd.f32 %v2598, %v2568
      %v2600 = vadd.f32 %v2599, %v2569
      %v2601 = vadd.f32 %v2600, %v2570
      %v2602 = vadd.f32 %v2601, %v2571
      %v2603 = vadd.f32 %v2602, %v2572
      %v2604 = vadd.f32 %v2603, %v2573
      %v2605 = vadd.f32 %v2604, %v2574
      %v2606 = vadd.f32 %v2605, %v2575
      %v2607 = vrot.slane %v2606, 4
      %v2608 = vadd.f32 %v2606, %v2607
      %v2609 = vrot.slane %v2608, 2
      %v2610 = vadd.f32 %v2608, %v2609
      %v2611 = vrot.slane %v2610, 1
      %v2612 = vadd.f32 %v2610, %v2611
      %vm2613 = vcmask 1040384
      %v2614 = vsel %vm2613, %v2437, %v2506
      %vm2615 = vcmask 1041408
      %v2616 = vsel %vm2615, %v2614, %v2543
      %vm2617 = vcmask 1042432
      %v2618 = vsel %vm2617, %v2616, %v2612
      %vm2619 = vcmask 1043456
      %v2620 = vsel %vm2619, %v2618, 0.0
      %2621 = vst [vmem:[%s247] sm:$0xff] %v2620
      %p2622 = scmp.lt.s32.totalorder %s17, 1
      %s2623 = scalar_select %p2622, %s17, 1
      %s2624 = smul.addr %s2623, 32
      %s2625 = smul.addr %s2624, 8
      %s2626 = scalar_lea.vmem %s3, %s2625
      %p2627 = scmp.lt.s32.totalorder %s17, 1
      %s2628 = scalar_select %p2627, %s17, 1
      %s2629 = smul.addr %s2628, 32
      %s2630 = smul.addr %s2629, 8
      %s2631 = scalar_lea.vmem %s4, %s2630
      %p2632 = scmp.lt.s32.totalorder %s17, 1
      %s2633 = scalar_select %p2632, %s17, 1
      %s2634 = smul.addr %s2633, 8
      %s2635 = scalar_lea.vmem %s5, %s2634
      // Predicated region
      $region33: #{basic_block_forward.3} parent=31 // pred_check
        %p2636 = pneg %p103
      $region34: #{basic_block_forward.3} parent=31 // pred_check_branch
        %2638 = sbr.rel (%p2636) target = $region36
      $region35: #{basic_block_forward.3} parent=31 // pred_region
        _
      $region36: #{basic_block_forward.3} parent=31 // pred_fallthru
        _
      // Predicated region
      $region37: #{basic_block_forward.3} parent=31 // pred_check
        %p2639 = pneg %p129
      $region38: #{basic_block_forward.3} parent=31 // pred_check_branch
        %2641 = sbr.rel (%p2639) target = $region40
      $region39: #{basic_block_forward.3} parent=31 // pred_region
        _
      $region40: #{basic_block_forward.3} parent=31 // pred_fallthru
        _
      // Predicated region
      $region41: #{basic_block_forward.3} parent=31 // pred_check
        %p2642 = pneg %p155
      $region42: #{basic_block_forward.3} parent=31 // pred_check_branch
        %2644 = sbr.rel (%p2642) target = $region44
      $region43: #{basic_block_forward.3} parent=31 // pred_region
        _
      $region44: #{basic_block_forward.3} parent=31 // pred_fallthru
        _
    $region32: #{basic_block_forward.3} parent=5 // pred_fallthru
      _
    %p2645 = scmp.le.s32.totalorder 2, %s12
    // Predicated region
    $region45: #{basic_block_forward.3} parent=5 // pred_check
      %p2646 = pneg %p2645
    $region46: #{basic_block_forward.3} parent=5 // pred_check_branch
      %2648 = sbr.rel (%p2646) target = $region48
    $region47: #{basic_block_forward.3} parent=5 // pred_region
      %s2649 = ssub.s32 %s12, 2
      // Predicated region
      $region49: #{basic_block_forward.3} parent=47 // pred_check
        %p2650 = pneg %p109
      $region50: #{basic_block_forward.3} parent=47 // pred_check_branch
        %2652 = sbr.rel (%p2650) target = $region52
      $region51: #{basic_block_forward.3} parent=47 // pred_region
        %p2653 = scmp.lt.s32.totalorder %s18, 1
        %s2654 = scalar_select %p2653, %s18, 1
        %s2655 = smul.addr %s2654, 32
        %s2656 = smul.addr %s2655, 8
        %s2657 = scalar_lea.vmem %s3, %s2656
      $region52: #{basic_block_forward.3} parent=47 // pred_fallthru
        _
      // Predicated region
      $region53: #{basic_block_forward.3} parent=47 // pred_check
        %p2658 = pneg %p135
      $region54: #{basic_block_forward.3} parent=47 // pred_check_branch
        %2660 = sbr.rel (%p2658) target = $region56
      $region55: #{basic_block_forward.3} parent=47 // pred_region
        %p2661 = scmp.lt.s32.totalorder %s18, 1
        %s2662 = scalar_select %p2661, %s18, 1
        %s2663 = smul.addr %s2662, 32
        %s2664 = smul.addr %s2663, 8
        %s2665 = scalar_lea.vmem %s4, %s2664
      $region56: #{basic_block_forward.3} parent=47 // pred_fallthru
        _
      // Predicated region
      $region57: #{basic_block_forward.3} parent=47 // pred_check
        %p2666 = pneg %p161
      $region58: #{basic_block_forward.3} parent=47 // pred_check_branch
        %2668 = sbr.rel (%p2666) target = $region60
      $region59: #{basic_block_forward.3} parent=47 // pred_region
        %p2669 = scmp.lt.s32.totalorder %s18, 1
        %s2670 = scalar_select %p2669, %s18, 1
        %s2671 = smul.addr %s2670, 8
        %s2672 = scalar_lea.vmem %s5, %s2671
      $region60: #{basic_block_forward.3} parent=47 // pred_fallthru
        _
    $region48: #{basic_block_forward.3} parent=5 // pred_fallthru
      _
  $region6: #{basic_block_forward.3} parent=0 // loop_footer
    %s16 = sadd.s32 1, %s12
  $region7: #{basic_block_forward.3} parent=0 // loop_footer_branch
    %11 = sbr.rel target = $region3
  $region8: #{basic_block_forward.3} parent=0 // loop_exit
    _

// kernel: basic_block_forward.4
$region0: #{basic_block_forward.4}
  #allocation0 [shape = 'u32[]', space=smem, size = 0x4, offset = 0x4, fixed_abs, tag = 'smem constant byte address 0x4 - core index']
  #allocation1 [shape = 'u32[144,128]{1,0:T(1,128)}', space=vmem, size = 0x12000, scoped, tag = 'internal scratch']
  #allocation2 [shape = 'f32[1,18,32,128]{3,2,1,0:T(8,128)}', space=vmem, size = 0x48000, scoped, tag = 'scratch operand']
  %s0 = inlined_call_operand.vmem [shape: f32[2,16,16,128], index: 0, kind: input, shape index: {}]
  %s1 = inlined_call_operand.vmem [shape: f32[1,128], index: 1, kind: input, shape index: {}]
  %s2 = inlined_call_operand.vmem [shape: f32[1,128], index: 2, kind: input, shape index: {}]
  %s3 = inlined_call_operand.vmem [shape: f32[1152,128], index: 3, kind: input, shape index: {}]
  %s4 = inlined_call_operand.vmem [shape: f32[2,16,16,128], index: 4, kind: output, shape index: {0}]
  %s5 = inlined_call_operand.vmem [shape: f32[2,8,128], index: 5, kind: output, shape index: {1}]
  %6 = xla_tuple %s4, %s5
  %s7 = sld [smem:[#allocation0]]
  $region57: #{basic_block_forward.4} parent=0
    _
  %s9 = ssub.s32 1, %s7
  %s10 = scalar_select 0, %s9, %s7
  loop: start=0, step=1, limit=4
  $region2: #{basic_block_forward.4} parent=0 // loop_pre_header
    _
  $region3: #{basic_block_forward.4} parent=0 // loop_header
    %s12 = sphi 0, %s16
    %p13 = scmp.ge.s32.totalorder %s12, 4
    %s22 = sphi 0, %s24
    %s25 = sphi 0, %s22
    %s26 = sphi 0, %s25
    %s42 = sphi 0, %s26
    %s46 = sphi 0, %s46
    %s48 = sphi 0, %s46
    %s49 = sphi 0, %s48
    %s63 = sphi 0, %s49
    %s67 = sphi 0, %s67
    %s69 = sphi 0, %s67
    %s70 = sphi 0, %s69
    %s84 = sphi 0, %s70
    %s88 = sphi 0, %s88
    %s90 = sphi 0, %s88
    %s91 = sphi 0, %s90
    %s105 = sphi 0, %s91
    %s111 = sphi 0, %s113
    %s114 = sphi 0, %s111
    %s115 = sphi 0, %s114
    %s131 = sphi 0, %s115
    %s137 = sphi 0, %s139
    %s140 = sphi 0, %s137
    %s141 = sphi 0, %s140
    %s157 = sphi 0, %s141
  $region4: #{basic_block_forward.4} parent=0 // loop_header_branch
    %15 = sbr.rel (%p13) target = $region8
  $region5: #{basic_block_forward.4} parent=0 // loop_body
    %s17 = ssub.s32 %s12, 1
    %s18 = ssub.s32 %s12, 2
    %s19 = sadd.s32 %s12, 1
    %s20 = ssub.s32 %s12, %s19
    %p21 = scmp.eq.s32.totalorder %s20, 0
    %s23 = sadd.s32 %s22, 1
    %s24 = scalar_select %p21, %s22, %s23
    %p27 = pneg %p21
    %p28 = scmp.eq.s32.totalorder %s12, 1
    %p29 = por %p27, %p28
    %p30 = scmp.ne.s32.totalorder %s22, %s25
    %p31 = scmp.eq.s32.totalorder %s12, 0
    %p32 = por %p30, %p31
    %p33 = scmp.ne.s32.totalorder %s22, %s25
    %p34 = scmp.eq.s32.totalorder %s17, 1
    %p35 = por %p33, %p34
    %p36 = scmp.ne.s32.totalorder %s25, %s26
    %p37 = scmp.eq.s32.totalorder %s17, 0
    %p38 = por %p36, %p37
    %p39 = scmp.ne.s32.totalorder %s25, %s26
    %p40 = scmp.eq.s32.totalorder %s18, 1
    %p41 = por %p39, %p40
    %p43 = scmp.ne.s32.totalorder %s26, %s42
    %p44 = scmp.eq.s32.totalorder %s18, 0
    %p45 = por %p43, %p44
    %s47 = sadd.s32 %s46, 1
    %p50 = scmp.eq.s32.totalorder %s12, 1
    %p51 = scmp.ne.s32.totalorder %s46, %s48
    %p52 = scmp.eq.s32.totalorder %s12, 0
    %p53 = por %p51, %p52
    %p54 = scmp.ne.s32.totalorder %s46, %s48
    %p55 = scmp.eq.s32.totalorder %s17, 1
    %p56 = por %p54, %p55
    %p57 = scmp.ne.s32.totalorder %s48, %s49
    %p58 = scmp.eq.s32.totalorder %s17, 0
    %p59 = por %p57, %p58
    %p60 = scmp.ne.s32.totalorder %s48, %s49
    %p61 = scmp.eq.s32.totalorder %s18, 1
    %p62 = por %p60, %p61
    %p64 = scmp.ne.s32.totalorder %s49, %s63
    %p65 = scmp.eq.s32.totalorder %s18, 0
    %p66 = por %p64, %p65
    %s68 = sadd.s32 %s67, 1
    %p71 = scmp.eq.s32.totalorder %s12, 1
    %p72 = scmp.ne.s32.totalorder %s67, %s69
    %p73 = scmp.eq.s32.totalorder %s12, 0
    %p74 = por %p72, %p73
    %p75 = scmp.ne.s32.totalorder %s67, %s69
    %p76 = scmp.eq.s32.totalorder %s17, 1
    %p77 = por %p75, %p76
    %p78 = scmp.ne.s32.totalorder %s69, %s70
    %p79 = scmp.eq.s32.totalorder %s17, 0
    %p80 = por %p78, %p79
    %p81 = scmp.ne.s32.totalorder %s69, %s70
    %p82 = scmp.eq.s32.totalorder %s18, 1
    %p83 = por %p81, %p82
    %p85 = scmp.ne.s32.totalorder %s70, %s84
    %p86 = scmp.eq.s32.totalorder %s18, 0
    %p87 = por %p85, %p86
    %s89 = sadd.s32 %s88, 1
    %p92 = scmp.eq.s32.totalorder %s12, 1
    %p93 = scmp.ne.s32.totalorder %s88, %s90
    %p94 = scmp.eq.s32.totalorder %s12, 0
    %p95 = por %p93, %p94
    %p96 = scmp.ne.s32.totalorder %s88, %s90
    %p97 = scmp.eq.s32.totalorder %s17, 1
    %p98 = por %p96, %p97
    %p99 = scmp.ne.s32.totalorder %s90, %s91
    %p100 = scmp.eq.s32.totalorder %s17, 0
    %p101 = por %p99, %p100
    %p102 = scmp.ne.s32.totalorder %s90, %s91
    %p103 = scmp.eq.s32.totalorder %s18, 1
    %p104 = por %p102, %p103
    %p106 = scmp.ne.s32.totalorder %s91, %s105
    %p107 = scmp.eq.s32.totalorder %s18, 0
    %p108 = por %p106, %p107
    %s109 = ssub.s32 %s12, %s19
    %p110 = scmp.eq.s32.totalorder %s109, 0
    %s112 = sadd.s32 %s111, 1
    %s113 = scalar_select %p110, %s111, %s112
    %p116 = pneg %p110
    %p117 = scmp.eq.s32.totalorder %s12, 1
    %p118 = por %p116, %p117
    %p119 = scmp.ne.s32.totalorder %s111, %s114
    %p120 = scmp.eq.s32.totalorder %s12, 0
    %p121 = por %p119, %p120
    %p122 = scmp.ne.s32.totalorder %s111, %s114
    %p123 = scmp.eq.s32.totalorder %s17, 1
    %p124 = por %p122, %p123
    %p125 = scmp.ne.s32.totalorder %s114, %s115
    %p126 = scmp.eq.s32.totalorder %s17, 0
    %p127 = por %p125, %p126
    %p128 = scmp.ne.s32.totalorder %s114, %s115
    %p129 = scmp.eq.s32.totalorder %s18, 1
    %p130 = por %p128, %p129
    %p132 = scmp.ne.s32.totalorder %s115, %s131
    %p133 = scmp.eq.s32.totalorder %s18, 0
    %p134 = por %p132, %p133
    %s135 = ssub.s32 %s12, %s19
    %p136 = scmp.eq.s32.totalorder %s135, 0
    %s138 = sadd.s32 %s137, 1
    %s139 = scalar_select %p136, %s137, %s138
    %p142 = pneg %p136
    %p143 = scmp.eq.s32.totalorder %s12, 1
    %p144 = por %p142, %p143
    %p145 = scmp.ne.s32.totalorder %s137, %s140
    %p146 = scmp.eq.s32.totalorder %s12, 0
    %p147 = por %p145, %p146
    %p148 = scmp.ne.s32.totalorder %s137, %s140
    %p149 = scmp.eq.s32.totalorder %s17, 1
    %p150 = por %p148, %p149
    %p151 = scmp.ne.s32.totalorder %s140, %s141
    %p152 = scmp.eq.s32.totalorder %s17, 0
    %p153 = por %p151, %p152
    %p154 = scmp.ne.s32.totalorder %s140, %s141
    %p155 = scmp.eq.s32.totalorder %s18, 1
    %p156 = por %p154, %p155
    %p158 = scmp.ne.s32.totalorder %s141, %s157
    %p159 = scmp.eq.s32.totalorder %s18, 0
    %p160 = por %p158, %p159
    %p161 = scmp.le.s32.totalorder 1, %s12
    %p162 = scmp.lt.s32.totalorder %s12, 3
    %p163 = pnand %p161, %p162
    %p164 = pneg %p163
    // Predicated region
    $region9: #{basic_block_forward.4} parent=5 // pred_check
      _
    $region10: #{basic_block_forward.4} parent=5 // pred_check_branch
      %166 = sbr.rel (%p163) target = $region12
    $region11: #{basic_block_forward.4} parent=5 // pred_region
      %s167 = ssub.s32 %s12, 1
      // Predicated region
      $region13: #{basic_block_forward.4} parent=11 // pred_check
        %p168 = pneg %p59
      $region14: #{basic_block_forward.4} parent=11 // pred_check_branch
        %170 = sbr.rel (%p168) target = $region16
      $region15: #{basic_block_forward.4} parent=11 // pred_region
        _
      $region16: #{basic_block_forward.4} parent=11 // pred_fallthru
        _
      // Predicated region
      $region17: #{basic_block_forward.4} parent=11 // pred_check
        %p171 = pneg %p80
      $region18: #{basic_block_forward.4} parent=11 // pred_check_branch
        %173 = sbr.rel (%p171) target = $region20
      $region19: #{basic_block_forward.4} parent=11 // pred_region
        _
      $region20: #{basic_block_forward.4} parent=11 // pred_fallthru
        _
      // Predicated region
      $region21: #{basic_block_forward.4} parent=11 // pred_check
        %p174 = pneg %p101
      $region22: #{basic_block_forward.4} parent=11 // pred_check_branch
        %176 = sbr.rel (%p174) target = $region24
      $region23: #{basic_block_forward.4} parent=11 // pred_region
        _
      $region24: #{basic_block_forward.4} parent=11 // pred_fallthru
        _
    $region12: #{basic_block_forward.4} parent=5 // pred_fallthru
      _
    %p177 = scmp.lt.s32.totalorder %s12, 2
    // Predicated region
    $region25: #{basic_block_forward.4} parent=5 // pred_check
      %p178 = pneg %p177
    $region26: #{basic_block_forward.4} parent=5 // pred_check_branch
      %180 = sbr.rel (%p178) target = $region28
    $region27: #{basic_block_forward.4} parent=5 // pred_region
      // Predicated region
      $region29: #{basic_block_forward.4} parent=27 // pred_check
        %p181 = pneg %p32
      $region30: #{basic_block_forward.4} parent=27 // pred_check_branch
        %183 = sbr.rel (%p181) target = $region32
      $region31: #{basic_block_forward.4} parent=27 // pred_region
        %p184 = scmp.lt.s32.totalorder %s12, 1
        %s185 = scalar_select %p184, %s12, 1
        %s186 = smul.addr %s185, 32
        %s187 = smul.addr %s186, 8
        %s188 = scalar_lea.vmem %s0, %s187
      $region32: #{basic_block_forward.4} parent=27 // pred_fallthru
        _
    $region28: #{basic_block_forward.4} parent=5 // pred_fallthru
      _
    %p189 = scmp.le.s32.totalorder 1, %s12
    %p190 = scmp.lt.s32.totalorder %s12, 3
    %p191 = pnand %p189, %p190
    %p192 = pneg %p191
    // Predicated region
    $region33: #{basic_block_forward.4} parent=5 // pred_check
      _
    $region34: #{basic_block_forward.4} parent=5 // pred_check_branch
      %194 = sbr.rel (%p191) target = $region36
    $region35: #{basic_block_forward.4} parent=5 // pred_region
      %s195 = ssub.s32 %s12, 1
      %p196 = scmp.lt.s32.totalorder %s17, 1
      %s197 = scalar_select %p196, %s17, 1
      %s198 = smul.addr %s197, 32
      %s199 = smul.addr %s198, 8
      %s200 = scalar_lea.vmem %s0, %s199
      %p201 = pneg %p38
      %p202 = pneg %p35
      %p203 = pneg %p59
      %p204 = pneg %p56
      %p205 = pneg %p80
      %p206 = pneg %p77
      %p207 = pneg %p101
      %p208 = pneg %p98
      %p209 = pneg %p127
      %p210 = pneg %p124
      %p211 = scmp.lt.s32.totalorder %s17, 1
      %s212 = scalar_select %p211, %s17, 1
      %s213 = smul.addr %s212, 32
      %s214 = smul.addr %s213, 8
      %s215 = scalar_lea.vmem %s4, %s214
      %p216 = pneg %p153
      %p217 = pneg %p150
      %p218 = scmp.lt.s32.totalorder %s17, 1
      %s219 = scalar_select %p218, %s17, 1
      %s220 = smul.addr %s219, 8
      %s221 = scalar_lea.vmem %s5, %s220
      %p222 = scmp.lt.s32.totalorder %s17, 1
      %s223 = scalar_select %p222, %s17, 1
      %s224 = smul.addr %s223, 32
      %s225 = smul.addr %s224, 8
      %s226 = scalar_lea.vmem %s0, %s225
      %p227 = scmp.lt.s32.totalorder %s17, 1
      %s228 = scalar_select %p227, %s17, 1
      %s229 = smul.addr %s228, 32
      %s230 = smul.addr %s229, 8
      %s231 = scalar_lea.vmem %s4, %s230
      %p232 = scmp.lt.s32.totalorder %s17, 1
      %s233 = scalar_select %p232, %s17, 1
      %s234 = smul.addr %s233, 8
      %s235 = scalar_lea.vmem %s5, %s234
      %v236 = vld [vmem:[%s226] sm:$0xff]
      %v237 = vld [vmem:[%s226 + $0x8] sm:$0xff]
      %v238 = vld [vmem:[%s226 + $0x10] sm:$0xff]
      %v239 = vld [vmem:[%s226 + $0x18] sm:$0xff]
      %v240 = vld [vmem:[%s226 + $0x20] sm:$0xff]
      %v241 = vld [vmem:[%s226 + $0x28] sm:$0xff]
      %v242 = vld [vmem:[%s226 + $0x30] sm:$0xff]
      %v243 = vld [vmem:[%s226 + $0x38] sm:$0xff]
      %v244 = vld [vmem:[%s226 + $0x40] sm:$0xff]
      %v245 = vld [vmem:[%s226 + $0x48] sm:$0xff]
      %v246 = vld [vmem:[%s226 + $0x50] sm:$0xff]
      %v247 = vld [vmem:[%s226 + $0x58] sm:$0xff]
      %v248 = vld [vmem:[%s226 + $0x60] sm:$0xff]
      %v249 = vld [vmem:[%s226 + $0x68] sm:$0xff]
      %v250 = vld [vmem:[%s226 + $0x70] sm:$0xff]
      %v251 = vld [vmem:[%s226 + $0x78] sm:$0xff]
      %v252 = vld [vmem:[%s226 + $0x80] sm:$0xff]
      %v253 = vld [vmem:[%s226 + $0x88] sm:$0xff]
      %v254 = vld [vmem:[%s226 + $0x90] sm:$0xff]
      %v255 = vld [vmem:[%s226 + $0x98] sm:$0xff]
      %v256 = vld [vmem:[%s226 + $0xa0] sm:$0xff]
      %v257 = vld [vmem:[%s226 + $0xa8] sm:$0xff]
      %v258 = vld [vmem:[%s226 + $0xb0] sm:$0xff]
      %v259 = vld [vmem:[%s226 + $0xb8] sm:$0xff]
      %v260 = vld [vmem:[%s226 + $0xc0] sm:$0xff]
      %v261 = vld [vmem:[%s226 + $0xc8] sm:$0xff]
      %v262 = vld [vmem:[%s226 + $0xd0] sm:$0xff]
      %v263 = vld [vmem:[%s226 + $0xd8] sm:$0xff]
      %v264 = vld [vmem:[%s226 + $0xe0] sm:$0xff]
      %v265 = vld [vmem:[%s226 + $0xe8] sm:$0xff]
      %v266 = vld [vmem:[%s226 + $0xf0] sm:$0xff]
      %v267 = vld [vmem:[%s226 + $0xf8] sm:$0xff]
      %v268 = vld [vmem:[%s1] sm:$0x1]
      %v270 = vlaneseq
      %v271 = vshrl.u32 %v270, 7
      %v272 = vsub.s32 0, %v271
      %v273 = vrot.slane %v268, %v272
      %v275 = vmul.f32 %v236, %v273
      %v276 = vmul.f32 %v237, %v273
      %v277 = vmul.f32 %v238, %v273
      %v278 = vmul.f32 %v239, %v273
      %v279 = vmul.f32 %v240, %v273
      %v280 = vmul.f32 %v241, %v273
      %v281 = vmul.f32 %v242, %v273
      %v282 = vmul.f32 %v243, %v273
      %v283 = vmul.f32 %v244, %v273
      %v284 = vmul.f32 %v245, %v273
      %v285 = vmul.f32 %v246, %v273
      %v286 = vmul.f32 %v247, %v273
      %v287 = vmul.f32 %v248, %v273
      %v288 = vmul.f32 %v249, %v273
      %v289 = vmul.f32 %v250, %v273
      %v290 = vmul.f32 %v251, %v273
      %v291 = vmul.f32 %v252, %v273
      %v292 = vmul.f32 %v253, %v273
      %v293 = vmul.f32 %v254, %v273
      %v294 = vmul.f32 %v255, %v273
      %v295 = vmul.f32 %v256, %v273
      %v296 = vmul.f32 %v257, %v273
      %v297 = vmul.f32 %v258, %v273
      %v298 = vmul.f32 %v259, %v273
      %v299 = vmul.f32 %v260, %v273
      %v300 = vmul.f32 %v261, %v273
      %v301 = vmul.f32 %v262, %v273
      %v302 = vmul.f32 %v263, %v273
      %v303 = vmul.f32 %v264, %v273
      %v304 = vmul.f32 %v265, %v273
      %v305 = vmul.f32 %v266, %v273
      %v306 = vmul.f32 %v267, %v273
      %v307 = vld [vmem:[%s2] sm:$0x1]
      %v309 = vlaneseq
      %v310 = vshrl.u32 %v309, 7
      %v311 = vsub.s32 0, %v310
      %v312 = vrot.slane %v307, %v311
      %v314 = vadd.f32 %v275, %v312
      %v315 = vadd.f32 %v276, %v312
      %v316 = vadd.f32 %v277, %v312
      %v317 = vadd.f32 %v278, %v312
      %v318 = vadd.f32 %v279, %v312
      %v319 = vadd.f32 %v280, %v312
      %v320 = vadd.f32 %v281, %v312
      %v321 = vadd.f32 %v282, %v312
      %v322 = vadd.f32 %v283, %v312
      %v323 = vadd.f32 %v284, %v312
      %v324 = vadd.f32 %v285, %v312
      %v325 = vadd.f32 %v286, %v312
      %v326 = vadd.f32 %v287, %v312
      %v327 = vadd.f32 %v288, %v312
      %v328 = vadd.f32 %v289, %v312
      %v329 = vadd.f32 %v290, %v312
      %v330 = vadd.f32 %v291, %v312
      %v331 = vadd.f32 %v292, %v312
      %v332 = vadd.f32 %v293, %v312
      %v333 = vadd.f32 %v294, %v312
      %v334 = vadd.f32 %v295, %v312
      %v335 = vadd.f32 %v296, %v312
      %v336 = vadd.f32 %v297, %v312
      %v337 = vadd.f32 %v298, %v312
      %v338 = vadd.f32 %v299, %v312
      %v339 = vadd.f32 %v300, %v312
      %v340 = vadd.f32 %v301, %v312
      %v341 = vadd.f32 %v302, %v312
      %v342 = vadd.f32 %v303, %v312
      %v343 = vadd.f32 %v304, %v312
      %v344 = vadd.f32 %v305, %v312
      %v345 = vadd.f32 %v306, %v312
      %v346 = vmax.f32 %v314, 0.0
      %v347 = vmax.f32 %v315, 0.0
      %v348 = vmax.f32 %v316, 0.0
      %v349 = vmax.f32 %v317, 0.0
      %v350 = vmax.f32 %v318, 0.0
      %v351 = vmax.f32 %v319, 0.0
      %v352 = vmax.f32 %v320, 0.0
      %v353 = vmax.f32 %v321, 0.0
      %v354 = vmax.f32 %v322, 0.0
      %v355 = vmax.f32 %v323, 0.0
      %v356 = vmax.f32 %v324, 0.0
      %v357 = vmax.f32 %v325, 0.0
      %v358 = vmax.f32 %v326, 0.0
      %v359 = vmax.f32 %v327, 0.0
      %v360 = vmax.f32 %v328, 0.0
      %v361 = vmax.f32 %v329, 0.0
      %v362 = vmax.f32 %v330, 0.0
      %v363 = vmax.f32 %v331, 0.0
      %v364 = vmax.f32 %v332, 0.0
      %v365 = vmax.f32 %v333, 0.0
      %v366 = vmax.f32 %v334, 0.0
      %v367 = vmax.f32 %v335, 0.0
      %v368 = vmax.f32 %v336, 0.0
      %v369 = vmax.f32 %v337, 0.0
      %v370 = vmax.f32 %v338, 0.0
      %v371 = vmax.f32 %v339, 0.0
      %v372 = vmax.f32 %v340, 0.0
      %v373 = vmax.f32 %v341, 0.0
      %v374 = vmax.f32 %v342, 0.0
      %v375 = vmax.f32 %v343, 0.0
      %v376 = vmax.f32 %v344, 0.0
      %v377 = vmax.f32 %v345, 0.0
      %378 = vst [vmem:[#allocation2] sm:$0xff] 0.0
      %379 = vst [vmem:[#allocation2 + $0x8] sm:$0xff] 0.0
      %380 = vst [vmem:[#allocation2 + $0x10] sm:$0xff] 0.0
      %381 = vst [vmem:[#allocation2 + $0x18] sm:$0xff] 0.0
      %s382 = scalar_lea.vmem [#allocation2], 544
      %383 = vst [vmem:[%s382] sm:$0xff] 0.0
      %384 = vst [vmem:[%s382 + $0x8] sm:$0xff] 0.0
      %385 = vst [vmem:[%s382 + $0x10] sm:$0xff] 0.0
      %386 = vst [vmem:[%s382 + $0x18] sm:$0xff] 0.0
      %387 = vst [vmem:[#allocation2] sm:$0xff] 0.0
      %388 = vst [vmem:[#allocation2 + $0x20] sm:$0xff] 0.0
      %389 = vst [vmem:[#allocation2 + $0x40] sm:$0xff] 0.0
      %390 = vst [vmem:[#allocation2 + $0x60] sm:$0xff] 0.0
      %391 = vst [vmem:[#allocation2 + $0x80] sm:$0xff] 0.0
      %392 = vst [vmem:[#allocation2 + $0xa0] sm:$0xff] 0.0
      %393 = vst [vmem:[#allocation2 + $0xc0] sm:$0xff] 0.0
      %394 = vst [vmem:[#allocation2 + $0xe0] sm:$0xff] 0.0
      %395 = vst [vmem:[#allocation2 + $0x100] sm:$0xff] 0.0
      %396 = vst [vmem:[#allocation2 + $0x120] sm:$0xff] 0.0
      %397 = vst [vmem:[#allocation2 + $0x140] sm:$0xff] 0.0
      %398 = vst [vmem:[#allocation2 + $0x160] sm:$0xff] 0.0
      %399 = vst [vmem:[#allocation2 + $0x180] sm:$0xff] 0.0
      %400 = vst [vmem:[#allocation2 + $0x1a0] sm:$0xff] 0.0
      %401 = vst [vmem:[#allocation2 + $0x1c0] sm:$0xff] 0.0
      %402 = vst [vmem:[#allocation2 + $0x1e0] sm:$0xff] 0.0
      %403 = vst [vmem:[#allocation2 + $0x200] sm:$0xff] 0.0
      %404 = vst [vmem:[#allocation2 + $0x220] sm:$0xff] 0.0
      %405 = vst [vmem:[#allocation2 + $0x18] sm:$0xff] 0.0
      %406 = vst [vmem:[#allocation2 + $0x38] sm:$0xff] 0.0
      %407 = vst [vmem:[#allocation2 + $0x58] sm:$0xff] 0.0
      %408 = vst [vmem:[#allocation2 + $0x78] sm:$0xff] 0.0
      %409 = vst [vmem:[#allocation2 + $0x98] sm:$0xff] 0.0
      %410 = vst [vmem:[#allocation2 + $0xb8] sm:$0xff] 0.0
      %411 = vst [vmem:[#allocation2 + $0xd8] sm:$0xff] 0.0
      %412 = vst [vmem:[#allocation2 + $0xf8] sm:$0xff] 0.0
      %413 = vst [vmem:[#allocation2 + $0x118] sm:$0xff] 0.0
      %414 = vst [vmem:[#allocation2 + $0x138] sm:$0xff] 0.0
      %415 = vst [vmem:[#allocation2 + $0x158] sm:$0xff] 0.0
      %416 = vst [vmem:[#allocation2 + $0x178] sm:$0xff] 0.0
      %417 = vst [vmem:[#allocation2 + $0x198] sm:$0xff] 0.0
      %418 = vst [vmem:[#allocation2 + $0x1b8] sm:$0xff] 0.0
      %419 = vst [vmem:[#allocation2 + $0x1d8] sm:$0xff] 0.0
      %420 = vst [vmem:[#allocation2 + $0x1f8] sm:$0xff] 0.0
      %421 = vst [vmem:[#allocation2 + $0x218] sm:$0xff] 0.0
      %422 = vst [vmem:[#allocation2 + $0x238] sm:$0xff] 0.0
      %s423 = scalar_lea.vmem [#allocation2], 32
      %424 = vst [vmem:[%s423 + $0x8] sm:$0xff] %v346
      %425 = vst [vmem:[%s423 + $0x10] sm:$0xff] %v347
      %426 = vst [vmem:[%s423 + $0x28] sm:$0xff] %v348
      %427 = vst [vmem:[%s423 + $0x30] sm:$0xff] %v349
      %428 = vst [vmem:[%s423 + $0x48] sm:$0xff] %v350
      %429 = vst [vmem:[%s423 + $0x50] sm:$0xff] %v351
      %430 = vst [vmem:[%s423 + $0x68] sm:$0xff] %v352
      %431 = vst [vmem:[%s423 + $0x70] sm:$0xff] %v353
      %432 = vst [vmem:[%s423 + $0x88] sm:$0xff] %v354
      %433 = vst [vmem:[%s423 + $0x90] sm:$0xff] %v355
      %434 = vst [vmem:[%s423 + $0xa8] sm:$0xff] %v356
      %435 = vst [vmem:[%s423 + $0xb0] sm:$0xff] %v357
      %436 = vst [vmem:[%s423 + $0xc8] sm:$0xff] %v358
      %437 = vst [vmem:[%s423 + $0xd0] sm:$0xff] %v359
      %438 = vst [vmem:[%s423 + $0xe8] sm:$0xff] %v360
      %439 = vst [vmem:[%s423 + $0xf0] sm:$0xff] %v361
      %440 = vst [vmem:[%s423 + $0x108] sm:$0xff] %v362
      %441 = vst [vmem:[%s423 + $0x110] sm:$0xff] %v363
      %442 = vst [vmem:[%s423 + $0x128] sm:$0xff] %v364
      %443 = vst [vmem:[%s423 + $0x130] sm:$0xff] %v365
      %444 = vst [vmem:[%s423 + $0x148] sm:$0xff] %v366
      %445 = vst [vmem:[%s423 + $0x150] sm:$0xff] %v367
      %446 = vst [vmem:[%s423 + $0x168] sm:$0xff] %v368
      %447 = vst [vmem:[%s423 + $0x170] sm:$0xff] %v369
      %448 = vst [vmem:[%s423 + $0x188] sm:$0xff] %v370
      %449 = vst [vmem:[%s423 + $0x190] sm:$0xff] %v371
      %450 = vst [vmem:[%s423 + $0x1a8] sm:$0xff] %v372
      %451 = vst [vmem:[%s423 + $0x1b0] sm:$0xff] %v373
      %452 = vst [vmem:[%s423 + $0x1c8] sm:$0xff] %v374
      %453 = vst [vmem:[%s423 + $0x1d0] sm:$0xff] %v375
      %454 = vst [vmem:[%s423 + $0x1e8] sm:$0xff] %v376
      %455 = vst [vmem:[%s423 + $0x1f0] sm:$0xff] %v377
      %v456 = vld [vmem:[#allocation2 + $0x7] sm:$0xff]
      %v457 = vld [vmem:[#allocation2 + $0xf] sm:$0xff]
      %v458 = vld [vmem:[#allocation2 + $0x27] sm:$0xff]
      %v459 = vld [vmem:[#allocation2 + $0x2f] sm:$0xff]
      %v460 = vld [vmem:[#allocation2 + $0x47] sm:$0xff]
      %v461 = vld [vmem:[#allocation2 + $0x4f] sm:$0xff]
      %v462 = vld [vmem:[#allocation2 + $0x67] sm:$0xff]
      %v463 = vld [vmem:[#allocation2 + $0x6f] sm:$0xff]
      %v464 = vld [vmem:[#allocation2 + $0x87] sm:$0xff]
      %v465 = vld [vmem:[#allocation2 + $0x8f] sm:$0xff]
      %v466 = vld [vmem:[#allocation2 + $0xa7] sm:$0xff]
      %v467 = vld [vmem:[#allocation2 + $0xaf] sm:$0xff]
      %v468 = vld [vmem:[#allocation2 + $0xc7] sm:$0xff]
      %v469 = vld [vmem:[#allocation2 + $0xcf] sm:$0xff]
      %v470 = vld [vmem:[#allocation2 + $0xe7] sm:$0xff]
      %v471 = vld [vmem:[#allocation2 + $0xef] sm:$0xff]
      %v472 = vld [vmem:[#allocation2 + $0x107] sm:$0xff]
      %v473 = vld [vmem:[#allocation2 + $0x10f] sm:$0xff]
      %v474 = vld [vmem:[#allocation2 + $0x127] sm:$0xff]
      %v475 = vld [vmem:[#allocation2 + $0x12f] sm:$0xff]
      %v476 = vld [vmem:[#allocation2 + $0x147] sm:$0xff]
      %v477 = vld [vmem:[#allocation2 + $0x14f] sm:$0xff]
      %v478 = vld [vmem:[#allocation2 + $0x167] sm:$0xff]
      %v479 = vld [vmem:[#allocation2 + $0x16f] sm:$0xff]
      %v480 = vld [vmem:[#allocation2 + $0x187] sm:$0xff]
      %v481 = vld [vmem:[#allocation2 + $0x18f] sm:$0xff]
      %v482 = vld [vmem:[#allocation2 + $0x1a7] sm:$0xff]
      %v483 = vld [vmem:[#allocation2 + $0x1af] sm:$0xff]
      %v484 = vld [vmem:[#allocation2 + $0x1c7] sm:$0xff]
      %v485 = vld [vmem:[#allocation2 + $0x1cf] sm:$0xff]
      %v486 = vld [vmem:[#allocation2 + $0x1e7] sm:$0xff]
      %v487 = vld [vmem:[#allocation2 + $0x1ef] sm:$0xff]
      %v488 = vld [vmem:[#allocation2 + $0x8] sm:$0xff]
      %v489 = vld [vmem:[#allocation2 + $0x10] sm:$0xff]
      %v490 = vld [vmem:[#allocation2 + $0x28] sm:$0xff]
      %v491 = vld [vmem:[#allocation2 + $0x30] sm:$0xff]
      %v492 = vld [vmem:[#allocation2 + $0x48] sm:$0xff]
      %v493 = vld [vmem:[#allocation2 + $0x50] sm:$0xff]
      %v494 = vld [vmem:[#allocation2 + $0x68] sm:$0xff]
      %v495 = vld [vmem:[#allocation2 + $0x70] sm:$0xff]
      %v496 = vld [vmem:[#allocation2 + $0x88] sm:$0xff]
      %v497 = vld [vmem:[#allocation2 + $0x90] sm:$0xff]
      %v498 = vld [vmem:[#allocation2 + $0xa8] sm:$0xff]
      %v499 = vld [vmem:[#allocation2 + $0xb0] sm:$0xff]
      %v500 = vld [vmem:[#allocation2 + $0xc8] sm:$0xff]
      %v501 = vld [vmem:[#allocation2 + $0xd0] sm:$0xff]
      %v502 = vld [vmem:[#allocation2 + $0xe8] sm:$0xff]
      %v503 = vld [vmem:[#allocation2 + $0xf0] sm:$0xff]
      %v504 = vld [vmem:[#allocation2 + $0x108] sm:$0xff]
      %v505 = vld [vmem:[#allocation2 + $0x110] sm:$0xff]
      %v506 = vld [vmem:[#allocation2 + $0x128] sm:$0xff]
      %v507 = vld [vmem:[#allocation2 + $0x130] sm:$0xff]
      %v508 = vld [vmem:[#allocation2 + $0x148] sm:$0xff]
      %v509 = vld [vmem:[#allocation2 + $0x150] sm:$0xff]
      %v510 = vld [vmem:[#allocation2 + $0x168] sm:$0xff]
      %v511 = vld [vmem:[#allocation2 + $0x170] sm:$0xff]
      %v512 = vld [vmem:[#allocation2 + $0x188] sm:$0xff]
      %v513 = vld [vmem:[#allocation2 + $0x190] sm:$0xff]
      %v514 = vld [vmem:[#allocation2 + $0x1a8] sm:$0xff]
      %v515 = vld [vmem:[#allocation2 + $0x1b0] sm:$0xff]
      %v516 = vld [vmem:[#allocation2 + $0x1c8] sm:$0xff]
      %v517 = vld [vmem:[#allocation2 + $0x1d0] sm:$0xff]
      %v518 = vld [vmem:[#allocation2 + $0x1e8] sm:$0xff]
      %v519 = vld [vmem:[#allocation2 + $0x1f0] sm:$0xff]
      %v520 = vld [vmem:[#allocation2 + $0x9] sm:$0xff]
      %v521 = vld [vmem:[#allocation2 + $0x11] sm:$0xff]
      %v522 = vld [vmem:[#allocation2 + $0x29] sm:$0xff]
      %v523 = vld [vmem:[#allocation2 + $0x31] sm:$0xff]
      %v524 = vld [vmem:[#allocation2 + $0x49] sm:$0xff]
      %v525 = vld [vmem:[#allocation2 + $0x51] sm:$0xff]
      %v526 = vld [vmem:[#allocation2 + $0x69] sm:$0xff]
      %v527 = vld [vmem:[#allocation2 + $0x71] sm:$0xff]
      %v528 = vld [vmem:[#allocation2 + $0x89] sm:$0xff]
      %v529 = vld [vmem:[#allocation2 + $0x91] sm:$0xff]
      %v530 = vld [vmem:[#allocation2 + $0xa9] sm:$0xff]
      %v531 = vld [vmem:[#allocation2 + $0xb1] sm:$0xff]
      %v532 = vld [vmem:[#allocation2 + $0xc9] sm:$0xff]
      %v533 = vld [vmem:[#allocation2 + $0xd1] sm:$0xff]
      %v534 = vld [vmem:[#allocation2 + $0xe9] sm:$0xff]
      %v535 = vld [vmem:[#allocation2 + $0xf1] sm:$0xff]
      %v536 = vld [vmem:[#allocation2 + $0x109] sm:$0xff]
      %v537 = vld [vmem:[#allocation2 + $0x111] sm:$0xff]
      %v538 = vld [vmem:[#allocation2 + $0x129] sm:$0xff]
      %v539 = vld [vmem:[#allocation2 + $0x131] sm:$0xff]
      %v540 = vld [vmem:[#allocation2 + $0x149] sm:$0xff]
      %v541 = vld [vmem:[#allocation2 + $0x151] sm:$0xff]
      %v542 = vld [vmem:[#allocation2 + $0x169] sm:$0xff]
      %v543 = vld [vmem:[#allocation2 + $0x171] sm:$0xff]
      %v544 = vld [vmem:[#allocation2 + $0x189] sm:$0xff]
      %v545 = vld [vmem:[#allocation2 + $0x191] sm:$0xff]
      %v546 = vld [vmem:[#allocation2 + $0x1a9] sm:$0xff]
      %v547 = vld [vmem:[#allocation2 + $0x1b1] sm:$0xff]
      %v548 = vld [vmem:[#allocation2 + $0x1c9] sm:$0xff]
      %v549 = vld [vmem:[#allocation2 + $0x1d1] sm:$0xff]
      %v550 = vld [vmem:[#allocation2 + $0x1e9] sm:$0xff]
      %v551 = vld [vmem:[#allocation2 + $0x1f1] sm:$0xff]
      %v552 = vld [vmem:[%s3] sm:$0xff]
      %v553 = vld [vmem:[%s3 + $0x8] sm:$0xff]
      %v554 = vld [vmem:[%s3 + $0x10] sm:$0xff]
      %v555 = vld [vmem:[%s3 + $0x18] sm:$0xff]
      %v556 = vld [vmem:[%s3 + $0x20] sm:$0xff]
      %v557 = vld [vmem:[%s3 + $0x28] sm:$0xff]
      %v558 = vld [vmem:[%s3 + $0x30] sm:$0xff]
      %v559 = vld [vmem:[%s3 + $0x38] sm:$0xff]
      %v560 = vld [vmem:[%s3 + $0x40] sm:$0xff]
      %v561 = vld [vmem:[%s3 + $0x48] sm:$0xff]
      %v562 = vld [vmem:[%s3 + $0x50] sm:$0xff]
      %v563 = vld [vmem:[%s3 + $0x58] sm:$0xff]
      %v564 = vld [vmem:[%s3 + $0x60] sm:$0xff]
      %v565 = vld [vmem:[%s3 + $0x68] sm:$0xff]
      %v566 = vld [vmem:[%s3 + $0x70] sm:$0xff]
      %v567 = vld [vmem:[%s3 + $0x78] sm:$0xff]
      %v568 = vld [vmem:[%s3 + $0x80] sm:$0xff]
      %v569 = vld [vmem:[%s3 + $0x88] sm:$0xff]
      %v570 = vld [vmem:[%s3 + $0x90] sm:$0xff]
      %v571 = vld [vmem:[%s3 + $0x98] sm:$0xff]
      %v572 = vld [vmem:[%s3 + $0xa0] sm:$0xff]
      %v573 = vld [vmem:[%s3 + $0xa8] sm:$0xff]
      %v574 = vld [vmem:[%s3 + $0xb0] sm:$0xff]
      %v575 = vld [vmem:[%s3 + $0xb8] sm:$0xff]
      %v576 = vld [vmem:[%s3 + $0xc0] sm:$0xff]
      %v577 = vld [vmem:[%s3 + $0xc8] sm:$0xff]
      %v578 = vld [vmem:[%s3 + $0xd0] sm:$0xff]
      %v579 = vld [vmem:[%s3 + $0xd8] sm:$0xff]
      %v580 = vld [vmem:[%s3 + $0xe0] sm:$0xff]
      %v581 = vld [vmem:[%s3 + $0xe8] sm:$0xff]
      %v582 = vld [vmem:[%s3 + $0xf0] sm:$0xff]
      %v583 = vld [vmem:[%s3 + $0xf8] sm:$0xff]
      %v584 = vld [vmem:[%s3 + $0x100] sm:$0xff]
      %v585 = vld [vmem:[%s3 + $0x108] sm:$0xff]
      %v586 = vld [vmem:[%s3 + $0x110] sm:$0xff]
      %v587 = vld [vmem:[%s3 + $0x118] sm:$0xff]
      %v588 = vld [vmem:[%s3 + $0x120] sm:$0xff]
      %v589 = vld [vmem:[%s3 + $0x128] sm:$0xff]
      %v590 = vld [vmem:[%s3 + $0x130] sm:$0xff]
      %v591 = vld [vmem:[%s3 + $0x138] sm:$0xff]
      %v592 = vld [vmem:[%s3 + $0x140] sm:$0xff]
      %v593 = vld [vmem:[%s3 + $0x148] sm:$0xff]
      %v594 = vld [vmem:[%s3 + $0x150] sm:$0xff]
      %v595 = vld [vmem:[%s3 + $0x158] sm:$0xff]
      %v596 = vld [vmem:[%s3 + $0x160] sm:$0xff]
      %v597 = vld [vmem:[%s3 + $0x168] sm:$0xff]
      %v598 = vld [vmem:[%s3 + $0x170] sm:$0xff]
      %v599 = vld [vmem:[%s3 + $0x178] sm:$0xff]
      %v600 = vld [vmem:[%s423 + $0x7] sm:$0xff]
      %v601 = vld [vmem:[%s423 + $0xf] sm:$0xff]
      %v602 = vld [vmem:[%s423 + $0x27] sm:$0xff]
      %v603 = vld [vmem:[%s423 + $0x2f] sm:$0xff]
      %v604 = vld [vmem:[%s423 + $0x47] sm:$0xff]
      %v605 = vld [vmem:[%s423 + $0x4f] sm:$0xff]
      %v606 = vld [vmem:[%s423 + $0x67] sm:$0xff]
      %v607 = vld [vmem:[%s423 + $0x6f] sm:$0xff]
      %v608 = vld [vmem:[%s423 + $0x87] sm:$0xff]
      %v609 = vld [vmem:[%s423 + $0x8f] sm:$0xff]
      %v610 = vld [vmem:[%s423 + $0xa7] sm:$0xff]
      %v611 = vld [vmem:[%s423 + $0xaf] sm:$0xff]
      %v612 = vld [vmem:[%s423 + $0xc7] sm:$0xff]
      %v613 = vld [vmem:[%s423 + $0xcf] sm:$0xff]
      %v614 = vld [vmem:[%s423 + $0xe7] sm:$0xff]
      %v615 = vld [vmem:[%s423 + $0xef] sm:$0xff]
      %v616 = vld [vmem:[%s423 + $0x107] sm:$0xff]
      %v617 = vld [vmem:[%s423 + $0x10f] sm:$0xff]
      %v618 = vld [vmem:[%s423 + $0x127] sm:$0xff]
      %v619 = vld [vmem:[%s423 + $0x12f] sm:$0xff]
      %v620 = vld [vmem:[%s423 + $0x147] sm:$0xff]
      %v621 = vld [vmem:[%s423 + $0x14f] sm:$0xff]
      %v622 = vld [vmem:[%s423 + $0x167] sm:$0xff]
      %v623 = vld [vmem:[%s423 + $0x16f] sm:$0xff]
      %v624 = vld [vmem:[%s423 + $0x187] sm:$0xff]
      %v625 = vld [vmem:[%s423 + $0x18f] sm:$0xff]
      %v626 = vld [vmem:[%s423 + $0x1a7] sm:$0xff]
      %v627 = vld [vmem:[%s423 + $0x1af] sm:$0xff]
      %v628 = vld [vmem:[%s423 + $0x1c7] sm:$0xff]
      %v629 = vld [vmem:[%s423 + $0x1cf] sm:$0xff]
      %v630 = vld [vmem:[%s423 + $0x1e7] sm:$0xff]
      %v631 = vld [vmem:[%s423 + $0x1ef] sm:$0xff]
      %v632 = vld [vmem:[%s423 + $0x8] sm:$0xff]
      %v633 = vld [vmem:[%s423 + $0x10] sm:$0xff]
      %v634 = vld [vmem:[%s423 + $0x28] sm:$0xff]
      %v635 = vld [vmem:[%s423 + $0x30] sm:$0xff]
      %v636 = vld [vmem:[%s423 + $0x48] sm:$0xff]
      %v637 = vld [vmem:[%s423 + $0x50] sm:$0xff]
      %v638 = vld [vmem:[%s423 + $0x68] sm:$0xff]
      %v639 = vld [vmem:[%s423 + $0x70] sm:$0xff]
      %v640 = vld [vmem:[%s423 + $0x88] sm:$0xff]
      %v641 = vld [vmem:[%s423 + $0x90] sm:$0xff]
      %v642 = vld [vmem:[%s423 + $0xa8] sm:$0xff]
      %v643 = vld [vmem:[%s423 + $0xb0] sm:$0xff]
      %v644 = vld [vmem:[%s423 + $0xc8] sm:$0xff]
      %v645 = vld [vmem:[%s423 + $0xd0] sm:$0xff]
      %v646 = vld [vmem:[%s423 + $0xe8] sm:$0xff]
      %v647 = vld [vmem:[%s423 + $0xf0] sm:$0xff]
      %v648 = vld [vmem:[%s423 + $0x108] sm:$0xff]
      %v649 = vld [vmem:[%s423 + $0x110] sm:$0xff]
      %v650 = vld [vmem:[%s423 + $0x128] sm:$0xff]
      %v651 = vld [vmem:[%s423 + $0x130] sm:$0xff]
      %v652 = vld [vmem:[%s423 + $0x148] sm:$0xff]
      %v653 = vld [vmem:[%s423 + $0x150] sm:$0xff]
      %v654 = vld [vmem:[%s423 + $0x168] sm:$0xff]
      %v655 = vld [vmem:[%s423 + $0x170] sm:$0xff]
      %v656 = vld [vmem:[%s423 + $0x188] sm:$0xff]
      %v657 = vld [vmem:[%s423 + $0x190] sm:$0xff]
      %v658 = vld [vmem:[%s423 + $0x1a8] sm:$0xff]
      %v659 = vld [vmem:[%s423 + $0x1b0] sm:$0xff]
      %v660 = vld [vmem:[%s423 + $0x1c8] sm:$0xff]
      %v661 = vld [vmem:[%s423 + $0x1d0] sm:$0xff]
      %v662 = vld [vmem:[%s423 + $0x1e8] sm:$0xff]
      %v663 = vld [vmem:[%s423 + $0x1f0] sm:$0xff]
      %v664 = vld [vmem:[%s423 + $0x9] sm:$0xff]
      %v665 = vld [vmem:[%s423 + $0x11] sm:$0xff]
      %v666 = vld [vmem:[%s423 + $0x29] sm:$0xff]
      %v667 = vld [vmem:[%s423 + $0x31] sm:$0xff]
      %v668 = vld [vmem:[%s423 + $0x49] sm:$0xff]
      %v669 = vld [vmem:[%s423 + $0x51] sm:$0xff]
      %v670 = vld [vmem:[%s423 + $0x69] sm:$0xff]
      %v671 = vld [vmem:[%s423 + $0x71] sm:$0xff]
      %v672 = vld [vmem:[%s423 + $0x89] sm:$0xff]
      %v673 = vld [vmem:[%s423 + $0x91] sm:$0xff]
      %v674 = vld [vmem:[%s423 + $0xa9] sm:$0xff]
      %v675 = vld [vmem:[%s423 + $0xb1] sm:$0xff]
      %v676 = vld [vmem:[%s423 + $0xc9] sm:$0xff]
      %v677 = vld [vmem:[%s423 + $0xd1] sm:$0xff]
      %v678 = vld [vmem:[%s423 + $0xe9] sm:$0xff]
      %v679 = vld [vmem:[%s423 + $0xf1] sm:$0xff]
      %v680 = vld [vmem:[%s423 + $0x109] sm:$0xff]
      %v681 = vld [vmem:[%s423 + $0x111] sm:$0xff]
      %v682 = vld [vmem:[%s423 + $0x129] sm:$0xff]
      %v683 = vld [vmem:[%s423 + $0x131] sm:$0xff]
      %v684 = vld [vmem:[%s423 + $0x149] sm:$0xff]
      %v685 = vld [vmem:[%s423 + $0x151] sm:$0xff]
      %v686 = vld [vmem:[%s423 + $0x169] sm:$0xff]
      %v687 = vld [vmem:[%s423 + $0x171] sm:$0xff]
      %v688 = vld [vmem:[%s423 + $0x189] sm:$0xff]
      %v689 = vld [vmem:[%s423 + $0x191] sm:$0xff]
      %v690 = vld [vmem:[%s423 + $0x1a9] sm:$0xff]
      %v691 = vld [vmem:[%s423 + $0x1b1] sm:$0xff]
      %v692 = vld [vmem:[%s423 + $0x1c9] sm:$0xff]
      %v693 = vld [vmem:[%s423 + $0x1d1] sm:$0xff]
      %v694 = vld [vmem:[%s423 + $0x1e9] sm:$0xff]
      %v695 = vld [vmem:[%s423 + $0x1f1] sm:$0xff]
      %v696 = vld [vmem:[%s3 + $0x180] sm:$0xff]
      %v697 = vld [vmem:[%s3 + $0x188] sm:$0xff]
      %v698 = vld [vmem:[%s3 + $0x190] sm:$0xff]
      %v699 = vld [vmem:[%s3 + $0x198] sm:$0xff]
      %v700 = vld [vmem:[%s3 + $0x1a0] sm:$0xff]
      %v701 = vld [vmem:[%s3 + $0x1a8] sm:$0xff]
      %v702 = vld [vmem:[%s3 + $0x1b0] sm:$0xff]
      %v703 = vld [vmem:[%s3 + $0x1b8] sm:$0xff]
      %v704 = vld [vmem:[%s3 + $0x1c0] sm:$0xff]
      %v705 = vld [vmem:[%s3 + $0x1c8] sm:$0xff]
      %v706 = vld [vmem:[%s3 + $0x1d0] sm:$0xff]
      %v707 = vld [vmem:[%s3 + $0x1d8] sm:$0xff]
      %v708 = vld [vmem:[%s3 + $0x1e0] sm:$0xff]
      %v709 = vld [vmem:[%s3 + $0x1e8] sm:$0xff]
      %v710 = vld [vmem:[%s3 + $0x1f0] sm:$0xff]
      %v711 = vld [vmem:[%s3 + $0x1f8] sm:$0xff]
      %v712 = vld [vmem:[%s3 + $0x200] sm:$0xff]
      %v713 = vld [vmem:[%s3 + $0x208] sm:$0xff]
      %v714 = vld [vmem:[%s3 + $0x210] sm:$0xff]
      %v715 = vld [vmem:[%s3 + $0x218] sm:$0xff]
      %v716 = vld [vmem:[%s3 + $0x220] sm:$0xff]
      %v717 = vld [vmem:[%s3 + $0x228] sm:$0xff]
      %v718 = vld [vmem:[%s3 + $0x230] sm:$0xff]
      %v719 = vld [vmem:[%s3 + $0x238] sm:$0xff]
      %v720 = vld [vmem:[%s3 + $0x240] sm:$0xff]
      %v721 = vld [vmem:[%s3 + $0x248] sm:$0xff]
      %v722 = vld [vmem:[%s3 + $0x250] sm:$0xff]
      %v723 = vld [vmem:[%s3 + $0x258] sm:$0xff]
      %v724 = vld [vmem:[%s3 + $0x260] sm:$0xff]
      %v725 = vld [vmem:[%s3 + $0x268] sm:$0xff]
      %v726 = vld [vmem:[%s3 + $0x270] sm:$0xff]
      %v727 = vld [vmem:[%s3 + $0x278] sm:$0xff]
      %v728 = vld [vmem:[%s3 + $0x280] sm:$0xff]
      %v729 = vld [vmem:[%s3 + $0x288] sm:$0xff]
      %v730 = vld [vmem:[%s3 + $0x290] sm:$0xff]
      %v731 = vld [vmem:[%s3 + $0x298] sm:$0xff]
      %v732 = vld [vmem:[%s3 + $0x2a0] sm:$0xff]
      %v733 = vld [vmem:[%s3 + $0x2a8] sm:$0xff]
      %v734 = vld [vmem:[%s3 + $0x2b0] sm:$0xff]
      %v735 = vld [vmem:[%s3 + $0x2b8] sm:$0xff]
      %v736 = vld [vmem:[%s3 + $0x2c0] sm:$0xff]
      %v737 = vld [vmem:[%s3 + $0x2c8] sm:$0xff]
      %v738 = vld [vmem:[%s3 + $0x2d0] sm:$0xff]
      %v739 = vld [vmem:[%s3 + $0x2d8] sm:$0xff]
      %v740 = vld [vmem:[%s3 + $0x2e0] sm:$0xff]
      %v741 = vld [vmem:[%s3 + $0x2e8] sm:$0xff]
      %v742 = vld [vmem:[%s3 + $0x2f0] sm:$0xff]
      %v743 = vld [vmem:[%s3 + $0x2f8] sm:$0xff]
      %744 = vmatprep.subr.mxu0 0.0
      %745 = vmatpush1.msra.mxu0 %v711
      %746 = vmatprep.subr.mxu0 0.0
      %747 = vmatpush1.msra.mxu0 %v710
      %748 = vmatprep.subr.mxu0 0.0
      %749 = vmatpush1.msra.mxu0 %v709
      %750 = vmatprep.subr.mxu0 0.0
      %751 = vmatpush1.msra.mxu0 %v708
      %752 = vmatprep.subr.mxu0 0.0
      %753 = vmatpush1.msra.mxu0 %v707
      %754 = vmatprep.subr.mxu0 0.0
      %755 = vmatpush1.msra.mxu0 %v706
      %756 = vmatprep.subr.mxu0 0.0
      %757 = vmatpush1.msra.mxu0 %v705
      %758 = vmatprep.subr.mxu0 0.0
      %759 = vmatpush1.msra.mxu0 %v704
      %760 = vmatprep.subr.mxu0 0.0
      %761 = vmatpush1.msra.mxu0 %v703
      %762 = vmatprep.subr.mxu0 0.0
      %763 = vmatpush1.msra.mxu0 %v702
      %764 = vmatprep.subr.mxu0 0.0
      %765 = vmatpush1.msra.mxu0 %v701
      %766 = vmatprep.subr.mxu0 0.0
      %767 = vmatpush1.msra.mxu0 %v700
      %768 = vmatprep.subr.mxu0 0.0
      %769 = vmatpush1.msra.mxu0 %v699
      %770 = vmatprep.subr.mxu0 0.0
      %771 = vmatpush1.msra.mxu0 %v698
      %772 = vmatprep.subr.mxu0 0.0
      %773 = vmatpush1.msra.mxu0 %v697
      %774 = vmatprep.subr.mxu0 0.0
      %775 = vmatpush1.msra.mxu0 %v696
      %776 = vmatprep.subr.mxu0 0.0
      %777 = vmatpush2.msra.mxu0 %v727
      %778 = vmatprep.subr.mxu0 0.0
      %779 = vmatpush2.msra.mxu0 %v726
      %780 = vmatprep.subr.mxu0 0.0
      %781 = vmatpush2.msra.mxu0 %v725
      %782 = vmatprep.subr.mxu0 0.0
      %783 = vmatpush2.msra.mxu0 %v724
      %784 = vmatprep.subr.mxu0 0.0
      %785 = vmatpush2.msra.mxu0 %v723
      %786 = vmatprep.subr.mxu0 0.0
      %787 = vmatpush2.msra.mxu0 %v722
      %788 = vmatprep.subr.mxu0 0.0
      %789 = vmatpush2.msra.mxu0 %v721
      %790 = vmatprep.subr.mxu0 0.0
      %791 = vmatpush2.msra.mxu0 %v720
      %792 = vmatprep.subr.mxu0 0.0
      %793 = vmatpush2.msra.mxu0 %v719
      %794 = vmatprep.subr.mxu0 0.0
      %795 = vmatpush2.msra.mxu0 %v718
      %796 = vmatprep.subr.mxu0 0.0
      %797 = vmatpush2.msra.mxu0 %v717
      %798 = vmatprep.subr.mxu0 0.0
      %799 = vmatpush2.msra.mxu0 %v716
      %800 = vmatprep.subr.mxu0 0.0
      %801 = vmatpush2.msra.mxu0 %v715
      %802 = vmatprep.subr.mxu0 0.0
      %803 = vmatpush2.msra.mxu0 %v714
      %804 = vmatprep.subr.mxu0 0.0
      %805 = vmatpush2.msra.mxu0 %v713
      %806 = vmatprep.subr.mxu0 0.0
      %807 = vmatpush2.msra.mxu0 %v712
      %808 = vmatprep.mubr.f32.mxu0 %v632
      %809 = vmatmul.mubr.f32.gmra.mxu0 %v600
      %v810 = vpop.f32.mrf.mxu0
      %v811 = vadd.f32 0.0, %v810
      %v812 = vpop.f32.mrf.mxu0
      %813 = vmatprep.mubr.f32.mxu0 %v633
      %814 = vmatmul.mubr.f32.gmra.mxu0 %v601
      %v815 = vpop.f32.mrf.mxu0
      %v816 = vadd.f32 0.0, %v815
      %v817 = vpop.f32.mrf.mxu0
      %818 = vmatprep.mubr.f32.mxu0 %v634
      %819 = vmatmul.mubr.f32.gmra.mxu0 %v602
      %v820 = vpop.f32.mrf.mxu0
      %v821 = vadd.f32 0.0, %v820
      %v822 = vpop.f32.mrf.mxu0
      %823 = vmatprep.mubr.f32.mxu0 %v635
      %824 = vmatmul.mubr.f32.gmra.mxu0 %v603
      %v825 = vpop.f32.mrf.mxu0
      %v826 = vadd.f32 0.0, %v825
      %v827 = vpop.f32.mrf.mxu0
      %828 = vmatprep.mubr.f32.mxu0 %v636
      %829 = vmatmul.mubr.f32.gmra.mxu0 %v604
      %v830 = vpop.f32.mrf.mxu0
      %v831 = vadd.f32 0.0, %v830
      %v832 = vpop.f32.mrf.mxu0
      %833 = vmatprep.mubr.f32.mxu0 %v637
      %834 = vmatmul.mubr.f32.gmra.mxu0 %v605
      %v835 = vpop.f32.mrf.mxu0
      %v836 = vadd.f32 0.0, %v835
      %v837 = vpop.f32.mrf.mxu0
      %838 = vmatprep.mubr.f32.mxu0 %v638
      %839 = vmatmul.mubr.f32.gmra.mxu0 %v606
      %v840 = vpop.f32.mrf.mxu0
      %v841 = vadd.f32 0.0, %v840
      %v842 = vpop.f32.mrf.mxu0
      %843 = vmatprep.mubr.f32.mxu0 %v639
      %844 = vmatmul.mubr.f32.gmra.mxu0 %v607
      %v845 = vpop.f32.mrf.mxu0
      %v846 = vadd.f32 0.0, %v845
      %v847 = vpop.f32.mrf.mxu0
      %848 = vmatprep.mubr.f32.mxu0 %v640
      %849 = vmatmul.mubr.f32.gmra.mxu0 %v608
      %v850 = vpop.f32.mrf.mxu0
      %v851 = vadd.f32 0.0, %v850
      %v852 = vpop.f32.mrf.mxu0
      %853 = vmatprep.mubr.f32.mxu0 %v641
      %854 = vmatmul.mubr.f32.gmra.mxu0 %v609
      %v855 = vpop.f32.mrf.mxu0
      %v856 = vadd.f32 0.0, %v855
      %v857 = vpop.f32.mrf.mxu0
      %858 = vmatprep.mubr.f32.mxu0 %v642
      %859 = vmatmul.mubr.f32.gmra.mxu0 %v610
      %v860 = vpop.f32.mrf.mxu0
      %v861 = vadd.f32 0.0, %v860
      %v862 = vpop.f32.mrf.mxu0
      %863 = vmatprep.mubr.f32.mxu0 %v643
      %864 = vmatmul.mubr.f32.gmra.mxu0 %v611
      %v865 = vpop.f32.mrf.mxu0
      %v866 = vadd.f32 0.0, %v865
      %v867 = vpop.f32.mrf.mxu0
      %868 = vmatprep.mubr.f32.mxu0 %v644
      %869 = vmatmul.mubr.f32.gmra.mxu0 %v612
      %v870 = vpop.f32.mrf.mxu0
      %v871 = vadd.f32 0.0, %v870
      %v872 = vpop.f32.mrf.mxu0
      %873 = vmatprep.mubr.f32.mxu0 %v645
      %874 = vmatmul.mubr.f32.gmra.mxu0 %v613
      %v875 = vpop.f32.mrf.mxu0
      %v876 = vadd.f32 0.0, %v875
      %v877 = vpop.f32.mrf.mxu0
      %878 = vmatprep.mubr.f32.mxu0 %v646
      %879 = vmatmul.mubr.f32.gmra.mxu0 %v614
      %v880 = vpop.f32.mrf.mxu0
      %v881 = vadd.f32 0.0, %v880
      %v882 = vpop.f32.mrf.mxu0
      %883 = vmatprep.mubr.f32.mxu0 %v647
      %884 = vmatmul.mubr.f32.gmra.mxu0 %v615
      %v885 = vpop.f32.mrf.mxu0
      %v886 = vadd.f32 0.0, %v885
      %v887 = vpop.f32.mrf.mxu0
      %888 = vmatprep.mubr.f32.mxu0 %v648
      %889 = vmatmul.mubr.f32.gmra.mxu0 %v616
      %v890 = vpop.f32.mrf.mxu0
      %v891 = vadd.f32 0.0, %v890
      %v892 = vpop.f32.mrf.mxu0
      %893 = vmatprep.mubr.f32.mxu0 %v649
      %894 = vmatmul.mubr.f32.gmra.mxu0 %v617
      %v895 = vpop.f32.mrf.mxu0
      %v896 = vadd.f32 0.0, %v895
      %v897 = vpop.f32.mrf.mxu0
      %898 = vmatprep.mubr.f32.mxu0 %v650
      %899 = vmatmul.mubr.f32.gmra.mxu0 %v618
      %v900 = vpop.f32.mrf.mxu0
      %v901 = vadd.f32 0.0, %v900
      %v902 = vpop.f32.mrf.mxu0
      %903 = vmatprep.mubr.f32.mxu0 %v651
      %904 = vmatmul.mubr.f32.gmra.mxu0 %v619
      %v905 = vpop.f32.mrf.mxu0
      %v906 = vadd.f32 0.0, %v905
      %v907 = vpop.f32.mrf.mxu0
      %908 = vmatprep.mubr.f32.mxu0 %v652
      %909 = vmatmul.mubr.f32.gmra.mxu0 %v620
      %v910 = vpop.f32.mrf.mxu0
      %v911 = vadd.f32 0.0, %v910
      %v912 = vpop.f32.mrf.mxu0
      %913 = vmatprep.mubr.f32.mxu0 %v653
      %914 = vmatmul.mubr.f32.gmra.mxu0 %v621
      %v915 = vpop.f32.mrf.mxu0
      %v916 = vadd.f32 0.0, %v915
      %v917 = vpop.f32.mrf.mxu0
      %918 = vmatprep.mubr.f32.mxu0 %v654
      %919 = vmatmul.mubr.f32.gmra.mxu0 %v622
      %v920 = vpop.f32.mrf.mxu0
      %v921 = vadd.f32 0.0, %v920
      %v922 = vpop.f32.mrf.mxu0
      %923 = vmatprep.mubr.f32.mxu0 %v655
      %924 = vmatmul.mubr.f32.gmra.mxu0 %v623
      %v925 = vpop.f32.mrf.mxu0
      %v926 = vadd.f32 0.0, %v925
      %v927 = vpop.f32.mrf.mxu0
      %928 = vmatprep.mubr.f32.mxu0 %v656
      %929 = vmatmul.mubr.f32.gmra.mxu0 %v624
      %v930 = vpop.f32.mrf.mxu0
      %v931 = vadd.f32 0.0, %v930
      %v932 = vpop.f32.mrf.mxu0
      %933 = vmatprep.mubr.f32.mxu0 %v657
      %934 = vmatmul.mubr.f32.gmra.mxu0 %v625
      %v935 = vpop.f32.mrf.mxu0
      %v936 = vadd.f32 0.0, %v935
      %v937 = vpop.f32.mrf.mxu0
      %938 = vmatprep.mubr.f32.mxu0 %v658
      %939 = vmatmul.mubr.f32.gmra.mxu0 %v626
      %v940 = vpop.f32.mrf.mxu0
      %v941 = vadd.f32 0.0, %v940
      %v942 = vpop.f32.mrf.mxu0
      %943 = vmatprep.mubr.f32.mxu0 %v659
      %944 = vmatmul.mubr.f32.gmra.mxu0 %v627
      %v945 = vpop.f32.mrf.mxu0
      %v946 = vadd.f32 0.0, %v945
      %v947 = vpop.f32.mrf.mxu0
      %948 = vmatprep.mubr.f32.mxu0 %v660
      %949 = vmatmul.mubr.f32.gmra.mxu0 %v628
      %v950 = vpop.f32.mrf.mxu0
      %v951 = vadd.f32 0.0, %v950
      %v952 = vpop.f32.mrf.mxu0
      %953 = vmatprep.mubr.f32.mxu0 %v661
      %954 = vmatmul.mubr.f32.gmra.mxu0 %v629
      %v955 = vpop.f32.mrf.mxu0
      %v956 = vadd.f32 0.0, %v955
      %v957 = vpop.f32.mrf.mxu0
      %958 = vmatprep.mubr.f32.mxu0 %v662
      %959 = vmatmul.mubr.f32.gmra.mxu0 %v630
      %v960 = vpop.f32.mrf.mxu0
      %v961 = vadd.f32 0.0, %v960
      %v962 = vpop.f32.mrf.mxu0
      %963 = vmatprep.mubr.f32.mxu0 %v663
      %964 = vmatmul.mubr.f32.gmra.mxu0 %v631
      %v965 = vpop.f32.mrf.mxu0
      %v966 = vadd.f32 0.0, %v965
      %v967 = vpop.f32.mrf.mxu0
      %968 = vdwg.mxu0
      %969 = vmatprep.subr.mxu0 0.0
      %970 = vmatpush1.msra.mxu0 %v743
      %971 = vmatprep.subr.mxu0 0.0
      %972 = vmatpush1.msra.mxu0 %v742
      %973 = vmatprep.subr.mxu0 0.0
      %974 = vmatpush1.msra.mxu0 %v741
      %975 = vmatprep.subr.mxu0 0.0
      %976 = vmatpush1.msra.mxu0 %v740
      %977 = vmatprep.subr.mxu0 0.0
      %978 = vmatpush1.msra.mxu0 %v739
      %979 = vmatprep.subr.mxu0 0.0
      %980 = vmatpush1.msra.mxu0 %v738
      %981 = vmatprep.subr.mxu0 0.0
      %982 = vmatpush1.msra.mxu0 %v737
      %983 = vmatprep.subr.mxu0 0.0
      %984 = vmatpush1.msra.mxu0 %v736
      %985 = vmatprep.subr.mxu0 0.0
      %986 = vmatpush1.msra.mxu0 %v735
      %987 = vmatprep.subr.mxu0 0.0
      %988 = vmatpush1.msra.mxu0 %v734
      %989 = vmatprep.subr.mxu0 0.0
      %990 = vmatpush1.msra.mxu0 %v733
      %991 = vmatprep.subr.mxu0 0.0
      %992 = vmatpush1.msra.mxu0 %v732
      %993 = vmatprep.subr.mxu0 0.0
      %994 = vmatpush1.msra.mxu0 %v731
      %995 = vmatprep.subr.mxu0 0.0
      %996 = vmatpush1.msra.mxu0 %v730
      %997 = vmatprep.subr.mxu0 0.0
      %998 = vmatpush1.msra.mxu0 %v729
      %999 = vmatprep.subr.mxu0 0.0
      %1000 = vmatpush1.msra.mxu0 %v728
      %1001 = vmatprep.subr.mxu0 0.0
      %1002 = vmatpush2.msra.mxu0 0.0
      %1003 = vmatprep.subr.mxu0 0.0
      %1004 = vmatpush2.msra.mxu0 0.0
      %1005 = vmatprep.subr.mxu0 0.0
      %1006 = vmatpush2.msra.mxu0 0.0
      %1007 = vmatprep.subr.mxu0 0.0
      %1008 = vmatpush2.msra.mxu0 0.0
      %1009 = vmatprep.subr.mxu0 0.0
      %1010 = vmatpush2.msra.mxu0 0.0
      %1011 = vmatprep.subr.mxu0 0.0
      %1012 = vmatpush2.msra.mxu0 0.0
      %1013 = vmatprep.subr.mxu0 0.0
      %1014 = vmatpush2.msra.mxu0 0.0
      %1015 = vmatprep.subr.mxu0 0.0
      %1016 = vmatpush2.msra.mxu0 0.0
      %1017 = vmatprep.subr.mxu0 0.0
      %1018 = vmatpush2.msra.mxu0 0.0
      %1019 = vmatprep.subr.mxu0 0.0
      %1020 = vmatpush2.msra.mxu0 0.0
      %1021 = vmatprep.subr.mxu0 0.0
      %1022 = vmatpush2.msra.mxu0 0.0
      %1023 = vmatprep.subr.mxu0 0.0
      %1024 = vmatpush2.msra.mxu0 0.0
      %1025 = vmatprep.subr.mxu0 0.0
      %1026 = vmatpush2.msra.mxu0 0.0
      %1027 = vmatprep.subr.mxu0 0.0
      %1028 = vmatpush2.msra.mxu0 0.0
      %1029 = vmatprep.subr.mxu0 0.0
      %1030 = vmatpush2.msra.mxu0 0.0
      %1031 = vmatprep.subr.mxu0 0.0
      %1032 = vmatpush2.msra.mxu0 0.0
      %1033 = vmatprep.mubr.f32.mxu0 0.0
      %1034 = vmatmul.mubr.f32.gmra.mxu0 %v664
      %v1035 = vpop.f32.mrf.mxu0
      %v1036 = vadd.f32 %v811, %v1035
      %v1037 = vpop.f32.mrf.mxu0
      %1038 = vmatprep.mubr.f32.mxu0 0.0
      %1039 = vmatmul.mubr.f32.gmra.mxu0 %v665
      %v1040 = vpop.f32.mrf.mxu0
      %v1041 = vadd.f32 %v816, %v1040
      %v1042 = vpop.f32.mrf.mxu0
      %1043 = vmatprep.mubr.f32.mxu0 0.0
      %1044 = vmatmul.mubr.f32.gmra.mxu0 %v666
      %v1045 = vpop.f32.mrf.mxu0
      %v1046 = vadd.f32 %v821, %v1045
      %v1047 = vpop.f32.mrf.mxu0
      %1048 = vmatprep.mubr.f32.mxu0 0.0
      %1049 = vmatmul.mubr.f32.gmra.mxu0 %v667
      %v1050 = vpop.f32.mrf.mxu0
      %v1051 = vadd.f32 %v826, %v1050
      %v1052 = vpop.f32.mrf.mxu0
      %1053 = vmatprep.mubr.f32.mxu0 0.0
      %1054 = vmatmul.mubr.f32.gmra.mxu0 %v668
      %v1055 = vpop.f32.mrf.mxu0
      %v1056 = vadd.f32 %v831, %v1055
      %v1057 = vpop.f32.mrf.mxu0
      %1058 = vmatprep.mubr.f32.mxu0 0.0
      %1059 = vmatmul.mubr.f32.gmra.mxu0 %v669
      %v1060 = vpop.f32.mrf.mxu0
      %v1061 = vadd.f32 %v836, %v1060
      %v1062 = vpop.f32.mrf.mxu0
      %1063 = vmatprep.mubr.f32.mxu0 0.0
      %1064 = vmatmul.mubr.f32.gmra.mxu0 %v670
      %v1065 = vpop.f32.mrf.mxu0
      %v1066 = vadd.f32 %v841, %v1065
      %v1067 = vpop.f32.mrf.mxu0
      %1068 = vmatprep.mubr.f32.mxu0 0.0
      %1069 = vmatmul.mubr.f32.gmra.mxu0 %v671
      %v1070 = vpop.f32.mrf.mxu0
      %v1071 = vadd.f32 %v846, %v1070
      %v1072 = vpop.f32.mrf.mxu0
      %1073 = vmatprep.mubr.f32.mxu0 0.0
      %1074 = vmatmul.mubr.f32.gmra.mxu0 %v672
      %v1075 = vpop.f32.mrf.mxu0
      %v1076 = vadd.f32 %v851, %v1075
      %v1077 = vpop.f32.mrf.mxu0
      %1078 = vmatprep.mubr.f32.mxu0 0.0
      %1079 = vmatmul.mubr.f32.gmra.mxu0 %v673
      %v1080 = vpop.f32.mrf.mxu0
      %v1081 = vadd.f32 %v856, %v1080
      %v1082 = vpop.f32.mrf.mxu0
      %1083 = vmatprep.mubr.f32.mxu0 0.0
      %1084 = vmatmul.mubr.f32.gmra.mxu0 %v674
      %v1085 = vpop.f32.mrf.mxu0
      %v1086 = vadd.f32 %v861, %v1085
      %v1087 = vpop.f32.mrf.mxu0
      %1088 = vmatprep.mubr.f32.mxu0 0.0
      %1089 = vmatmul.mubr.f32.gmra.mxu0 %v675
      %v1090 = vpop.f32.mrf.mxu0
      %v1091 = vadd.f32 %v866, %v1090
      %v1092 = vpop.f32.mrf.mxu0
      %1093 = vmatprep.mubr.f32.mxu0 0.0
      %1094 = vmatmul.mubr.f32.gmra.mxu0 %v676
      %v1095 = vpop.f32.mrf.mxu0
      %v1096 = vadd.f32 %v871, %v1095
      %v1097 = vpop.f32.mrf.mxu0
      %1098 = vmatprep.mubr.f32.mxu0 0.0
      %1099 = vmatmul.mubr.f32.gmra.mxu0 %v677
      %v1100 = vpop.f32.mrf.mxu0
      %v1101 = vadd.f32 %v876, %v1100
      %v1102 = vpop.f32.mrf.mxu0
      %1103 = vmatprep.mubr.f32.mxu0 0.0
      %1104 = vmatmul.mubr.f32.gmra.mxu0 %v678
      %v1105 = vpop.f32.mrf.mxu0
      %v1106 = vadd.f32 %v881, %v1105
      %v1107 = vpop.f32.mrf.mxu0
      %1108 = vmatprep.mubr.f32.mxu0 0.0
      %1109 = vmatmul.mubr.f32.gmra.mxu0 %v679
      %v1110 = vpop.f32.mrf.mxu0
      %v1111 = vadd.f32 %v886, %v1110
      %v1112 = vpop.f32.mrf.mxu0
      %1113 = vmatprep.mubr.f32.mxu0 0.0
      %1114 = vmatmul.mubr.f32.gmra.mxu0 %v680
      %v1115 = vpop.f32.mrf.mxu0
      %v1116 = vadd.f32 %v891, %v1115
      %v1117 = vpop.f32.mrf.mxu0
      %1118 = vmatprep.mubr.f32.mxu0 0.0
      %1119 = vmatmul.mubr.f32.gmra.mxu0 %v681
      %v1120 = vpop.f32.mrf.mxu0
      %v1121 = vadd.f32 %v896, %v1120
      %v1122 = vpop.f32.mrf.mxu0
      %1123 = vmatprep.mubr.f32.mxu0 0.0
      %1124 = vmatmul.mubr.f32.gmra.mxu0 %v682
      %v1125 = vpop.f32.mrf.mxu0
      %v1126 = vadd.f32 %v901, %v1125
      %v1127 = vpop.f32.mrf.mxu0
      %1128 = vmatprep.mubr.f32.mxu0 0.0
      %1129 = vmatmul.mubr.f32.gmra.mxu0 %v683
      %v1130 = vpop.f32.mrf.mxu0
      %v1131 = vadd.f32 %v906, %v1130
      %v1132 = vpop.f32.mrf.mxu0
      %1133 = vmatprep.mubr.f32.mxu0 0.0
      %1134 = vmatmul.mubr.f32.gmra.mxu0 %v684
      %v1135 = vpop.f32.mrf.mxu0
      %v1136 = vadd.f32 %v911, %v1135
      %v1137 = vpop.f32.mrf.mxu0
      %1138 = vmatprep.mubr.f32.mxu0 0.0
      %1139 = vmatmul.mubr.f32.gmra.mxu0 %v685
      %v1140 = vpop.f32.mrf.mxu0
      %v1141 = vadd.f32 %v916, %v1140
      %v1142 = vpop.f32.mrf.mxu0
      %1143 = vmatprep.mubr.f32.mxu0 0.0
      %1144 = vmatmul.mubr.f32.gmra.mxu0 %v686
      %v1145 = vpop.f32.mrf.mxu0
      %v1146 = vadd.f32 %v921, %v1145
      %v1147 = vpop.f32.mrf.mxu0
      %1148 = vmatprep.mubr.f32.mxu0 0.0
      %1149 = vmatmul.mubr.f32.gmra.mxu0 %v687
      %v1150 = vpop.f32.mrf.mxu0
      %v1151 = vadd.f32 %v926, %v1150
      %v1152 = vpop.f32.mrf.mxu0
      %1153 = vmatprep.mubr.f32.mxu0 0.0
      %1154 = vmatmul.mubr.f32.gmra.mxu0 %v688
      %v1155 = vpop.f32.mrf.mxu0
      %v1156 = vadd.f32 %v931, %v1155
      %v1157 = vpop.f32.mrf.mxu0
      %1158 = vmatprep.mubr.f32.mxu0 0.0
      %1159 = vmatmul.mubr.f32.gmra.mxu0 %v689
      %v1160 = vpop.f32.mrf.mxu0
      %v1161 = vadd.f32 %v936, %v1160
      %v1162 = vpop.f32.mrf.mxu0
      %1163 = vmatprep.mubr.f32.mxu0 0.0
      %1164 = vmatmul.mubr.f32.gmra.mxu0 %v690
      %v1165 = vpop.f32.mrf.mxu0
      %v1166 = vadd.f32 %v941, %v1165
      %v1167 = vpop.f32.mrf.mxu0
      %1168 = vmatprep.mubr.f32.mxu0 0.0
      %1169 = vmatmul.mubr.f32.gmra.mxu0 %v691
      %v1170 = vpop.f32.mrf.mxu0
      %v1171 = vadd.f32 %v946, %v1170
      %v1172 = vpop.f32.mrf.mxu0
      %1173 = vmatprep.mubr.f32.mxu0 0.0
      %1174 = vmatmul.mubr.f32.gmra.mxu0 %v692
      %v1175 = vpop.f32.mrf.mxu0
      %v1176 = vadd.f32 %v951, %v1175
      %v1177 = vpop.f32.mrf.mxu0
      %1178 = vmatprep.mubr.f32.mxu0 0.0
      %1179 = vmatmul.mubr.f32.gmra.mxu0 %v693
      %v1180 = vpop.f32.mrf.mxu0
      %v1181 = vadd.f32 %v956, %v1180
      %v1182 = vpop.f32.mrf.mxu0
      %1183 = vmatprep.mubr.f32.mxu0 0.0
      %1184 = vmatmul.mubr.f32.gmra.mxu0 %v694
      %v1185 = vpop.f32.mrf.mxu0
      %v1186 = vadd.f32 %v961, %v1185
      %v1187 = vpop.f32.mrf.mxu0
      %1188 = vmatprep.mubr.f32.mxu0 0.0
      %1189 = vmatmul.mubr.f32.gmra.mxu0 %v695
      %v1190 = vpop.f32.mrf.mxu0
      %v1191 = vadd.f32 %v966, %v1190
      %v1192 = vpop.f32.mrf.mxu0
      %1193 = vdwg.mxu0
      %1194 = vmatprep.subr.mxu0 0.0
      %1195 = vmatpush1.msra.mxu0 %v567
      %1196 = vmatprep.subr.mxu0 0.0
      %1197 = vmatpush1.msra.mxu0 %v566
      %1198 = vmatprep.subr.mxu0 0.0
      %1199 = vmatpush1.msra.mxu0 %v565
      %1200 = vmatprep.subr.mxu0 0.0
      %1201 = vmatpush1.msra.mxu0 %v564
      %1202 = vmatprep.subr.mxu0 0.0
      %1203 = vmatpush1.msra.mxu0 %v563
      %1204 = vmatprep.subr.mxu0 0.0
      %1205 = vmatpush1.msra.mxu0 %v562
      %1206 = vmatprep.subr.mxu0 0.0
      %1207 = vmatpush1.msra.mxu0 %v561
      %1208 = vmatprep.subr.mxu0 0.0
      %1209 = vmatpush1.msra.mxu0 %v560
      %1210 = vmatprep.subr.mxu0 0.0
      %1211 = vmatpush1.msra.mxu0 %v559
      %1212 = vmatprep.subr.mxu0 0.0
      %1213 = vmatpush1.msra.mxu0 %v558
      %1214 = vmatprep.subr.mxu0 0.0
      %1215 = vmatpush1.msra.mxu0 %v557
      %1216 = vmatprep.subr.mxu0 0.0
      %1217 = vmatpush1.msra.mxu0 %v556
      %1218 = vmatprep.subr.mxu0 0.0
      %1219 = vmatpush1.msra.mxu0 %v555
      %1220 = vmatprep.subr.mxu0 0.0
      %1221 = vmatpush1.msra.mxu0 %v554
      %1222 = vmatprep.subr.mxu0 0.0
      %1223 = vmatpush1.msra.mxu0 %v553
      %1224 = vmatprep.subr.mxu0 0.0
      %1225 = vmatpush1.msra.mxu0 %v552
      %1226 = vmatprep.subr.mxu0 0.0
      %1227 = vmatpush2.msra.mxu0 %v583
      %1228 = vmatprep.subr.mxu0 0.0
      %1229 = vmatpush2.msra.mxu0 %v582
      %1230 = vmatprep.subr.mxu0 0.0
      %1231 = vmatpush2.msra.mxu0 %v581
      %1232 = vmatprep.subr.mxu0 0.0
      %1233 = vmatpush2.msra.mxu0 %v580
      %1234 = vmatprep.subr.mxu0 0.0
      %1235 = vmatpush2.msra.mxu0 %v579
      %1236 = vmatprep.subr.mxu0 0.0
      %1237 = vmatpush2.msra.mxu0 %v578
      %1238 = vmatprep.subr.mxu0 0.0
      %1239 = vmatpush2.msra.mxu0 %v577
      %1240 = vmatprep.subr.mxu0 0.0
      %1241 = vmatpush2.msra.mxu0 %v576
      %1242 = vmatprep.subr.mxu0 0.0
      %1243 = vmatpush2.msra.mxu0 %v575
      %1244 = vmatprep.subr.mxu0 0.0
      %1245 = vmatpush2.msra.mxu0 %v574
      %1246 = vmatprep.subr.mxu0 0.0
      %1247 = vmatpush2.msra.mxu0 %v573
      %1248 = vmatprep.subr.mxu0 0.0
      %1249 = vmatpush2.msra.mxu0 %v572
      %1250 = vmatprep.subr.mxu0 0.0
      %1251 = vmatpush2.msra.mxu0 %v571
      %1252 = vmatprep.subr.mxu0 0.0
      %1253 = vmatpush2.msra.mxu0 %v570
      %1254 = vmatprep.subr.mxu0 0.0
      %1255 = vmatpush2.msra.mxu0 %v569
      %1256 = vmatprep.subr.mxu0 0.0
      %1257 = vmatpush2.msra.mxu0 %v568
      %1258 = vmatprep.mubr.f32.mxu0 %v488
      %1259 = vmatmul.mubr.f32.gmra.mxu0 %v456
      %v1260 = vpop.f32.mrf.mxu0
      %v1261 = vadd.f32 %v1036, %v1260
      %v1262 = vpop.f32.mrf.mxu0
      %1263 = vmatprep.mubr.f32.mxu0 %v489
      %1264 = vmatmul.mubr.f32.gmra.mxu0 %v457
      %v1265 = vpop.f32.mrf.mxu0
      %v1266 = vadd.f32 %v1041, %v1265
      %v1267 = vpop.f32.mrf.mxu0
      %1268 = vmatprep.mubr.f32.mxu0 %v490
      %1269 = vmatmul.mubr.f32.gmra.mxu0 %v458
      %v1270 = vpop.f32.mrf.mxu0
      %v1271 = vadd.f32 %v1046, %v1270
      %v1272 = vpop.f32.mrf.mxu0
      %1273 = vmatprep.mubr.f32.mxu0 %v491
      %1274 = vmatmul.mubr.f32.gmra.mxu0 %v459
      %v1275 = vpop.f32.mrf.mxu0
      %v1276 = vadd.f32 %v1051, %v1275
      %v1277 = vpop.f32.mrf.mxu0
      %1278 = vmatprep.mubr.f32.mxu0 %v492
      %1279 = vmatmul.mubr.f32.gmra.mxu0 %v460
      %v1280 = vpop.f32.mrf.mxu0
      %v1281 = vadd.f32 %v1056, %v1280
      %v1282 = vpop.f32.mrf.mxu0
      %1283 = vmatprep.mubr.f32.mxu0 %v493
      %1284 = vmatmul.mubr.f32.gmra.mxu0 %v461
      %v1285 = vpop.f32.mrf.mxu0
      %v1286 = vadd.f32 %v1061, %v1285
      %v1287 = vpop.f32.mrf.mxu0
      %1288 = vmatprep.mubr.f32.mxu0 %v494
      %1289 = vmatmul.mubr.f32.gmra.mxu0 %v462
      %v1290 = vpop.f32.mrf.mxu0
      %v1291 = vadd.f32 %v1066, %v1290
      %v1292 = vpop.f32.mrf.mxu0
      %1293 = vmatprep.mubr.f32.mxu0 %v495
      %1294 = vmatmul.mubr.f32.gmra.mxu0 %v463
      %v1295 = vpop.f32.mrf.mxu0
      %v1296 = vadd.f32 %v1071, %v1295
      %v1297 = vpop.f32.mrf.mxu0
      %1298 = vmatprep.mubr.f32.mxu0 %v496
      %1299 = vmatmul.mubr.f32.gmra.mxu0 %v464
      %v1300 = vpop.f32.mrf.mxu0
      %v1301 = vadd.f32 %v1076, %v1300
      %v1302 = vpop.f32.mrf.mxu0
      %1303 = vmatprep.mubr.f32.mxu0 %v497
      %1304 = vmatmul.mubr.f32.gmra.mxu0 %v465
      %v1305 = vpop.f32.mrf.mxu0
      %v1306 = vadd.f32 %v1081, %v1305
      %v1307 = vpop.f32.mrf.mxu0
      %1308 = vmatprep.mubr.f32.mxu0 %v498
      %1309 = vmatmul.mubr.f32.gmra.mxu0 %v466
      %v1310 = vpop.f32.mrf.mxu0
      %v1311 = vadd.f32 %v1086, %v1310
      %v1312 = vpop.f32.mrf.mxu0
      %1313 = vmatprep.mubr.f32.mxu0 %v499
      %1314 = vmatmul.mubr.f32.gmra.mxu0 %v467
      %v1315 = vpop.f32.mrf.mxu0
      %v1316 = vadd.f32 %v1091, %v1315
      %v1317 = vpop.f32.mrf.mxu0
      %1318 = vmatprep.mubr.f32.mxu0 %v500
      %1319 = vmatmul.mubr.f32.gmra.mxu0 %v468
      %v1320 = vpop.f32.mrf.mxu0
      %v1321 = vadd.f32 %v1096, %v1320
      %v1322 = vpop.f32.mrf.mxu0
      %1323 = vmatprep.mubr.f32.mxu0 %v501
      %1324 = vmatmul.mubr.f32.gmra.mxu0 %v469
      %v1325 = vpop.f32.mrf.mxu0
      %v1326 = vadd.f32 %v1101, %v1325
      %v1327 = vpop.f32.mrf.mxu0
      %1328 = vmatprep.mubr.f32.mxu0 %v502
      %1329 = vmatmul.mubr.f32.gmra.mxu0 %v470
      %v1330 = vpop.f32.mrf.mxu0
      %v1331 = vadd.f32 %v1106, %v1330
      %v1332 = vpop.f32.mrf.mxu0
      %1333 = vmatprep.mubr.f32.mxu0 %v503
      %1334 = vmatmul.mubr.f32.gmra.mxu0 %v471
      %v1335 = vpop.f32.mrf.mxu0
      %v1336 = vadd.f32 %v1111, %v1335
      %v1337 = vpop.f32.mrf.mxu0
      %1338 = vmatprep.mubr.f32.mxu0 %v504
      %1339 = vmatmul.mubr.f32.gmra.mxu0 %v472
      %v1340 = vpop.f32.mrf.mxu0
      %v1341 = vadd.f32 %v1116, %v1340
      %v1342 = vpop.f32.mrf.mxu0
      %1343 = vmatprep.mubr.f32.mxu0 %v505
      %1344 = vmatmul.mubr.f32.gmra.mxu0 %v473
      %v1345 = vpop.f32.mrf.mxu0
      %v1346 = vadd.f32 %v1121, %v1345
      %v1347 = vpop.f32.mrf.mxu0
      %1348 = vmatprep.mubr.f32.mxu0 %v506
      %1349 = vmatmul.mubr.f32.gmra.mxu0 %v474
      %v1350 = vpop.f32.mrf.mxu0
      %v1351 = vadd.f32 %v1126, %v1350
      %v1352 = vpop.f32.mrf.mxu0
      %1353 = vmatprep.mubr.f32.mxu0 %v507
      %1354 = vmatmul.mubr.f32.gmra.mxu0 %v475
      %v1355 = vpop.f32.mrf.mxu0
      %v1356 = vadd.f32 %v1131, %v1355
      %v1357 = vpop.f32.mrf.mxu0
      %1358 = vmatprep.mubr.f32.mxu0 %v508
      %1359 = vmatmul.mubr.f32.gmra.mxu0 %v476
      %v1360 = vpop.f32.mrf.mxu0
      %v1361 = vadd.f32 %v1136, %v1360
      %v1362 = vpop.f32.mrf.mxu0
      %1363 = vmatprep.mubr.f32.mxu0 %v509
      %1364 = vmatmul.mubr.f32.gmra.mxu0 %v477
      %v1365 = vpop.f32.mrf.mxu0
      %v1366 = vadd.f32 %v1141, %v1365
      %v1367 = vpop.f32.mrf.mxu0
      %1368 = vmatprep.mubr.f32.mxu0 %v510
      %1369 = vmatmul.mubr.f32.gmra.mxu0 %v478
      %v1370 = vpop.f32.mrf.mxu0
      %v1371 = vadd.f32 %v1146, %v1370
      %v1372 = vpop.f32.mrf.mxu0
      %1373 = vmatprep.mubr.f32.mxu0 %v511
      %1374 = vmatmul.mubr.f32.gmra.mxu0 %v479
      %v1375 = vpop.f32.mrf.mxu0
      %v1376 = vadd.f32 %v1151, %v1375
      %v1377 = vpop.f32.mrf.mxu0
      %1378 = vmatprep.mubr.f32.mxu0 %v512
      %1379 = vmatmul.mubr.f32.gmra.mxu0 %v480
      %v1380 = vpop.f32.mrf.mxu0
      %v1381 = vadd.f32 %v1156, %v1380
      %v1382 = vpop.f32.mrf.mxu0
      %1383 = vmatprep.mubr.f32.mxu0 %v513
      %1384 = vmatmul.mubr.f32.gmra.mxu0 %v481
      %v1385 = vpop.f32.mrf.mxu0
      %v1386 = vadd.f32 %v1161, %v1385
      %v1387 = vpop.f32.mrf.mxu0
      %1388 = vmatprep.mubr.f32.mxu0 %v514
      %1389 = vmatmul.mubr.f32.gmra.mxu0 %v482
      %v1390 = vpop.f32.mrf.mxu0
      %v1391 = vadd.f32 %v1166, %v1390
      %v1392 = vpop.f32.mrf.mxu0
      %1393 = vmatprep.mubr.f32.mxu0 %v515
      %1394 = vmatmul.mubr.f32.gmra.mxu0 %v483
      %v1395 = vpop.f32.mrf.mxu0
      %v1396 = vadd.f32 %v1171, %v1395
      %v1397 = vpop.f32.mrf.mxu0
      %1398 = vmatprep.mubr.f32.mxu0 %v516
      %1399 = vmatmul.mubr.f32.gmra.mxu0 %v484
      %v1400 = vpop.f32.mrf.mxu0
      %v1401 = vadd.f32 %v1176, %v1400
      %v1402 = vpop.f32.mrf.mxu0
      %1403 = vmatprep.mubr.f32.mxu0 %v517
      %1404 = vmatmul.mubr.f32.gmra.mxu0 %v485
      %v1405 = vpop.f32.mrf.mxu0
      %v1406 = vadd.f32 %v1181, %v1405
      %v1407 = vpop.f32.mrf.mxu0
      %1408 = vmatprep.mubr.f32.mxu0 %v518
      %1409 = vmatmul.mubr.f32.gmra.mxu0 %v486
      %v1410 = vpop.f32.mrf.mxu0
      %v1411 = vadd.f32 %v1186, %v1410
      %v1412 = vpop.f32.mrf.mxu0
      %1413 = vmatprep.mubr.f32.mxu0 %v519
      %1414 = vmatmul.mubr.f32.gmra.mxu0 %v487
      %v1415 = vpop.f32.mrf.mxu0
      %v1416 = vadd.f32 %v1191, %v1415
      %v1417 = vpop.f32.mrf.mxu0
      %1418 = vdwg.mxu0
      %1419 = vmatprep.subr.mxu0 0.0
      %1420 = vmatpush1.msra.mxu0 %v599
      %1421 = vmatprep.subr.mxu0 0.0
      %1422 = vmatpush1.msra.mxu0 %v598
      %1423 = vmatprep.subr.mxu0 0.0
      %1424 = vmatpush1.msra.mxu0 %v597
      %1425 = vmatprep.subr.mxu0 0.0
      %1426 = vmatpush1.msra.mxu0 %v596
      %1427 = vmatprep.subr.mxu0 0.0
      %1428 = vmatpush1.msra.mxu0 %v595
      %1429 = vmatprep.subr.mxu0 0.0
      %1430 = vmatpush1.msra.mxu0 %v594
      %1431 = vmatprep.subr.mxu0 0.0
      %1432 = vmatpush1.msra.mxu0 %v593
      %1433 = vmatprep.subr.mxu0 0.0
      %1434 = vmatpush1.msra.mxu0 %v592
      %1435 = vmatprep.subr.mxu0 0.0
      %1436 = vmatpush1.msra.mxu0 %v591
      %1437 = vmatprep.subr.mxu0 0.0
      %1438 = vmatpush1.msra.mxu0 %v590
      %1439 = vmatprep.subr.mxu0 0.0
      %1440 = vmatpush1.msra.mxu0 %v589
      %1441 = vmatprep.subr.mxu0 0.0
      %1442 = vmatpush1.msra.mxu0 %v588
      %1443 = vmatprep.subr.mxu0 0.0
      %1444 = vmatpush1.msra.mxu0 %v587
      %1445 = vmatprep.subr.mxu0 0.0
      %1446 = vmatpush1.msra.mxu0 %v586
      %1447 = vmatprep.subr.mxu0 0.0
      %1448 = vmatpush1.msra.mxu0 %v585
      %1449 = vmatprep.subr.mxu0 0.0
      %1450 = vmatpush1.msra.mxu0 %v584
      %1451 = vmatprep.subr.mxu0 0.0
      %1452 = vmatpush2.msra.mxu0 0.0
      %1453 = vmatprep.subr.mxu0 0.0
      %1454 = vmatpush2.msra.mxu0 0.0
      %1455 = vmatprep.subr.mxu0 0.0
      %1456 = vmatpush2.msra.mxu0 0.0
      %1457 = vmatprep.subr.mxu0 0.0
      %1458 = vmatpush2.msra.mxu0 0.0
      %1459 = vmatprep.subr.mxu0 0.0
      %1460 = vmatpush2.msra.mxu0 0.0
      %1461 = vmatprep.subr.mxu0 0.0
      %1462 = vmatpush2.msra.mxu0 0.0
      %1463 = vmatprep.subr.mxu0 0.0
      %1464 = vmatpush2.msra.mxu0 0.0
      %1465 = vmatprep.subr.mxu0 0.0
      %1466 = vmatpush2.msra.mxu0 0.0
      %1467 = vmatprep.subr.mxu0 0.0
      %1468 = vmatpush2.msra.mxu0 0.0
      %1469 = vmatprep.subr.mxu0 0.0
      %1470 = vmatpush2.msra.mxu0 0.0
      %1471 = vmatprep.subr.mxu0 0.0
      %1472 = vmatpush2.msra.mxu0 0.0
      %1473 = vmatprep.subr.mxu0 0.0
      %1474 = vmatpush2.msra.mxu0 0.0
      %1475 = vmatprep.subr.mxu0 0.0
      %1476 = vmatpush2.msra.mxu0 0.0
      %1477 = vmatprep.subr.mxu0 0.0
      %1478 = vmatpush2.msra.mxu0 0.0
      %1479 = vmatprep.subr.mxu0 0.0
      %1480 = vmatpush2.msra.mxu0 0.0
      %1481 = vmatprep.subr.mxu0 0.0
      %1482 = vmatpush2.msra.mxu0 0.0
      %1483 = vmatprep.mubr.f32.mxu0 0.0
      %1484 = vmatmul.mubr.f32.gmra.mxu0 %v520
      %v1485 = vpop.f32.mrf.mxu0
      %v1486 = vadd.f32 %v1261, %v1485
      %v1487 = vpop.f32.mrf.mxu0
      %1488 = vmatprep.mubr.f32.mxu0 0.0
      %1489 = vmatmul.mubr.f32.gmra.mxu0 %v521
      %v1490 = vpop.f32.mrf.mxu0
      %v1491 = vadd.f32 %v1266, %v1490
      %v1492 = vpop.f32.mrf.mxu0
      %1493 = vmatprep.mubr.f32.mxu0 0.0
      %1494 = vmatmul.mubr.f32.gmra.mxu0 %v522
      %v1495 = vpop.f32.mrf.mxu0
      %v1496 = vadd.f32 %v1271, %v1495
      %v1497 = vpop.f32.mrf.mxu0
      %1498 = vmatprep.mubr.f32.mxu0 0.0
      %1499 = vmatmul.mubr.f32.gmra.mxu0 %v523
      %v1500 = vpop.f32.mrf.mxu0
      %v1501 = vadd.f32 %v1276, %v1500
      %v1502 = vpop.f32.mrf.mxu0
      %1503 = vmatprep.mubr.f32.mxu0 0.0
      %1504 = vmatmul.mubr.f32.gmra.mxu0 %v524
      %v1505 = vpop.f32.mrf.mxu0
      %v1506 = vadd.f32 %v1281, %v1505
      %v1507 = vpop.f32.mrf.mxu0
      %1508 = vmatprep.mubr.f32.mxu0 0.0
      %1509 = vmatmul.mubr.f32.gmra.mxu0 %v525
      %v1510 = vpop.f32.mrf.mxu0
      %v1511 = vadd.f32 %v1286, %v1510
      %v1512 = vpop.f32.mrf.mxu0
      %1513 = vmatprep.mubr.f32.mxu0 0.0
      %1514 = vmatmul.mubr.f32.gmra.mxu0 %v526
      %v1515 = vpop.f32.mrf.mxu0
      %v1516 = vadd.f32 %v1291, %v1515
      %v1517 = vpop.f32.mrf.mxu0
      %1518 = vmatprep.mubr.f32.mxu0 0.0
      %1519 = vmatmul.mubr.f32.gmra.mxu0 %v527
      %v1520 = vpop.f32.mrf.mxu0
      %v1521 = vadd.f32 %v1296, %v1520
      %v1522 = vpop.f32.mrf.mxu0
      %1523 = vmatprep.mubr.f32.mxu0 0.0
      %1524 = vmatmul.mubr.f32.gmra.mxu0 %v528
      %v1525 = vpop.f32.mrf.mxu0
      %v1526 = vadd.f32 %v1301, %v1525
      %v1527 = vpop.f32.mrf.mxu0
      %1528 = vmatprep.mubr.f32.mxu0 0.0
      %1529 = vmatmul.mubr.f32.gmra.mxu0 %v529
      %v1530 = vpop.f32.mrf.mxu0
      %v1531 = vadd.f32 %v1306, %v1530
      %v1532 = vpop.f32.mrf.mxu0
      %1533 = vmatprep.mubr.f32.mxu0 0.0
      %1534 = vmatmul.mubr.f32.gmra.mxu0 %v530
      %v1535 = vpop.f32.mrf.mxu0
      %v1536 = vadd.f32 %v1311, %v1535
      %v1537 = vpop.f32.mrf.mxu0
      %1538 = vmatprep.mubr.f32.mxu0 0.0
      %1539 = vmatmul.mubr.f32.gmra.mxu0 %v531
      %v1540 = vpop.f32.mrf.mxu0
      %v1541 = vadd.f32 %v1316, %v1540
      %v1542 = vpop.f32.mrf.mxu0
      %1543 = vmatprep.mubr.f32.mxu0 0.0
      %1544 = vmatmul.mubr.f32.gmra.mxu0 %v532
      %v1545 = vpop.f32.mrf.mxu0
      %v1546 = vadd.f32 %v1321, %v1545
      %v1547 = vpop.f32.mrf.mxu0
      %1548 = vmatprep.mubr.f32.mxu0 0.0
      %1549 = vmatmul.mubr.f32.gmra.mxu0 %v533
      %v1550 = vpop.f32.mrf.mxu0
      %v1551 = vadd.f32 %v1326, %v1550
      %v1552 = vpop.f32.mrf.mxu0
      %1553 = vmatprep.mubr.f32.mxu0 0.0
      %1554 = vmatmul.mubr.f32.gmra.mxu0 %v534
      %v1555 = vpop.f32.mrf.mxu0
      %v1556 = vadd.f32 %v1331, %v1555
      %v1557 = vpop.f32.mrf.mxu0
      %1558 = vmatprep.mubr.f32.mxu0 0.0
      %1559 = vmatmul.mubr.f32.gmra.mxu0 %v535
      %v1560 = vpop.f32.mrf.mxu0
      %v1561 = vadd.f32 %v1336, %v1560
      %v1562 = vpop.f32.mrf.mxu0
      %1563 = vmatprep.mubr.f32.mxu0 0.0
      %1564 = vmatmul.mubr.f32.gmra.mxu0 %v536
      %v1565 = vpop.f32.mrf.mxu0
      %v1566 = vadd.f32 %v1341, %v1565
      %v1567 = vpop.f32.mrf.mxu0
      %1568 = vmatprep.mubr.f32.mxu0 0.0
      %1569 = vmatmul.mubr.f32.gmra.mxu0 %v537
      %v1570 = vpop.f32.mrf.mxu0
      %v1571 = vadd.f32 %v1346, %v1570
      %v1572 = vpop.f32.mrf.mxu0
      %1573 = vmatprep.mubr.f32.mxu0 0.0
      %1574 = vmatmul.mubr.f32.gmra.mxu0 %v538
      %v1575 = vpop.f32.mrf.mxu0
      %v1576 = vadd.f32 %v1351, %v1575
      %v1577 = vpop.f32.mrf.mxu0
      %1578 = vmatprep.mubr.f32.mxu0 0.0
      %1579 = vmatmul.mubr.f32.gmra.mxu0 %v539
      %v1580 = vpop.f32.mrf.mxu0
      %v1581 = vadd.f32 %v1356, %v1580
      %v1582 = vpop.f32.mrf.mxu0
      %1583 = vmatprep.mubr.f32.mxu0 0.0
      %1584 = vmatmul.mubr.f32.gmra.mxu0 %v540
      %v1585 = vpop.f32.mrf.mxu0
      %v1586 = vadd.f32 %v1361, %v1585
      %v1587 = vpop.f32.mrf.mxu0
      %1588 = vmatprep.mubr.f32.mxu0 0.0
      %1589 = vmatmul.mubr.f32.gmra.mxu0 %v541
      %v1590 = vpop.f32.mrf.mxu0
      %v1591 = vadd.f32 %v1366, %v1590
      %v1592 = vpop.f32.mrf.mxu0
      %1593 = vmatprep.mubr.f32.mxu0 0.0
      %1594 = vmatmul.mubr.f32.gmra.mxu0 %v542
      %v1595 = vpop.f32.mrf.mxu0
      %v1596 = vadd.f32 %v1371, %v1595
      %v1597 = vpop.f32.mrf.mxu0
      %1598 = vmatprep.mubr.f32.mxu0 0.0
      %1599 = vmatmul.mubr.f32.gmra.mxu0 %v543
      %v1600 = vpop.f32.mrf.mxu0
      %v1601 = vadd.f32 %v1376, %v1600
      %v1602 = vpop.f32.mrf.mxu0
      %1603 = vmatprep.mubr.f32.mxu0 0.0
      %1604 = vmatmul.mubr.f32.gmra.mxu0 %v544
      %v1605 = vpop.f32.mrf.mxu0
      %v1606 = vadd.f32 %v1381, %v1605
      %v1607 = vpop.f32.mrf.mxu0
      %1608 = vmatprep.mubr.f32.mxu0 0.0
      %1609 = vmatmul.mubr.f32.gmra.mxu0 %v545
      %v1610 = vpop.f32.mrf.mxu0
      %v1611 = vadd.f32 %v1386, %v1610
      %v1612 = vpop.f32.mrf.mxu0
      %1613 = vmatprep.mubr.f32.mxu0 0.0
      %1614 = vmatmul.mubr.f32.gmra.mxu0 %v546
      %v1615 = vpop.f32.mrf.mxu0
      %v1616 = vadd.f32 %v1391, %v1615
      %v1617 = vpop.f32.mrf.mxu0
      %1618 = vmatprep.mubr.f32.mxu0 0.0
      %1619 = vmatmul.mubr.f32.gmra.mxu0 %v547
      %v1620 = vpop.f32.mrf.mxu0
      %v1621 = vadd.f32 %v1396, %v1620
      %v1622 = vpop.f32.mrf.mxu0
      %1623 = vmatprep.mubr.f32.mxu0 0.0
      %1624 = vmatmul.mubr.f32.gmra.mxu0 %v548
      %v1625 = vpop.f32.mrf.mxu0
      %v1626 = vadd.f32 %v1401, %v1625
      %v1627 = vpop.f32.mrf.mxu0
      %1628 = vmatprep.mubr.f32.mxu0 0.0
      %1629 = vmatmul.mubr.f32.gmra.mxu0 %v549
      %v1630 = vpop.f32.mrf.mxu0
      %v1631 = vadd.f32 %v1406, %v1630
      %v1632 = vpop.f32.mrf.mxu0
      %1633 = vmatprep.mubr.f32.mxu0 0.0
      %1634 = vmatmul.mubr.f32.gmra.mxu0 %v550
      %v1635 = vpop.f32.mrf.mxu0
      %v1636 = vadd.f32 %v1411, %v1635
      %v1637 = vpop.f32.mrf.mxu0
      %1638 = vmatprep.mubr.f32.mxu0 0.0
      %1639 = vmatmul.mubr.f32.gmra.mxu0 %v551
      %v1640 = vpop.f32.mrf.mxu0
      %v1641 = vadd.f32 %v1416, %v1640
      %v1642 = vpop.f32.mrf.mxu0
      %1643 = vdwg.mxu0
      %s1644 = scalar_lea.vmem [#allocation2], 64
      %v1645 = vld [vmem:[%s1644 + $0x7] sm:$0xff]
      %v1646 = vld [vmem:[%s1644 + $0xf] sm:$0xff]
      %v1647 = vld [vmem:[%s1644 + $0x27] sm:$0xff]
      %v1648 = vld [vmem:[%s1644 + $0x2f] sm:$0xff]
      %v1649 = vld [vmem:[%s1644 + $0x47] sm:$0xff]
      %v1650 = vld [vmem:[%s1644 + $0x4f] sm:$0xff]
      %v1651 = vld [vmem:[%s1644 + $0x67] sm:$0xff]
      %v1652 = vld [vmem:[%s1644 + $0x6f] sm:$0xff]
      %v1653 = vld [vmem:[%s1644 + $0x87] sm:$0xff]
      %v1654 = vld [vmem:[%s1644 + $0x8f] sm:$0xff]
      %v1655 = vld [vmem:[%s1644 + $0xa7] sm:$0xff]
      %v1656 = vld [vmem:[%s1644 + $0xaf] sm:$0xff]
      %v1657 = vld [vmem:[%s1644 + $0xc7] sm:$0xff]
      %v1658 = vld [vmem:[%s1644 + $0xcf] sm:$0xff]
      %v1659 = vld [vmem:[%s1644 + $0xe7] sm:$0xff]
      %v1660 = vld [vmem:[%s1644 + $0xef] sm:$0xff]
      %v1661 = vld [vmem:[%s1644 + $0x107] sm:$0xff]
      %v1662 = vld [vmem:[%s1644 + $0x10f] sm:$0xff]
      %v1663 = vld [vmem:[%s1644 + $0x127] sm:$0xff]
      %v1664 = vld [vmem:[%s1644 + $0x12f] sm:$0xff]
      %v1665 = vld [vmem:[%s1644 + $0x147] sm:$0xff]
      %v1666 = vld [vmem:[%s1644 + $0x14f] sm:$0xff]
      %v1667 = vld [vmem:[%s1644 + $0x167] sm:$0xff]
      %v1668 = vld [vmem:[%s1644 + $0x16f] sm:$0xff]
      %v1669 = vld [vmem:[%s1644 + $0x187] sm:$0xff]
      %v1670 = vld [vmem:[%s1644 + $0x18f] sm:$0xff]
      %v1671 = vld [vmem:[%s1644 + $0x1a7] sm:$0xff]
      %v1672 = vld [vmem:[%s1644 + $0x1af] sm:$0xff]
      %v1673 = vld [vmem:[%s1644 + $0x1c7] sm:$0xff]
      %v1674 = vld [vmem:[%s1644 + $0x1cf] sm:$0xff]
      %v1675 = vld [vmem:[%s1644 + $0x1e7] sm:$0xff]
      %v1676 = vld [vmem:[%s1644 + $0x1ef] sm:$0xff]
      %v1677 = vld [vmem:[%s1644 + $0x8] sm:$0xff]
      %v1678 = vld [vmem:[%s1644 + $0x10] sm:$0xff]
      %v1679 = vld [vmem:[%s1644 + $0x28] sm:$0xff]
      %v1680 = vld [vmem:[%s1644 + $0x30] sm:$0xff]
      %v1681 = vld [vmem:[%s1644 + $0x48] sm:$0xff]
      %v1682 = vld [vmem:[%s1644 + $0x50] sm:$0xff]
      %v1683 = vld [vmem:[%s1644 + $0x68] sm:$0xff]
      %v1684 = vld [vmem:[%s1644 + $0x70] sm:$0xff]
      %v1685 = vld [vmem:[%s1644 + $0x88] sm:$0xff]
      %v1686 = vld [vmem:[%s1644 + $0x90] sm:$0xff]
      %v1687 = vld [vmem:[%s1644 + $0xa8] sm:$0xff]
      %v1688 = vld [vmem:[%s1644 + $0xb0] sm:$0xff]
      %v1689 = vld [vmem:[%s1644 + $0xc8] sm:$0xff]
      %v1690 = vld [vmem:[%s1644 + $0xd0] sm:$0xff]
      %v1691 = vld [vmem:[%s1644 + $0xe8] sm:$0xff]
      %v1692 = vld [vmem:[%s1644 + $0xf0] sm:$0xff]
      %v1693 = vld [vmem:[%s1644 + $0x108] sm:$0xff]
      %v1694 = vld [vmem:[%s1644 + $0x110] sm:$0xff]
      %v1695 = vld [vmem:[%s1644 + $0x128] sm:$0xff]
      %v1696 = vld [vmem:[%s1644 + $0x130] sm:$0xff]
      %v1697 = vld [vmem:[%s1644 + $0x148] sm:$0xff]
      %v1698 = vld [vmem:[%s1644 + $0x150] sm:$0xff]
      %v1699 = vld [vmem:[%s1644 + $0x168] sm:$0xff]
      %v1700 = vld [vmem:[%s1644 + $0x170] sm:$0xff]
      %v1701 = vld [vmem:[%s1644 + $0x188] sm:$0xff]
      %v1702 = vld [vmem:[%s1644 + $0x190] sm:$0xff]
      %v1703 = vld [vmem:[%s1644 + $0x1a8] sm:$0xff]
      %v1704 = vld [vmem:[%s1644 + $0x1b0] sm:$0xff]
      %v1705 = vld [vmem:[%s1644 + $0x1c8] sm:$0xff]
      %v1706 = vld [vmem:[%s1644 + $0x1d0] sm:$0xff]
      %v1707 = vld [vmem:[%s1644 + $0x1e8] sm:$0xff]
      %v1708 = vld [vmem:[%s1644 + $0x1f0] sm:$0xff]
      %v1709 = vld [vmem:[%s1644 + $0x9] sm:$0xff]
      %v1710 = vld [vmem:[%s1644 + $0x11] sm:$0xff]
      %v1711 = vld [vmem:[%s1644 + $0x29] sm:$0xff]
      %v1712 = vld [vmem:[%s1644 + $0x31] sm:$0xff]
      %v1713 = vld [vmem:[%s1644 + $0x49] sm:$0xff]
      %v1714 = vld [vmem:[%s1644 + $0x51] sm:$0xff]
      %v1715 = vld [vmem:[%s1644 + $0x69] sm:$0xff]
      %v1716 = vld [vmem:[%s1644 + $0x71] sm:$0xff]
      %v1717 = vld [vmem:[%s1644 + $0x89] sm:$0xff]
      %v1718 = vld [vmem:[%s1644 + $0x91] sm:$0xff]
      %v1719 = vld [vmem:[%s1644 + $0xa9] sm:$0xff]
      %v1720 = vld [vmem:[%s1644 + $0xb1] sm:$0xff]
      %v1721 = vld [vmem:[%s1644 + $0xc9] sm:$0xff]
      %v1722 = vld [vmem:[%s1644 + $0xd1] sm:$0xff]
      %v1723 = vld [vmem:[%s1644 + $0xe9] sm:$0xff]
      %v1724 = vld [vmem:[%s1644 + $0xf1] sm:$0xff]
      %v1725 = vld [vmem:[%s1644 + $0x109] sm:$0xff]
      %v1726 = vld [vmem:[%s1644 + $0x111] sm:$0xff]
      %v1727 = vld [vmem:[%s1644 + $0x129] sm:$0xff]
      %v1728 = vld [vmem:[%s1644 + $0x131] sm:$0xff]
      %v1729 = vld [vmem:[%s1644 + $0x149] sm:$0xff]
      %v1730 = vld [vmem:[%s1644 + $0x151] sm:$0xff]
      %v1731 = vld [vmem:[%s1644 + $0x169] sm:$0xff]
      %v1732 = vld [vmem:[%s1644 + $0x171] sm:$0xff]
      %v1733 = vld [vmem:[%s1644 + $0x189] sm:$0xff]
      %v1734 = vld [vmem:[%s1644 + $0x191] sm:$0xff]
      %v1735 = vld [vmem:[%s1644 + $0x1a9] sm:$0xff]
      %v1736 = vld [vmem:[%s1644 + $0x1b1] sm:$0xff]
      %v1737 = vld [vmem:[%s1644 + $0x1c9] sm:$0xff]
      %v1738 = vld [vmem:[%s1644 + $0x1d1] sm:$0xff]
      %v1739 = vld [vmem:[%s1644 + $0x1e9] sm:$0xff]
      %v1740 = vld [vmem:[%s1644 + $0x1f1] sm:$0xff]
      %v1741 = vld [vmem:[%s3 + $0x300] sm:$0xff]
      %v1742 = vld [vmem:[%s3 + $0x308] sm:$0xff]
      %v1743 = vld [vmem:[%s3 + $0x310] sm:$0xff]
      %v1744 = vld [vmem:[%s3 + $0x318] sm:$0xff]
      %v1745 = vld [vmem:[%s3 + $0x320] sm:$0xff]
      %v1746 = vld [vmem:[%s3 + $0x328] sm:$0xff]
      %v1747 = vld [vmem:[%s3 + $0x330] sm:$0xff]
      %v1748 = vld [vmem:[%s3 + $0x338] sm:$0xff]
      %v1749 = vld [vmem:[%s3 + $0x340] sm:$0xff]
      %v1750 = vld [vmem:[%s3 + $0x348] sm:$0xff]
      %v1751 = vld [vmem:[%s3 + $0x350] sm:$0xff]
      %v1752 = vld [vmem:[%s3 + $0x358] sm:$0xff]
      %v1753 = vld [vmem:[%s3 + $0x360] sm:$0xff]
      %v1754 = vld [vmem:[%s3 + $0x368] sm:$0xff]
      %v1755 = vld [vmem:[%s3 + $0x370] sm:$0xff]
      %v1756 = vld [vmem:[%s3 + $0x378] sm:$0xff]
      %v1757 = vld [vmem:[%s3 + $0x380] sm:$0xff]
      %v1758 = vld [vmem:[%s3 + $0x388] sm:$0xff]
      %v1759 = vld [vmem:[%s3 + $0x390] sm:$0xff]
      %v1760 = vld [vmem:[%s3 + $0x398] sm:$0xff]
      %v1761 = vld [vmem:[%s3 + $0x3a0] sm:$0xff]
      %v1762 = vld [vmem:[%s3 + $0x3a8] sm:$0xff]
      %v1763 = vld [vmem:[%s3 + $0x3b0] sm:$0xff]
      %v1764 = vld [vmem:[%s3 + $0x3b8] sm:$0xff]
      %v1765 = vld [vmem:[%s3 + $0x3c0] sm:$0xff]
      %v1766 = vld [vmem:[%s3 + $0x3c8] sm:$0xff]
      %v1767 = vld [vmem:[%s3 + $0x3d0] sm:$0xff]
      %v1768 = vld [vmem:[%s3 + $0x3d8] sm:$0xff]
      %v1769 = vld [vmem:[%s3 + $0x3e0] sm:$0xff]
      %v1770 = vld [vmem:[%s3 + $0x3e8] sm:$0xff]
      %v1771 = vld [vmem:[%s3 + $0x3f0] sm:$0xff]
      %v1772 = vld [vmem:[%s3 + $0x3f8] sm:$0xff]
      %v1773 = vld [vmem:[%s3 + $0x400] sm:$0xff]
      %v1774 = vld [vmem:[%s3 + $0x408] sm:$0xff]
      %v1775 = vld [vmem:[%s3 + $0x410] sm:$0xff]
      %v1776 = vld [vmem:[%s3 + $0x418] sm:$0xff]
      %v1777 = vld [vmem:[%s3 + $0x420] sm:$0xff]
      %v1778 = vld [vmem:[%s3 + $0x428] sm:$0xff]
      %v1779 = vld [vmem:[%s3 + $0x430] sm:$0xff]
      %v1780 = vld [vmem:[%s3 + $0x438] sm:$0xff]
      %v1781 = vld [vmem:[%s3 + $0x440] sm:$0xff]
      %v1782 = vld [vmem:[%s3 + $0x448] sm:$0xff]
      %v1783 = vld [vmem:[%s3 + $0x450] sm:$0xff]
      %v1784 = vld [vmem:[%s3 + $0x458] sm:$0xff]
      %v1785 = vld [vmem:[%s3 + $0x460] sm:$0xff]
      %v1786 = vld [vmem:[%s3 + $0x468] sm:$0xff]
      %v1787 = vld [vmem:[%s3 + $0x470] sm:$0xff]
      %v1788 = vld [vmem:[%s3 + $0x478] sm:$0xff]
      %1789 = vmatprep.subr.mxu0 0.0
      %1790 = vmatpush1.msra.mxu0 %v1756
      %1791 = vmatprep.subr.mxu0 0.0
      %1792 = vmatpush1.msra.mxu0 %v1755
      %1793 = vmatprep.subr.mxu0 0.0
      %1794 = vmatpush1.msra.mxu0 %v1754
      %1795 = vmatprep.subr.mxu0 0.0
      %1796 = vmatpush1.msra.mxu0 %v1753
      %1797 = vmatprep.subr.mxu0 0.0
      %1798 = vmatpush1.msra.mxu0 %v1752
      %1799 = vmatprep.subr.mxu0 0.0
      %1800 = vmatpush1.msra.mxu0 %v1751
      %1801 = vmatprep.subr.mxu0 0.0
      %1802 = vmatpush1.msra.mxu0 %v1750
      %1803 = vmatprep.subr.mxu0 0.0
      %1804 = vmatpush1.msra.mxu0 %v1749
      %1805 = vmatprep.subr.mxu0 0.0
      %1806 = vmatpush1.msra.mxu0 %v1748
      %1807 = vmatprep.subr.mxu0 0.0
      %1808 = vmatpush1.msra.mxu0 %v1747
      %1809 = vmatprep.subr.mxu0 0.0
      %1810 = vmatpush1.msra.mxu0 %v1746
      %1811 = vmatprep.subr.mxu0 0.0
      %1812 = vmatpush1.msra.mxu0 %v1745
      %1813 = vmatprep.subr.mxu0 0.0
      %1814 = vmatpush1.msra.mxu0 %v1744
      %1815 = vmatprep.subr.mxu0 0.0
      %1816 = vmatpush1.msra.mxu0 %v1743
      %1817 = vmatprep.subr.mxu0 0.0
      %1818 = vmatpush1.msra.mxu0 %v1742
      %1819 = vmatprep.subr.mxu0 0.0
      %1820 = vmatpush1.msra.mxu0 %v1741
      %1821 = vmatprep.subr.mxu0 0.0
      %1822 = vmatpush2.msra.mxu0 %v1772
      %1823 = vmatprep.subr.mxu0 0.0
      %1824 = vmatpush2.msra.mxu0 %v1771
      %1825 = vmatprep.subr.mxu0 0.0
      %1826 = vmatpush2.msra.mxu0 %v1770
      %1827 = vmatprep.subr.mxu0 0.0
      %1828 = vmatpush2.msra.mxu0 %v1769
      %1829 = vmatprep.subr.mxu0 0.0
      %1830 = vmatpush2.msra.mxu0 %v1768
      %1831 = vmatprep.subr.mxu0 0.0
      %1832 = vmatpush2.msra.mxu0 %v1767
      %1833 = vmatprep.subr.mxu0 0.0
      %1834 = vmatpush2.msra.mxu0 %v1766
      %1835 = vmatprep.subr.mxu0 0.0
      %1836 = vmatpush2.msra.mxu0 %v1765
      %1837 = vmatprep.subr.mxu0 0.0
      %1838 = vmatpush2.msra.mxu0 %v1764
      %1839 = vmatprep.subr.mxu0 0.0
      %1840 = vmatpush2.msra.mxu0 %v1763
      %1841 = vmatprep.subr.mxu0 0.0
      %1842 = vmatpush2.msra.mxu0 %v1762
      %1843 = vmatprep.subr.mxu0 0.0
      %1844 = vmatpush2.msra.mxu0 %v1761
      %1845 = vmatprep.subr.mxu0 0.0
      %1846 = vmatpush2.msra.mxu0 %v1760
      %1847 = vmatprep.subr.mxu0 0.0
      %1848 = vmatpush2.msra.mxu0 %v1759
      %1849 = vmatprep.subr.mxu0 0.0
      %1850 = vmatpush2.msra.mxu0 %v1758
      %1851 = vmatprep.subr.mxu0 0.0
      %1852 = vmatpush2.msra.mxu0 %v1757
      %1853 = vmatprep.mubr.f32.mxu0 %v1677
      %1854 = vmatmul.mubr.f32.gmra.mxu0 %v1645
      %v1855 = vpop.f32.mrf.mxu0
      %v1856 = vadd.f32 0.0, %v1855
      %v1857 = vpop.f32.mrf.mxu0
      %1858 = vmatprep.mubr.f32.mxu0 %v1678
      %1859 = vmatmul.mubr.f32.gmra.mxu0 %v1646
      %v1860 = vpop.f32.mrf.mxu0
      %v1861 = vadd.f32 0.0, %v1860
      %v1862 = vpop.f32.mrf.mxu0
      %1863 = vmatprep.mubr.f32.mxu0 %v1679
      %1864 = vmatmul.mubr.f32.gmra.mxu0 %v1647
      %v1865 = vpop.f32.mrf.mxu0
      %v1866 = vadd.f32 0.0, %v1865
      %v1867 = vpop.f32.mrf.mxu0
      %1868 = vmatprep.mubr.f32.mxu0 %v1680
      %1869 = vmatmul.mubr.f32.gmra.mxu0 %v1648
      %v1870 = vpop.f32.mrf.mxu0
      %v1871 = vadd.f32 0.0, %v1870
      %v1872 = vpop.f32.mrf.mxu0
      %1873 = vmatprep.mubr.f32.mxu0 %v1681
      %1874 = vmatmul.mubr.f32.gmra.mxu0 %v1649
      %v1875 = vpop.f32.mrf.mxu0
      %v1876 = vadd.f32 0.0, %v1875
      %v1877 = vpop.f32.mrf.mxu0
      %1878 = vmatprep.mubr.f32.mxu0 %v1682
      %1879 = vmatmul.mubr.f32.gmra.mxu0 %v1650
      %v1880 = vpop.f32.mrf.mxu0
      %v1881 = vadd.f32 0.0, %v1880
      %v1882 = vpop.f32.mrf.mxu0
      %1883 = vmatprep.mubr.f32.mxu0 %v1683
      %1884 = vmatmul.mubr.f32.gmra.mxu0 %v1651
      %v1885 = vpop.f32.mrf.mxu0
      %v1886 = vadd.f32 0.0, %v1885
      %v1887 = vpop.f32.mrf.mxu0
      %1888 = vmatprep.mubr.f32.mxu0 %v1684
      %1889 = vmatmul.mubr.f32.gmra.mxu0 %v1652
      %v1890 = vpop.f32.mrf.mxu0
      %v1891 = vadd.f32 0.0, %v1890
      %v1892 = vpop.f32.mrf.mxu0
      %1893 = vmatprep.mubr.f32.mxu0 %v1685
      %1894 = vmatmul.mubr.f32.gmra.mxu0 %v1653
      %v1895 = vpop.f32.mrf.mxu0
      %v1896 = vadd.f32 0.0, %v1895
      %v1897 = vpop.f32.mrf.mxu0
      %1898 = vmatprep.mubr.f32.mxu0 %v1686
      %1899 = vmatmul.mubr.f32.gmra.mxu0 %v1654
      %v1900 = vpop.f32.mrf.mxu0
      %v1901 = vadd.f32 0.0, %v1900
      %v1902 = vpop.f32.mrf.mxu0
      %1903 = vmatprep.mubr.f32.mxu0 %v1687
      %1904 = vmatmul.mubr.f32.gmra.mxu0 %v1655
      %v1905 = vpop.f32.mrf.mxu0
      %v1906 = vadd.f32 0.0, %v1905
      %v1907 = vpop.f32.mrf.mxu0
      %1908 = vmatprep.mubr.f32.mxu0 %v1688
      %1909 = vmatmul.mubr.f32.gmra.mxu0 %v1656
      %v1910 = vpop.f32.mrf.mxu0
      %v1911 = vadd.f32 0.0, %v1910
      %v1912 = vpop.f32.mrf.mxu0
      %1913 = vmatprep.mubr.f32.mxu0 %v1689
      %1914 = vmatmul.mubr.f32.gmra.mxu0 %v1657
      %v1915 = vpop.f32.mrf.mxu0
      %v1916 = vadd.f32 0.0, %v1915
      %v1917 = vpop.f32.mrf.mxu0
      %1918 = vmatprep.mubr.f32.mxu0 %v1690
      %1919 = vmatmul.mubr.f32.gmra.mxu0 %v1658
      %v1920 = vpop.f32.mrf.mxu0
      %v1921 = vadd.f32 0.0, %v1920
      %v1922 = vpop.f32.mrf.mxu0
      %1923 = vmatprep.mubr.f32.mxu0 %v1691
      %1924 = vmatmul.mubr.f32.gmra.mxu0 %v1659
      %v1925 = vpop.f32.mrf.mxu0
      %v1926 = vadd.f32 0.0, %v1925
      %v1927 = vpop.f32.mrf.mxu0
      %1928 = vmatprep.mubr.f32.mxu0 %v1692
      %1929 = vmatmul.mubr.f32.gmra.mxu0 %v1660
      %v1930 = vpop.f32.mrf.mxu0
      %v1931 = vadd.f32 0.0, %v1930
      %v1932 = vpop.f32.mrf.mxu0
      %1933 = vmatprep.mubr.f32.mxu0 %v1693
      %1934 = vmatmul.mubr.f32.gmra.mxu0 %v1661
      %v1935 = vpop.f32.mrf.mxu0
      %v1936 = vadd.f32 0.0, %v1935
      %v1937 = vpop.f32.mrf.mxu0
      %1938 = vmatprep.mubr.f32.mxu0 %v1694
      %1939 = vmatmul.mubr.f32.gmra.mxu0 %v1662
      %v1940 = vpop.f32.mrf.mxu0
      %v1941 = vadd.f32 0.0, %v1940
      %v1942 = vpop.f32.mrf.mxu0
      %1943 = vmatprep.mubr.f32.mxu0 %v1695
      %1944 = vmatmul.mubr.f32.gmra.mxu0 %v1663
      %v1945 = vpop.f32.mrf.mxu0
      %v1946 = vadd.f32 0.0, %v1945
      %v1947 = vpop.f32.mrf.mxu0
      %1948 = vmatprep.mubr.f32.mxu0 %v1696
      %1949 = vmatmul.mubr.f32.gmra.mxu0 %v1664
      %v1950 = vpop.f32.mrf.mxu0
      %v1951 = vadd.f32 0.0, %v1950
      %v1952 = vpop.f32.mrf.mxu0
      %1953 = vmatprep.mubr.f32.mxu0 %v1697
      %1954 = vmatmul.mubr.f32.gmra.mxu0 %v1665
      %v1955 = vpop.f32.mrf.mxu0
      %v1956 = vadd.f32 0.0, %v1955
      %v1957 = vpop.f32.mrf.mxu0
      %1958 = vmatprep.mubr.f32.mxu0 %v1698
      %1959 = vmatmul.mubr.f32.gmra.mxu0 %v1666
      %v1960 = vpop.f32.mrf.mxu0
      %v1961 = vadd.f32 0.0, %v1960
      %v1962 = vpop.f32.mrf.mxu0
      %1963 = vmatprep.mubr.f32.mxu0 %v1699
      %1964 = vmatmul.mubr.f32.gmra.mxu0 %v1667
      %v1965 = vpop.f32.mrf.mxu0
      %v1966 = vadd.f32 0.0, %v1965
      %v1967 = vpop.f32.mrf.mxu0
      %1968 = vmatprep.mubr.f32.mxu0 %v1700
      %1969 = vmatmul.mubr.f32.gmra.mxu0 %v1668
      %v1970 = vpop.f32.mrf.mxu0
      %v1971 = vadd.f32 0.0, %v1970
      %v1972 = vpop.f32.mrf.mxu0
      %1973 = vmatprep.mubr.f32.mxu0 %v1701
      %1974 = vmatmul.mubr.f32.gmra.mxu0 %v1669
      %v1975 = vpop.f32.mrf.mxu0
      %v1976 = vadd.f32 0.0, %v1975
      %v1977 = vpop.f32.mrf.mxu0
      %1978 = vmatprep.mubr.f32.mxu0 %v1702
      %1979 = vmatmul.mubr.f32.gmra.mxu0 %v1670
      %v1980 = vpop.f32.mrf.mxu0
      %v1981 = vadd.f32 0.0, %v1980
      %v1982 = vpop.f32.mrf.mxu0
      %1983 = vmatprep.mubr.f32.mxu0 %v1703
      %1984 = vmatmul.mubr.f32.gmra.mxu0 %v1671
      %v1985 = vpop.f32.mrf.mxu0
      %v1986 = vadd.f32 0.0, %v1985
      %v1987 = vpop.f32.mrf.mxu0
      %1988 = vmatprep.mubr.f32.mxu0 %v1704
      %1989 = vmatmul.mubr.f32.gmra.mxu0 %v1672
      %v1990 = vpop.f32.mrf.mxu0
      %v1991 = vadd.f32 0.0, %v1990
      %v1992 = vpop.f32.mrf.mxu0
      %1993 = vmatprep.mubr.f32.mxu0 %v1705
      %1994 = vmatmul.mubr.f32.gmra.mxu0 %v1673
      %v1995 = vpop.f32.mrf.mxu0
      %v1996 = vadd.f32 0.0, %v1995
      %v1997 = vpop.f32.mrf.mxu0
      %1998 = vmatprep.mubr.f32.mxu0 %v1706
      %1999 = vmatmul.mubr.f32.gmra.mxu0 %v1674
      %v2000 = vpop.f32.mrf.mxu0
      %v2001 = vadd.f32 0.0, %v2000
      %v2002 = vpop.f32.mrf.mxu0
      %2003 = vmatprep.mubr.f32.mxu0 %v1707
      %2004 = vmatmul.mubr.f32.gmra.mxu0 %v1675
      %v2005 = vpop.f32.mrf.mxu0
      %v2006 = vadd.f32 0.0, %v2005
      %v2007 = vpop.f32.mrf.mxu0
      %2008 = vmatprep.mubr.f32.mxu0 %v1708
      %2009 = vmatmul.mubr.f32.gmra.mxu0 %v1676
      %v2010 = vpop.f32.mrf.mxu0
      %v2011 = vadd.f32 0.0, %v2010
      %v2012 = vpop.f32.mrf.mxu0
      %2013 = vdwg.mxu0
      %2014 = vmatprep.subr.mxu0 0.0
      %2015 = vmatpush1.msra.mxu0 %v1788
      %2016 = vmatprep.subr.mxu0 0.0
      %2017 = vmatpush1.msra.mxu0 %v1787
      %2018 = vmatprep.subr.mxu0 0.0
      %2019 = vmatpush1.msra.mxu0 %v1786
      %2020 = vmatprep.subr.mxu0 0.0
      %2021 = vmatpush1.msra.mxu0 %v1785
      %2022 = vmatprep.subr.mxu0 0.0
      %2023 = vmatpush1.msra.mxu0 %v1784
      %2024 = vmatprep.subr.mxu0 0.0
      %2025 = vmatpush1.msra.mxu0 %v1783
      %2026 = vmatprep.subr.mxu0 0.0
      %2027 = vmatpush1.msra.mxu0 %v1782
      %2028 = vmatprep.subr.mxu0 0.0
      %2029 = vmatpush1.msra.mxu0 %v1781
      %2030 = vmatprep.subr.mxu0 0.0
      %2031 = vmatpush1.msra.mxu0 %v1780
      %2032 = vmatprep.subr.mxu0 0.0
      %2033 = vmatpush1.msra.mxu0 %v1779
      %2034 = vmatprep.subr.mxu0 0.0
      %2035 = vmatpush1.msra.mxu0 %v1778
      %2036 = vmatprep.subr.mxu0 0.0
      %2037 = vmatpush1.msra.mxu0 %v1777
      %2038 = vmatprep.subr.mxu0 0.0
      %2039 = vmatpush1.msra.mxu0 %v1776
      %2040 = vmatprep.subr.mxu0 0.0
      %2041 = vmatpush1.msra.mxu0 %v1775
      %2042 = vmatprep.subr.mxu0 0.0
      %2043 = vmatpush1.msra.mxu0 %v1774
      %2044 = vmatprep.subr.mxu0 0.0
      %2045 = vmatpush1.msra.mxu0 %v1773
      %2046 = vmatprep.subr.mxu0 0.0
      %2047 = vmatpush2.msra.mxu0 0.0
      %2048 = vmatprep.subr.mxu0 0.0
      %2049 = vmatpush2.msra.mxu0 0.0
      %2050 = vmatprep.subr.mxu0 0.0
      %2051 = vmatpush2.msra.mxu0 0.0
      %2052 = vmatprep.subr.mxu0 0.0
      %2053 = vmatpush2.msra.mxu0 0.0
      %2054 = vmatprep.subr.mxu0 0.0
      %2055 = vmatpush2.msra.mxu0 0.0
      %2056 = vmatprep.subr.mxu0 0.0
      %2057 = vmatpush2.msra.mxu0 0.0
      %2058 = vmatprep.subr.mxu0 0.0
      %2059 = vmatpush2.msra.mxu0 0.0
      %2060 = vmatprep.subr.mxu0 0.0
      %2061 = vmatpush2.msra.mxu0 0.0
      %2062 = vmatprep.subr.mxu0 0.0
      %2063 = vmatpush2.msra.mxu0 0.0
      %2064 = vmatprep.subr.mxu0 0.0
      %2065 = vmatpush2.msra.mxu0 0.0
      %2066 = vmatprep.subr.mxu0 0.0
      %2067 = vmatpush2.msra.mxu0 0.0
      %2068 = vmatprep.subr.mxu0 0.0
      %2069 = vmatpush2.msra.mxu0 0.0
      %2070 = vmatprep.subr.mxu0 0.0
      %2071 = vmatpush2.msra.mxu0 0.0
      %2072 = vmatprep.subr.mxu0 0.0
      %2073 = vmatpush2.msra.mxu0 0.0
      %2074 = vmatprep.subr.mxu0 0.0
      %2075 = vmatpush2.msra.mxu0 0.0
      %2076 = vmatprep.subr.mxu0 0.0
      %2077 = vmatpush2.msra.mxu0 0.0
      %2078 = vmatprep.mubr.f32.mxu0 0.0
      %2079 = vmatmul.mubr.f32.gmra.mxu0 %v1709
      %v2080 = vpop.f32.mrf.mxu0
      %v2081 = vadd.f32 %v1856, %v2080
      %v2082 = vpop.f32.mrf.mxu0
      %2083 = vmatprep.mubr.f32.mxu0 0.0
      %2084 = vmatmul.mubr.f32.gmra.mxu0 %v1710
      %v2085 = vpop.f32.mrf.mxu0
      %v2086 = vadd.f32 %v1861, %v2085
      %v2087 = vpop.f32.mrf.mxu0
      %2088 = vmatprep.mubr.f32.mxu0 0.0
      %2089 = vmatmul.mubr.f32.gmra.mxu0 %v1711
      %v2090 = vpop.f32.mrf.mxu0
      %v2091 = vadd.f32 %v1866, %v2090
      %v2092 = vpop.f32.mrf.mxu0
      %2093 = vmatprep.mubr.f32.mxu0 0.0
      %2094 = vmatmul.mubr.f32.gmra.mxu0 %v1712
      %v2095 = vpop.f32.mrf.mxu0
      %v2096 = vadd.f32 %v1871, %v2095
      %v2097 = vpop.f32.mrf.mxu0
      %2098 = vmatprep.mubr.f32.mxu0 0.0
      %2099 = vmatmul.mubr.f32.gmra.mxu0 %v1713
      %v2100 = vpop.f32.mrf.mxu0
      %v2101 = vadd.f32 %v1876, %v2100
      %v2102 = vpop.f32.mrf.mxu0
      %2103 = vmatprep.mubr.f32.mxu0 0.0
      %2104 = vmatmul.mubr.f32.gmra.mxu0 %v1714
      %v2105 = vpop.f32.mrf.mxu0
      %v2106 = vadd.f32 %v1881, %v2105
      %v2107 = vpop.f32.mrf.mxu0
      %2108 = vmatprep.mubr.f32.mxu0 0.0
      %2109 = vmatmul.mubr.f32.gmra.mxu0 %v1715
      %v2110 = vpop.f32.mrf.mxu0
      %v2111 = vadd.f32 %v1886, %v2110
      %v2112 = vpop.f32.mrf.mxu0
      %2113 = vmatprep.mubr.f32.mxu0 0.0
      %2114 = vmatmul.mubr.f32.gmra.mxu0 %v1716
      %v2115 = vpop.f32.mrf.mxu0
      %v2116 = vadd.f32 %v1891, %v2115
      %v2117 = vpop.f32.mrf.mxu0
      %2118 = vmatprep.mubr.f32.mxu0 0.0
      %2119 = vmatmul.mubr.f32.gmra.mxu0 %v1717
      %v2120 = vpop.f32.mrf.mxu0
      %v2121 = vadd.f32 %v1896, %v2120
      %v2122 = vpop.f32.mrf.mxu0
      %2123 = vmatprep.mubr.f32.mxu0 0.0
      %2124 = vmatmul.mubr.f32.gmra.mxu0 %v1718
      %v2125 = vpop.f32.mrf.mxu0
      %v2126 = vadd.f32 %v1901, %v2125
      %v2127 = vpop.f32.mrf.mxu0
      %2128 = vmatprep.mubr.f32.mxu0 0.0
      %2129 = vmatmul.mubr.f32.gmra.mxu0 %v1719
      %v2130 = vpop.f32.mrf.mxu0
      %v2131 = vadd.f32 %v1906, %v2130
      %v2132 = vpop.f32.mrf.mxu0
      %2133 = vmatprep.mubr.f32.mxu0 0.0
      %2134 = vmatmul.mubr.f32.gmra.mxu0 %v1720
      %v2135 = vpop.f32.mrf.mxu0
      %v2136 = vadd.f32 %v1911, %v2135
      %v2137 = vpop.f32.mrf.mxu0
      %2138 = vmatprep.mubr.f32.mxu0 0.0
      %2139 = vmatmul.mubr.f32.gmra.mxu0 %v1721
      %v2140 = vpop.f32.mrf.mxu0
      %v2141 = vadd.f32 %v1916, %v2140
      %v2142 = vpop.f32.mrf.mxu0
      %2143 = vmatprep.mubr.f32.mxu0 0.0
      %2144 = vmatmul.mubr.f32.gmra.mxu0 %v1722
      %v2145 = vpop.f32.mrf.mxu0
      %v2146 = vadd.f32 %v1921, %v2145
      %v2147 = vpop.f32.mrf.mxu0
      %2148 = vmatprep.mubr.f32.mxu0 0.0
      %2149 = vmatmul.mubr.f32.gmra.mxu0 %v1723
      %v2150 = vpop.f32.mrf.mxu0
      %v2151 = vadd.f32 %v1926, %v2150
      %v2152 = vpop.f32.mrf.mxu0
      %2153 = vmatprep.mubr.f32.mxu0 0.0
      %2154 = vmatmul.mubr.f32.gmra.mxu0 %v1724
      %v2155 = vpop.f32.mrf.mxu0
      %v2156 = vadd.f32 %v1931, %v2155
      %v2157 = vpop.f32.mrf.mxu0
      %2158 = vmatprep.mubr.f32.mxu0 0.0
      %2159 = vmatmul.mubr.f32.gmra.mxu0 %v1725
      %v2160 = vpop.f32.mrf.mxu0
      %v2161 = vadd.f32 %v1936, %v2160
      %v2162 = vpop.f32.mrf.mxu0
      %2163 = vmatprep.mubr.f32.mxu0 0.0
      %2164 = vmatmul.mubr.f32.gmra.mxu0 %v1726
      %v2165 = vpop.f32.mrf.mxu0
      %v2166 = vadd.f32 %v1941, %v2165
      %v2167 = vpop.f32.mrf.mxu0
      %2168 = vmatprep.mubr.f32.mxu0 0.0
      %2169 = vmatmul.mubr.f32.gmra.mxu0 %v1727
      %v2170 = vpop.f32.mrf.mxu0
      %v2171 = vadd.f32 %v1946, %v2170
      %v2172 = vpop.f32.mrf.mxu0
      %2173 = vmatprep.mubr.f32.mxu0 0.0
      %2174 = vmatmul.mubr.f32.gmra.mxu0 %v1728
      %v2175 = vpop.f32.mrf.mxu0
      %v2176 = vadd.f32 %v1951, %v2175
      %v2177 = vpop.f32.mrf.mxu0
      %2178 = vmatprep.mubr.f32.mxu0 0.0
      %2179 = vmatmul.mubr.f32.gmra.mxu0 %v1729
      %v2180 = vpop.f32.mrf.mxu0
      %v2181 = vadd.f32 %v1956, %v2180
      %v2182 = vpop.f32.mrf.mxu0
      %2183 = vmatprep.mubr.f32.mxu0 0.0
      %2184 = vmatmul.mubr.f32.gmra.mxu0 %v1730
      %v2185 = vpop.f32.mrf.mxu0
      %v2186 = vadd.f32 %v1961, %v2185
      %v2187 = vpop.f32.mrf.mxu0
      %2188 = vmatprep.mubr.f32.mxu0 0.0
      %2189 = vmatmul.mubr.f32.gmra.mxu0 %v1731
      %v2190 = vpop.f32.mrf.mxu0
      %v2191 = vadd.f32 %v1966, %v2190
      %v2192 = vpop.f32.mrf.mxu0
      %2193 = vmatprep.mubr.f32.mxu0 0.0
      %2194 = vmatmul.mubr.f32.gmra.mxu0 %v1732
      %v2195 = vpop.f32.mrf.mxu0
      %v2196 = vadd.f32 %v1971, %v2195
      %v2197 = vpop.f32.mrf.mxu0
      %2198 = vmatprep.mubr.f32.mxu0 0.0
      %2199 = vmatmul.mubr.f32.gmra.mxu0 %v1733
      %v2200 = vpop.f32.mrf.mxu0
      %v2201 = vadd.f32 %v1976, %v2200
      %v2202 = vpop.f32.mrf.mxu0
      %2203 = vmatprep.mubr.f32.mxu0 0.0
      %2204 = vmatmul.mubr.f32.gmra.mxu0 %v1734
      %v2205 = vpop.f32.mrf.mxu0
      %v2206 = vadd.f32 %v1981, %v2205
      %v2207 = vpop.f32.mrf.mxu0
      %2208 = vmatprep.mubr.f32.mxu0 0.0
      %2209 = vmatmul.mubr.f32.gmra.mxu0 %v1735
      %v2210 = vpop.f32.mrf.mxu0
      %v2211 = vadd.f32 %v1986, %v2210
      %v2212 = vpop.f32.mrf.mxu0
      %2213 = vmatprep.mubr.f32.mxu0 0.0
      %2214 = vmatmul.mubr.f32.gmra.mxu0 %v1736
      %v2215 = vpop.f32.mrf.mxu0
      %v2216 = vadd.f32 %v1991, %v2215
      %v2217 = vpop.f32.mrf.mxu0
      %2218 = vmatprep.mubr.f32.mxu0 0.0
      %2219 = vmatmul.mubr.f32.gmra.mxu0 %v1737
      %v2220 = vpop.f32.mrf.mxu0
      %v2221 = vadd.f32 %v1996, %v2220
      %v2222 = vpop.f32.mrf.mxu0
      %2223 = vmatprep.mubr.f32.mxu0 0.0
      %2224 = vmatmul.mubr.f32.gmra.mxu0 %v1738
      %v2225 = vpop.f32.mrf.mxu0
      %v2226 = vadd.f32 %v2001, %v2225
      %v2227 = vpop.f32.mrf.mxu0
      %2228 = vmatprep.mubr.f32.mxu0 0.0
      %2229 = vmatmul.mubr.f32.gmra.mxu0 %v1739
      %v2230 = vpop.f32.mrf.mxu0
      %v2231 = vadd.f32 %v2006, %v2230
      %v2232 = vpop.f32.mrf.mxu0
      %2233 = vmatprep.mubr.f32.mxu0 0.0
      %2234 = vmatmul.mubr.f32.gmra.mxu0 %v1740
      %v2235 = vpop.f32.mrf.mxu0
      %v2236 = vadd.f32 %v2011, %v2235
      %v2237 = vpop.f32.mrf.mxu0
      %2238 = vdwg.mxu0
      %v2239 = vadd.f32 %v1486, %v2081
      %v2240 = vadd.f32 %v1491, %v2086
      %v2241 = vadd.f32 %v1496, %v2091
      %v2242 = vadd.f32 %v1501, %v2096
      %v2243 = vadd.f32 %v1506, %v2101
      %v2244 = vadd.f32 %v1511, %v2106
      %v2245 = vadd.f32 %v1516, %v2111
      %v2246 = vadd.f32 %v1521, %v2116
      %v2247 = vadd.f32 %v1526, %v2121
      %v2248 = vadd.f32 %v1531, %v2126
      %v2249 = vadd.f32 %v1536, %v2131
      %v2250 = vadd.f32 %v1541, %v2136
      %v2251 = vadd.f32 %v1546, %v2141
      %v2252 = vadd.f32 %v1551, %v2146
      %v2253 = vadd.f32 %v1556, %v2151
      %v2254 = vadd.f32 %v1561, %v2156
      %v2255 = vadd.f32 %v1566, %v2161
      %v2256 = vadd.f32 %v1571, %v2166
      %v2257 = vadd.f32 %v1576, %v2171
      %v2258 = vadd.f32 %v1581, %v2176
      %v2259 = vadd.f32 %v1586, %v2181
      %v2260 = vadd.f32 %v1591, %v2186
      %v2261 = vadd.f32 %v1596, %v2191
      %v2262 = vadd.f32 %v1601, %v2196
      %v2263 = vadd.f32 %v1606, %v2201
      %v2264 = vadd.f32 %v1611, %v2206
      %v2265 = vadd.f32 %v1616, %v2211
      %v2266 = vadd.f32 %v1621, %v2216
      %v2267 = vadd.f32 %v1626, %v2221
      %v2268 = vadd.f32 %v1631, %v2226
      %v2269 = vadd.f32 %v1636, %v2231
      %v2270 = vadd.f32 %v1641, %v2236
      %2271 = vst [vmem:[%s231] sm:$0xff] %v2239
      %2272 = vst [vmem:[%s231 + $0x8] sm:$0xff] %v2240
      %2273 = vst [vmem:[%s231 + $0x10] sm:$0xff] %v2241
      %2274 = vst [vmem:[%s231 + $0x18] sm:$0xff] %v2242
      %2275 = vst [vmem:[%s231 + $0x20] sm:$0xff] %v2243
      %2276 = vst [vmem:[%s231 + $0x28] sm:$0xff] %v2244
      %2277 = vst [vmem:[%s231 + $0x30] sm:$0xff] %v2245
      %2278 = vst [vmem:[%s231 + $0x38] sm:$0xff] %v2246
      %2279 = vst [vmem:[%s231 + $0x40] sm:$0xff] %v2247
      %2280 = vst [vmem:[%s231 + $0x48] sm:$0xff] %v2248
      %2281 = vst [vmem:[%s231 + $0x50] sm:$0xff] %v2249
      %2282 = vst [vmem:[%s231 + $0x58] sm:$0xff] %v2250
      %2283 = vst [vmem:[%s231 + $0x60] sm:$0xff] %v2251
      %2284 = vst [vmem:[%s231 + $0x68] sm:$0xff] %v2252
      %2285 = vst [vmem:[%s231 + $0x70] sm:$0xff] %v2253
      %2286 = vst [vmem:[%s231 + $0x78] sm:$0xff] %v2254
      %2287 = vst [vmem:[%s231 + $0x80] sm:$0xff] %v2255
      %2288 = vst [vmem:[%s231 + $0x88] sm:$0xff] %v2256
      %2289 = vst [vmem:[%s231 + $0x90] sm:$0xff] %v2257
      %2290 = vst [vmem:[%s231 + $0x98] sm:$0xff] %v2258
      %2291 = vst [vmem:[%s231 + $0xa0] sm:$0xff] %v2259
      %2292 = vst [vmem:[%s231 + $0xa8] sm:$0xff] %v2260
      %2293 = vst [vmem:[%s231 + $0xb0] sm:$0xff] %v2261
      %2294 = vst [vmem:[%s231 + $0xb8] sm:$0xff] %v2262
      %2295 = vst [vmem:[%s231 + $0xc0] sm:$0xff] %v2263
      %2296 = vst [vmem:[%s231 + $0xc8] sm:$0xff] %v2264
      %2297 = vst [vmem:[%s231 + $0xd0] sm:$0xff] %v2265
      %2298 = vst [vmem:[%s231 + $0xd8] sm:$0xff] %v2266
      %2299 = vst [vmem:[%s231 + $0xe0] sm:$0xff] %v2267
      %2300 = vst [vmem:[%s231 + $0xe8] sm:$0xff] %v2268
      %2301 = vst [vmem:[%s231 + $0xf0] sm:$0xff] %v2269
      %2302 = vst [vmem:[%s231 + $0xf8] sm:$0xff] %v2270
      %v2303 = vadd.f32 %v2239, %v2240
      %v2304 = vadd.f32 %v2303, %v2241
      %v2305 = vadd.f32 %v2304, %v2242
      %v2306 = vadd.f32 %v2305, %v2243
      %v2307 = vadd.f32 %v2306, %v2244
      %v2308 = vadd.f32 %v2307, %v2245
      %v2309 = vadd.f32 %v2308, %v2246
      %v2310 = vadd.f32 %v2309, %v2247
      %v2311 = vadd.f32 %v2310, %v2248
      %v2312 = vadd.f32 %v2311, %v2249
      %v2313 = vadd.f32 %v2312, %v2250
      %v2314 = vadd.f32 %v2313, %v2251
      %v2315 = vadd.f32 %v2314, %v2252
      %v2316 = vadd.f32 %v2315, %v2253
      %v2317 = vadd.f32 %v2316, %v2254
      %v2318 = vadd.f32 %v2317, %v2255
      %v2319 = vadd.f32 %v2318, %v2256
      %v2320 = vadd.f32 %v2319, %v2257
      %v2321 = vadd.f32 %v2320, %v2258
      %v2322 = vadd.f32 %v2321, %v2259
      %v2323 = vadd.f32 %v2322, %v2260
      %v2324 = vadd.f32 %v2323, %v2261
      %v2325 = vadd.f32 %v2324, %v2262
      %v2326 = vadd.f32 %v2325, %v2263
      %v2327 = vadd.f32 %v2326, %v2264
      %v2328 = vadd.f32 %v2327, %v2265
      %v2329 = vadd.f32 %v2328, %v2266
      %v2330 = vadd.f32 %v2329, %v2267
      %v2331 = vadd.f32 %v2330, %v2268
      %v2332 = vadd.f32 %v2331, %v2269
      %v2333 = vadd.f32 %v2332, %v2270
      %v2334 = vrot.slane %v2333, 4
      %v2335 = vadd.f32 %v2333, %v2334
      %v2336 = vrot.slane %v2335, 2
      %v2337 = vadd.f32 %v2335, %v2336
      %v2338 = vrot.slane %v2337, 1
      %v2339 = vadd.f32 %v2337, %v2338
      %v2340 = vmul.f32 %v2239, %v2239
      %v2341 = vmul.f32 %v2240, %v2240
      %v2342 = vmul.f32 %v2241, %v2241
      %v2343 = vmul.f32 %v2242, %v2242
      %v2344 = vmul.f32 %v2243, %v2243
      %v2345 = vmul.f32 %v2244, %v2244
      %v2346 = vmul.f32 %v2245, %v2245
      %v2347 = vmul.f32 %v2246, %v2246
      %v2348 = vmul.f32 %v2247, %v2247
      %v2349 = vmul.f32 %v2248, %v2248
      %v2350 = vmul.f32 %v2249, %v2249
      %v2351 = vmul.f32 %v2250, %v2250
      %v2352 = vmul.f32 %v2251, %v2251
      %v2353 = vmul.f32 %v2252, %v2252
      %v2354 = vmul.f32 %v2253, %v2253
      %v2355 = vmul.f32 %v2254, %v2254
      %v2356 = vmul.f32 %v2255, %v2255
      %v2357 = vmul.f32 %v2256, %v2256
      %v2358 = vmul.f32 %v2257, %v2257
      %v2359 = vmul.f32 %v2258, %v2258
      %v2360 = vmul.f32 %v2259, %v2259
      %v2361 = vmul.f32 %v2260, %v2260
      %v2362 = vmul.f32 %v2261, %v2261
      %v2363 = vmul.f32 %v2262, %v2262
      %v2364 = vmul.f32 %v2263, %v2263
      %v2365 = vmul.f32 %v2264, %v2264
      %v2366 = vmul.f32 %v2265, %v2265
      %v2367 = vmul.f32 %v2266, %v2266
      %v2368 = vmul.f32 %v2267, %v2267
      %v2369 = vmul.f32 %v2268, %v2268
      %v2370 = vmul.f32 %v2269, %v2269
      %v2371 = vmul.f32 %v2270, %v2270
      %v2372 = vadd.f32 %v2340, %v2341
      %v2373 = vadd.f32 %v2372, %v2342
      %v2374 = vadd.f32 %v2373, %v2343
      %v2375 = vadd.f32 %v2374, %v2344
      %v2376 = vadd.f32 %v2375, %v2345
      %v2377 = vadd.f32 %v2376, %v2346
      %v2378 = vadd.f32 %v2377, %v2347
      %v2379 = vadd.f32 %v2378, %v2348
      %v2380 = vadd.f32 %v2379, %v2349
      %v2381 = vadd.f32 %v2380, %v2350
      %v2382 = vadd.f32 %v2381, %v2351
      %v2383 = vadd.f32 %v2382, %v2352
      %v2384 = vadd.f32 %v2383, %v2353
      %v2385 = vadd.f32 %v2384, %v2354
      %v2386 = vadd.f32 %v2385, %v2355
      %v2387 = vadd.f32 %v2386, %v2356
      %v2388 = vadd.f32 %v2387, %v2357
      %v2389 = vadd.f32 %v2388, %v2358
      %v2390 = vadd.f32 %v2389, %v2359
      %v2391 = vadd.f32 %v2390, %v2360
      %v2392 = vadd.f32 %v2391, %v2361
      %v2393 = vadd.f32 %v2392, %v2362
      %v2394 = vadd.f32 %v2393, %v2363
      %v2395 = vadd.f32 %v2394, %v2364
      %v2396 = vadd.f32 %v2395, %v2365
      %v2397 = vadd.f32 %v2396, %v2366
      %v2398 = vadd.f32 %v2397, %v2367
      %v2399 = vadd.f32 %v2398, %v2368
      %v2400 = vadd.f32 %v2399, %v2369
      %v2401 = vadd.f32 %v2400, %v2370
      %v2402 = vadd.f32 %v2401, %v2371
      %v2403 = vrot.slane %v2402, 4
      %v2404 = vadd.f32 %v2402, %v2403
      %v2405 = vrot.slane %v2404, 2
      %v2406 = vadd.f32 %v2404, %v2405
      %v2407 = vrot.slane %v2406, 1
      %v2408 = vadd.f32 %v2406, %v2407
      %vm2409 = vcmask 1040384
      %v2410 = vsel %vm2409, %v2339, %v2408
      %vm2411 = vcmask 1041408
      %v2412 = vsel %vm2411, %v2410, 0.0
      %2413 = vst [vmem:[%s235] sm:$0xff] %v2412
      %p2414 = scmp.lt.s32.totalorder %s17, 1
      %s2415 = scalar_select %p2414, %s17, 1
      %s2416 = smul.addr %s2415, 32
      %s2417 = smul.addr %s2416, 8
      %s2418 = scalar_lea.vmem %s4, %s2417
      %p2419 = scmp.lt.s32.totalorder %s17, 1
      %s2420 = scalar_select %p2419, %s17, 1
      %s2421 = smul.addr %s2420, 8
      %s2422 = scalar_lea.vmem %s5, %s2421
      // Predicated region
      $region37: #{basic_block_forward.4} parent=35 // pred_check
        %p2423 = pneg %p124
      $region38: #{basic_block_forward.4} parent=35 // pred_check_branch
        %2425 = sbr.rel (%p2423) target = $region40
      $region39: #{basic_block_forward.4} parent=35 // pred_region
        _
      $region40: #{basic_block_forward.4} parent=35 // pred_fallthru
        _
      // Predicated region
      $region41: #{basic_block_forward.4} parent=35 // pred_check
        %p2426 = pneg %p150
      $region42: #{basic_block_forward.4} parent=35 // pred_check_branch
        %2428 = sbr.rel (%p2426) target = $region44
      $region43: #{basic_block_forward.4} parent=35 // pred_region
        _
      $region44: #{basic_block_forward.4} parent=35 // pred_fallthru
        _
    $region36: #{basic_block_forward.4} parent=5 // pred_fallthru
      _
    %p2429 = scmp.le.s32.totalorder 2, %s12
    // Predicated region
    $region45: #{basic_block_forward.4} parent=5 // pred_check
      %p2430 = pneg %p2429
    $region46: #{basic_block_forward.4} parent=5 // pred_check_branch
      %2432 = sbr.rel (%p2430) target = $region48
    $region47: #{basic_block_forward.4} parent=5 // pred_region
      %s2433 = ssub.s32 %s12, 2
      // Predicated region
      $region49: #{basic_block_forward.4} parent=47 // pred_check
        %p2434 = pneg %p130
      $region50: #{basic_block_forward.4} parent=47 // pred_check_branch
        %2436 = sbr.rel (%p2434) target = $region52
      $region51: #{basic_block_forward.4} parent=47 // pred_region
        %p2437 = scmp.lt.s32.totalorder %s18, 1
        %s2438 = scalar_select %p2437, %s18, 1
        %s2439 = smul.addr %s2438, 32
        %s2440 = smul.addr %s2439, 8
        %s2441 = scalar_lea.vmem %s4, %s2440
      $region52: #{basic_block_forward.4} parent=47 // pred_fallthru
        _
      // Predicated region
      $region53: #{basic_block_forward.4} parent=47 // pred_check
        %p2442 = pneg %p156
      $region54: #{basic_block_forward.4} parent=47 // pred_check_branch
        %2444 = sbr.rel (%p2442) target = $region56
      $region55: #{basic_block_forward.4} parent=47 // pred_region
        %p2445 = scmp.lt.s32.totalorder %s18, 1
        %s2446 = scalar_select %p2445, %s18, 1
        %s2447 = smul.addr %s2446, 8
        %s2448 = scalar_lea.vmem %s5, %s2447
      $region56: #{basic_block_forward.4} parent=47 // pred_fallthru
        _
    $region48: #{basic_block_forward.4} parent=5 // pred_fallthru
      _
  $region6: #{basic_block_forward.4} parent=0 // loop_footer
    %s16 = sadd.s32 1, %s12
  $region7: #{basic_block_forward.4} parent=0 // loop_footer_branch
    %11 = sbr.rel target = $region3
  $region8: #{basic_block_forward.4} parent=0 // loop_exit
    _

</llo_original>
